<compile_context>
chip_gen: v7x
topology: tpu7x:2x2x1
jax: 0.10.0
libtpu: 0.0.40
codegen_flags: <defaults>
</compile_context>

<pallas_src>
import functools

import jax
import jax.numpy as jnp
from jax import lax
from jax.experimental import pallas as pl
from jax.experimental.pallas import tpu as pltpu

EPS = 1e-5
SLOPE = 0.2  # LeakyReLU negative slope
VMEM_LIMIT = 48 << 20  # <= 64 MiB physical VMEM per TC on v7x


def _round_up(x, m):
    return (x + m - 1) // m * m


def _choose_tm(m, cout):
    """M-tile size: bigger tiles for the narrow-Cout layer, 8-aligned for tiny M."""
    if m >= 512 and cout <= 128:
        return 512
    if m >= 256:
        return 256
    return _round_up(max(m, 8), 8)


# ----------------------------------------------------------------------------
# Phase 1: tiled matmul + bias + LeakyReLU, with per-tile partial BN statistics.
# ----------------------------------------------------------------------------
def _matmul_lrelu_stats_kernel(p_ref, w_ref, b_ref, y_ref, s_ref, *, tm, m_true):
    # p_ref: (tm, K)   bf16 im2col patches tile
    # w_ref: (K, Cout) bf16 reshaped conv weights (resident across the grid)
    # b_ref: (1, Cout) f32 conv bias
    # y_ref: (tm, Cout) f32 pre-BN activations (LeakyReLU output)
    # s_ref: (1, 2, Cout) f32 per-tile [sum, sum_sq] over valid rows
    acc = jnp.dot(p_ref[...], w_ref[...], preferred_element_type=jnp.float32)
    acc = acc + b_ref[...]
    y = jnp.where(acc >= 0, acc, SLOPE * acc)  # LeakyReLU(0.2), f32 on the VPU
    y_ref[...] = y

    # Mask padded rows (M padded up to a multiple of tm) out of the statistics.
    row = lax.broadcasted_iota(jnp.int32, (tm, 1), 0) + pl.program_id(0) * tm
    mask = (row < m_true).astype(jnp.float32)  # (tm, 1)
    ym = y * mask
    s1 = jnp.sum(ym, axis=0, keepdims=True)        # (1, Cout)
    s2 = jnp.sum(ym * ym, axis=0, keepdims=True)   # (1, Cout)
    s_ref[...] = jnp.concatenate([s1, s2], axis=0).reshape(1, 2, s1.shape[-1])


# ----------------------------------------------------------------------------
# Phase 2: tiled per-channel normalization  (y - mean) * rsqrt(var + eps).
# ----------------------------------------------------------------------------
def _normalize_kernel(y_ref, mean_ref, rstd_ref, o_ref):
    o_ref[...] = ((y_ref[...] - mean_ref[...]) * rstd_ref[...]).astype(o_ref.dtype)


def conv_lrelu_bn(patches, w2d, b2d, out_dtype):
    """patches: (M, K) bf16, w2d: (K, Cout) bf16, b2d: (1, Cout) f32.

    Returns (M, Cout) in `out_dtype` (conv + LeakyReLU + training-mode BN).
    """
    m_true, K = patches.shape
    Cout = w2d.shape[1]
    tm = _choose_tm(m_true, Cout)
    m_pad = _round_up(m_true, tm)
    if m_pad != m_true:
        patches = jnp.pad(patches, ((0, m_pad - m_true), (0, 0)))
    grid = m_pad // tm

    kernel = functools.partial(_matmul_lrelu_stats_kernel, tm=tm, m_true=m_true)
    y, stats = pl.pallas_call(
        kernel,
        out_shape=(
            jax.ShapeDtypeStruct((m_pad, Cout), jnp.float32),
            jax.ShapeDtypeStruct((grid, 2, Cout), jnp.float32),
        ),
        grid=(grid,),
        in_specs=[
            pl.BlockSpec((tm, K), lambda i: (i, 0)),      # streamed patch tiles
            pl.BlockSpec((K, Cout), lambda i: (0, 0)),    # resident weights
            pl.BlockSpec((1, Cout), lambda i: (0, 0)),    # resident bias
        ],
        out_specs=(
            pl.BlockSpec((tm, Cout), lambda i: (i, 0)),
            pl.BlockSpec((1, 2, Cout), lambda i: (i, 0, 0)),
        ),
        compiler_params=pltpu.CompilerParams(
            dimension_semantics=("parallel",),
            vmem_limit_bytes=VMEM_LIMIT,
        ),
    )(patches, w2d, b2d)

    # Finalize batch statistics (tiny: (grid, 2, Cout) -> (Cout,)).
    s = jnp.sum(stats, axis=0)                                    # (2, Cout)
    mean = s[0] / m_true
    var = jnp.maximum(s[1] / m_true - mean * mean, 0.0)           # biased variance
    rstd = lax.rsqrt(var + EPS)

    out = pl.pallas_call(
        _normalize_kernel,
        out_shape=jax.ShapeDtypeStruct((m_pad, Cout), out_dtype),
        grid=(grid,),
        in_specs=[
            pl.BlockSpec((tm, Cout), lambda i: (i, 0)),
            pl.BlockSpec((1, Cout), lambda i: (0, 0)),
            pl.BlockSpec((1, Cout), lambda i: (0, 0)),
        ],
        out_specs=pl.BlockSpec((tm, Cout), lambda i: (i, 0)),
        compiler_params=pltpu.CompilerParams(
            dimension_semantics=("parallel",),
            vmem_limit_bytes=VMEM_LIMIT,
        ),
    )(y, mean.reshape(1, Cout), rstd.reshape(1, Cout))

    return out[:m_true]


def im2col_nhwc(x, k=4, s=2, p=1):
    """x: (B, H, W, C) -> patches (B*Ho*Wo, k*k*C), plus Ho, Wo. Keeps x's dtype."""
    B, H, W, C = x.shape
    xp = jnp.pad(x, ((0, 0), (p, p), (p, p), (0, 0)))
    Ho = (H + 2 * p - k) // s + 1
    Wo = (W + 2 * p - k) // s + 1
    cols = []
    for di in range(k):
        for dj in range(k):
            cols.append(
                lax.slice(
                    xp,
                    (0, di, dj, 0),
                    (B, di + (Ho - 1) * s + 1, dj + (Wo - 1) * s + 1, C),
                    (1, s, s, 1),
                )
            )  # each (B, Ho, Wo, C)
    pat = jnp.stack(cols, axis=3)  # (B, Ho, Wo, k*k, C) -- index (di*k + dj)
    return pat.reshape(B * Ho * Wo, k * k * C), Ho, Wo
    # TODO(synk): build the (tm, K) patch block inside the kernel with strided
    # DMA reads of the padded NHWC tile to avoid materializing the 4x-blown-up
    # im2col tensor in HBM.


def layer(x_nhwc, w, b, *, final=False):
    """One conv(k4,s2,p1) + LeakyReLU(0.2) + BatchNorm block.

    w: (Cout, Cin, 4, 4) in PyTorch layout, b: (Cout,)
    Returns NHWC output (B, Ho, Wo, Cout), bf16 for intermediate layers,
    f32 for the final layer.
    """
    Cout, Cin, kH, kW = w.shape
    B = x_nhwc.shape[0]
    # bf16 patches: MXU-native and half the HBM traffic of the im2col tensor.
    patches, Ho, Wo = im2col_nhwc(x_nhwc.astype(jnp.bfloat16), k=kH, s=2, p=1)
    # Reorder weights so K index matches patch layout: (di*k + dj)*Cin + cin.
    w2d = (
        jnp.transpose(w, (2, 3, 1, 0))
        .reshape(kH * kW * Cin, Cout)
        .astype(jnp.bfloat16)
    )
    b2d = b.reshape(1, Cout).astype(jnp.float32)
    out_dtype = jnp.float32 if final else jnp.bfloat16
    out = conv_lrelu_bn(patches, w2d, b2d, out_dtype)  # (M, Cout)
    return out.reshape(B, Ho, Wo, Cout)


def init_params(key, in_channels):
    """Deterministic params matching the module __init__ (std=0.001, bias=0)."""
    k1, k2, k3 = jax.random.split(key, 3)
    params = {
        "w1": 0.001 * jax.random.normal(k1, (512, in_channels, 4, 4), jnp.float32),
        "b1": jnp.zeros((512,), jnp.float32),
        "w2": 0.001 * jax.random.normal(k2, (256, 512, 4, 4), jnp.float32),
        "b2": jnp.zeros((256,), jnp.float32),
        "w3": 0.001 * jax.random.normal(k3, (128, 256, 4, 4), jnp.float32),
        "b3": jnp.zeros((128,), jnp.float32),
    }
    return params


def da_feature_discriminator_v4(x_nchw, params):
    """Forward pass. x_nchw: (B, C, H, W). Returns (B, 128, H/8, W/8) f32."""
    x = jnp.transpose(x_nchw, (0, 2, 3, 1))  # NCHW -> NHWC
    x = layer(x, params["w1"], params["b1"])
    x = layer(x, params["w2"], params["b2"])
    x = layer(x, params["w3"], params["b3"], final=True)
    return jnp.transpose(x, (0, 3, 1, 2))  # NHWC -> NCHW


if __name__ == "__main__":
    key = jax.random.PRNGKey(0)
    kx, kp = jax.random.split(key)

    B, C, H, W = 2, 4, 16, 16
    x = jax.random.normal(kx, (B, C, H, W), jnp.float32)
    params = init_params(kp, in_channels=C)

    out = jax.jit(da_feature_discriminator_v4)(x, params)
    out = jax.block_until_ready(out)

    assert out.shape == (B, 128, H // 8, W // 8), out.shape
    assert out.dtype == jnp.float32, out.dtype
    assert jnp.all(jnp.isfinite(out))
    print("KERNEL_OK")
</pallas_src>

<mosaic_0001>
module attributes {stable_mosaic.version = 11 : i64} {
  func.func @_matmul_lrelu_stats_kernel(%arg0: i32, %arg1: memref<128x64xbf16, #tpu.memory_space<vmem>>, %arg2: memref<64x512xbf16, #tpu.memory_space<vmem>>, %arg3: memref<1x512xf32, #tpu.memory_space<vmem>>, %arg4: memref<128x512xf32, #tpu.memory_space<vmem>>, %arg5: memref<1x2x512xf32, #tpu.memory_space<vmem>>) attributes {dimension_semantics = [#tpu.dimension_semantics<parallel>], iteration_bounds = array<i64: 1>, scalar_prefetch = 0 : i64, scratch_operands = 0 : i64, tpu.core_type = #tpu.core_type<tc>, window_params = [{transform_indices = @transform_0, window_bounds = array<i64: 128, 64>}, {pipeline_mode = #tpu.pipeline_mode<synchronous>, transform_indices = @transform_1, window_bounds = array<i64: 64, 512>}, {pipeline_mode = #tpu.pipeline_mode<synchronous>, transform_indices = @transform_2, window_bounds = array<i64: 1, 512>}, {transform_indices = @transform_3, window_bounds = array<i64: 128, 512>}, {transform_indices = @transform_4, window_bounds = array<i64: 1, 2, 512>}]} {
    %c0 = arith.constant 0 : index
    %c0_0 = arith.constant 0 : index
    %0 = vector.load %arg1[%c0, %c0_0] : memref<128x64xbf16, #tpu.memory_space<vmem>>, vector<128x64xbf16>
    %c0_1 = arith.constant 0 : index
    %c0_2 = arith.constant 0 : index
    %1 = vector.load %arg2[%c0_1, %c0_2] : memref<64x512xbf16, #tpu.memory_space<vmem>>, vector<64x512xbf16>
    %cst = arith.constant dense<0.000000e+00> : vector<128x512xf32>
    %2 = tpu.matmul %0, %1, %cst {dimension_numbers = #tpu.dot_dimension_numbers<[1], [0], [0], [1], [0, 0, 1, 1], [], []>} : vector<128x64xbf16>, vector<64x512xbf16>, vector<128x512xf32> -> vector<128x512xf32>
    %c0_3 = arith.constant 0 : index
    %c0_4 = arith.constant 0 : index
    %3 = vector.load %arg3[%c0_3, %c0_4] : memref<1x512xf32, #tpu.memory_space<vmem>>, vector<1x512xf32>
    %4 = vector.broadcast %3 : vector<1x512xf32> to vector<128x512xf32>
    %5 = arith.addf %2, %4 : vector<128x512xf32>
    %cst_5 = arith.constant 0.000000e+00 : f32
    %6 = vector.broadcast %cst_5 : f32 to vector<128x512xf32>
    %7 = arith.cmpf oge, %5, %6 : vector<128x512xf32>
    %cst_6 = arith.constant 2.000000e-01 : f32
    %8 = vector.broadcast %cst_6 : f32 to vector<128x512xf32>
    %9 = arith.mulf %8, %5 : vector<128x512xf32>
    %10 = arith.select %7, %5, %9 : vector<128x512xi1>, vector<128x512xf32>
    %c0_7 = arith.constant 0 : index
    %c0_8 = arith.constant 0 : index
    %11 = vector.load %arg4[%c0_7, %c0_8] : memref<128x512xf32, #tpu.memory_space<vmem>>, vector<128x512xf32>
    tpu.vector_store %arg4[%c0_7, %c0_8], %10 {strides = array<i32>} : memref<128x512xf32, #tpu.memory_space<vmem>>, vector<128x512xf32>,
    %12 = tpu.iota {dimensions = array<i32: 0>} : vector<128x1xi32>
    %c128_i32 = arith.constant 128 : i32
    %13 = arith.muli %arg0, %c128_i32 : i32
    %14 = vector.broadcast %13 : i32 to vector<128x1xi32>
    %15 = arith.addi %12, %14 : vector<128x1xi32>
    %c128_i32_9 = arith.constant 128 : i32
    %16 = vector.broadcast %c128_i32_9 : i32 to vector<128x1xi32>
    %17 = arith.cmpi slt, %15, %16 : vector<128x1xi32>
    %18 = arith.extui %17 : vector<128x1xi1> to vector<128x1xi32>
    %19 = arith.sitofp %18 : vector<128x1xi32> to vector<128x1xf32>
    %20 = vector.broadcast %19 : vector<128x1xf32> to vector<128x512xf32>
    %21 = arith.mulf %10, %20 : vector<128x512xf32>
    %cst_10 = arith.constant dense<0.000000e+00> : vector<512xf32>
    %22 = vector.multi_reduction <add>, %21, %cst_10 [0] : vector<128x512xf32> to vector<512xf32>
    %23 = vector.shape_cast %22 : vector<512xf32> to vector<1x512xf32>
    %24 = arith.mulf %21, %21 : vector<128x512xf32>
    %cst_11 = arith.constant dense<0.000000e+00> : vector<512xf32>
    %25 = vector.multi_reduction <add>, %24, %cst_11 [0] : vector<128x512xf32> to vector<512xf32>
    %26 = vector.shape_cast %25 : vector<512xf32> to vector<1x512xf32>
    %27 = tpu.concatenate %23, %26 in 0 : vector<1x512xf32>, vector<1x512xf32> -> vector<2x512xf32>
    %28 = vector.shape_cast %27 : vector<2x512xf32> to vector<1x2x512xf32>
    %c0_12 = arith.constant 0 : index
    %c0_13 = arith.constant 0 : index
    %c0_14 = arith.constant 0 : index
    %29 = vector.load %arg5[%c0_12, %c0_13, %c0_14] : memref<1x2x512xf32, #tpu.memory_space<vmem>>, vector<1x2x512xf32>
    tpu.vector_store %arg5[%c0_12, %c0_13, %c0_14], %28 {strides = array<i32>} : memref<1x2x512xf32, #tpu.memory_space<vmem>>, vector<1x2x512xf32>,
    return
  }
  func.func @transform_0(%arg0: i32) -> (i32, i32) {
    %c0_i32 = arith.constant 0 : i32
    %c0_i32_0 = arith.constant 0 : i32
    return %arg0, %c0_i32 : i32, i32
  }
  func.func @transform_1(%arg0: i32) -> (i32, i32) {
    %c0_i32 = arith.constant 0 : i32
    %c0_i32_0 = arith.constant 0 : i32
    %c0_i32_1 = arith.constant 0 : i32
    return %c0_i32, %c0_i32_0 : i32, i32
  }
  func.func @transform_2(%arg0: i32) -> (i32, i32) {
    %c0_i32 = arith.constant 0 : i32
    %c0_i32_0 = arith.constant 0 : i32
    %c0_i32_1 = arith.constant 0 : i32
    return %c0_i32, %c0_i32_0 : i32, i32
  }
  func.func @transform_3(%arg0: i32) -> (i32, i32) {
    %c0_i32 = arith.constant 0 : i32
    %c0_i32_0 = arith.constant 0 : i32
    return %arg0, %c0_i32 : i32, i32
  }
  func.func @transform_4(%arg0: i32) -> (i32, i32, i32) {
    %c0_i32 = arith.constant 0 : i32
    %c0_i32_0 = arith.constant 0 : i32
    %c0_i32_1 = arith.constant 0 : i32
    return %arg0, %c0_i32, %c0_i32_0 : i32, i32, i32
  }
}

module attributes {stable_mosaic.version = 11 : i64} {
  func.func @_normalize_kernel(%arg0: i32, %arg1: memref<128x512xf32, #tpu.memory_space<vmem>>, %arg2: memref<1x512xf32, #tpu.memory_space<vmem>>, %arg3: memref<1x512xf32, #tpu.memory_space<vmem>>, %arg4: memref<128x512xbf16, #tpu.memory_space<vmem>>) attributes {dimension_semantics = [#tpu.dimension_semantics<parallel>], iteration_bounds = array<i64: 1>, scalar_prefetch = 0 : i64, scratch_operands = 0 : i64, tpu.core_type = #tpu.core_type<tc>, window_params = [{transform_indices = @transform_0, window_bounds = array<i64: 128, 512>}, {pipeline_mode = #tpu.pipeline_mode<synchronous>, transform_indices = @transform_1, window_bounds = array<i64: 1, 512>}, {pipeline_mode = #tpu.pipeline_mode<synchronous>, transform_indices = @transform_2, window_bounds = array<i64: 1, 512>}, {transform_indices = @transform_3, window_bounds = array<i64: 128, 512>}]} {
    %c0 = arith.constant 0 : index
    %c0_0 = arith.constant 0 : index
    %0 = vector.load %arg1[%c0, %c0_0] : memref<128x512xf32, #tpu.memory_space<vmem>>, vector<128x512xf32>
    %c0_1 = arith.constant 0 : index
    %c0_2 = arith.constant 0 : index
    %1 = vector.load %arg2[%c0_1, %c0_2] : memref<1x512xf32, #tpu.memory_space<vmem>>, vector<1x512xf32>
    %2 = vector.broadcast %1 : vector<1x512xf32> to vector<128x512xf32>
    %3 = arith.subf %0, %2 : vector<128x512xf32>
    %c0_3 = arith.constant 0 : index
    %c0_4 = arith.constant 0 : index
    %4 = vector.load %arg3[%c0_3, %c0_4] : memref<1x512xf32, #tpu.memory_space<vmem>>, vector<1x512xf32>
    %5 = vector.broadcast %4 : vector<1x512xf32> to vector<128x512xf32>
    %6 = arith.mulf %3, %5 : vector<128x512xf32>
    %7 = arith.truncf %6 : vector<128x512xf32> to vector<128x512xbf16>
    %c0_5 = arith.constant 0 : index
    %c0_6 = arith.constant 0 : index
    %8 = vector.load %arg4[%c0_5, %c0_6] : memref<128x512xbf16, #tpu.memory_space<vmem>>, vector<128x512xbf16>
    tpu.vector_store %arg4[%c0_5, %c0_6], %7 {strides = array<i32>} : memref<128x512xbf16, #tpu.memory_space<vmem>>, vector<128x512xbf16>,
    return
  }
  func.func @transform_0(%arg0: i32) -> (i32, i32) {
    %c0_i32 = arith.constant 0 : i32
    %c0_i32_0 = arith.constant 0 : i32
    return %arg0, %c0_i32 : i32, i32
  }
  func.func @transform_1(%arg0: i32) -> (i32, i32) {
    %c0_i32 = arith.constant 0 : i32
    %c0_i32_0 = arith.constant 0 : i32
    %c0_i32_1 = arith.constant 0 : i32
    return %c0_i32, %c0_i32_0 : i32, i32
  }
  func.func @transform_2(%arg0: i32) -> (i32, i32) {
    %c0_i32 = arith.constant 0 : i32
    %c0_i32_0 = arith.constant 0 : i32
    %c0_i32_1 = arith.constant 0 : i32
    return %c0_i32, %c0_i32_0 : i32, i32
  }
  func.func @transform_3(%arg0: i32) -> (i32, i32) {
    %c0_i32 = arith.constant 0 : i32
    %c0_i32_0 = arith.constant 0 : i32
    return %arg0, %c0_i32 : i32, i32
  }
}

module attributes {stable_mosaic.version = 11 : i64} {
  func.func @_matmul_lrelu_stats_kernel(%arg0: i32, %arg1: memref<32x8192xbf16, #tpu.memory_space<vmem>>, %arg2: memref<8192x256xbf16, #tpu.memory_space<vmem>>, %arg3: memref<1x256xf32, #tpu.memory_space<vmem>>, %arg4: memref<32x256xf32, #tpu.memory_space<vmem>>, %arg5: memref<1x2x256xf32, #tpu.memory_space<vmem>>) attributes {dimension_semantics = [#tpu.dimension_semantics<parallel>], iteration_bounds = array<i64: 1>, scalar_prefetch = 0 : i64, scratch_operands = 0 : i64, tpu.core_type = #tpu.core_type<tc>, window_params = [{transform_indices = @transform_0, window_bounds = array<i64: 32, 8192>}, {pipeline_mode = #tpu.pipeline_mode<synchronous>, transform_indices = @transform_1, window_bounds = array<i64: 8192, 256>}, {pipeline_mode = #tpu.pipeline_mode<synchronous>, transform_indices = @transform_2, window_bounds = array<i64: 1, 256>}, {transform_indices = @transform_3, window_bounds = array<i64: 32, 256>}, {transform_indices = @transform_4, window_bounds = array<i64: 1, 2, 256>}]} {
    %c0 = arith.constant 0 : index
    %c0_0 = arith.constant 0 : index
    %0 = vector.load %arg1[%c0, %c0_0] : memref<32x8192xbf16, #tpu.memory_space<vmem>>, vector<32x8192xbf16>
    %c0_1 = arith.constant 0 : index
    %c0_2 = arith.constant 0 : index
    %1 = vector.load %arg2[%c0_1, %c0_2] : memref<8192x256xbf16, #tpu.memory_space<vmem>>, vector<8192x256xbf16>
    %cst = arith.constant dense<0.000000e+00> : vector<32x256xf32>
    %2 = tpu.matmul %0, %1, %cst {dimension_numbers = #tpu.dot_dimension_numbers<[1], [0], [0], [1], [0, 0, 1, 1], [], []>} : vector<32x8192xbf16>, vector<8192x256xbf16>, vector<32x256xf32> -> vector<32x256xf32>
    %c0_3 = arith.constant 0 : index
    %c0_4 = arith.constant 0 : index
    %3 = vector.load %arg3[%c0_3, %c0_4] : memref<1x256xf32, #tpu.memory_space<vmem>>, vector<1x256xf32>
    %4 = vector.broadcast %3 : vector<1x256xf32> to vector<32x256xf32>
    %5 = arith.addf %2, %4 : vector<32x256xf32>
    %cst_5 = arith.constant 0.000000e+00 : f32
    %6 = vector.broadcast %cst_5 : f32 to vector<32x256xf32>
    %7 = arith.cmpf oge, %5, %6 : vector<32x256xf32>
    %cst_6 = arith.constant 2.000000e-01 : f32
    %8 = vector.broadcast %cst_6 : f32 to vector<32x256xf32>
    %9 = arith.mulf %8, %5 : vector<32x256xf32>
    %10 = arith.select %7, %5, %9 : vector<32x256xi1>, vector<32x256xf32>
    %c0_7 = arith.constant 0 : index
    %c0_8 = arith.constant 0 : index
    %11 = vector.load %arg4[%c0_7, %c0_8] : memref<32x256xf32, #tpu.memory_space<vmem>>, vector<32x256xf32>
    tpu.vector_store %arg4[%c0_7, %c0_8], %10 {strides = array<i32>} : memref<32x256xf32, #tpu.memory_space<vmem>>, vector<32x256xf32>,
    %12 = tpu.iota {dimensions = array<i32: 0>} : vector<32x1xi32>
    %c32_i32 = arith.constant 32 : i32
    %13 = arith.muli %arg0, %c32_i32 : i32
    %14 = vector.broadcast %13 : i32 to vector<32x1xi32>
    %15 = arith.addi %12, %14 : vector<32x1xi32>
    %c32_i32_9 = arith.constant 32 : i32
    %16 = vector.broadcast %c32_i32_9 : i32 to vector<32x1xi32>
    %17 = arith.cmpi slt, %15, %16 : vector<32x1xi32>
    %18 = arith.extui %17 : vector<32x1xi1> to vector<32x1xi32>
    %19 = arith.sitofp %18 : vector<32x1xi32> to vector<32x1xf32>
    %20 = vector.broadcast %19 : vector<32x1xf32> to vector<32x256xf32>
    %21 = arith.mulf %10, %20 : vector<32x256xf32>
    %cst_10 = arith.constant dense<0.000000e+00> : vector<256xf32>
    %22 = vector.multi_reduction <add>, %21, %cst_10 [0] : vector<32x256xf32> to vector<256xf32>
    %23 = vector.shape_cast %22 : vector<256xf32> to vector<1x256xf32>
    %24 = arith.mulf %21, %21 : vector<32x256xf32>
    %cst_11 = arith.constant dense<0.000000e+00> : vector<256xf32>
    %25 = vector.multi_reduction <add>, %24, %cst_11 [0] : vector<32x256xf32> to vector<256xf32>
    %26 = vector.shape_cast %25 : vector<256xf32> to vector<1x256xf32>
    %27 = tpu.concatenate %23, %26 in 0 : vector<1x256xf32>, vector<1x256xf32> -> vector<2x256xf32>
    %28 = vector.shape_cast %27 : vector<2x256xf32> to vector<1x2x256xf32>
    %c0_12 = arith.constant 0 : index
    %c0_13 = arith.constant 0 : index
    %c0_14 = arith.constant 0 : index
    %29 = vector.load %arg5[%c0_12, %c0_13, %c0_14] : memref<1x2x256xf32, #tpu.memory_space<vmem>>, vector<1x2x256xf32>
    tpu.vector_store %arg5[%c0_12, %c0_13, %c0_14], %28 {strides = array<i32>} : memref<1x2x256xf32, #tpu.memory_space<vmem>>, vector<1x2x256xf32>,
    return
  }
  func.func @transform_0(%arg0: i32) -> (i32, i32) {
    %c0_i32 = arith.constant 0 : i32
    %c0_i32_0 = arith.constant 0 : i32
    return %arg0, %c0_i32 : i32, i32
  }
  func.func @transform_1(%arg0: i32) -> (i32, i32) {
    %c0_i32 = arith.constant 0 : i32
    %c0_i32_0 = arith.constant 0 : i32
    %c0_i32_1 = arith.constant 0 : i32
    return %c0_i32, %c0_i32_0 : i32, i32
  }
  func.func @transform_2(%arg0: i32) -> (i32, i32) {
    %c0_i32 = arith.constant 0 : i32
    %c0_i32_0 = arith.constant 0 : i32
    %c0_i32_1 = arith.constant 0 : i32
    return %c0_i32, %c0_i32_0 : i32, i32
  }
  func.func @transform_3(%arg0: i32) -> (i32, i32) {
    %c0_i32 = arith.constant 0 : i32
    %c0_i32_0 = arith.constant 0 : i32
    return %arg0, %c0_i32 : i32, i32
  }
  func.func @transform_4(%arg0: i32) -> (i32, i32, i32) {
    %c0_i32 = arith.constant 0 : i32
    %c0_i32_0 = arith.constant 0 : i32
    %c0_i32_1 = arith.constant 0 : i32
    return %arg0, %c0_i32, %c0_i32_0 : i32, i32, i32
  }
}

module attributes {stable_mosaic.version = 11 : i64} {
  func.func @_normalize_kernel(%arg0: i32, %arg1: memref<32x256xf32, #tpu.memory_space<vmem>>, %arg2: memref<1x256xf32, #tpu.memory_space<vmem>>, %arg3: memref<1x256xf32, #tpu.memory_space<vmem>>, %arg4: memref<32x256xbf16, #tpu.memory_space<vmem>>) attributes {dimension_semantics = [#tpu.dimension_semantics<parallel>], iteration_bounds = array<i64: 1>, scalar_prefetch = 0 : i64, scratch_operands = 0 : i64, tpu.core_type = #tpu.core_type<tc>, window_params = [{transform_indices = @transform_0, window_bounds = array<i64: 32, 256>}, {pipeline_mode = #tpu.pipeline_mode<synchronous>, transform_indices = @transform_1, window_bounds = array<i64: 1, 256>}, {pipeline_mode = #tpu.pipeline_mode<synchronous>, transform_indices = @transform_2, window_bounds = array<i64: 1, 256>}, {transform_indices = @transform_3, window_bounds = array<i64: 32, 256>}]} {
    %c0 = arith.constant 0 : index
    %c0_0 = arith.constant 0 : index
    %0 = vector.load %arg1[%c0, %c0_0] : memref<32x256xf32, #tpu.memory_space<vmem>>, vector<32x256xf32>
    %c0_1 = arith.constant 0 : index
    %c0_2 = arith.constant 0 : index
    %1 = vector.load %arg2[%c0_1, %c0_2] : memref<1x256xf32, #tpu.memory_space<vmem>>, vector<1x256xf32>
    %2 = vector.broadcast %1 : vector<1x256xf32> to vector<32x256xf32>
    %3 = arith.subf %0, %2 : vector<32x256xf32>
    %c0_3 = arith.constant 0 : index
    %c0_4 = arith.constant 0 : index
    %4 = vector.load %arg3[%c0_3, %c0_4] : memref<1x256xf32, #tpu.memory_space<vmem>>, vector<1x256xf32>
    %5 = vector.broadcast %4 : vector<1x256xf32> to vector<32x256xf32>
    %6 = arith.mulf %3, %5 : vector<32x256xf32>
    %7 = arith.truncf %6 : vector<32x256xf32> to vector<32x256xbf16>
    %c0_5 = arith.constant 0 : index
    %c0_6 = arith.constant 0 : index
    %8 = vector.load %arg4[%c0_5, %c0_6] : memref<32x256xbf16, #tpu.memory_space<vmem>>, vector<32x256xbf16>
    tpu.vector_store %arg4[%c0_5, %c0_6], %7 {strides = array<i32>} : memref<32x256xbf16, #tpu.memory_space<vmem>>, vector<32x256xbf16>,
    return
  }
  func.func @transform_0(%arg0: i32) -> (i32, i32) {
    %c0_i32 = arith.constant 0 : i32
    %c0_i32_0 = arith.constant 0 : i32
    return %arg0, %c0_i32 : i32, i32
  }
  func.func @transform_1(%arg0: i32) -> (i32, i32) {
    %c0_i32 = arith.constant 0 : i32
    %c0_i32_0 = arith.constant 0 : i32
    %c0_i32_1 = arith.constant 0 : i32
    return %c0_i32, %c0_i32_0 : i32, i32
  }
  func.func @transform_2(%arg0: i32) -> (i32, i32) {
    %c0_i32 = arith.constant 0 : i32
    %c0_i32_0 = arith.constant 0 : i32
    %c0_i32_1 = arith.constant 0 : i32
    return %c0_i32, %c0_i32_0 : i32, i32
  }
  func.func @transform_3(%arg0: i32) -> (i32, i32) {
    %c0_i32 = arith.constant 0 : i32
    %c0_i32_0 = arith.constant 0 : i32
    return %arg0, %c0_i32 : i32, i32
  }
}

module attributes {stable_mosaic.version = 11 : i64} {
  func.func @_matmul_lrelu_stats_kernel(%arg0: i32, %arg1: memref<8x4096xbf16, #tpu.memory_space<vmem>>, %arg2: memref<4096x128xbf16, #tpu.memory_space<vmem>>, %arg3: memref<1x128xf32, #tpu.memory_space<vmem>>, %arg4: memref<8x128xf32, #tpu.memory_space<vmem>>, %arg5: memref<1x2x128xf32, #tpu.memory_space<vmem>>) attributes {dimension_semantics = [#tpu.dimension_semantics<parallel>], iteration_bounds = array<i64: 1>, scalar_prefetch = 0 : i64, scratch_operands = 0 : i64, tpu.core_type = #tpu.core_type<tc>, window_params = [{transform_indices = @transform_0, window_bounds = array<i64: 8, 4096>}, {pipeline_mode = #tpu.pipeline_mode<synchronous>, transform_indices = @transform_1, window_bounds = array<i64: 4096, 128>}, {pipeline_mode = #tpu.pipeline_mode<synchronous>, transform_indices = @transform_2, window_bounds = array<i64: 1, 128>}, {transform_indices = @transform_3, window_bounds = array<i64: 8, 128>}, {transform_indices = @transform_4, window_bounds = array<i64: 1, 2, 128>}]} {
    %c0 = arith.constant 0 : index
    %c0_0 = arith.constant 0 : index
    %0 = vector.load %arg1[%c0, %c0_0] : memref<8x4096xbf16, #tpu.memory_space<vmem>>, vector<8x4096xbf16>
    %c0_1 = arith.constant 0 : index
    %c0_2 = arith.constant 0 : index
    %1 = vector.load %arg2[%c0_1, %c0_2] : memref<4096x128xbf16, #tpu.memory_space<vmem>>, vector<4096x128xbf16>
    %cst = arith.constant dense<0.000000e+00> : vector<8x128xf32>
    %2 = tpu.matmul %0, %1, %cst {dimension_numbers = #tpu.dot_dimension_numbers<[1], [0], [0], [1], [0, 0, 1, 1], [], []>} : vector<8x4096xbf16>, vector<4096x128xbf16>, vector<8x128xf32> -> vector<8x128xf32>
    %c0_3 = arith.constant 0 : index
    %c0_4 = arith.constant 0 : index
    %3 = vector.load %arg3[%c0_3, %c0_4] : memref<1x128xf32, #tpu.memory_space<vmem>>, vector<1x128xf32>
    %4 = vector.broadcast %3 : vector<1x128xf32> to vector<8x128xf32>
    %5 = arith.addf %2, %4 : vector<8x128xf32>
    %cst_5 = arith.constant 0.000000e+00 : f32
    %6 = vector.broadcast %cst_5 : f32 to vector<8x128xf32>
    %7 = arith.cmpf oge, %5, %6 : vector<8x128xf32>
    %cst_6 = arith.constant 2.000000e-01 : f32
    %8 = vector.broadcast %cst_6 : f32 to vector<8x128xf32>
    %9 = arith.mulf %8, %5 : vector<8x128xf32>
    %10 = arith.select %7, %5, %9 : vector<8x128xi1>, vector<8x128xf32>
    %c0_7 = arith.constant 0 : index
    %c0_8 = arith.constant 0 : index
    %11 = vector.load %arg4[%c0_7, %c0_8] : memref<8x128xf32, #tpu.memory_space<vmem>>, vector<8x128xf32>
    tpu.vector_store %arg4[%c0_7, %c0_8], %10 {strides = array<i32>} : memref<8x128xf32, #tpu.memory_space<vmem>>, vector<8x128xf32>,
    %12 = tpu.iota {dimensions = array<i32: 0>} : vector<8x1xi32>
    %c8_i32 = arith.constant 8 : i32
    %13 = arith.muli %arg0, %c8_i32 : i32
    %14 = vector.broadcast %13 : i32 to vector<8x1xi32>
    %15 = arith.addi %12, %14 : vector<8x1xi32>
    %c8_i32_9 = arith.constant 8 : i32
    %16 = vector.broadcast %c8_i32_9 : i32 to vector<8x1xi32>
    %17 = arith.cmpi slt, %15, %16 : vector<8x1xi32>
    %18 = arith.extui %17 : vector<8x1xi1> to vector<8x1xi32>
    %19 = arith.sitofp %18 : vector<8x1xi32> to vector<8x1xf32>
    %20 = vector.broadcast %19 : vector<8x1xf32> to vector<8x128xf32>
    %21 = arith.mulf %10, %20 : vector<8x128xf32>
    %cst_10 = arith.constant dense<0.000000e+00> : vector<128xf32>
    %22 = vector.multi_reduction <add>, %21, %cst_10 [0] : vector<8x128xf32> to vector<128xf32>
    %23 = vector.shape_cast %22 : vector<128xf32> to vector<1x128xf32>
    %24 = arith.mulf %21, %21 : vector<8x128xf32>
    %cst_11 = arith.constant dense<0.000000e+00> : vector<128xf32>
    %25 = vector.multi_reduction <add>, %24, %cst_11 [0] : vector<8x128xf32> to vector<128xf32>
    %26 = vector.shape_cast %25 : vector<128xf32> to vector<1x128xf32>
    %27 = tpu.concatenate %23, %26 in 0 : vector<1x128xf32>, vector<1x128xf32> -> vector<2x128xf32>
    %28 = vector.shape_cast %27 : vector<2x128xf32> to vector<1x2x128xf32>
    %c0_12 = arith.constant 0 : index
    %c0_13 = arith.constant 0 : index
    %c0_14 = arith.constant 0 : index
    %29 = vector.load %arg5[%c0_12, %c0_13, %c0_14] : memref<1x2x128xf32, #tpu.memory_space<vmem>>, vector<1x2x128xf32>
    tpu.vector_store %arg5[%c0_12, %c0_13, %c0_14], %28 {strides = array<i32>} : memref<1x2x128xf32, #tpu.memory_space<vmem>>, vector<1x2x128xf32>,
    return
  }
  func.func @transform_0(%arg0: i32) -> (i32, i32) {
    %c0_i32 = arith.constant 0 : i32
    %c0_i32_0 = arith.constant 0 : i32
    return %arg0, %c0_i32 : i32, i32
  }
  func.func @transform_1(%arg0: i32) -> (i32, i32) {
    %c0_i32 = arith.constant 0 : i32
    %c0_i32_0 = arith.constant 0 : i32
    %c0_i32_1 = arith.constant 0 : i32
    return %c0_i32, %c0_i32_0 : i32, i32
  }
  func.func @transform_2(%arg0: i32) -> (i32, i32) {
    %c0_i32 = arith.constant 0 : i32
    %c0_i32_0 = arith.constant 0 : i32
    %c0_i32_1 = arith.constant 0 : i32
    return %c0_i32, %c0_i32_0 : i32, i32
  }
  func.func @transform_3(%arg0: i32) -> (i32, i32) {
    %c0_i32 = arith.constant 0 : i32
    %c0_i32_0 = arith.constant 0 : i32
    return %arg0, %c0_i32 : i32, i32
  }
  func.func @transform_4(%arg0: i32) -> (i32, i32, i32) {
    %c0_i32 = arith.constant 0 : i32
    %c0_i32_0 = arith.constant 0 : i32
    %c0_i32_1 = arith.constant 0 : i32
    return %arg0, %c0_i32, %c0_i32_0 : i32, i32, i32
  }
}

module attributes {stable_mosaic.version = 11 : i64} {
  func.func @_normalize_kernel(%arg0: i32, %arg1: memref<8x128xf32, #tpu.memory_space<vmem>>, %arg2: memref<1x128xf32, #tpu.memory_space<vmem>>, %arg3: memref<1x128xf32, #tpu.memory_space<vmem>>, %arg4: memref<8x128xf32, #tpu.memory_space<vmem>>) attributes {dimension_semantics = [#tpu.dimension_semantics<parallel>], iteration_bounds = array<i64: 1>, scalar_prefetch = 0 : i64, scratch_operands = 0 : i64, tpu.core_type = #tpu.core_type<tc>, window_params = [{transform_indices = @transform_0, window_bounds = array<i64: 8, 128>}, {pipeline_mode = #tpu.pipeline_mode<synchronous>, transform_indices = @transform_1, window_bounds = array<i64: 1, 128>}, {pipeline_mode = #tpu.pipeline_mode<synchronous>, transform_indices = @transform_2, window_bounds = array<i64: 1, 128>}, {transform_indices = @transform_3, window_bounds = array<i64: 8, 128>}]} {
    %c0 = arith.constant 0 : index
    %c0_0 = arith.constant 0 : index
    %0 = vector.load %arg1[%c0, %c0_0] : memref<8x128xf32, #tpu.memory_space<vmem>>, vector<8x128xf32>
    %c0_1 = arith.constant 0 : index
    %c0_2 = arith.constant 0 : index
    %1 = vector.load %arg2[%c0_1, %c0_2] : memref<1x128xf32, #tpu.memory_space<vmem>>, vector<1x128xf32>
    %2 = vector.broadcast %1 : vector<1x128xf32> to vector<8x128xf32>
    %3 = arith.subf %0, %2 : vector<8x128xf32>
    %c0_3 = arith.constant 0 : index
    %c0_4 = arith.constant 0 : index
    %4 = vector.load %arg3[%c0_3, %c0_4] : memref<1x128xf32, #tpu.memory_space<vmem>>, vector<1x128xf32>
    %5 = vector.broadcast %4 : vector<1x128xf32> to vector<8x128xf32>
    %6 = arith.mulf %3, %5 : vector<8x128xf32>
    %c0_5 = arith.constant 0 : index
    %c0_6 = arith.constant 0 : index
    %7 = vector.load %arg4[%c0_5, %c0_6] : memref<8x128xf32, #tpu.memory_space<vmem>>, vector<8x128xf32>
    tpu.vector_store %arg4[%c0_5, %c0_6], %6 {strides = array<i32>} : memref<8x128xf32, #tpu.memory_space<vmem>>, vector<8x128xf32>,
    return
  }
  func.func @transform_0(%arg0: i32) -> (i32, i32) {
    %c0_i32 = arith.constant 0 : i32
    %c0_i32_0 = arith.constant 0 : i32
    return %arg0, %c0_i32 : i32, i32
  }
  func.func @transform_1(%arg0: i32) -> (i32, i32) {
    %c0_i32 = arith.constant 0 : i32
    %c0_i32_0 = arith.constant 0 : i32
    %c0_i32_1 = arith.constant 0 : i32
    return %c0_i32, %c0_i32_0 : i32, i32
  }
  func.func @transform_2(%arg0: i32) -> (i32, i32) {
    %c0_i32 = arith.constant 0 : i32
    %c0_i32_0 = arith.constant 0 : i32
    %c0_i32_1 = arith.constant 0 : i32
    return %c0_i32, %c0_i32_0 : i32, i32
  }
  func.func @transform_3(%arg0: i32) -> (i32, i32) {
    %c0_i32 = arith.constant 0 : i32
    %c0_i32_0 = arith.constant 0 : i32
    return %arg0, %c0_i32 : i32, i32
  }
}

</mosaic_0001>

<llo_original>
// kernel: da_feature_discriminator_v4.6
$region0: #{da_feature_discriminator_v4.6}
  #allocation0 [shape = 'u32[]', space=smem, size = 0x4, offset = 0x4, fixed_abs, tag = 'smem constant byte address 0x4 - core index']
  #allocation1 [shape = 'u32[144,128]{1,0:T(1,128)}', space=vmem, size = 0x12000, scoped, tag = 'internal scratch']
  %s0 = inlined_call_operand.vmem [shape: bf16[128,64], index: 0, kind: input, shape index: {}]
  %s1 = inlined_call_operand.vmem [shape: bf16[64,512], index: 1, kind: input, shape index: {}]
  %s2 = inlined_call_operand.hbm [shape: f32[1,512], index: 2, kind: input, shape index: {}]
  %s3 = inlined_call_operand.vmem [shape: f32[128,512], index: 3, kind: output, shape index: {0}]
  %s4 = inlined_call_operand.vmem [shape: f32[1,2,512], index: 4, kind: output, shape index: {1}]
  %5 = xla_tuple %s3, %s4
  %s6 = sld [smem:[#allocation0]]
  $region34: #{da_feature_discriminator_v4.6} parent=0
    _
  %s8 = ssub.s32 1, %s6
  %s9 = scalar_select 0, %s8, %s6
  $region1: #{da_feature_discriminator_v4.6} parent=0
    #allocation2 [shape = 'u8[2048]{0}', space=vmem, size = 0x800, scoped, tag = 'input window, operand 2, single buffered']
    #allocation3 [shape = 's32[1]{0}', space=sflag, size = 0x4, scoped, tag = 'scoped memory for da_feature_discriminator_v4.6']
    %10 = vsyncpa [#allocation3], 0
    // Predicated region
    $region2: #{da_feature_discriminator_v4.6} parent=1 // pred_check
      _
    $region3: #{da_feature_discriminator_v4.6} parent=1 // pred_check_branch
      %12 = sbr.rel (0) target = $region5
    $region4: #{da_feature_discriminator_v4.6} parent=1 // pred_region
      _
    $region5: #{da_feature_discriminator_v4.6} parent=1 // pred_fallthru
      _
    // Predicated region
    $region6: #{da_feature_discriminator_v4.6} parent=1 // pred_check
      _
    $region7: #{da_feature_discriminator_v4.6} parent=1 // pred_check_branch
      %14 = sbr.rel (0) target = $region9
    $region8: #{da_feature_discriminator_v4.6} parent=1 // pred_region
      _
    $region9: #{da_feature_discriminator_v4.6} parent=1 // pred_fallthru
      _
    // Predicated region
    $region10: #{da_feature_discriminator_v4.6} parent=1 // pred_check
      _
    $region11: #{da_feature_discriminator_v4.6} parent=1 // pred_check_branch
      %16 = sbr.rel (0) target = $region13
    $region12: #{da_feature_discriminator_v4.6} parent=1 // pred_region
      %s18 = ssub.s32 64, 64
      %19 = vsyncadd [#allocation3], %s18
      %s21 = sshll.u32 [#allocation2], 4
      %s22 = int_to_ptr.vmem [resolvable:$true] %s21
      %24 = dma.hbm_to_vmem [thread:$0]  %s2, 64, %s22, [#allocation3]
    $region13: #{da_feature_discriminator_v4.6} parent=1 // pred_fallthru
      _
    // Predicated region
    $region14: #{da_feature_discriminator_v4.6} parent=1 // pred_check
      _
    $region15: #{da_feature_discriminator_v4.6} parent=1 // pred_check_branch
      %26 = sbr.rel (0) target = $region17
    $region16: #{da_feature_discriminator_v4.6} parent=1 // pred_region
      %27 = dma.done [#allocation3], 64
    $region17: #{da_feature_discriminator_v4.6} parent=1 // pred_fallthru
      _
    %v29 = vld [vmem:[%s0] sm:$0xf]
    %v30 = vld [vmem:[%s0 + $0x4] sm:$0xf]
    %v31 = vld [vmem:[%s0 + $0x8] sm:$0xf]
    %v32 = vld [vmem:[%s0 + $0xc] sm:$0xf]
    %v33 = vld [vmem:[%s0 + $0x10] sm:$0xf]
    %v34 = vld [vmem:[%s0 + $0x14] sm:$0xf]
    %v35 = vld [vmem:[%s0 + $0x18] sm:$0xf]
    %v36 = vld [vmem:[%s0 + $0x1c] sm:$0xf]
    %v37 = vld [vmem:[%s0 + $0x20] sm:$0xf]
    %v38 = vld [vmem:[%s0 + $0x24] sm:$0xf]
    %v39 = vld [vmem:[%s0 + $0x28] sm:$0xf]
    %v40 = vld [vmem:[%s0 + $0x2c] sm:$0xf]
    %v41 = vld [vmem:[%s0 + $0x30] sm:$0xf]
    %v42 = vld [vmem:[%s0 + $0x34] sm:$0xf]
    %v43 = vld [vmem:[%s0 + $0x38] sm:$0xf]
    %v44 = vld [vmem:[%s0 + $0x3c] sm:$0xf]
    %v45 = vld [vmem:[%s1] sm:$0xff]
    %v46 = vld [vmem:[%s1 + $0x8] sm:$0xff]
    %v47 = vld [vmem:[%s1 + $0x10] sm:$0xff]
    %v48 = vld [vmem:[%s1 + $0x18] sm:$0xff]
    %v49 = vld [vmem:[%s1 + $0x20] sm:$0xff]
    %v50 = vld [vmem:[%s1 + $0x28] sm:$0xff]
    %v51 = vld [vmem:[%s1 + $0x30] sm:$0xff]
    %v52 = vld [vmem:[%s1 + $0x38] sm:$0xff]
    %v53 = vld [vmem:[%s1 + $0x40] sm:$0xff]
    %v54 = vld [vmem:[%s1 + $0x48] sm:$0xff]
    %v55 = vld [vmem:[%s1 + $0x50] sm:$0xff]
    %v56 = vld [vmem:[%s1 + $0x58] sm:$0xff]
    %v57 = vld [vmem:[%s1 + $0x60] sm:$0xff]
    %v58 = vld [vmem:[%s1 + $0x68] sm:$0xff]
    %v59 = vld [vmem:[%s1 + $0x70] sm:$0xff]
    %v60 = vld [vmem:[%s1 + $0x78] sm:$0xff]
    %v61 = vld [vmem:[#allocation2] sm:$0xf]
    %v63 = vlaneseq
    %v64 = vshrl.u32 %v63, 7
    %v65 = vsub.s32 0, %v64
    %v66 = vrot.slane %v61, %v65
    %v67 = vlaneseq
    %v68 = vshrl.u32 %v67, 7
    %v69 = vsub.s32 1, %v68
    %v70 = vrot.slane %v61, %v69
    %v71 = vlaneseq
    %v72 = vshrl.u32 %v71, 7
    %v73 = vsub.s32 2, %v72
    %v74 = vrot.slane %v61, %v73
    %v75 = vlaneseq
    %v76 = vshrl.u32 %v75, 7
    %v77 = vsub.s32 3, %v76
    %v78 = vrot.slane %v61, %v77
    %v99 = vunpack.c.l.b16 %v29
    %v100 = vunpack.c.l.b16 %v30
    %v101 = vunpack.c.l.b16 %v31
    %v102 = vunpack.c.l.b16 %v32
    %v103 = vunpack.c.l.b16 %v33
    %v104 = vunpack.c.l.b16 %v34
    %v105 = vunpack.c.l.b16 %v35
    %v106 = vunpack.c.l.b16 %v36
    %v107 = vunpack.c.l.b16 %v37
    %v108 = vunpack.c.l.b16 %v38
    %v109 = vunpack.c.l.b16 %v39
    %v110 = vunpack.c.l.b16 %v40
    %v111 = vunpack.c.l.b16 %v41
    %v112 = vunpack.c.l.b16 %v42
    %v113 = vunpack.c.l.b16 %v43
    %v114 = vunpack.c.l.b16 %v44
    %v115 = vpack.c.b16 %v100, %v99
    %v116 = vpack.c.b16 %v102, %v101
    %v117 = vpack.c.b16 %v104, %v103
    %v118 = vpack.c.b16 %v106, %v105
    %v119 = vpack.c.b16 %v108, %v107
    %v120 = vpack.c.b16 %v110, %v109
    %v121 = vpack.c.b16 %v112, %v111
    %v122 = vpack.c.b16 %v114, %v113
    %v139 = vunpack.c.l.b16 %v45
    %v140 = vunpack.c.h.b16 %v45
    %v141 = vunpack.c.l.b16 %v46
    %v142 = vunpack.c.h.b16 %v46
    %v143 = vunpack.c.l.b16 %v47
    %v144 = vunpack.c.h.b16 %v47
    %v145 = vunpack.c.l.b16 %v48
    %v146 = vunpack.c.h.b16 %v48
    %v147 = vunpack.c.l.b16 %v49
    %v148 = vunpack.c.h.b16 %v49
    %v149 = vunpack.c.l.b16 %v50
    %v150 = vunpack.c.h.b16 %v50
    %v151 = vunpack.c.l.b16 %v51
    %v152 = vunpack.c.h.b16 %v51
    %v153 = vunpack.c.l.b16 %v52
    %v154 = vunpack.c.h.b16 %v52
    %v155 = vunpack.c.l.b16 %v53
    %v156 = vunpack.c.h.b16 %v53
    %v157 = vunpack.c.l.b16 %v54
    %v158 = vunpack.c.h.b16 %v54
    %v159 = vunpack.c.l.b16 %v55
    %v160 = vunpack.c.h.b16 %v55
    %v161 = vunpack.c.l.b16 %v56
    %v162 = vunpack.c.h.b16 %v56
    %v163 = vunpack.c.l.b16 %v57
    %v164 = vunpack.c.h.b16 %v57
    %v165 = vunpack.c.l.b16 %v58
    %v166 = vunpack.c.h.b16 %v58
    %v167 = vunpack.c.l.b16 %v59
    %v168 = vunpack.c.h.b16 %v59
    %v169 = vunpack.c.l.b16 %v60
    %v170 = vunpack.c.h.b16 %v60
    %v171 = vpack.c.b16 %v143, %v139
    %v172 = vpack.c.b16 %v144, %v140
    %v173 = vpack.c.b16 %v145, %v141
    %v174 = vpack.c.b16 %v146, %v142
    %v175 = vpack.c.b16 %v151, %v147
    %v176 = vpack.c.b16 %v152, %v148
    %v177 = vpack.c.b16 %v153, %v149
    %v178 = vpack.c.b16 %v154, %v150
    %v179 = vpack.c.b16 %v159, %v155
    %v180 = vpack.c.b16 %v160, %v156
    %v181 = vpack.c.b16 %v161, %v157
    %v182 = vpack.c.b16 %v162, %v158
    %v183 = vpack.c.b16 %v167, %v163
    %v184 = vpack.c.b16 %v168, %v164
    %v185 = vpack.c.b16 %v169, %v165
    %v186 = vpack.c.b16 %v170, %v166
    %vm203 = vcmask 523264
    %v205 = vsel %vm203, %v115, 0
    %v208 = vsel %vm203, %v116, 0
    %v211 = vsel %vm203, %v117, 0
    %v214 = vsel %vm203, %v118, 0
    %v217 = vsel %vm203, %v119, 0
    %v220 = vsel %vm203, %v120, 0
    %v223 = vsel %vm203, %v121, 0
    %v226 = vsel %vm203, %v122, 0
    %228 = vmatprep.subr.bf16.mxu0 %v172
    %229 = vmatpush1.bf16.msra.mxu0 %v171
    %230 = vmatprep.subr.bf16.mxu0 %v176
    %231 = vmatpush1.bf16.msra.mxu0 %v175
    %232 = vmatprep.subr.bf16.mxu0 %v180
    %233 = vmatpush1.bf16.msra.mxu0 %v179
    %234 = vmatprep.subr.bf16.mxu0 %v184
    %235 = vmatpush1.bf16.msra.mxu0 %v183
    %236 = vmatprep.subr.bf16.mxu0 0
    %237 = vmatpush1.bf16.msra.mxu0 0
    %238 = vmatprep.subr.bf16.mxu0 0
    %239 = vmatpush1.bf16.msra.mxu0 0
    %240 = vmatprep.subr.bf16.mxu0 0
    %241 = vmatpush1.bf16.msra.mxu0 0
    %242 = vmatprep.subr.bf16.mxu0 0
    %243 = vmatpush1.bf16.msra.mxu0 0
    %244 = vmatprep.subr.bf16.mxu0 0
    %245 = vmatpush1.bf16.msra.mxu0 0
    %246 = vmatprep.subr.bf16.mxu0 0
    %247 = vmatpush1.bf16.msra.mxu0 0
    %248 = vmatprep.subr.bf16.mxu0 0
    %249 = vmatpush1.bf16.msra.mxu0 0
    %250 = vmatprep.subr.bf16.mxu0 0
    %251 = vmatpush1.bf16.msra.mxu0 0
    %252 = vmatprep.subr.bf16.mxu0 0
    %253 = vmatpush1.bf16.msra.mxu0 0
    %254 = vmatprep.subr.bf16.mxu0 0
    %255 = vmatpush1.bf16.msra.mxu0 0
    %256 = vmatprep.subr.bf16.mxu0 0
    %257 = vmatpush1.bf16.msra.mxu0 0
    %258 = vmatprep.subr.bf16.mxu0 0
    %259 = vmatpush1.bf16.msra.mxu0 0
    %260 = vmatprep.mubr.bf16.mxu0 0
    %261 = vmatmul.mubr.bf16.gmra.mrb[0].mxu0 %v205
    %v262 = vpop.f32.mrb[0].mxu0
    %v263 = vadd.f32 %v66, %v262
    %v264 = vpop.f32.mrb[0].mxu0
    %v265 = vadd.f32 %v70, %v264
    %v266 = vpop.f32.mrb[0].mxu0
    %v267 = vadd.f32 %v66, %v266
    %v268 = vpop.f32.mrb[0].mxu0
    %v269 = vadd.f32 %v70, %v268
    %270 = vmatprep.mubr.bf16.mxu0 0
    %271 = vmatmul.mubr.bf16.gmra.mrb[0].mxu0 %v208
    %v272 = vpop.f32.mrb[0].mxu0
    %v273 = vadd.f32 %v66, %v272
    %v274 = vpop.f32.mrb[0].mxu0
    %v275 = vadd.f32 %v70, %v274
    %v276 = vpop.f32.mrb[0].mxu0
    %v277 = vadd.f32 %v66, %v276
    %v278 = vpop.f32.mrb[0].mxu0
    %v279 = vadd.f32 %v70, %v278
    %280 = vmatprep.mubr.bf16.mxu0 0
    %281 = vmatmul.mubr.bf16.gmra.mrb[0].mxu0 %v211
    %v282 = vpop.f32.mrb[0].mxu0
    %v283 = vadd.f32 %v66, %v282
    %v284 = vpop.f32.mrb[0].mxu0
    %v285 = vadd.f32 %v70, %v284
    %v286 = vpop.f32.mrb[0].mxu0
    %v287 = vadd.f32 %v66, %v286
    %v288 = vpop.f32.mrb[0].mxu0
    %v289 = vadd.f32 %v70, %v288
    %290 = vmatprep.mubr.bf16.mxu0 0
    %291 = vmatmul.mubr.bf16.gmra.mrb[0].mxu0 %v214
    %v292 = vpop.f32.mrb[0].mxu0
    %v293 = vadd.f32 %v66, %v292
    %v294 = vpop.f32.mrb[0].mxu0
    %v295 = vadd.f32 %v70, %v294
    %v296 = vpop.f32.mrb[0].mxu0
    %v297 = vadd.f32 %v66, %v296
    %v298 = vpop.f32.mrb[0].mxu0
    %v299 = vadd.f32 %v70, %v298
    %300 = vmatprep.mubr.bf16.mxu0 0
    %301 = vmatmul.mubr.bf16.gmra.mrb[0].mxu0 %v217
    %v302 = vpop.f32.mrb[0].mxu0
    %v303 = vadd.f32 %v66, %v302
    %v304 = vpop.f32.mrb[0].mxu0
    %v305 = vadd.f32 %v70, %v304
    %v306 = vpop.f32.mrb[0].mxu0
    %v307 = vadd.f32 %v66, %v306
    %v308 = vpop.f32.mrb[0].mxu0
    %v309 = vadd.f32 %v70, %v308
    %310 = vmatprep.mubr.bf16.mxu0 0
    %311 = vmatmul.mubr.bf16.gmra.mrb[0].mxu0 %v220
    %v312 = vpop.f32.mrb[0].mxu0
    %v313 = vadd.f32 %v66, %v312
    %v314 = vpop.f32.mrb[0].mxu0
    %v315 = vadd.f32 %v70, %v314
    %v316 = vpop.f32.mrb[0].mxu0
    %v317 = vadd.f32 %v66, %v316
    %v318 = vpop.f32.mrb[0].mxu0
    %v319 = vadd.f32 %v70, %v318
    %320 = vmatprep.mubr.bf16.mxu0 0
    %321 = vmatmul.mubr.bf16.gmra.mrb[0].mxu0 %v223
    %v322 = vpop.f32.mrb[0].mxu0
    %v323 = vadd.f32 %v66, %v322
    %v324 = vpop.f32.mrb[0].mxu0
    %v325 = vadd.f32 %v70, %v324
    %v326 = vpop.f32.mrb[0].mxu0
    %v327 = vadd.f32 %v66, %v326
    %v328 = vpop.f32.mrb[0].mxu0
    %v329 = vadd.f32 %v70, %v328
    %330 = vmatprep.mubr.bf16.mxu0 0
    %331 = vmatmul.mubr.bf16.gmra.mrb[0].mxu0 %v226
    %v332 = vpop.f32.mrb[0].mxu0
    %v333 = vadd.f32 %v66, %v332
    %v334 = vpop.f32.mrb[0].mxu0
    %v335 = vadd.f32 %v70, %v334
    %v336 = vpop.f32.mrb[0].mxu0
    %v337 = vadd.f32 %v66, %v336
    %v338 = vpop.f32.mrb[0].mxu0
    %v339 = vadd.f32 %v70, %v338
    %340 = vdwg.mxu0
    %341 = vmatprep.subr.bf16.mxu0 %v174
    %342 = vmatpush1.bf16.msra.mxu0 %v173
    %343 = vmatprep.subr.bf16.mxu0 %v178
    %344 = vmatpush1.bf16.msra.mxu0 %v177
    %345 = vmatprep.subr.bf16.mxu0 %v182
    %346 = vmatpush1.bf16.msra.mxu0 %v181
    %347 = vmatprep.subr.bf16.mxu0 %v186
    %348 = vmatpush1.bf16.msra.mxu0 %v185
    %349 = vmatprep.subr.bf16.mxu0 0
    %350 = vmatpush1.bf16.msra.mxu0 0
    %351 = vmatprep.subr.bf16.mxu0 0
    %352 = vmatpush1.bf16.msra.mxu0 0
    %353 = vmatprep.subr.bf16.mxu0 0
    %354 = vmatpush1.bf16.msra.mxu0 0
    %355 = vmatprep.subr.bf16.mxu0 0
    %356 = vmatpush1.bf16.msra.mxu0 0
    %357 = vmatprep.subr.bf16.mxu0 0
    %358 = vmatpush1.bf16.msra.mxu0 0
    %359 = vmatprep.subr.bf16.mxu0 0
    %360 = vmatpush1.bf16.msra.mxu0 0
    %361 = vmatprep.subr.bf16.mxu0 0
    %362 = vmatpush1.bf16.msra.mxu0 0
    %363 = vmatprep.subr.bf16.mxu0 0
    %364 = vmatpush1.bf16.msra.mxu0 0
    %365 = vmatprep.subr.bf16.mxu0 0
    %366 = vmatpush1.bf16.msra.mxu0 0
    %367 = vmatprep.subr.bf16.mxu0 0
    %368 = vmatpush1.bf16.msra.mxu0 0
    %369 = vmatprep.subr.bf16.mxu0 0
    %370 = vmatpush1.bf16.msra.mxu0 0
    %371 = vmatprep.subr.bf16.mxu0 0
    %372 = vmatpush1.bf16.msra.mxu0 0
    %373 = vmatprep.mubr.bf16.mxu0 0
    %374 = vmatmul.mubr.bf16.gmra.mrb[0].mxu0 %v205
    %v375 = vpop.f32.mrb[0].mxu0
    %v376 = vadd.f32 %v74, %v375
    %v377 = vpop.f32.mrb[0].mxu0
    %v378 = vadd.f32 %v78, %v377
    %v379 = vpop.f32.mrb[0].mxu0
    %v380 = vadd.f32 %v74, %v379
    %v381 = vpop.f32.mrb[0].mxu0
    %v382 = vadd.f32 %v78, %v381
    %383 = vmatprep.mubr.bf16.mxu0 0
    %384 = vmatmul.mubr.bf16.gmra.mrb[0].mxu0 %v208
    %v385 = vpop.f32.mrb[0].mxu0
    %v386 = vadd.f32 %v74, %v385
    %v387 = vpop.f32.mrb[0].mxu0
    %v388 = vadd.f32 %v78, %v387
    %v389 = vpop.f32.mrb[0].mxu0
    %v390 = vadd.f32 %v74, %v389
    %v391 = vpop.f32.mrb[0].mxu0
    %v392 = vadd.f32 %v78, %v391
    %393 = vmatprep.mubr.bf16.mxu0 0
    %394 = vmatmul.mubr.bf16.gmra.mrb[0].mxu0 %v211
    %v395 = vpop.f32.mrb[0].mxu0
    %v396 = vadd.f32 %v74, %v395
    %v397 = vpop.f32.mrb[0].mxu0
    %v398 = vadd.f32 %v78, %v397
    %v399 = vpop.f32.mrb[0].mxu0
    %v400 = vadd.f32 %v74, %v399
    %v401 = vpop.f32.mrb[0].mxu0
    %v402 = vadd.f32 %v78, %v401
    %403 = vmatprep.mubr.bf16.mxu0 0
    %404 = vmatmul.mubr.bf16.gmra.mrb[0].mxu0 %v214
    %v405 = vpop.f32.mrb[0].mxu0
    %v406 = vadd.f32 %v74, %v405
    %v407 = vpop.f32.mrb[0].mxu0
    %v408 = vadd.f32 %v78, %v407
    %v409 = vpop.f32.mrb[0].mxu0
    %v410 = vadd.f32 %v74, %v409
    %v411 = vpop.f32.mrb[0].mxu0
    %v412 = vadd.f32 %v78, %v411
    %413 = vmatprep.mubr.bf16.mxu0 0
    %414 = vmatmul.mubr.bf16.gmra.mrb[0].mxu0 %v217
    %v415 = vpop.f32.mrb[0].mxu0
    %v416 = vadd.f32 %v74, %v415
    %v417 = vpop.f32.mrb[0].mxu0
    %v418 = vadd.f32 %v78, %v417
    %v419 = vpop.f32.mrb[0].mxu0
    %v420 = vadd.f32 %v74, %v419
    %v421 = vpop.f32.mrb[0].mxu0
    %v422 = vadd.f32 %v78, %v421
    %423 = vmatprep.mubr.bf16.mxu0 0
    %424 = vmatmul.mubr.bf16.gmra.mrb[0].mxu0 %v220
    %v425 = vpop.f32.mrb[0].mxu0
    %v426 = vadd.f32 %v74, %v425
    %v427 = vpop.f32.mrb[0].mxu0
    %v428 = vadd.f32 %v78, %v427
    %v429 = vpop.f32.mrb[0].mxu0
    %v430 = vadd.f32 %v74, %v429
    %v431 = vpop.f32.mrb[0].mxu0
    %v432 = vadd.f32 %v78, %v431
    %433 = vmatprep.mubr.bf16.mxu0 0
    %434 = vmatmul.mubr.bf16.gmra.mrb[0].mxu0 %v223
    %v435 = vpop.f32.mrb[0].mxu0
    %v436 = vadd.f32 %v74, %v435
    %v437 = vpop.f32.mrb[0].mxu0
    %v438 = vadd.f32 %v78, %v437
    %v439 = vpop.f32.mrb[0].mxu0
    %v440 = vadd.f32 %v74, %v439
    %v441 = vpop.f32.mrb[0].mxu0
    %v442 = vadd.f32 %v78, %v441
    %443 = vmatprep.mubr.bf16.mxu0 0
    %444 = vmatmul.mubr.bf16.gmra.mrb[0].mxu0 %v226
    %v445 = vpop.f32.mrb[0].mxu0
    %v446 = vadd.f32 %v74, %v445
    %v447 = vpop.f32.mrb[0].mxu0
    %v448 = vadd.f32 %v78, %v447
    %v449 = vpop.f32.mrb[0].mxu0
    %v450 = vadd.f32 %v74, %v449
    %v451 = vpop.f32.mrb[0].mxu0
    %v452 = vadd.f32 %v78, %v451
    %453 = vdwg.mxu0
    %vm454 = vcmp.ge.f32.partialorder %v263, 0.0
    %vm455 = vcmp.ge.f32.partialorder %v265, 0.0
    %vm456 = vcmp.ge.f32.partialorder %v376, 0.0
    %vm457 = vcmp.ge.f32.partialorder %v378, 0.0
    %vm458 = vcmp.ge.f32.partialorder %v267, 0.0
    %vm459 = vcmp.ge.f32.partialorder %v269, 0.0
    %vm460 = vcmp.ge.f32.partialorder %v380, 0.0
    %vm461 = vcmp.ge.f32.partialorder %v382, 0.0
    %vm462 = vcmp.ge.f32.partialorder %v273, 0.0
    %vm463 = vcmp.ge.f32.partialorder %v275, 0.0
    %vm464 = vcmp.ge.f32.partialorder %v386, 0.0
    %vm465 = vcmp.ge.f32.partialorder %v388, 0.0
    %vm466 = vcmp.ge.f32.partialorder %v277, 0.0
    %vm467 = vcmp.ge.f32.partialorder %v279, 0.0
    %vm468 = vcmp.ge.f32.partialorder %v390, 0.0
    %vm469 = vcmp.ge.f32.partialorder %v392, 0.0
    %vm470 = vcmp.ge.f32.partialorder %v283, 0.0
    %vm471 = vcmp.ge.f32.partialorder %v285, 0.0
    %vm472 = vcmp.ge.f32.partialorder %v396, 0.0
    %vm473 = vcmp.ge.f32.partialorder %v398, 0.0
    %vm474 = vcmp.ge.f32.partialorder %v287, 0.0
    %vm475 = vcmp.ge.f32.partialorder %v289, 0.0
    %vm476 = vcmp.ge.f32.partialorder %v400, 0.0
    %vm477 = vcmp.ge.f32.partialorder %v402, 0.0
    %vm478 = vcmp.ge.f32.partialorder %v293, 0.0
    %vm479 = vcmp.ge.f32.partialorder %v295, 0.0
    %vm480 = vcmp.ge.f32.partialorder %v406, 0.0
    %vm481 = vcmp.ge.f32.partialorder %v408, 0.0
    %vm482 = vcmp.ge.f32.partialorder %v297, 0.0
    %vm483 = vcmp.ge.f32.partialorder %v299, 0.0
    %vm484 = vcmp.ge.f32.partialorder %v410, 0.0
    %vm485 = vcmp.ge.f32.partialorder %v412, 0.0
    %vm486 = vcmp.ge.f32.partialorder %v303, 0.0
    %vm487 = vcmp.ge.f32.partialorder %v305, 0.0
    %vm488 = vcmp.ge.f32.partialorder %v416, 0.0
    %vm489 = vcmp.ge.f32.partialorder %v418, 0.0
    %vm490 = vcmp.ge.f32.partialorder %v307, 0.0
    %vm491 = vcmp.ge.f32.partialorder %v309, 0.0
    %vm492 = vcmp.ge.f32.partialorder %v420, 0.0
    %vm493 = vcmp.ge.f32.partialorder %v422, 0.0
    %vm494 = vcmp.ge.f32.partialorder %v313, 0.0
    %vm495 = vcmp.ge.f32.partialorder %v315, 0.0
    %vm496 = vcmp.ge.f32.partialorder %v426, 0.0
    %vm497 = vcmp.ge.f32.partialorder %v428, 0.0
    %vm498 = vcmp.ge.f32.partialorder %v317, 0.0
    %vm499 = vcmp.ge.f32.partialorder %v319, 0.0
    %vm500 = vcmp.ge.f32.partialorder %v430, 0.0
    %vm501 = vcmp.ge.f32.partialorder %v432, 0.0
    %vm502 = vcmp.ge.f32.partialorder %v323, 0.0
    %vm503 = vcmp.ge.f32.partialorder %v325, 0.0
    %vm504 = vcmp.ge.f32.partialorder %v436, 0.0
    %vm505 = vcmp.ge.f32.partialorder %v438, 0.0
    %vm506 = vcmp.ge.f32.partialorder %v327, 0.0
    %vm507 = vcmp.ge.f32.partialorder %v329, 0.0
    %vm508 = vcmp.ge.f32.partialorder %v440, 0.0
    %vm509 = vcmp.ge.f32.partialorder %v442, 0.0
    %vm510 = vcmp.ge.f32.partialorder %v333, 0.0
    %vm511 = vcmp.ge.f32.partialorder %v335, 0.0
    %vm512 = vcmp.ge.f32.partialorder %v446, 0.0
    %vm513 = vcmp.ge.f32.partialorder %v448, 0.0
    %vm514 = vcmp.ge.f32.partialorder %v337, 0.0
    %vm515 = vcmp.ge.f32.partialorder %v339, 0.0
    %vm516 = vcmp.ge.f32.partialorder %v450, 0.0
    %vm517 = vcmp.ge.f32.partialorder %v452, 0.0
    %v518 = vmul.f32 %v263, 0.2
    %v519 = vmul.f32 %v265, 0.2
    %v520 = vmul.f32 %v376, 0.2
    %v521 = vmul.f32 %v378, 0.2
    %v522 = vmul.f32 %v267, 0.2
    %v523 = vmul.f32 %v269, 0.2
    %v524 = vmul.f32 %v380, 0.2
    %v525 = vmul.f32 %v382, 0.2
    %v526 = vmul.f32 %v273, 0.2
    %v527 = vmul.f32 %v275, 0.2
    %v528 = vmul.f32 %v386, 0.2
    %v529 = vmul.f32 %v388, 0.2
    %v530 = vmul.f32 %v277, 0.2
    %v531 = vmul.f32 %v279, 0.2
    %v532 = vmul.f32 %v390, 0.2
    %v533 = vmul.f32 %v392, 0.2
    %v534 = vmul.f32 %v283, 0.2
    %v535 = vmul.f32 %v285, 0.2
    %v536 = vmul.f32 %v396, 0.2
    %v537 = vmul.f32 %v398, 0.2
    %v538 = vmul.f32 %v287, 0.2
    %v539 = vmul.f32 %v289, 0.2
    %v540 = vmul.f32 %v400, 0.2
    %v541 = vmul.f32 %v402, 0.2
    %v542 = vmul.f32 %v293, 0.2
    %v543 = vmul.f32 %v295, 0.2
    %v544 = vmul.f32 %v406, 0.2
    %v545 = vmul.f32 %v408, 0.2
    %v546 = vmul.f32 %v297, 0.2
    %v547 = vmul.f32 %v299, 0.2
    %v548 = vmul.f32 %v410, 0.2
    %v549 = vmul.f32 %v412, 0.2
    %v550 = vmul.f32 %v303, 0.2
    %v551 = vmul.f32 %v305, 0.2
    %v552 = vmul.f32 %v416, 0.2
    %v553 = vmul.f32 %v418, 0.2
    %v554 = vmul.f32 %v307, 0.2
    %v555 = vmul.f32 %v309, 0.2
    %v556 = vmul.f32 %v420, 0.2
    %v557 = vmul.f32 %v422, 0.2
    %v558 = vmul.f32 %v313, 0.2
    %v559 = vmul.f32 %v315, 0.2
    %v560 = vmul.f32 %v426, 0.2
    %v561 = vmul.f32 %v428, 0.2
    %v562 = vmul.f32 %v317, 0.2
    %v563 = vmul.f32 %v319, 0.2
    %v564 = vmul.f32 %v430, 0.2
    %v565 = vmul.f32 %v432, 0.2
    %v566 = vmul.f32 %v323, 0.2
    %v567 = vmul.f32 %v325, 0.2
    %v568 = vmul.f32 %v436, 0.2
    %v569 = vmul.f32 %v438, 0.2
    %v570 = vmul.f32 %v327, 0.2
    %v571 = vmul.f32 %v329, 0.2
    %v572 = vmul.f32 %v440, 0.2
    %v573 = vmul.f32 %v442, 0.2
    %v574 = vmul.f32 %v333, 0.2
    %v575 = vmul.f32 %v335, 0.2
    %v576 = vmul.f32 %v446, 0.2
    %v577 = vmul.f32 %v448, 0.2
    %v578 = vmul.f32 %v337, 0.2
    %v579 = vmul.f32 %v339, 0.2
    %v580 = vmul.f32 %v450, 0.2
    %v581 = vmul.f32 %v452, 0.2
    %v582 = vsel %vm454, %v263, %v518
    %v583 = vsel %vm455, %v265, %v519
    %v584 = vsel %vm456, %v376, %v520
    %v585 = vsel %vm457, %v378, %v521
    %v586 = vsel %vm458, %v267, %v522
    %v587 = vsel %vm459, %v269, %v523
    %v588 = vsel %vm460, %v380, %v524
    %v589 = vsel %vm461, %v382, %v525
    %v590 = vsel %vm462, %v273, %v526
    %v591 = vsel %vm463, %v275, %v527
    %v592 = vsel %vm464, %v386, %v528
    %v593 = vsel %vm465, %v388, %v529
    %v594 = vsel %vm466, %v277, %v530
    %v595 = vsel %vm467, %v279, %v531
    %v596 = vsel %vm468, %v390, %v532
    %v597 = vsel %vm469, %v392, %v533
    %v598 = vsel %vm470, %v283, %v534
    %v599 = vsel %vm471, %v285, %v535
    %v600 = vsel %vm472, %v396, %v536
    %v601 = vsel %vm473, %v398, %v537
    %v602 = vsel %vm474, %v287, %v538
    %v603 = vsel %vm475, %v289, %v539
    %v604 = vsel %vm476, %v400, %v540
    %v605 = vsel %vm477, %v402, %v541
    %v606 = vsel %vm478, %v293, %v542
    %v607 = vsel %vm479, %v295, %v543
    %v608 = vsel %vm480, %v406, %v544
    %v609 = vsel %vm481, %v408, %v545
    %v610 = vsel %vm482, %v297, %v546
    %v611 = vsel %vm483, %v299, %v547
    %v612 = vsel %vm484, %v410, %v548
    %v613 = vsel %vm485, %v412, %v549
    %v614 = vsel %vm486, %v303, %v550
    %v615 = vsel %vm487, %v305, %v551
    %v616 = vsel %vm488, %v416, %v552
    %v617 = vsel %vm489, %v418, %v553
    %v618 = vsel %vm490, %v307, %v554
    %v619 = vsel %vm491, %v309, %v555
    %v620 = vsel %vm492, %v420, %v556
    %v621 = vsel %vm493, %v422, %v557
    %v622 = vsel %vm494, %v313, %v558
    %v623 = vsel %vm495, %v315, %v559
    %v624 = vsel %vm496, %v426, %v560
    %v625 = vsel %vm497, %v428, %v561
    %v626 = vsel %vm498, %v317, %v562
    %v627 = vsel %vm499, %v319, %v563
    %v628 = vsel %vm500, %v430, %v564
    %v629 = vsel %vm501, %v432, %v565
    %v630 = vsel %vm502, %v323, %v566
    %v631 = vsel %vm503, %v325, %v567
    %v632 = vsel %vm504, %v436, %v568
    %v633 = vsel %vm505, %v438, %v569
    %v634 = vsel %vm506, %v327, %v570
    %v635 = vsel %vm507, %v329, %v571
    %v636 = vsel %vm508, %v440, %v572
    %v637 = vsel %vm509, %v442, %v573
    %v638 = vsel %vm510, %v333, %v574
    %v639 = vsel %vm511, %v335, %v575
    %v640 = vsel %vm512, %v446, %v576
    %v641 = vsel %vm513, %v448, %v577
    %v642 = vsel %vm514, %v337, %v578
    %v643 = vsel %vm515, %v339, %v579
    %v644 = vsel %vm516, %v450, %v580
    %v645 = vsel %vm517, %v452, %v581
    %646 = vst [vmem:[%s3] sm:$0xff] %v582
    %647 = vst [vmem:[%s3 + $0x8] sm:$0xff] %v583
    %648 = vst [vmem:[%s3 + $0x10] sm:$0xff] %v584
    %649 = vst [vmem:[%s3 + $0x18] sm:$0xff] %v585
    %650 = vst [vmem:[%s3 + $0x20] sm:$0xff] %v586
    %651 = vst [vmem:[%s3 + $0x28] sm:$0xff] %v587
    %652 = vst [vmem:[%s3 + $0x30] sm:$0xff] %v588
    %653 = vst [vmem:[%s3 + $0x38] sm:$0xff] %v589
    %654 = vst [vmem:[%s3 + $0x40] sm:$0xff] %v590
    %655 = vst [vmem:[%s3 + $0x48] sm:$0xff] %v591
    %656 = vst [vmem:[%s3 + $0x50] sm:$0xff] %v592
    %657 = vst [vmem:[%s3 + $0x58] sm:$0xff] %v593
    %658 = vst [vmem:[%s3 + $0x60] sm:$0xff] %v594
    %659 = vst [vmem:[%s3 + $0x68] sm:$0xff] %v595
    %660 = vst [vmem:[%s3 + $0x70] sm:$0xff] %v596
    %661 = vst [vmem:[%s3 + $0x78] sm:$0xff] %v597
    %662 = vst [vmem:[%s3 + $0x80] sm:$0xff] %v598
    %663 = vst [vmem:[%s3 + $0x88] sm:$0xff] %v599
    %664 = vst [vmem:[%s3 + $0x90] sm:$0xff] %v600
    %665 = vst [vmem:[%s3 + $0x98] sm:$0xff] %v601
    %666 = vst [vmem:[%s3 + $0xa0] sm:$0xff] %v602
    %667 = vst [vmem:[%s3 + $0xa8] sm:$0xff] %v603
    %668 = vst [vmem:[%s3 + $0xb0] sm:$0xff] %v604
    %669 = vst [vmem:[%s3 + $0xb8] sm:$0xff] %v605
    %670 = vst [vmem:[%s3 + $0xc0] sm:$0xff] %v606
    %671 = vst [vmem:[%s3 + $0xc8] sm:$0xff] %v607
    %672 = vst [vmem:[%s3 + $0xd0] sm:$0xff] %v608
    %673 = vst [vmem:[%s3 + $0xd8] sm:$0xff] %v609
    %674 = vst [vmem:[%s3 + $0xe0] sm:$0xff] %v610
    %675 = vst [vmem:[%s3 + $0xe8] sm:$0xff] %v611
    %676 = vst [vmem:[%s3 + $0xf0] sm:$0xff] %v612
    %677 = vst [vmem:[%s3 + $0xf8] sm:$0xff] %v613
    %678 = vst [vmem:[%s3 + $0x100] sm:$0xff] %v614
    %679 = vst [vmem:[%s3 + $0x108] sm:$0xff] %v615
    %680 = vst [vmem:[%s3 + $0x110] sm:$0xff] %v616
    %681 = vst [vmem:[%s3 + $0x118] sm:$0xff] %v617
    %682 = vst [vmem:[%s3 + $0x120] sm:$0xff] %v618
    %683 = vst [vmem:[%s3 + $0x128] sm:$0xff] %v619
    %684 = vst [vmem:[%s3 + $0x130] sm:$0xff] %v620
    %685 = vst [vmem:[%s3 + $0x138] sm:$0xff] %v621
    %686 = vst [vmem:[%s3 + $0x140] sm:$0xff] %v622
    %687 = vst [vmem:[%s3 + $0x148] sm:$0xff] %v623
    %688 = vst [vmem:[%s3 + $0x150] sm:$0xff] %v624
    %689 = vst [vmem:[%s3 + $0x158] sm:$0xff] %v625
    %690 = vst [vmem:[%s3 + $0x160] sm:$0xff] %v626
    %691 = vst [vmem:[%s3 + $0x168] sm:$0xff] %v627
    %692 = vst [vmem:[%s3 + $0x170] sm:$0xff] %v628
    %693 = vst [vmem:[%s3 + $0x178] sm:$0xff] %v629
    %694 = vst [vmem:[%s3 + $0x180] sm:$0xff] %v630
    %695 = vst [vmem:[%s3 + $0x188] sm:$0xff] %v631
    %696 = vst [vmem:[%s3 + $0x190] sm:$0xff] %v632
    %697 = vst [vmem:[%s3 + $0x198] sm:$0xff] %v633
    %698 = vst [vmem:[%s3 + $0x1a0] sm:$0xff] %v634
    %699 = vst [vmem:[%s3 + $0x1a8] sm:$0xff] %v635
    %700 = vst [vmem:[%s3 + $0x1b0] sm:$0xff] %v636
    %701 = vst [vmem:[%s3 + $0x1b8] sm:$0xff] %v637
    %702 = vst [vmem:[%s3 + $0x1c0] sm:$0xff] %v638
    %703 = vst [vmem:[%s3 + $0x1c8] sm:$0xff] %v639
    %704 = vst [vmem:[%s3 + $0x1d0] sm:$0xff] %v640
    %705 = vst [vmem:[%s3 + $0x1d8] sm:$0xff] %v641
    %706 = vst [vmem:[%s3 + $0x1e0] sm:$0xff] %v642
    %707 = vst [vmem:[%s3 + $0x1e8] sm:$0xff] %v643
    %708 = vst [vmem:[%s3 + $0x1f0] sm:$0xff] %v644
    %709 = vst [vmem:[%s3 + $0x1f8] sm:$0xff] %v645
    %v710 = vlaneseq
    %v711 = vshrl.u32 %v710, 7
    %v712 = vadd.s32 %v711, 8
    %v713 = vadd.s32 %v711, 16
    %v714 = vadd.s32 %v711, 24
    %v715 = vadd.s32 %v711, 32
    %v716 = vadd.s32 %v711, 40
    %v717 = vadd.s32 %v711, 48
    %v718 = vadd.s32 %v711, 56
    %v719 = vadd.s32 %v711, 64
    %v720 = vadd.s32 %v711, 72
    %v721 = vadd.s32 %v711, 80
    %v722 = vadd.s32 %v711, 88
    %v723 = vadd.s32 %v711, 96
    %v724 = vadd.s32 %v711, 104
    %v725 = vadd.s32 %v711, 112
    %v726 = vadd.s32 %v711, 120
    %s727 = smul.u32 0, 128
    %v728 = vstv %s727
    %v729 = vadd.s32 %v711, %v728
    %v730 = vadd.s32 %v712, %v728
    %v731 = vadd.s32 %v713, %v728
    %v732 = vadd.s32 %v714, %v728
    %v733 = vadd.s32 %v715, %v728
    %v734 = vadd.s32 %v716, %v728
    %v735 = vadd.s32 %v717, %v728
    %v736 = vadd.s32 %v718, %v728
    %v737 = vadd.s32 %v719, %v728
    %v738 = vadd.s32 %v720, %v728
    %v739 = vadd.s32 %v721, %v728
    %v740 = vadd.s32 %v722, %v728
    %v741 = vadd.s32 %v723, %v728
    %v742 = vadd.s32 %v724, %v728
    %v743 = vadd.s32 %v725, %v728
    %v744 = vadd.s32 %v726, %v728
    %vm745 = vcmp.lt.s32.totalorder %v729, 128
    %vm746 = vcmp.lt.s32.totalorder %v730, 128
    %vm747 = vcmp.lt.s32.totalorder %v731, 128
    %vm748 = vcmp.lt.s32.totalorder %v732, 128
    %vm749 = vcmp.lt.s32.totalorder %v733, 128
    %vm750 = vcmp.lt.s32.totalorder %v734, 128
    %vm751 = vcmp.lt.s32.totalorder %v735, 128
    %vm752 = vcmp.lt.s32.totalorder %v736, 128
    %vm753 = vcmp.lt.s32.totalorder %v737, 128
    %vm754 = vcmp.lt.s32.totalorder %v738, 128
    %vm755 = vcmp.lt.s32.totalorder %v739, 128
    %vm756 = vcmp.lt.s32.totalorder %v740, 128
    %vm757 = vcmp.lt.s32.totalorder %v741, 128
    %vm758 = vcmp.lt.s32.totalorder %v742, 128
    %vm759 = vcmp.lt.s32.totalorder %v743, 128
    %vm760 = vcmp.lt.s32.totalorder %v744, 128
    %v761 = vsel %vm745, 1, 0
    %v762 = vsel %vm746, 1, 0
    %v763 = vsel %vm747, 1, 0
    %v764 = vsel %vm748, 1, 0
    %v765 = vsel %vm749, 1, 0
    %v766 = vsel %vm750, 1, 0
    %v767 = vsel %vm751, 1, 0
    %v768 = vsel %vm752, 1, 0
    %v769 = vsel %vm753, 1, 0
    %v770 = vsel %vm754, 1, 0
    %v771 = vsel %vm755, 1, 0
    %v772 = vsel %vm756, 1, 0
    %v773 = vsel %vm757, 1, 0
    %v774 = vsel %vm758, 1, 0
    %v775 = vsel %vm759, 1, 0
    %v776 = vsel %vm760, 1, 0
    %v777 = vcvt.s32.f32 %v761
    %v778 = vcvt.s32.f32 %v762
    %v779 = vcvt.s32.f32 %v763
    %v780 = vcvt.s32.f32 %v764
    %v781 = vcvt.s32.f32 %v765
    %v782 = vcvt.s32.f32 %v766
    %v783 = vcvt.s32.f32 %v767
    %v784 = vcvt.s32.f32 %v768
    %v785 = vcvt.s32.f32 %v769
    %v786 = vcvt.s32.f32 %v770
    %v787 = vcvt.s32.f32 %v771
    %v788 = vcvt.s32.f32 %v772
    %v789 = vcvt.s32.f32 %v773
    %v790 = vcvt.s32.f32 %v774
    %v791 = vcvt.s32.f32 %v775
    %v792 = vcvt.s32.f32 %v776
    %v793 = vmul.f32 %v582, %v777
    %v794 = vmul.f32 %v583, %v777
    %v795 = vmul.f32 %v584, %v777
    %v796 = vmul.f32 %v585, %v777
    %v797 = vmul.f32 %v586, %v778
    %v798 = vmul.f32 %v587, %v778
    %v799 = vmul.f32 %v588, %v778
    %v800 = vmul.f32 %v589, %v778
    %v801 = vmul.f32 %v590, %v779
    %v802 = vmul.f32 %v591, %v779
    %v803 = vmul.f32 %v592, %v779
    %v804 = vmul.f32 %v593, %v779
    %v805 = vmul.f32 %v594, %v780
    %v806 = vmul.f32 %v595, %v780
    %v807 = vmul.f32 %v596, %v780
    %v808 = vmul.f32 %v597, %v780
    %v809 = vmul.f32 %v598, %v781
    %v810 = vmul.f32 %v599, %v781
    %v811 = vmul.f32 %v600, %v781
    %v812 = vmul.f32 %v601, %v781
    %v813 = vmul.f32 %v602, %v782
    %v814 = vmul.f32 %v603, %v782
    %v815 = vmul.f32 %v604, %v782
    %v816 = vmul.f32 %v605, %v782
    %v817 = vmul.f32 %v606, %v783
    %v818 = vmul.f32 %v607, %v783
    %v819 = vmul.f32 %v608, %v783
    %v820 = vmul.f32 %v609, %v783
    %v821 = vmul.f32 %v610, %v784
    %v822 = vmul.f32 %v611, %v784
    %v823 = vmul.f32 %v612, %v784
    %v824 = vmul.f32 %v613, %v784
    %v825 = vmul.f32 %v614, %v785
    %v826 = vmul.f32 %v615, %v785
    %v827 = vmul.f32 %v616, %v785
    %v828 = vmul.f32 %v617, %v785
    %v829 = vmul.f32 %v618, %v786
    %v830 = vmul.f32 %v619, %v786
    %v831 = vmul.f32 %v620, %v786
    %v832 = vmul.f32 %v621, %v786
    %v833 = vmul.f32 %v622, %v787
    %v834 = vmul.f32 %v623, %v787
    %v835 = vmul.f32 %v624, %v787
    %v836 = vmul.f32 %v625, %v787
    %v837 = vmul.f32 %v626, %v788
    %v838 = vmul.f32 %v627, %v788
    %v839 = vmul.f32 %v628, %v788
    %v840 = vmul.f32 %v629, %v788
    %v841 = vmul.f32 %v630, %v789
    %v842 = vmul.f32 %v631, %v789
    %v843 = vmul.f32 %v632, %v789
    %v844 = vmul.f32 %v633, %v789
    %v845 = vmul.f32 %v634, %v790
    %v846 = vmul.f32 %v635, %v790
    %v847 = vmul.f32 %v636, %v790
    %v848 = vmul.f32 %v637, %v790
    %v849 = vmul.f32 %v638, %v791
    %v850 = vmul.f32 %v639, %v791
    %v851 = vmul.f32 %v640, %v791
    %v852 = vmul.f32 %v641, %v791
    %v853 = vmul.f32 %v642, %v792
    %v854 = vmul.f32 %v643, %v792
    %v855 = vmul.f32 %v644, %v792
    %v856 = vmul.f32 %v645, %v792
    %v857 = vadd.f32 %v793, %v797
    %v858 = vadd.f32 %v857, %v801
    %v859 = vadd.f32 %v858, %v805
    %v860 = vadd.f32 %v859, %v809
    %v861 = vadd.f32 %v860, %v813
    %v862 = vadd.f32 %v861, %v817
    %v863 = vadd.f32 %v862, %v821
    %v864 = vadd.f32 %v863, %v825
    %v865 = vadd.f32 %v864, %v829
    %v866 = vadd.f32 %v865, %v833
    %v867 = vadd.f32 %v866, %v837
    %v868 = vadd.f32 %v867, %v841
    %v869 = vadd.f32 %v868, %v845
    %v870 = vadd.f32 %v869, %v849
    %v871 = vadd.f32 %v870, %v853
    %v872 = vrot.slane %v871, 4
    %v873 = vadd.f32 %v871, %v872
    %v874 = vrot.slane %v873, 2
    %v875 = vadd.f32 %v873, %v874
    %v876 = vrot.slane %v875, 1
    %v877 = vadd.f32 %v875, %v876
    %v878 = vadd.f32 %v794, %v798
    %v879 = vadd.f32 %v878, %v802
    %v880 = vadd.f32 %v879, %v806
    %v881 = vadd.f32 %v880, %v810
    %v882 = vadd.f32 %v881, %v814
    %v883 = vadd.f32 %v882, %v818
    %v884 = vadd.f32 %v883, %v822
    %v885 = vadd.f32 %v884, %v826
    %v886 = vadd.f32 %v885, %v830
    %v887 = vadd.f32 %v886, %v834
    %v888 = vadd.f32 %v887, %v838
    %v889 = vadd.f32 %v888, %v842
    %v890 = vadd.f32 %v889, %v846
    %v891 = vadd.f32 %v890, %v850
    %v892 = vadd.f32 %v891, %v854
    %v893 = vrot.slane %v892, 4
    %v894 = vadd.f32 %v892, %v893
    %v895 = vrot.slane %v894, 2
    %v896 = vadd.f32 %v894, %v895
    %v897 = vrot.slane %v896, 1
    %v898 = vadd.f32 %v896, %v897
    %v899 = vadd.f32 %v795, %v799
    %v900 = vadd.f32 %v899, %v803
    %v901 = vadd.f32 %v900, %v807
    %v902 = vadd.f32 %v901, %v811
    %v903 = vadd.f32 %v902, %v815
    %v904 = vadd.f32 %v903, %v819
    %v905 = vadd.f32 %v904, %v823
    %v906 = vadd.f32 %v905, %v827
    %v907 = vadd.f32 %v906, %v831
    %v908 = vadd.f32 %v907, %v835
    %v909 = vadd.f32 %v908, %v839
    %v910 = vadd.f32 %v909, %v843
    %v911 = vadd.f32 %v910, %v847
    %v912 = vadd.f32 %v911, %v851
    %v913 = vadd.f32 %v912, %v855
    %v914 = vrot.slane %v913, 4
    %v915 = vadd.f32 %v913, %v914
    %v916 = vrot.slane %v915, 2
    %v917 = vadd.f32 %v915, %v916
    %v918 = vrot.slane %v917, 1
    %v919 = vadd.f32 %v917, %v918
    %v920 = vadd.f32 %v796, %v800
    %v921 = vadd.f32 %v920, %v804
    %v922 = vadd.f32 %v921, %v808
    %v923 = vadd.f32 %v922, %v812
    %v924 = vadd.f32 %v923, %v816
    %v925 = vadd.f32 %v924, %v820
    %v926 = vadd.f32 %v925, %v824
    %v927 = vadd.f32 %v926, %v828
    %v928 = vadd.f32 %v927, %v832
    %v929 = vadd.f32 %v928, %v836
    %v930 = vadd.f32 %v929, %v840
    %v931 = vadd.f32 %v930, %v844
    %v932 = vadd.f32 %v931, %v848
    %v933 = vadd.f32 %v932, %v852
    %v934 = vadd.f32 %v933, %v856
    %v935 = vrot.slane %v934, 4
    %v936 = vadd.f32 %v934, %v935
    %v937 = vrot.slane %v936, 2
    %v938 = vadd.f32 %v936, %v937
    %v939 = vrot.slane %v938, 1
    %v940 = vadd.f32 %v938, %v939
    %v941 = vmul.f32 %v793, %v793
    %v942 = vmul.f32 %v794, %v794
    %v943 = vmul.f32 %v795, %v795
    %v944 = vmul.f32 %v796, %v796
    %v945 = vmul.f32 %v797, %v797
    %v946 = vmul.f32 %v798, %v798
    %v947 = vmul.f32 %v799, %v799
    %v948 = vmul.f32 %v800, %v800
    %v949 = vmul.f32 %v801, %v801
    %v950 = vmul.f32 %v802, %v802
    %v951 = vmul.f32 %v803, %v803
    %v952 = vmul.f32 %v804, %v804
    %v953 = vmul.f32 %v805, %v805
    %v954 = vmul.f32 %v806, %v806
    %v955 = vmul.f32 %v807, %v807
    %v956 = vmul.f32 %v808, %v808
    %v957 = vmul.f32 %v809, %v809
    %v958 = vmul.f32 %v810, %v810
    %v959 = vmul.f32 %v811, %v811
    %v960 = vmul.f32 %v812, %v812
    %v961 = vmul.f32 %v813, %v813
    %v962 = vmul.f32 %v814, %v814
    %v963 = vmul.f32 %v815, %v815
    %v964 = vmul.f32 %v816, %v816
    %v965 = vmul.f32 %v817, %v817
    %v966 = vmul.f32 %v818, %v818
    %v967 = vmul.f32 %v819, %v819
    %v968 = vmul.f32 %v820, %v820
    %v969 = vmul.f32 %v821, %v821
    %v970 = vmul.f32 %v822, %v822
    %v971 = vmul.f32 %v823, %v823
    %v972 = vmul.f32 %v824, %v824
    %v973 = vmul.f32 %v825, %v825
    %v974 = vmul.f32 %v826, %v826
    %v975 = vmul.f32 %v827, %v827
    %v976 = vmul.f32 %v828, %v828
    %v977 = vmul.f32 %v829, %v829
    %v978 = vmul.f32 %v830, %v830
    %v979 = vmul.f32 %v831, %v831
    %v980 = vmul.f32 %v832, %v832
    %v981 = vmul.f32 %v833, %v833
    %v982 = vmul.f32 %v834, %v834
    %v983 = vmul.f32 %v835, %v835
    %v984 = vmul.f32 %v836, %v836
    %v985 = vmul.f32 %v837, %v837
    %v986 = vmul.f32 %v838, %v838
    %v987 = vmul.f32 %v839, %v839
    %v988 = vmul.f32 %v840, %v840
    %v989 = vmul.f32 %v841, %v841
    %v990 = vmul.f32 %v842, %v842
    %v991 = vmul.f32 %v843, %v843
    %v992 = vmul.f32 %v844, %v844
    %v993 = vmul.f32 %v845, %v845
    %v994 = vmul.f32 %v846, %v846
    %v995 = vmul.f32 %v847, %v847
    %v996 = vmul.f32 %v848, %v848
    %v997 = vmul.f32 %v849, %v849
    %v998 = vmul.f32 %v850, %v850
    %v999 = vmul.f32 %v851, %v851
    %v1000 = vmul.f32 %v852, %v852
    %v1001 = vmul.f32 %v853, %v853
    %v1002 = vmul.f32 %v854, %v854
    %v1003 = vmul.f32 %v855, %v855
    %v1004 = vmul.f32 %v856, %v856
    %v1005 = vadd.f32 %v941, %v945
    %v1006 = vadd.f32 %v1005, %v949
    %v1007 = vadd.f32 %v1006, %v953
    %v1008 = vadd.f32 %v1007, %v957
    %v1009 = vadd.f32 %v1008, %v961
    %v1010 = vadd.f32 %v1009, %v965
    %v1011 = vadd.f32 %v1010, %v969
    %v1012 = vadd.f32 %v1011, %v973
    %v1013 = vadd.f32 %v1012, %v977
    %v1014 = vadd.f32 %v1013, %v981
    %v1015 = vadd.f32 %v1014, %v985
    %v1016 = vadd.f32 %v1015, %v989
    %v1017 = vadd.f32 %v1016, %v993
    %v1018 = vadd.f32 %v1017, %v997
    %v1019 = vadd.f32 %v1018, %v1001
    %v1020 = vrot.slane %v1019, 4
    %v1021 = vadd.f32 %v1019, %v1020
    %v1022 = vrot.slane %v1021, 2
    %v1023 = vadd.f32 %v1021, %v1022
    %v1024 = vrot.slane %v1023, 1
    %v1025 = vadd.f32 %v1023, %v1024
    %v1026 = vadd.f32 %v942, %v946
    %v1027 = vadd.f32 %v1026, %v950
    %v1028 = vadd.f32 %v1027, %v954
    %v1029 = vadd.f32 %v1028, %v958
    %v1030 = vadd.f32 %v1029, %v962
    %v1031 = vadd.f32 %v1030, %v966
    %v1032 = vadd.f32 %v1031, %v970
    %v1033 = vadd.f32 %v1032, %v974
    %v1034 = vadd.f32 %v1033, %v978
    %v1035 = vadd.f32 %v1034, %v982
    %v1036 = vadd.f32 %v1035, %v986
    %v1037 = vadd.f32 %v1036, %v990
    %v1038 = vadd.f32 %v1037, %v994
    %v1039 = vadd.f32 %v1038, %v998
    %v1040 = vadd.f32 %v1039, %v1002
    %v1041 = vrot.slane %v1040, 4
    %v1042 = vadd.f32 %v1040, %v1041
    %v1043 = vrot.slane %v1042, 2
    %v1044 = vadd.f32 %v1042, %v1043
    %v1045 = vrot.slane %v1044, 1
    %v1046 = vadd.f32 %v1044, %v1045
    %v1047 = vadd.f32 %v943, %v947
    %v1048 = vadd.f32 %v1047, %v951
    %v1049 = vadd.f32 %v1048, %v955
    %v1050 = vadd.f32 %v1049, %v959
    %v1051 = vadd.f32 %v1050, %v963
    %v1052 = vadd.f32 %v1051, %v967
    %v1053 = vadd.f32 %v1052, %v971
    %v1054 = vadd.f32 %v1053, %v975
    %v1055 = vadd.f32 %v1054, %v979
    %v1056 = vadd.f32 %v1055, %v983
    %v1057 = vadd.f32 %v1056, %v987
    %v1058 = vadd.f32 %v1057, %v991
    %v1059 = vadd.f32 %v1058, %v995
    %v1060 = vadd.f32 %v1059, %v999
    %v1061 = vadd.f32 %v1060, %v1003
    %v1062 = vrot.slane %v1061, 4
    %v1063 = vadd.f32 %v1061, %v1062
    %v1064 = vrot.slane %v1063, 2
    %v1065 = vadd.f32 %v1063, %v1064
    %v1066 = vrot.slane %v1065, 1
    %v1067 = vadd.f32 %v1065, %v1066
    %v1068 = vadd.f32 %v944, %v948
    %v1069 = vadd.f32 %v1068, %v952
    %v1070 = vadd.f32 %v1069, %v956
    %v1071 = vadd.f32 %v1070, %v960
    %v1072 = vadd.f32 %v1071, %v964
    %v1073 = vadd.f32 %v1072, %v968
    %v1074 = vadd.f32 %v1073, %v972
    %v1075 = vadd.f32 %v1074, %v976
    %v1076 = vadd.f32 %v1075, %v980
    %v1077 = vadd.f32 %v1076, %v984
    %v1078 = vadd.f32 %v1077, %v988
    %v1079 = vadd.f32 %v1078, %v992
    %v1080 = vadd.f32 %v1079, %v996
    %v1081 = vadd.f32 %v1080, %v1000
    %v1082 = vadd.f32 %v1081, %v1004
    %v1083 = vrot.slane %v1082, 4
    %v1084 = vadd.f32 %v1082, %v1083
    %v1085 = vrot.slane %v1084, 2
    %v1086 = vadd.f32 %v1084, %v1085
    %v1087 = vrot.slane %v1086, 1
    %v1088 = vadd.f32 %v1086, %v1087
    %vm1089 = vcmask 1040384
    %v1090 = vsel %vm1089, %v877, %v1025
    %v1091 = vsel %vm1089, %v898, %v1046
    %v1092 = vsel %vm1089, %v919, %v1067
    %v1093 = vsel %vm1089, %v940, %v1088
    %v1098 = vcombine.low %v1090, %v1091
    %v1099 = vcombine.low %v1092, %v1093
    %v1101 = vunpack.c.l.s4 1983009808
    %v1102 = vunpack.c.0.s8 %v1101
    %v1103 = vlaneseq
    %v1104 = vshrl.u32 %v1103, 7
    %v1105 = vsub.s32 %v1102, %v1104
    %v1106 = vrot.slane %v1098, %v1105
    %v1108 = vunpack.c.l.s4 1983009808
    %v1109 = vunpack.c.0.s8 %v1108
    %v1110 = vlaneseq
    %v1111 = vshrl.u32 %v1110, 7
    %v1112 = vsub.s32 %v1109, %v1111
    %v1113 = vrot.slane %v1099, %v1112
    %v1114 = vcombine.low %v1106, %v1113
    %1116 = vst [vmem:[%s4] sm:$0xff] %v1114
    // Predicated region
    $region18: #{da_feature_discriminator_v4.6} parent=1 // pred_check
      _
    $region19: #{da_feature_discriminator_v4.6} parent=1 // pred_check_branch
      %1118 = sbr.rel (0) target = $region21
    $region20: #{da_feature_discriminator_v4.6} parent=1 // pred_region
      _
    $region21: #{da_feature_discriminator_v4.6} parent=1 // pred_fallthru
      _
    // Predicated region
    $region22: #{da_feature_discriminator_v4.6} parent=1 // pred_check
      _
    $region23: #{da_feature_discriminator_v4.6} parent=1 // pred_check_branch
      %1120 = sbr.rel (0) target = $region25
    $region24: #{da_feature_discriminator_v4.6} parent=1 // pred_region
      _
    $region25: #{da_feature_discriminator_v4.6} parent=1 // pred_fallthru
      _
    // Predicated region
    $region26: #{da_feature_discriminator_v4.6} parent=1 // pred_check
      _
    $region27: #{da_feature_discriminator_v4.6} parent=1 // pred_check_branch
      %1122 = sbr.rel (0) target = $region29
    $region28: #{da_feature_discriminator_v4.6} parent=1 // pred_region
      _
    $region29: #{da_feature_discriminator_v4.6} parent=1 // pred_fallthru
      _
    // Predicated region
    $region30: #{da_feature_discriminator_v4.6} parent=1 // pred_check
      _
    $region31: #{da_feature_discriminator_v4.6} parent=1 // pred_check_branch
      %1124 = sbr.rel (0) target = $region33
    $region32: #{da_feature_discriminator_v4.6} parent=1 // pred_region
      _
    $region33: #{da_feature_discriminator_v4.6} parent=1 // pred_fallthru
      _
    %1125 = vsyncpa [#allocation3], 1

// kernel: da_feature_discriminator_v4.7
$region0: #{da_feature_discriminator_v4.7}
  #allocation0 [shape = 'u32[]', space=smem, size = 0x4, offset = 0x4, fixed_abs, tag = 'smem constant byte address 0x4 - core index']
  #allocation1 [shape = 'u32[144,128]{1,0:T(1,128)}', space=vmem, size = 0x12000, scoped, tag = 'internal scratch']
  %s0 = inlined_call_operand.vmem [shape: f32[128,512], index: 0, kind: input, shape index: {}]
  %s1 = inlined_call_operand.vmem [shape: f32[1,512], index: 1, kind: input, shape index: {}]
  %s2 = inlined_call_operand.vmem [shape: f32[1,512], index: 2, kind: input, shape index: {}]
  %s3 = inlined_call_operand.vmem [shape: bf16[128,512], index: 3, kind: output, shape index: {}]
  %s4 = sld [smem:[#allocation0]]
  $region22: #{da_feature_discriminator_v4.7} parent=0
    _
  %s6 = ssub.s32 1, %s4
  %s7 = scalar_select 0, %s6, %s4
  // Predicated region
  $region2: #{da_feature_discriminator_v4.7} parent=0 // pred_check
    _
  $region3: #{da_feature_discriminator_v4.7} parent=0 // pred_check_branch
    %9 = sbr.rel (0) target = $region5
  $region4: #{da_feature_discriminator_v4.7} parent=0 // pred_region
    _
  $region5: #{da_feature_discriminator_v4.7} parent=0 // pred_fallthru
    _
  // Predicated region
  $region6: #{da_feature_discriminator_v4.7} parent=0 // pred_check
    _
  $region7: #{da_feature_discriminator_v4.7} parent=0 // pred_check_branch
    %11 = sbr.rel (0) target = $region9
  $region8: #{da_feature_discriminator_v4.7} parent=0 // pred_region
    _
  $region9: #{da_feature_discriminator_v4.7} parent=0 // pred_fallthru
    _
  // Predicated region
  $region10: #{da_feature_discriminator_v4.7} parent=0 // pred_check
    _
  $region11: #{da_feature_discriminator_v4.7} parent=0 // pred_check_branch
    %13 = sbr.rel (0) target = $region13
  $region12: #{da_feature_discriminator_v4.7} parent=0 // pred_region
    _
  $region13: #{da_feature_discriminator_v4.7} parent=0 // pred_fallthru
    _
  %v14 = vld [vmem:[%s0] sm:$0xff]
  %v15 = vld [vmem:[%s0 + $0x8] sm:$0xff]
  %v16 = vld [vmem:[%s0 + $0x10] sm:$0xff]
  %v17 = vld [vmem:[%s0 + $0x18] sm:$0xff]
  %v18 = vld [vmem:[%s0 + $0x20] sm:$0xff]
  %v19 = vld [vmem:[%s0 + $0x28] sm:$0xff]
  %v20 = vld [vmem:[%s0 + $0x30] sm:$0xff]
  %v21 = vld [vmem:[%s0 + $0x38] sm:$0xff]
  %v22 = vld [vmem:[%s0 + $0x40] sm:$0xff]
  %v23 = vld [vmem:[%s0 + $0x48] sm:$0xff]
  %v24 = vld [vmem:[%s0 + $0x50] sm:$0xff]
  %v25 = vld [vmem:[%s0 + $0x58] sm:$0xff]
  %v26 = vld [vmem:[%s0 + $0x60] sm:$0xff]
  %v27 = vld [vmem:[%s0 + $0x68] sm:$0xff]
  %v28 = vld [vmem:[%s0 + $0x70] sm:$0xff]
  %v29 = vld [vmem:[%s0 + $0x78] sm:$0xff]
  %v30 = vld [vmem:[%s0 + $0x80] sm:$0xff]
  %v31 = vld [vmem:[%s0 + $0x88] sm:$0xff]
  %v32 = vld [vmem:[%s0 + $0x90] sm:$0xff]
  %v33 = vld [vmem:[%s0 + $0x98] sm:$0xff]
  %v34 = vld [vmem:[%s0 + $0xa0] sm:$0xff]
  %v35 = vld [vmem:[%s0 + $0xa8] sm:$0xff]
  %v36 = vld [vmem:[%s0 + $0xb0] sm:$0xff]
  %v37 = vld [vmem:[%s0 + $0xb8] sm:$0xff]
  %v38 = vld [vmem:[%s0 + $0xc0] sm:$0xff]
  %v39 = vld [vmem:[%s0 + $0xc8] sm:$0xff]
  %v40 = vld [vmem:[%s0 + $0xd0] sm:$0xff]
  %v41 = vld [vmem:[%s0 + $0xd8] sm:$0xff]
  %v42 = vld [vmem:[%s0 + $0xe0] sm:$0xff]
  %v43 = vld [vmem:[%s0 + $0xe8] sm:$0xff]
  %v44 = vld [vmem:[%s0 + $0xf0] sm:$0xff]
  %v45 = vld [vmem:[%s0 + $0xf8] sm:$0xff]
  %v46 = vld [vmem:[%s0 + $0x100] sm:$0xff]
  %v47 = vld [vmem:[%s0 + $0x108] sm:$0xff]
  %v48 = vld [vmem:[%s0 + $0x110] sm:$0xff]
  %v49 = vld [vmem:[%s0 + $0x118] sm:$0xff]
  %v50 = vld [vmem:[%s0 + $0x120] sm:$0xff]
  %v51 = vld [vmem:[%s0 + $0x128] sm:$0xff]
  %v52 = vld [vmem:[%s0 + $0x130] sm:$0xff]
  %v53 = vld [vmem:[%s0 + $0x138] sm:$0xff]
  %v54 = vld [vmem:[%s0 + $0x140] sm:$0xff]
  %v55 = vld [vmem:[%s0 + $0x148] sm:$0xff]
  %v56 = vld [vmem:[%s0 + $0x150] sm:$0xff]
  %v57 = vld [vmem:[%s0 + $0x158] sm:$0xff]
  %v58 = vld [vmem:[%s0 + $0x160] sm:$0xff]
  %v59 = vld [vmem:[%s0 + $0x168] sm:$0xff]
  %v60 = vld [vmem:[%s0 + $0x170] sm:$0xff]
  %v61 = vld [vmem:[%s0 + $0x178] sm:$0xff]
  %v62 = vld [vmem:[%s0 + $0x180] sm:$0xff]
  %v63 = vld [vmem:[%s0 + $0x188] sm:$0xff]
  %v64 = vld [vmem:[%s0 + $0x190] sm:$0xff]
  %v65 = vld [vmem:[%s0 + $0x198] sm:$0xff]
  %v66 = vld [vmem:[%s0 + $0x1a0] sm:$0xff]
  %v67 = vld [vmem:[%s0 + $0x1a8] sm:$0xff]
  %v68 = vld [vmem:[%s0 + $0x1b0] sm:$0xff]
  %v69 = vld [vmem:[%s0 + $0x1b8] sm:$0xff]
  %v70 = vld [vmem:[%s0 + $0x1c0] sm:$0xff]
  %v71 = vld [vmem:[%s0 + $0x1c8] sm:$0xff]
  %v72 = vld [vmem:[%s0 + $0x1d0] sm:$0xff]
  %v73 = vld [vmem:[%s0 + $0x1d8] sm:$0xff]
  %v74 = vld [vmem:[%s0 + $0x1e0] sm:$0xff]
  %v75 = vld [vmem:[%s0 + $0x1e8] sm:$0xff]
  %v76 = vld [vmem:[%s0 + $0x1f0] sm:$0xff]
  %v77 = vld [vmem:[%s0 + $0x1f8] sm:$0xff]
  %v78 = vld [vmem:[%s1] sm:$0xf]
  %v80 = vlaneseq
  %v81 = vshrl.u32 %v80, 7
  %v82 = vsub.s32 0, %v81
  %v83 = vrot.slane %v78, %v82
  %v84 = vlaneseq
  %v85 = vshrl.u32 %v84, 7
  %v86 = vsub.s32 1, %v85
  %v87 = vrot.slane %v78, %v86
  %v88 = vlaneseq
  %v89 = vshrl.u32 %v88, 7
  %v90 = vsub.s32 2, %v89
  %v91 = vrot.slane %v78, %v90
  %v92 = vlaneseq
  %v93 = vshrl.u32 %v92, 7
  %v94 = vsub.s32 3, %v93
  %v95 = vrot.slane %v78, %v94
  %v100 = vsub.f32 %v14, %v83
  %v101 = vsub.f32 %v15, %v87
  %v102 = vsub.f32 %v16, %v91
  %v103 = vsub.f32 %v17, %v95
  %v104 = vsub.f32 %v18, %v83
  %v105 = vsub.f32 %v19, %v87
  %v106 = vsub.f32 %v20, %v91
  %v107 = vsub.f32 %v21, %v95
  %v108 = vsub.f32 %v22, %v83
  %v109 = vsub.f32 %v23, %v87
  %v110 = vsub.f32 %v24, %v91
  %v111 = vsub.f32 %v25, %v95
  %v112 = vsub.f32 %v26, %v83
  %v113 = vsub.f32 %v27, %v87
  %v114 = vsub.f32 %v28, %v91
  %v115 = vsub.f32 %v29, %v95
  %v116 = vsub.f32 %v30, %v83
  %v117 = vsub.f32 %v31, %v87
  %v118 = vsub.f32 %v32, %v91
  %v119 = vsub.f32 %v33, %v95
  %v120 = vsub.f32 %v34, %v83
  %v121 = vsub.f32 %v35, %v87
  %v122 = vsub.f32 %v36, %v91
  %v123 = vsub.f32 %v37, %v95
  %v124 = vsub.f32 %v38, %v83
  %v125 = vsub.f32 %v39, %v87
  %v126 = vsub.f32 %v40, %v91
  %v127 = vsub.f32 %v41, %v95
  %v128 = vsub.f32 %v42, %v83
  %v129 = vsub.f32 %v43, %v87
  %v130 = vsub.f32 %v44, %v91
  %v131 = vsub.f32 %v45, %v95
  %v132 = vsub.f32 %v46, %v83
  %v133 = vsub.f32 %v47, %v87
  %v134 = vsub.f32 %v48, %v91
  %v135 = vsub.f32 %v49, %v95
  %v136 = vsub.f32 %v50, %v83
  %v137 = vsub.f32 %v51, %v87
  %v138 = vsub.f32 %v52, %v91
  %v139 = vsub.f32 %v53, %v95
  %v140 = vsub.f32 %v54, %v83
  %v141 = vsub.f32 %v55, %v87
  %v142 = vsub.f32 %v56, %v91
  %v143 = vsub.f32 %v57, %v95
  %v144 = vsub.f32 %v58, %v83
  %v145 = vsub.f32 %v59, %v87
  %v146 = vsub.f32 %v60, %v91
  %v147 = vsub.f32 %v61, %v95
  %v148 = vsub.f32 %v62, %v83
  %v149 = vsub.f32 %v63, %v87
  %v150 = vsub.f32 %v64, %v91
  %v151 = vsub.f32 %v65, %v95
  %v152 = vsub.f32 %v66, %v83
  %v153 = vsub.f32 %v67, %v87
  %v154 = vsub.f32 %v68, %v91
  %v155 = vsub.f32 %v69, %v95
  %v156 = vsub.f32 %v70, %v83
  %v157 = vsub.f32 %v71, %v87
  %v158 = vsub.f32 %v72, %v91
  %v159 = vsub.f32 %v73, %v95
  %v160 = vsub.f32 %v74, %v83
  %v161 = vsub.f32 %v75, %v87
  %v162 = vsub.f32 %v76, %v91
  %v163 = vsub.f32 %v77, %v95
  %v164 = vld [vmem:[%s2] sm:$0xf]
  %v166 = vlaneseq
  %v167 = vshrl.u32 %v166, 7
  %v168 = vsub.s32 0, %v167
  %v169 = vrot.slane %v164, %v168
  %v170 = vlaneseq
  %v171 = vshrl.u32 %v170, 7
  %v172 = vsub.s32 1, %v171
  %v173 = vrot.slane %v164, %v172
  %v174 = vlaneseq
  %v175 = vshrl.u32 %v174, 7
  %v176 = vsub.s32 2, %v175
  %v177 = vrot.slane %v164, %v176
  %v178 = vlaneseq
  %v179 = vshrl.u32 %v178, 7
  %v180 = vsub.s32 3, %v179
  %v181 = vrot.slane %v164, %v180
  %v186 = vmul.f32 %v100, %v169
  %v187 = vmul.f32 %v101, %v173
  %v188 = vmul.f32 %v102, %v177
  %v189 = vmul.f32 %v103, %v181
  %v190 = vmul.f32 %v104, %v169
  %v191 = vmul.f32 %v105, %v173
  %v192 = vmul.f32 %v106, %v177
  %v193 = vmul.f32 %v107, %v181
  %v194 = vmul.f32 %v108, %v169
  %v195 = vmul.f32 %v109, %v173
  %v196 = vmul.f32 %v110, %v177
  %v197 = vmul.f32 %v111, %v181
  %v198 = vmul.f32 %v112, %v169
  %v199 = vmul.f32 %v113, %v173
  %v200 = vmul.f32 %v114, %v177
  %v201 = vmul.f32 %v115, %v181
  %v202 = vmul.f32 %v116, %v169
  %v203 = vmul.f32 %v117, %v173
  %v204 = vmul.f32 %v118, %v177
  %v205 = vmul.f32 %v119, %v181
  %v206 = vmul.f32 %v120, %v169
  %v207 = vmul.f32 %v121, %v173
  %v208 = vmul.f32 %v122, %v177
  %v209 = vmul.f32 %v123, %v181
  %v210 = vmul.f32 %v124, %v169
  %v211 = vmul.f32 %v125, %v173
  %v212 = vmul.f32 %v126, %v177
  %v213 = vmul.f32 %v127, %v181
  %v214 = vmul.f32 %v128, %v169
  %v215 = vmul.f32 %v129, %v173
  %v216 = vmul.f32 %v130, %v177
  %v217 = vmul.f32 %v131, %v181
  %v218 = vmul.f32 %v132, %v169
  %v219 = vmul.f32 %v133, %v173
  %v220 = vmul.f32 %v134, %v177
  %v221 = vmul.f32 %v135, %v181
  %v222 = vmul.f32 %v136, %v169
  %v223 = vmul.f32 %v137, %v173
  %v224 = vmul.f32 %v138, %v177
  %v225 = vmul.f32 %v139, %v181
  %v226 = vmul.f32 %v140, %v169
  %v227 = vmul.f32 %v141, %v173
  %v228 = vmul.f32 %v142, %v177
  %v229 = vmul.f32 %v143, %v181
  %v230 = vmul.f32 %v144, %v169
  %v231 = vmul.f32 %v145, %v173
  %v232 = vmul.f32 %v146, %v177
  %v233 = vmul.f32 %v147, %v181
  %v234 = vmul.f32 %v148, %v169
  %v235 = vmul.f32 %v149, %v173
  %v236 = vmul.f32 %v150, %v177
  %v237 = vmul.f32 %v151, %v181
  %v238 = vmul.f32 %v152, %v169
  %v239 = vmul.f32 %v153, %v173
  %v240 = vmul.f32 %v154, %v177
  %v241 = vmul.f32 %v155, %v181
  %v242 = vmul.f32 %v156, %v169
  %v243 = vmul.f32 %v157, %v173
  %v244 = vmul.f32 %v158, %v177
  %v245 = vmul.f32 %v159, %v181
  %v246 = vmul.f32 %v160, %v169
  %v247 = vmul.f32 %v161, %v173
  %v248 = vmul.f32 %v162, %v177
  %v249 = vmul.f32 %v163, %v181
  %v250 = vpack.c.bf16 %v190, %v186
  %v251 = vpack.c.bf16 %v191, %v187
  %v252 = vpack.c.bf16 %v192, %v188
  %v253 = vpack.c.bf16 %v193, %v189
  %v254 = vpack.c.bf16 %v198, %v194
  %v255 = vpack.c.bf16 %v199, %v195
  %v256 = vpack.c.bf16 %v200, %v196
  %v257 = vpack.c.bf16 %v201, %v197
  %v258 = vpack.c.bf16 %v206, %v202
  %v259 = vpack.c.bf16 %v207, %v203
  %v260 = vpack.c.bf16 %v208, %v204
  %v261 = vpack.c.bf16 %v209, %v205
  %v262 = vpack.c.bf16 %v214, %v210
  %v263 = vpack.c.bf16 %v215, %v211
  %v264 = vpack.c.bf16 %v216, %v212
  %v265 = vpack.c.bf16 %v217, %v213
  %v266 = vpack.c.bf16 %v222, %v218
  %v267 = vpack.c.bf16 %v223, %v219
  %v268 = vpack.c.bf16 %v224, %v220
  %v269 = vpack.c.bf16 %v225, %v221
  %v270 = vpack.c.bf16 %v230, %v226
  %v271 = vpack.c.bf16 %v231, %v227
  %v272 = vpack.c.bf16 %v232, %v228
  %v273 = vpack.c.bf16 %v233, %v229
  %v274 = vpack.c.bf16 %v238, %v234
  %v275 = vpack.c.bf16 %v239, %v235
  %v276 = vpack.c.bf16 %v240, %v236
  %v277 = vpack.c.bf16 %v241, %v237
  %v278 = vpack.c.bf16 %v246, %v242
  %v279 = vpack.c.bf16 %v247, %v243
  %v280 = vpack.c.bf16 %v248, %v244
  %v281 = vpack.c.bf16 %v249, %v245
  %v314 = vunpack.c.l.b16 %v250
  %v315 = vunpack.c.l.b16 %v251
  %v316 = vunpack.c.l.b16 %v252
  %v317 = vunpack.c.l.b16 %v253
  %v318 = vunpack.c.h.b16 %v250
  %v319 = vunpack.c.h.b16 %v251
  %v320 = vunpack.c.h.b16 %v252
  %v321 = vunpack.c.h.b16 %v253
  %v322 = vunpack.c.l.b16 %v254
  %v323 = vunpack.c.l.b16 %v255
  %v324 = vunpack.c.l.b16 %v256
  %v325 = vunpack.c.l.b16 %v257
  %v326 = vunpack.c.h.b16 %v254
  %v327 = vunpack.c.h.b16 %v255
  %v328 = vunpack.c.h.b16 %v256
  %v329 = vunpack.c.h.b16 %v257
  %v330 = vunpack.c.l.b16 %v258
  %v331 = vunpack.c.l.b16 %v259
  %v332 = vunpack.c.l.b16 %v260
  %v333 = vunpack.c.l.b16 %v261
  %v334 = vunpack.c.h.b16 %v258
  %v335 = vunpack.c.h.b16 %v259
  %v336 = vunpack.c.h.b16 %v260
  %v337 = vunpack.c.h.b16 %v261
  %v338 = vunpack.c.l.b16 %v262
  %v339 = vunpack.c.l.b16 %v263
  %v340 = vunpack.c.l.b16 %v264
  %v341 = vunpack.c.l.b16 %v265
  %v342 = vunpack.c.h.b16 %v262
  %v343 = vunpack.c.h.b16 %v263
  %v344 = vunpack.c.h.b16 %v264
  %v345 = vunpack.c.h.b16 %v265
  %v346 = vunpack.c.l.b16 %v266
  %v347 = vunpack.c.l.b16 %v267
  %v348 = vunpack.c.l.b16 %v268
  %v349 = vunpack.c.l.b16 %v269
  %v350 = vunpack.c.h.b16 %v266
  %v351 = vunpack.c.h.b16 %v267
  %v352 = vunpack.c.h.b16 %v268
  %v353 = vunpack.c.h.b16 %v269
  %v354 = vunpack.c.l.b16 %v270
  %v355 = vunpack.c.l.b16 %v271
  %v356 = vunpack.c.l.b16 %v272
  %v357 = vunpack.c.l.b16 %v273
  %v358 = vunpack.c.h.b16 %v270
  %v359 = vunpack.c.h.b16 %v271
  %v360 = vunpack.c.h.b16 %v272
  %v361 = vunpack.c.h.b16 %v273
  %v362 = vunpack.c.l.b16 %v274
  %v363 = vunpack.c.l.b16 %v275
  %v364 = vunpack.c.l.b16 %v276
  %v365 = vunpack.c.l.b16 %v277
  %v366 = vunpack.c.h.b16 %v274
  %v367 = vunpack.c.h.b16 %v275
  %v368 = vunpack.c.h.b16 %v276
  %v369 = vunpack.c.h.b16 %v277
  %v370 = vunpack.c.l.b16 %v278
  %v371 = vunpack.c.l.b16 %v279
  %v372 = vunpack.c.l.b16 %v280
  %v373 = vunpack.c.l.b16 %v281
  %v374 = vunpack.c.h.b16 %v278
  %v375 = vunpack.c.h.b16 %v279
  %v376 = vunpack.c.h.b16 %v280
  %v377 = vunpack.c.h.b16 %v281
  %v378 = vpack.c.b16 %v315, %v314
  %v379 = vpack.c.b16 %v317, %v316
  %v380 = vpack.c.b16 %v319, %v318
  %v381 = vpack.c.b16 %v321, %v320
  %v382 = vpack.c.b16 %v323, %v322
  %v383 = vpack.c.b16 %v325, %v324
  %v384 = vpack.c.b16 %v327, %v326
  %v385 = vpack.c.b16 %v329, %v328
  %v386 = vpack.c.b16 %v331, %v330
  %v387 = vpack.c.b16 %v333, %v332
  %v388 = vpack.c.b16 %v335, %v334
  %v389 = vpack.c.b16 %v337, %v336
  %v390 = vpack.c.b16 %v339, %v338
  %v391 = vpack.c.b16 %v341, %v340
  %v392 = vpack.c.b16 %v343, %v342
  %v393 = vpack.c.b16 %v345, %v344
  %v394 = vpack.c.b16 %v347, %v346
  %v395 = vpack.c.b16 %v349, %v348
  %v396 = vpack.c.b16 %v351, %v350
  %v397 = vpack.c.b16 %v353, %v352
  %v398 = vpack.c.b16 %v355, %v354
  %v399 = vpack.c.b16 %v357, %v356
  %v400 = vpack.c.b16 %v359, %v358
  %v401 = vpack.c.b16 %v361, %v360
  %v402 = vpack.c.b16 %v363, %v362
  %v403 = vpack.c.b16 %v365, %v364
  %v404 = vpack.c.b16 %v367, %v366
  %v405 = vpack.c.b16 %v369, %v368
  %v406 = vpack.c.b16 %v371, %v370
  %v407 = vpack.c.b16 %v373, %v372
  %v408 = vpack.c.b16 %v375, %v374
  %v409 = vpack.c.b16 %v377, %v376
  %442 = vst [vmem:[%s3] sm:$0xff] %v378
  %443 = vst [vmem:[%s3 + $0x8] sm:$0xff] %v379
  %444 = vst [vmem:[%s3 + $0x10] sm:$0xff] %v380
  %445 = vst [vmem:[%s3 + $0x18] sm:$0xff] %v381
  %446 = vst [vmem:[%s3 + $0x20] sm:$0xff] %v382
  %447 = vst [vmem:[%s3 + $0x28] sm:$0xff] %v383
  %448 = vst [vmem:[%s3 + $0x30] sm:$0xff] %v384
  %449 = vst [vmem:[%s3 + $0x38] sm:$0xff] %v385
  %450 = vst [vmem:[%s3 + $0x40] sm:$0xff] %v386
  %451 = vst [vmem:[%s3 + $0x48] sm:$0xff] %v387
  %452 = vst [vmem:[%s3 + $0x50] sm:$0xff] %v388
  %453 = vst [vmem:[%s3 + $0x58] sm:$0xff] %v389
  %454 = vst [vmem:[%s3 + $0x60] sm:$0xff] %v390
  %455 = vst [vmem:[%s3 + $0x68] sm:$0xff] %v391
  %456 = vst [vmem:[%s3 + $0x70] sm:$0xff] %v392
  %457 = vst [vmem:[%s3 + $0x78] sm:$0xff] %v393
  %458 = vst [vmem:[%s3 + $0x80] sm:$0xff] %v394
  %459 = vst [vmem:[%s3 + $0x88] sm:$0xff] %v395
  %460 = vst [vmem:[%s3 + $0x90] sm:$0xff] %v396
  %461 = vst [vmem:[%s3 + $0x98] sm:$0xff] %v397
  %462 = vst [vmem:[%s3 + $0xa0] sm:$0xff] %v398
  %463 = vst [vmem:[%s3 + $0xa8] sm:$0xff] %v399
  %464 = vst [vmem:[%s3 + $0xb0] sm:$0xff] %v400
  %465 = vst [vmem:[%s3 + $0xb8] sm:$0xff] %v401
  %466 = vst [vmem:[%s3 + $0xc0] sm:$0xff] %v402
  %467 = vst [vmem:[%s3 + $0xc8] sm:$0xff] %v403
  %468 = vst [vmem:[%s3 + $0xd0] sm:$0xff] %v404
  %469 = vst [vmem:[%s3 + $0xd8] sm:$0xff] %v405
  %470 = vst [vmem:[%s3 + $0xe0] sm:$0xff] %v406
  %471 = vst [vmem:[%s3 + $0xe8] sm:$0xff] %v407
  %472 = vst [vmem:[%s3 + $0xf0] sm:$0xff] %v408
  %473 = vst [vmem:[%s3 + $0xf8] sm:$0xff] %v409
  // Predicated region
  $region14: #{da_feature_discriminator_v4.7} parent=0 // pred_check
    _
  $region15: #{da_feature_discriminator_v4.7} parent=0 // pred_check_branch
    %475 = sbr.rel (0) target = $region17
  $region16: #{da_feature_discriminator_v4.7} parent=0 // pred_region
    _
  $region17: #{da_feature_discriminator_v4.7} parent=0 // pred_fallthru
    _
  // Predicated region
  $region18: #{da_feature_discriminator_v4.7} parent=0 // pred_check
    _
  $region19: #{da_feature_discriminator_v4.7} parent=0 // pred_check_branch
    %477 = sbr.rel (0) target = $region21
  $region20: #{da_feature_discriminator_v4.7} parent=0 // pred_region
    _
  $region21: #{da_feature_discriminator_v4.7} parent=0 // pred_fallthru
    _

// kernel: da_feature_discriminator_v4.9
$region0: #{da_feature_discriminator_v4.9}
  #allocation0 [shape = 'u32[]', space=smem, size = 0x4, offset = 0x4, fixed_abs, tag = 'smem constant byte address 0x4 - core index']
  #allocation1 [shape = 'u32[144,128]{1,0:T(1,128)}', space=vmem, size = 0x12000, scoped, tag = 'internal scratch']
  %s0 = inlined_call_operand.vmem [shape: f32[32,256], index: 0, kind: input, shape index: {}]
  %s1 = inlined_call_operand.vmem [shape: f32[1,256], index: 1, kind: input, shape index: {}]
  %s2 = inlined_call_operand.vmem [shape: f32[1,256], index: 2, kind: input, shape index: {}]
  %s3 = inlined_call_operand.vmem [shape: bf16[32,256], index: 3, kind: output, shape index: {}]
  %s4 = sld [smem:[#allocation0]]
  $region22: #{da_feature_discriminator_v4.9} parent=0
    _
  %s6 = ssub.s32 1, %s4
  %s7 = scalar_select 0, %s6, %s4
  // Predicated region
  $region2: #{da_feature_discriminator_v4.9} parent=0 // pred_check
    _
  $region3: #{da_feature_discriminator_v4.9} parent=0 // pred_check_branch
    %9 = sbr.rel (0) target = $region5
  $region4: #{da_feature_discriminator_v4.9} parent=0 // pred_region
    _
  $region5: #{da_feature_discriminator_v4.9} parent=0 // pred_fallthru
    _
  // Predicated region
  $region6: #{da_feature_discriminator_v4.9} parent=0 // pred_check
    _
  $region7: #{da_feature_discriminator_v4.9} parent=0 // pred_check_branch
    %11 = sbr.rel (0) target = $region9
  $region8: #{da_feature_discriminator_v4.9} parent=0 // pred_region
    _
  $region9: #{da_feature_discriminator_v4.9} parent=0 // pred_fallthru
    _
  // Predicated region
  $region10: #{da_feature_discriminator_v4.9} parent=0 // pred_check
    _
  $region11: #{da_feature_discriminator_v4.9} parent=0 // pred_check_branch
    %13 = sbr.rel (0) target = $region13
  $region12: #{da_feature_discriminator_v4.9} parent=0 // pred_region
    _
  $region13: #{da_feature_discriminator_v4.9} parent=0 // pred_fallthru
    _
  %v14 = vld [vmem:[%s0] sm:$0xff]
  %v15 = vld [vmem:[%s0 + $0x8] sm:$0xff]
  %v16 = vld [vmem:[%s0 + $0x10] sm:$0xff]
  %v17 = vld [vmem:[%s0 + $0x18] sm:$0xff]
  %v18 = vld [vmem:[%s0 + $0x20] sm:$0xff]
  %v19 = vld [vmem:[%s0 + $0x28] sm:$0xff]
  %v20 = vld [vmem:[%s0 + $0x30] sm:$0xff]
  %v21 = vld [vmem:[%s0 + $0x38] sm:$0xff]
  %v22 = vld [vmem:[%s1] sm:$0x3]
  %v24 = vlaneseq
  %v25 = vshrl.u32 %v24, 7
  %v26 = vsub.s32 0, %v25
  %v27 = vrot.slane %v22, %v26
  %v28 = vlaneseq
  %v29 = vshrl.u32 %v28, 7
  %v30 = vsub.s32 1, %v29
  %v31 = vrot.slane %v22, %v30
  %v34 = vsub.f32 %v14, %v27
  %v35 = vsub.f32 %v15, %v31
  %v36 = vsub.f32 %v16, %v27
  %v37 = vsub.f32 %v17, %v31
  %v38 = vsub.f32 %v18, %v27
  %v39 = vsub.f32 %v19, %v31
  %v40 = vsub.f32 %v20, %v27
  %v41 = vsub.f32 %v21, %v31
  %v42 = vld [vmem:[%s2] sm:$0x3]
  %v44 = vlaneseq
  %v45 = vshrl.u32 %v44, 7
  %v46 = vsub.s32 0, %v45
  %v47 = vrot.slane %v42, %v46
  %v48 = vlaneseq
  %v49 = vshrl.u32 %v48, 7
  %v50 = vsub.s32 1, %v49
  %v51 = vrot.slane %v42, %v50
  %v54 = vmul.f32 %v34, %v47
  %v55 = vmul.f32 %v35, %v51
  %v56 = vmul.f32 %v36, %v47
  %v57 = vmul.f32 %v37, %v51
  %v58 = vmul.f32 %v38, %v47
  %v59 = vmul.f32 %v39, %v51
  %v60 = vmul.f32 %v40, %v47
  %v61 = vmul.f32 %v41, %v51
  %v62 = vpack.c.bf16 %v56, %v54
  %v63 = vpack.c.bf16 %v57, %v55
  %v64 = vpack.c.bf16 %v60, %v58
  %v65 = vpack.c.bf16 %v61, %v59
  %v70 = vunpack.c.l.b16 %v62
  %v71 = vunpack.c.l.b16 %v63
  %v72 = vunpack.c.h.b16 %v62
  %v73 = vunpack.c.h.b16 %v63
  %v74 = vunpack.c.l.b16 %v64
  %v75 = vunpack.c.l.b16 %v65
  %v76 = vunpack.c.h.b16 %v64
  %v77 = vunpack.c.h.b16 %v65
  %v78 = vpack.c.b16 %v71, %v70
  %v79 = vpack.c.b16 %v73, %v72
  %v80 = vpack.c.b16 %v75, %v74
  %v81 = vpack.c.b16 %v77, %v76
  %86 = vst [vmem:[%s3] sm:$0xff] %v78
  %87 = vst [vmem:[%s3 + $0x8] sm:$0xff] %v79
  %88 = vst [vmem:[%s3 + $0x10] sm:$0xff] %v80
  %89 = vst [vmem:[%s3 + $0x18] sm:$0xff] %v81
  // Predicated region
  $region14: #{da_feature_discriminator_v4.9} parent=0 // pred_check
    _
  $region15: #{da_feature_discriminator_v4.9} parent=0 // pred_check_branch
    %91 = sbr.rel (0) target = $region17
  $region16: #{da_feature_discriminator_v4.9} parent=0 // pred_region
    _
  $region17: #{da_feature_discriminator_v4.9} parent=0 // pred_fallthru
    _
  // Predicated region
  $region18: #{da_feature_discriminator_v4.9} parent=0 // pred_check
    _
  $region19: #{da_feature_discriminator_v4.9} parent=0 // pred_check_branch
    %93 = sbr.rel (0) target = $region21
  $region20: #{da_feature_discriminator_v4.9} parent=0 // pred_region
    _
  $region21: #{da_feature_discriminator_v4.9} parent=0 // pred_fallthru
    _

// kernel: da_feature_discriminator_v4.10
$region0: #{da_feature_discriminator_v4.10}
  #allocation0 [shape = 'u32[]', space=smem, size = 0x4, offset = 0x4, fixed_abs, tag = 'smem constant byte address 0x4 - core index']
  #allocation1 [shape = 'u32[144,128]{1,0:T(1,128)}', space=vmem, size = 0x12000, scoped, tag = 'internal scratch']
  %s0 = inlined_call_operand.vmem [shape: bf16[8,4096], index: 0, kind: input, shape index: {}]
  %s1 = inlined_call_operand.vmem [shape: bf16[4096,128], index: 1, kind: input, shape index: {}]
  %s2 = inlined_call_operand.vmem [shape: f32[1,128], index: 2, kind: input, shape index: {}]
  %s3 = inlined_call_operand.vmem [shape: f32[8,128], index: 3, kind: output, shape index: {0}]
  %s4 = inlined_call_operand.vmem [shape: f32[1,2,128], index: 4, kind: output, shape index: {1}]
  %5 = xla_tuple %s3, %s4
  %s6 = sld [smem:[#allocation0]]
  $region30: #{da_feature_discriminator_v4.10} parent=0
    _
  %s8 = ssub.s32 1, %s6
  %s9 = scalar_select 0, %s8, %s6
  // Predicated region
  $region2: #{da_feature_discriminator_v4.10} parent=0 // pred_check
    _
  $region3: #{da_feature_discriminator_v4.10} parent=0 // pred_check_branch
    %11 = sbr.rel (0) target = $region5
  $region4: #{da_feature_discriminator_v4.10} parent=0 // pred_region
    _
  $region5: #{da_feature_discriminator_v4.10} parent=0 // pred_fallthru
    _
  // Predicated region
  $region6: #{da_feature_discriminator_v4.10} parent=0 // pred_check
    _
  $region7: #{da_feature_discriminator_v4.10} parent=0 // pred_check_branch
    %13 = sbr.rel (0) target = $region9
  $region8: #{da_feature_discriminator_v4.10} parent=0 // pred_region
    _
  $region9: #{da_feature_discriminator_v4.10} parent=0 // pred_fallthru
    _
  // Predicated region
  $region10: #{da_feature_discriminator_v4.10} parent=0 // pred_check
    _
  $region11: #{da_feature_discriminator_v4.10} parent=0 // pred_check_branch
    %15 = sbr.rel (0) target = $region13
  $region12: #{da_feature_discriminator_v4.10} parent=0 // pred_region
    _
  $region13: #{da_feature_discriminator_v4.10} parent=0 // pred_fallthru
    _
  %v17 = vld [vmem:[%s0] sm:$0xff]
  %v18 = vld [vmem:[%s0 + $0x8] sm:$0xff]
  %v19 = vld [vmem:[%s0 + $0x10] sm:$0xff]
  %v20 = vld [vmem:[%s0 + $0x18] sm:$0xff]
  %v21 = vld [vmem:[%s0 + $0x20] sm:$0xff]
  %v22 = vld [vmem:[%s0 + $0x28] sm:$0xff]
  %v23 = vld [vmem:[%s0 + $0x30] sm:$0xff]
  %v24 = vld [vmem:[%s0 + $0x38] sm:$0xff]
  %v25 = vld [vmem:[%s0 + $0x40] sm:$0xff]
  %v26 = vld [vmem:[%s0 + $0x48] sm:$0xff]
  %v27 = vld [vmem:[%s0 + $0x50] sm:$0xff]
  %v28 = vld [vmem:[%s0 + $0x58] sm:$0xff]
  %v29 = vld [vmem:[%s0 + $0x60] sm:$0xff]
  %v30 = vld [vmem:[%s0 + $0x68] sm:$0xff]
  %v31 = vld [vmem:[%s0 + $0x70] sm:$0xff]
  %v32 = vld [vmem:[%s0 + $0x78] sm:$0xff]
  %v33 = vld [vmem:[%s1] sm:$0xf]
  %v34 = vld [vmem:[%s1 + $0x4] sm:$0xf]
  %v35 = vld [vmem:[%s1 + $0x8] sm:$0xf]
  %v36 = vld [vmem:[%s1 + $0xc] sm:$0xf]
  %v37 = vld [vmem:[%s1 + $0x10] sm:$0xf]
  %v38 = vld [vmem:[%s1 + $0x14] sm:$0xf]
  %v39 = vld [vmem:[%s1 + $0x18] sm:$0xf]
  %v40 = vld [vmem:[%s1 + $0x1c] sm:$0xf]
  %v41 = vld [vmem:[%s1 + $0x20] sm:$0xf]
  %v42 = vld [vmem:[%s1 + $0x24] sm:$0xf]
  %v43 = vld [vmem:[%s1 + $0x28] sm:$0xf]
  %v44 = vld [vmem:[%s1 + $0x2c] sm:$0xf]
  %v45 = vld [vmem:[%s1 + $0x30] sm:$0xf]
  %v46 = vld [vmem:[%s1 + $0x34] sm:$0xf]
  %v47 = vld [vmem:[%s1 + $0x38] sm:$0xf]
  %v48 = vld [vmem:[%s1 + $0x3c] sm:$0xf]
  %v49 = vld [vmem:[%s1 + $0x40] sm:$0xf]
  %v50 = vld [vmem:[%s1 + $0x44] sm:$0xf]
  %v51 = vld [vmem:[%s1 + $0x48] sm:$0xf]
  %v52 = vld [vmem:[%s1 + $0x4c] sm:$0xf]
  %v53 = vld [vmem:[%s1 + $0x50] sm:$0xf]
  %v54 = vld [vmem:[%s1 + $0x54] sm:$0xf]
  %v55 = vld [vmem:[%s1 + $0x58] sm:$0xf]
  %v56 = vld [vmem:[%s1 + $0x5c] sm:$0xf]
  %v57 = vld [vmem:[%s1 + $0x60] sm:$0xf]
  %v58 = vld [vmem:[%s1 + $0x64] sm:$0xf]
  %v59 = vld [vmem:[%s1 + $0x68] sm:$0xf]
  %v60 = vld [vmem:[%s1 + $0x6c] sm:$0xf]
  %v61 = vld [vmem:[%s1 + $0x70] sm:$0xf]
  %v62 = vld [vmem:[%s1 + $0x74] sm:$0xf]
  %v63 = vld [vmem:[%s1 + $0x78] sm:$0xf]
  %v64 = vld [vmem:[%s1 + $0x7c] sm:$0xf]
  %v65 = vld [vmem:[%s1 + $0x80] sm:$0xf]
  %v66 = vld [vmem:[%s1 + $0x84] sm:$0xf]
  %v67 = vld [vmem:[%s1 + $0x88] sm:$0xf]
  %v68 = vld [vmem:[%s1 + $0x8c] sm:$0xf]
  %v69 = vld [vmem:[%s1 + $0x90] sm:$0xf]
  %v70 = vld [vmem:[%s1 + $0x94] sm:$0xf]
  %v71 = vld [vmem:[%s1 + $0x98] sm:$0xf]
  %v72 = vld [vmem:[%s1 + $0x9c] sm:$0xf]
  %v73 = vld [vmem:[%s1 + $0xa0] sm:$0xf]
  %v74 = vld [vmem:[%s1 + $0xa4] sm:$0xf]
  %v75 = vld [vmem:[%s1 + $0xa8] sm:$0xf]
  %v76 = vld [vmem:[%s1 + $0xac] sm:$0xf]
  %v77 = vld [vmem:[%s1 + $0xb0] sm:$0xf]
  %v78 = vld [vmem:[%s1 + $0xb4] sm:$0xf]
  %v79 = vld [vmem:[%s1 + $0xb8] sm:$0xf]
  %v80 = vld [vmem:[%s1 + $0xbc] sm:$0xf]
  %v81 = vld [vmem:[%s1 + $0xc0] sm:$0xf]
  %v82 = vld [vmem:[%s1 + $0xc4] sm:$0xf]
  %v83 = vld [vmem:[%s1 + $0xc8] sm:$0xf]
  %v84 = vld [vmem:[%s1 + $0xcc] sm:$0xf]
  %v85 = vld [vmem:[%s1 + $0xd0] sm:$0xf]
  %v86 = vld [vmem:[%s1 + $0xd4] sm:$0xf]
  %v87 = vld [vmem:[%s1 + $0xd8] sm:$0xf]
  %v88 = vld [vmem:[%s1 + $0xdc] sm:$0xf]
  %v89 = vld [vmem:[%s1 + $0xe0] sm:$0xf]
  %v90 = vld [vmem:[%s1 + $0xe4] sm:$0xf]
  %v91 = vld [vmem:[%s1 + $0xe8] sm:$0xf]
  %v92 = vld [vmem:[%s1 + $0xec] sm:$0xf]
  %v93 = vld [vmem:[%s1 + $0xf0] sm:$0xf]
  %v94 = vld [vmem:[%s1 + $0xf4] sm:$0xf]
  %v95 = vld [vmem:[%s1 + $0xf8] sm:$0xf]
  %v96 = vld [vmem:[%s1 + $0xfc] sm:$0xf]
  %v97 = vld [vmem:[%s1 + $0x100] sm:$0xf]
  %v98 = vld [vmem:[%s1 + $0x104] sm:$0xf]
  %v99 = vld [vmem:[%s1 + $0x108] sm:$0xf]
  %v100 = vld [vmem:[%s1 + $0x10c] sm:$0xf]
  %v101 = vld [vmem:[%s1 + $0x110] sm:$0xf]
  %v102 = vld [vmem:[%s1 + $0x114] sm:$0xf]
  %v103 = vld [vmem:[%s1 + $0x118] sm:$0xf]
  %v104 = vld [vmem:[%s1 + $0x11c] sm:$0xf]
  %v105 = vld [vmem:[%s1 + $0x120] sm:$0xf]
  %v106 = vld [vmem:[%s1 + $0x124] sm:$0xf]
  %v107 = vld [vmem:[%s1 + $0x128] sm:$0xf]
  %v108 = vld [vmem:[%s1 + $0x12c] sm:$0xf]
  %v109 = vld [vmem:[%s1 + $0x130] sm:$0xf]
  %v110 = vld [vmem:[%s1 + $0x134] sm:$0xf]
  %v111 = vld [vmem:[%s1 + $0x138] sm:$0xf]
  %v112 = vld [vmem:[%s1 + $0x13c] sm:$0xf]
  %v113 = vld [vmem:[%s1 + $0x140] sm:$0xf]
  %v114 = vld [vmem:[%s1 + $0x144] sm:$0xf]
  %v115 = vld [vmem:[%s1 + $0x148] sm:$0xf]
  %v116 = vld [vmem:[%s1 + $0x14c] sm:$0xf]
  %v117 = vld [vmem:[%s1 + $0x150] sm:$0xf]
  %v118 = vld [vmem:[%s1 + $0x154] sm:$0xf]
  %v119 = vld [vmem:[%s1 + $0x158] sm:$0xf]
  %v120 = vld [vmem:[%s1 + $0x15c] sm:$0xf]
  %v121 = vld [vmem:[%s1 + $0x160] sm:$0xf]
  %v122 = vld [vmem:[%s1 + $0x164] sm:$0xf]
  %v123 = vld [vmem:[%s1 + $0x168] sm:$0xf]
  %v124 = vld [vmem:[%s1 + $0x16c] sm:$0xf]
  %v125 = vld [vmem:[%s1 + $0x170] sm:$0xf]
  %v126 = vld [vmem:[%s1 + $0x174] sm:$0xf]
  %v127 = vld [vmem:[%s1 + $0x178] sm:$0xf]
  %v128 = vld [vmem:[%s1 + $0x17c] sm:$0xf]
  %v129 = vld [vmem:[%s1 + $0x180] sm:$0xf]
  %v130 = vld [vmem:[%s1 + $0x184] sm:$0xf]
  %v131 = vld [vmem:[%s1 + $0x188] sm:$0xf]
  %v132 = vld [vmem:[%s1 + $0x18c] sm:$0xf]
  %v133 = vld [vmem:[%s1 + $0x190] sm:$0xf]
  %v134 = vld [vmem:[%s1 + $0x194] sm:$0xf]
  %v135 = vld [vmem:[%s1 + $0x198] sm:$0xf]
  %v136 = vld [vmem:[%s1 + $0x19c] sm:$0xf]
  %v137 = vld [vmem:[%s1 + $0x1a0] sm:$0xf]
  %v138 = vld [vmem:[%s1 + $0x1a4] sm:$0xf]
  %v139 = vld [vmem:[%s1 + $0x1a8] sm:$0xf]
  %v140 = vld [vmem:[%s1 + $0x1ac] sm:$0xf]
  %v141 = vld [vmem:[%s1 + $0x1b0] sm:$0xf]
  %v142 = vld [vmem:[%s1 + $0x1b4] sm:$0xf]
  %v143 = vld [vmem:[%s1 + $0x1b8] sm:$0xf]
  %v144 = vld [vmem:[%s1 + $0x1bc] sm:$0xf]
  %v145 = vld [vmem:[%s1 + $0x1c0] sm:$0xf]
  %v146 = vld [vmem:[%s1 + $0x1c4] sm:$0xf]
  %v147 = vld [vmem:[%s1 + $0x1c8] sm:$0xf]
  %v148 = vld [vmem:[%s1 + $0x1cc] sm:$0xf]
  %v149 = vld [vmem:[%s1 + $0x1d0] sm:$0xf]
  %v150 = vld [vmem:[%s1 + $0x1d4] sm:$0xf]
  %v151 = vld [vmem:[%s1 + $0x1d8] sm:$0xf]
  %v152 = vld [vmem:[%s1 + $0x1dc] sm:$0xf]
  %v153 = vld [vmem:[%s1 + $0x1e0] sm:$0xf]
  %v154 = vld [vmem:[%s1 + $0x1e4] sm:$0xf]
  %v155 = vld [vmem:[%s1 + $0x1e8] sm:$0xf]
  %v156 = vld [vmem:[%s1 + $0x1ec] sm:$0xf]
  %v157 = vld [vmem:[%s1 + $0x1f0] sm:$0xf]
  %v158 = vld [vmem:[%s1 + $0x1f4] sm:$0xf]
  %v159 = vld [vmem:[%s1 + $0x1f8] sm:$0xf]
  %v160 = vld [vmem:[%s1 + $0x1fc] sm:$0xf]
  %v161 = vld [vmem:[%s1 + $0x200] sm:$0xf]
  %v162 = vld [vmem:[%s1 + $0x204] sm:$0xf]
  %v163 = vld [vmem:[%s1 + $0x208] sm:$0xf]
  %v164 = vld [vmem:[%s1 + $0x20c] sm:$0xf]
  %v165 = vld [vmem:[%s1 + $0x210] sm:$0xf]
  %v166 = vld [vmem:[%s1 + $0x214] sm:$0xf]
  %v167 = vld [vmem:[%s1 + $0x218] sm:$0xf]
  %v168 = vld [vmem:[%s1 + $0x21c] sm:$0xf]
  %v169 = vld [vmem:[%s1 + $0x220] sm:$0xf]
  %v170 = vld [vmem:[%s1 + $0x224] sm:$0xf]
  %v171 = vld [vmem:[%s1 + $0x228] sm:$0xf]
  %v172 = vld [vmem:[%s1 + $0x22c] sm:$0xf]
  %v173 = vld [vmem:[%s1 + $0x230] sm:$0xf]
  %v174 = vld [vmem:[%s1 + $0x234] sm:$0xf]
  %v175 = vld [vmem:[%s1 + $0x238] sm:$0xf]
  %v176 = vld [vmem:[%s1 + $0x23c] sm:$0xf]
  %v177 = vld [vmem:[%s1 + $0x240] sm:$0xf]
  %v178 = vld [vmem:[%s1 + $0x244] sm:$0xf]
  %v179 = vld [vmem:[%s1 + $0x248] sm:$0xf]
  %v180 = vld [vmem:[%s1 + $0x24c] sm:$0xf]
  %v181 = vld [vmem:[%s1 + $0x250] sm:$0xf]
  %v182 = vld [vmem:[%s1 + $0x254] sm:$0xf]
  %v183 = vld [vmem:[%s1 + $0x258] sm:$0xf]
  %v184 = vld [vmem:[%s1 + $0x25c] sm:$0xf]
  %v185 = vld [vmem:[%s1 + $0x260] sm:$0xf]
  %v186 = vld [vmem:[%s1 + $0x264] sm:$0xf]
  %v187 = vld [vmem:[%s1 + $0x268] sm:$0xf]
  %v188 = vld [vmem:[%s1 + $0x26c] sm:$0xf]
  %v189 = vld [vmem:[%s1 + $0x270] sm:$0xf]
  %v190 = vld [vmem:[%s1 + $0x274] sm:$0xf]
  %v191 = vld [vmem:[%s1 + $0x278] sm:$0xf]
  %v192 = vld [vmem:[%s1 + $0x27c] sm:$0xf]
  %v193 = vld [vmem:[%s1 + $0x280] sm:$0xf]
  %v194 = vld [vmem:[%s1 + $0x284] sm:$0xf]
  %v195 = vld [vmem:[%s1 + $0x288] sm:$0xf]
  %v196 = vld [vmem:[%s1 + $0x28c] sm:$0xf]
  %v197 = vld [vmem:[%s1 + $0x290] sm:$0xf]
  %v198 = vld [vmem:[%s1 + $0x294] sm:$0xf]
  %v199 = vld [vmem:[%s1 + $0x298] sm:$0xf]
  %v200 = vld [vmem:[%s1 + $0x29c] sm:$0xf]
  %v201 = vld [vmem:[%s1 + $0x2a0] sm:$0xf]
  %v202 = vld [vmem:[%s1 + $0x2a4] sm:$0xf]
  %v203 = vld [vmem:[%s1 + $0x2a8] sm:$0xf]
  %v204 = vld [vmem:[%s1 + $0x2ac] sm:$0xf]
  %v205 = vld [vmem:[%s1 + $0x2b0] sm:$0xf]
  %v206 = vld [vmem:[%s1 + $0x2b4] sm:$0xf]
  %v207 = vld [vmem:[%s1 + $0x2b8] sm:$0xf]
  %v208 = vld [vmem:[%s1 + $0x2bc] sm:$0xf]
  %v209 = vld [vmem:[%s1 + $0x2c0] sm:$0xf]
  %v210 = vld [vmem:[%s1 + $0x2c4] sm:$0xf]
  %v211 = vld [vmem:[%s1 + $0x2c8] sm:$0xf]
  %v212 = vld [vmem:[%s1 + $0x2cc] sm:$0xf]
  %v213 = vld [vmem:[%s1 + $0x2d0] sm:$0xf]
  %v214 = vld [vmem:[%s1 + $0x2d4] sm:$0xf]
  %v215 = vld [vmem:[%s1 + $0x2d8] sm:$0xf]
  %v216 = vld [vmem:[%s1 + $0x2dc] sm:$0xf]
  %v217 = vld [vmem:[%s1 + $0x2e0] sm:$0xf]
  %v218 = vld [vmem:[%s1 + $0x2e4] sm:$0xf]
  %v219 = vld [vmem:[%s1 + $0x2e8] sm:$0xf]
  %v220 = vld [vmem:[%s1 + $0x2ec] sm:$0xf]
  %v221 = vld [vmem:[%s1 + $0x2f0] sm:$0xf]
  %v222 = vld [vmem:[%s1 + $0x2f4] sm:$0xf]
  %v223 = vld [vmem:[%s1 + $0x2f8] sm:$0xf]
  %v224 = vld [vmem:[%s1 + $0x2fc] sm:$0xf]
  %v225 = vld [vmem:[%s1 + $0x300] sm:$0xf]
  %v226 = vld [vmem:[%s1 + $0x304] sm:$0xf]
  %v227 = vld [vmem:[%s1 + $0x308] sm:$0xf]
  %v228 = vld [vmem:[%s1 + $0x30c] sm:$0xf]
  %v229 = vld [vmem:[%s1 + $0x310] sm:$0xf]
  %v230 = vld [vmem:[%s1 + $0x314] sm:$0xf]
  %v231 = vld [vmem:[%s1 + $0x318] sm:$0xf]
  %v232 = vld [vmem:[%s1 + $0x31c] sm:$0xf]
  %v233 = vld [vmem:[%s1 + $0x320] sm:$0xf]
  %v234 = vld [vmem:[%s1 + $0x324] sm:$0xf]
  %v235 = vld [vmem:[%s1 + $0x328] sm:$0xf]
  %v236 = vld [vmem:[%s1 + $0x32c] sm:$0xf]
  %v237 = vld [vmem:[%s1 + $0x330] sm:$0xf]
  %v238 = vld [vmem:[%s1 + $0x334] sm:$0xf]
  %v239 = vld [vmem:[%s1 + $0x338] sm:$0xf]
  %v240 = vld [vmem:[%s1 + $0x33c] sm:$0xf]
  %v241 = vld [vmem:[%s1 + $0x340] sm:$0xf]
  %v242 = vld [vmem:[%s1 + $0x344] sm:$0xf]
  %v243 = vld [vmem:[%s1 + $0x348] sm:$0xf]
  %v244 = vld [vmem:[%s1 + $0x34c] sm:$0xf]
  %v245 = vld [vmem:[%s1 + $0x350] sm:$0xf]
  %v246 = vld [vmem:[%s1 + $0x354] sm:$0xf]
  %v247 = vld [vmem:[%s1 + $0x358] sm:$0xf]
  %v248 = vld [vmem:[%s1 + $0x35c] sm:$0xf]
  %v249 = vld [vmem:[%s1 + $0x360] sm:$0xf]
  %v250 = vld [vmem:[%s1 + $0x364] sm:$0xf]
  %v251 = vld [vmem:[%s1 + $0x368] sm:$0xf]
  %v252 = vld [vmem:[%s1 + $0x36c] sm:$0xf]
  %v253 = vld [vmem:[%s1 + $0x370] sm:$0xf]
  %v254 = vld [vmem:[%s1 + $0x374] sm:$0xf]
  %v255 = vld [vmem:[%s1 + $0x378] sm:$0xf]
  %v256 = vld [vmem:[%s1 + $0x37c] sm:$0xf]
  %v257 = vld [vmem:[%s1 + $0x380] sm:$0xf]
  %v258 = vld [vmem:[%s1 + $0x384] sm:$0xf]
  %v259 = vld [vmem:[%s1 + $0x388] sm:$0xf]
  %v260 = vld [vmem:[%s1 + $0x38c] sm:$0xf]
  %v261 = vld [vmem:[%s1 + $0x390] sm:$0xf]
  %v262 = vld [vmem:[%s1 + $0x394] sm:$0xf]
  %v263 = vld [vmem:[%s1 + $0x398] sm:$0xf]
  %v264 = vld [vmem:[%s1 + $0x39c] sm:$0xf]
  %v265 = vld [vmem:[%s1 + $0x3a0] sm:$0xf]
  %v266 = vld [vmem:[%s1 + $0x3a4] sm:$0xf]
  %v267 = vld [vmem:[%s1 + $0x3a8] sm:$0xf]
  %v268 = vld [vmem:[%s1 + $0x3ac] sm:$0xf]
  %v269 = vld [vmem:[%s1 + $0x3b0] sm:$0xf]
  %v270 = vld [vmem:[%s1 + $0x3b4] sm:$0xf]
  %v271 = vld [vmem:[%s1 + $0x3b8] sm:$0xf]
  %v272 = vld [vmem:[%s1 + $0x3bc] sm:$0xf]
  %v273 = vld [vmem:[%s1 + $0x3c0] sm:$0xf]
  %v274 = vld [vmem:[%s1 + $0x3c4] sm:$0xf]
  %v275 = vld [vmem:[%s1 + $0x3c8] sm:$0xf]
  %v276 = vld [vmem:[%s1 + $0x3cc] sm:$0xf]
  %v277 = vld [vmem:[%s1 + $0x3d0] sm:$0xf]
  %v278 = vld [vmem:[%s1 + $0x3d4] sm:$0xf]
  %v279 = vld [vmem:[%s1 + $0x3d8] sm:$0xf]
  %v280 = vld [vmem:[%s1 + $0x3dc] sm:$0xf]
  %v281 = vld [vmem:[%s1 + $0x3e0] sm:$0xf]
  %v282 = vld [vmem:[%s1 + $0x3e4] sm:$0xf]
  %v283 = vld [vmem:[%s1 + $0x3e8] sm:$0xf]
  %v284 = vld [vmem:[%s1 + $0x3ec] sm:$0xf]
  %v285 = vld [vmem:[%s1 + $0x3f0] sm:$0xf]
  %v286 = vld [vmem:[%s1 + $0x3f4] sm:$0xf]
  %v287 = vld [vmem:[%s1 + $0x3f8] sm:$0xf]
  %v288 = vld [vmem:[%s1 + $0x3fc] sm:$0xf]
  %v289 = vld [vmem:[%s1 + $0x400] sm:$0xf]
  %v290 = vld [vmem:[%s1 + $0x404] sm:$0xf]
  %v291 = vld [vmem:[%s1 + $0x408] sm:$0xf]
  %v292 = vld [vmem:[%s1 + $0x40c] sm:$0xf]
  %v293 = vld [vmem:[%s1 + $0x410] sm:$0xf]
  %v294 = vld [vmem:[%s1 + $0x414] sm:$0xf]
  %v295 = vld [vmem:[%s1 + $0x418] sm:$0xf]
  %v296 = vld [vmem:[%s1 + $0x41c] sm:$0xf]
  %v297 = vld [vmem:[%s1 + $0x420] sm:$0xf]
  %v298 = vld [vmem:[%s1 + $0x424] sm:$0xf]
  %v299 = vld [vmem:[%s1 + $0x428] sm:$0xf]
  %v300 = vld [vmem:[%s1 + $0x42c] sm:$0xf]
  %v301 = vld [vmem:[%s1 + $0x430] sm:$0xf]
  %v302 = vld [vmem:[%s1 + $0x434] sm:$0xf]
  %v303 = vld [vmem:[%s1 + $0x438] sm:$0xf]
  %v304 = vld [vmem:[%s1 + $0x43c] sm:$0xf]
  %v305 = vld [vmem:[%s1 + $0x440] sm:$0xf]
  %v306 = vld [vmem:[%s1 + $0x444] sm:$0xf]
  %v307 = vld [vmem:[%s1 + $0x448] sm:$0xf]
  %v308 = vld [vmem:[%s1 + $0x44c] sm:$0xf]
  %v309 = vld [vmem:[%s1 + $0x450] sm:$0xf]
  %v310 = vld [vmem:[%s1 + $0x454] sm:$0xf]
  %v311 = vld [vmem:[%s1 + $0x458] sm:$0xf]
  %v312 = vld [vmem:[%s1 + $0x45c] sm:$0xf]
  %v313 = vld [vmem:[%s1 + $0x460] sm:$0xf]
  %v314 = vld [vmem:[%s1 + $0x464] sm:$0xf]
  %v315 = vld [vmem:[%s1 + $0x468] sm:$0xf]
  %v316 = vld [vmem:[%s1 + $0x46c] sm:$0xf]
  %v317 = vld [vmem:[%s1 + $0x470] sm:$0xf]
  %v318 = vld [vmem:[%s1 + $0x474] sm:$0xf]
  %v319 = vld [vmem:[%s1 + $0x478] sm:$0xf]
  %v320 = vld [vmem:[%s1 + $0x47c] sm:$0xf]
  %v321 = vld [vmem:[%s1 + $0x480] sm:$0xf]
  %v322 = vld [vmem:[%s1 + $0x484] sm:$0xf]
  %v323 = vld [vmem:[%s1 + $0x488] sm:$0xf]
  %v324 = vld [vmem:[%s1 + $0x48c] sm:$0xf]
  %v325 = vld [vmem:[%s1 + $0x490] sm:$0xf]
  %v326 = vld [vmem:[%s1 + $0x494] sm:$0xf]
  %v327 = vld [vmem:[%s1 + $0x498] sm:$0xf]
  %v328 = vld [vmem:[%s1 + $0x49c] sm:$0xf]
  %v329 = vld [vmem:[%s1 + $0x4a0] sm:$0xf]
  %v330 = vld [vmem:[%s1 + $0x4a4] sm:$0xf]
  %v331 = vld [vmem:[%s1 + $0x4a8] sm:$0xf]
  %v332 = vld [vmem:[%s1 + $0x4ac] sm:$0xf]
  %v333 = vld [vmem:[%s1 + $0x4b0] sm:$0xf]
  %v334 = vld [vmem:[%s1 + $0x4b4] sm:$0xf]
  %v335 = vld [vmem:[%s1 + $0x4b8] sm:$0xf]
  %v336 = vld [vmem:[%s1 + $0x4bc] sm:$0xf]
  %v337 = vld [vmem:[%s1 + $0x4c0] sm:$0xf]
  %v338 = vld [vmem:[%s1 + $0x4c4] sm:$0xf]
  %v339 = vld [vmem:[%s1 + $0x4c8] sm:$0xf]
  %v340 = vld [vmem:[%s1 + $0x4cc] sm:$0xf]
  %v341 = vld [vmem:[%s1 + $0x4d0] sm:$0xf]
  %v342 = vld [vmem:[%s1 + $0x4d4] sm:$0xf]
  %v343 = vld [vmem:[%s1 + $0x4d8] sm:$0xf]
  %v344 = vld [vmem:[%s1 + $0x4dc] sm:$0xf]
  %v345 = vld [vmem:[%s1 + $0x4e0] sm:$0xf]
  %v346 = vld [vmem:[%s1 + $0x4e4] sm:$0xf]
  %v347 = vld [vmem:[%s1 + $0x4e8] sm:$0xf]
  %v348 = vld [vmem:[%s1 + $0x4ec] sm:$0xf]
  %v349 = vld [vmem:[%s1 + $0x4f0] sm:$0xf]
  %v350 = vld [vmem:[%s1 + $0x4f4] sm:$0xf]
  %v351 = vld [vmem:[%s1 + $0x4f8] sm:$0xf]
  %v352 = vld [vmem:[%s1 + $0x4fc] sm:$0xf]
  %v353 = vld [vmem:[%s1 + $0x500] sm:$0xf]
  %v354 = vld [vmem:[%s1 + $0x504] sm:$0xf]
  %v355 = vld [vmem:[%s1 + $0x508] sm:$0xf]
  %v356 = vld [vmem:[%s1 + $0x50c] sm:$0xf]
  %v357 = vld [vmem:[%s1 + $0x510] sm:$0xf]
  %v358 = vld [vmem:[%s1 + $0x514] sm:$0xf]
  %v359 = vld [vmem:[%s1 + $0x518] sm:$0xf]
  %v360 = vld [vmem:[%s1 + $0x51c] sm:$0xf]
  %v361 = vld [vmem:[%s1 + $0x520] sm:$0xf]
  %v362 = vld [vmem:[%s1 + $0x524] sm:$0xf]
  %v363 = vld [vmem:[%s1 + $0x528] sm:$0xf]
  %v364 = vld [vmem:[%s1 + $0x52c] sm:$0xf]
  %v365 = vld [vmem:[%s1 + $0x530] sm:$0xf]
  %v366 = vld [vmem:[%s1 + $0x534] sm:$0xf]
  %v367 = vld [vmem:[%s1 + $0x538] sm:$0xf]
  %v368 = vld [vmem:[%s1 + $0x53c] sm:$0xf]
  %v369 = vld [vmem:[%s1 + $0x540] sm:$0xf]
  %v370 = vld [vmem:[%s1 + $0x544] sm:$0xf]
  %v371 = vld [vmem:[%s1 + $0x548] sm:$0xf]
  %v372 = vld [vmem:[%s1 + $0x54c] sm:$0xf]
  %v373 = vld [vmem:[%s1 + $0x550] sm:$0xf]
  %v374 = vld [vmem:[%s1 + $0x554] sm:$0xf]
  %v375 = vld [vmem:[%s1 + $0x558] sm:$0xf]
  %v376 = vld [vmem:[%s1 + $0x55c] sm:$0xf]
  %v377 = vld [vmem:[%s1 + $0x560] sm:$0xf]
  %v378 = vld [vmem:[%s1 + $0x564] sm:$0xf]
  %v379 = vld [vmem:[%s1 + $0x568] sm:$0xf]
  %v380 = vld [vmem:[%s1 + $0x56c] sm:$0xf]
  %v381 = vld [vmem:[%s1 + $0x570] sm:$0xf]
  %v382 = vld [vmem:[%s1 + $0x574] sm:$0xf]
  %v383 = vld [vmem:[%s1 + $0x578] sm:$0xf]
  %v384 = vld [vmem:[%s1 + $0x57c] sm:$0xf]
  %v385 = vld [vmem:[%s1 + $0x580] sm:$0xf]
  %v386 = vld [vmem:[%s1 + $0x584] sm:$0xf]
  %v387 = vld [vmem:[%s1 + $0x588] sm:$0xf]
  %v388 = vld [vmem:[%s1 + $0x58c] sm:$0xf]
  %v389 = vld [vmem:[%s1 + $0x590] sm:$0xf]
  %v390 = vld [vmem:[%s1 + $0x594] sm:$0xf]
  %v391 = vld [vmem:[%s1 + $0x598] sm:$0xf]
  %v392 = vld [vmem:[%s1 + $0x59c] sm:$0xf]
  %v393 = vld [vmem:[%s1 + $0x5a0] sm:$0xf]
  %v394 = vld [vmem:[%s1 + $0x5a4] sm:$0xf]
  %v395 = vld [vmem:[%s1 + $0x5a8] sm:$0xf]
  %v396 = vld [vmem:[%s1 + $0x5ac] sm:$0xf]
  %v397 = vld [vmem:[%s1 + $0x5b0] sm:$0xf]
  %v398 = vld [vmem:[%s1 + $0x5b4] sm:$0xf]
  %v399 = vld [vmem:[%s1 + $0x5b8] sm:$0xf]
  %v400 = vld [vmem:[%s1 + $0x5bc] sm:$0xf]
  %v401 = vld [vmem:[%s1 + $0x5c0] sm:$0xf]
  %v402 = vld [vmem:[%s1 + $0x5c4] sm:$0xf]
  %v403 = vld [vmem:[%s1 + $0x5c8] sm:$0xf]
  %v404 = vld [vmem:[%s1 + $0x5cc] sm:$0xf]
  %v405 = vld [vmem:[%s1 + $0x5d0] sm:$0xf]
  %v406 = vld [vmem:[%s1 + $0x5d4] sm:$0xf]
  %v407 = vld [vmem:[%s1 + $0x5d8] sm:$0xf]
  %v408 = vld [vmem:[%s1 + $0x5dc] sm:$0xf]
  %v409 = vld [vmem:[%s1 + $0x5e0] sm:$0xf]
  %v410 = vld [vmem:[%s1 + $0x5e4] sm:$0xf]
  %v411 = vld [vmem:[%s1 + $0x5e8] sm:$0xf]
  %v412 = vld [vmem:[%s1 + $0x5ec] sm:$0xf]
  %v413 = vld [vmem:[%s1 + $0x5f0] sm:$0xf]
  %v414 = vld [vmem:[%s1 + $0x5f4] sm:$0xf]
  %v415 = vld [vmem:[%s1 + $0x5f8] sm:$0xf]
  %v416 = vld [vmem:[%s1 + $0x5fc] sm:$0xf]
  %v417 = vld [vmem:[%s1 + $0x600] sm:$0xf]
  %v418 = vld [vmem:[%s1 + $0x604] sm:$0xf]
  %v419 = vld [vmem:[%s1 + $0x608] sm:$0xf]
  %v420 = vld [vmem:[%s1 + $0x60c] sm:$0xf]
  %v421 = vld [vmem:[%s1 + $0x610] sm:$0xf]
  %v422 = vld [vmem:[%s1 + $0x614] sm:$0xf]
  %v423 = vld [vmem:[%s1 + $0x618] sm:$0xf]
  %v424 = vld [vmem:[%s1 + $0x61c] sm:$0xf]
  %v425 = vld [vmem:[%s1 + $0x620] sm:$0xf]
  %v426 = vld [vmem:[%s1 + $0x624] sm:$0xf]
  %v427 = vld [vmem:[%s1 + $0x628] sm:$0xf]
  %v428 = vld [vmem:[%s1 + $0x62c] sm:$0xf]
  %v429 = vld [vmem:[%s1 + $0x630] sm:$0xf]
  %v430 = vld [vmem:[%s1 + $0x634] sm:$0xf]
  %v431 = vld [vmem:[%s1 + $0x638] sm:$0xf]
  %v432 = vld [vmem:[%s1 + $0x63c] sm:$0xf]
  %v433 = vld [vmem:[%s1 + $0x640] sm:$0xf]
  %v434 = vld [vmem:[%s1 + $0x644] sm:$0xf]
  %v435 = vld [vmem:[%s1 + $0x648] sm:$0xf]
  %v436 = vld [vmem:[%s1 + $0x64c] sm:$0xf]
  %v437 = vld [vmem:[%s1 + $0x650] sm:$0xf]
  %v438 = vld [vmem:[%s1 + $0x654] sm:$0xf]
  %v439 = vld [vmem:[%s1 + $0x658] sm:$0xf]
  %v440 = vld [vmem:[%s1 + $0x65c] sm:$0xf]
  %v441 = vld [vmem:[%s1 + $0x660] sm:$0xf]
  %v442 = vld [vmem:[%s1 + $0x664] sm:$0xf]
  %v443 = vld [vmem:[%s1 + $0x668] sm:$0xf]
  %v444 = vld [vmem:[%s1 + $0x66c] sm:$0xf]
  %v445 = vld [vmem:[%s1 + $0x670] sm:$0xf]
  %v446 = vld [vmem:[%s1 + $0x674] sm:$0xf]
  %v447 = vld [vmem:[%s1 + $0x678] sm:$0xf]
  %v448 = vld [vmem:[%s1 + $0x67c] sm:$0xf]
  %v449 = vld [vmem:[%s1 + $0x680] sm:$0xf]
  %v450 = vld [vmem:[%s1 + $0x684] sm:$0xf]
  %v451 = vld [vmem:[%s1 + $0x688] sm:$0xf]
  %v452 = vld [vmem:[%s1 + $0x68c] sm:$0xf]
  %v453 = vld [vmem:[%s1 + $0x690] sm:$0xf]
  %v454 = vld [vmem:[%s1 + $0x694] sm:$0xf]
  %v455 = vld [vmem:[%s1 + $0x698] sm:$0xf]
  %v456 = vld [vmem:[%s1 + $0x69c] sm:$0xf]
  %v457 = vld [vmem:[%s1 + $0x6a0] sm:$0xf]
  %v458 = vld [vmem:[%s1 + $0x6a4] sm:$0xf]
  %v459 = vld [vmem:[%s1 + $0x6a8] sm:$0xf]
  %v460 = vld [vmem:[%s1 + $0x6ac] sm:$0xf]
  %v461 = vld [vmem:[%s1 + $0x6b0] sm:$0xf]
  %v462 = vld [vmem:[%s1 + $0x6b4] sm:$0xf]
  %v463 = vld [vmem:[%s1 + $0x6b8] sm:$0xf]
  %v464 = vld [vmem:[%s1 + $0x6bc] sm:$0xf]
  %v465 = vld [vmem:[%s1 + $0x6c0] sm:$0xf]
  %v466 = vld [vmem:[%s1 + $0x6c4] sm:$0xf]
  %v467 = vld [vmem:[%s1 + $0x6c8] sm:$0xf]
  %v468 = vld [vmem:[%s1 + $0x6cc] sm:$0xf]
  %v469 = vld [vmem:[%s1 + $0x6d0] sm:$0xf]
  %v470 = vld [vmem:[%s1 + $0x6d4] sm:$0xf]
  %v471 = vld [vmem:[%s1 + $0x6d8] sm:$0xf]
  %v472 = vld [vmem:[%s1 + $0x6dc] sm:$0xf]
  %v473 = vld [vmem:[%s1 + $0x6e0] sm:$0xf]
  %v474 = vld [vmem:[%s1 + $0x6e4] sm:$0xf]
  %v475 = vld [vmem:[%s1 + $0x6e8] sm:$0xf]
  %v476 = vld [vmem:[%s1 + $0x6ec] sm:$0xf]
  %v477 = vld [vmem:[%s1 + $0x6f0] sm:$0xf]
  %v478 = vld [vmem:[%s1 + $0x6f4] sm:$0xf]
  %v479 = vld [vmem:[%s1 + $0x6f8] sm:$0xf]
  %v480 = vld [vmem:[%s1 + $0x6fc] sm:$0xf]
  %v481 = vld [vmem:[%s1 + $0x700] sm:$0xf]
  %v482 = vld [vmem:[%s1 + $0x704] sm:$0xf]
  %v483 = vld [vmem:[%s1 + $0x708] sm:$0xf]
  %v484 = vld [vmem:[%s1 + $0x70c] sm:$0xf]
  %v485 = vld [vmem:[%s1 + $0x710] sm:$0xf]
  %v486 = vld [vmem:[%s1 + $0x714] sm:$0xf]
  %v487 = vld [vmem:[%s1 + $0x718] sm:$0xf]
  %v488 = vld [vmem:[%s1 + $0x71c] sm:$0xf]
  %v489 = vld [vmem:[%s1 + $0x720] sm:$0xf]
  %v490 = vld [vmem:[%s1 + $0x724] sm:$0xf]
  %v491 = vld [vmem:[%s1 + $0x728] sm:$0xf]
  %v492 = vld [vmem:[%s1 + $0x72c] sm:$0xf]
  %v493 = vld [vmem:[%s1 + $0x730] sm:$0xf]
  %v494 = vld [vmem:[%s1 + $0x734] sm:$0xf]
  %v495 = vld [vmem:[%s1 + $0x738] sm:$0xf]
  %v496 = vld [vmem:[%s1 + $0x73c] sm:$0xf]
  %v497 = vld [vmem:[%s1 + $0x740] sm:$0xf]
  %v498 = vld [vmem:[%s1 + $0x744] sm:$0xf]
  %v499 = vld [vmem:[%s1 + $0x748] sm:$0xf]
  %v500 = vld [vmem:[%s1 + $0x74c] sm:$0xf]
  %v501 = vld [vmem:[%s1 + $0x750] sm:$0xf]
  %v502 = vld [vmem:[%s1 + $0x754] sm:$0xf]
  %v503 = vld [vmem:[%s1 + $0x758] sm:$0xf]
  %v504 = vld [vmem:[%s1 + $0x75c] sm:$0xf]
  %v505 = vld [vmem:[%s1 + $0x760] sm:$0xf]
  %v506 = vld [vmem:[%s1 + $0x764] sm:$0xf]
  %v507 = vld [vmem:[%s1 + $0x768] sm:$0xf]
  %v508 = vld [vmem:[%s1 + $0x76c] sm:$0xf]
  %v509 = vld [vmem:[%s1 + $0x770] sm:$0xf]
  %v510 = vld [vmem:[%s1 + $0x774] sm:$0xf]
  %v511 = vld [vmem:[%s1 + $0x778] sm:$0xf]
  %v512 = vld [vmem:[%s1 + $0x77c] sm:$0xf]
  %v513 = vld [vmem:[%s1 + $0x780] sm:$0xf]
  %v514 = vld [vmem:[%s1 + $0x784] sm:$0xf]
  %v515 = vld [vmem:[%s1 + $0x788] sm:$0xf]
  %v516 = vld [vmem:[%s1 + $0x78c] sm:$0xf]
  %v517 = vld [vmem:[%s1 + $0x790] sm:$0xf]
  %v518 = vld [vmem:[%s1 + $0x794] sm:$0xf]
  %v519 = vld [vmem:[%s1 + $0x798] sm:$0xf]
  %v520 = vld [vmem:[%s1 + $0x79c] sm:$0xf]
  %v521 = vld [vmem:[%s1 + $0x7a0] sm:$0xf]
  %v522 = vld [vmem:[%s1 + $0x7a4] sm:$0xf]
  %v523 = vld [vmem:[%s1 + $0x7a8] sm:$0xf]
  %v524 = vld [vmem:[%s1 + $0x7ac] sm:$0xf]
  %v525 = vld [vmem:[%s1 + $0x7b0] sm:$0xf]
  %v526 = vld [vmem:[%s1 + $0x7b4] sm:$0xf]
  %v527 = vld [vmem:[%s1 + $0x7b8] sm:$0xf]
  %v528 = vld [vmem:[%s1 + $0x7bc] sm:$0xf]
  %v529 = vld [vmem:[%s1 + $0x7c0] sm:$0xf]
  %v530 = vld [vmem:[%s1 + $0x7c4] sm:$0xf]
  %v531 = vld [vmem:[%s1 + $0x7c8] sm:$0xf]
  %v532 = vld [vmem:[%s1 + $0x7cc] sm:$0xf]
  %v533 = vld [vmem:[%s1 + $0x7d0] sm:$0xf]
  %v534 = vld [vmem:[%s1 + $0x7d4] sm:$0xf]
  %v535 = vld [vmem:[%s1 + $0x7d8] sm:$0xf]
  %v536 = vld [vmem:[%s1 + $0x7dc] sm:$0xf]
  %v537 = vld [vmem:[%s1 + $0x7e0] sm:$0xf]
  %v538 = vld [vmem:[%s1 + $0x7e4] sm:$0xf]
  %v539 = vld [vmem:[%s1 + $0x7e8] sm:$0xf]
  %v540 = vld [vmem:[%s1 + $0x7ec] sm:$0xf]
  %v541 = vld [vmem:[%s1 + $0x7f0] sm:$0xf]
  %v542 = vld [vmem:[%s1 + $0x7f4] sm:$0xf]
  %v543 = vld [vmem:[%s1 + $0x7f8] sm:$0xf]
  %v544 = vld [vmem:[%s1 + $0x7fc] sm:$0xf]
  %v545 = vld [vmem:[%s2] sm:$0x1]
  %v547 = vlaneseq
  %v548 = vshrl.u32 %v547, 7
  %v549 = vsub.s32 0, %v548
  %v550 = vrot.slane %v545, %v549
  %v568 = vunpack.c.l.b16 %v17
  %v569 = vunpack.c.h.b16 %v17
  %v570 = vunpack.c.l.b16 %v18
  %v571 = vunpack.c.h.b16 %v18
  %v572 = vunpack.c.l.b16 %v19
  %v573 = vunpack.c.h.b16 %v19
  %v574 = vunpack.c.l.b16 %v20
  %v575 = vunpack.c.h.b16 %v20
  %v576 = vunpack.c.l.b16 %v21
  %v577 = vunpack.c.h.b16 %v21
  %v578 = vunpack.c.l.b16 %v22
  %v579 = vunpack.c.h.b16 %v22
  %v580 = vunpack.c.l.b16 %v23
  %v581 = vunpack.c.h.b16 %v23
  %v582 = vunpack.c.l.b16 %v24
  %v583 = vunpack.c.h.b16 %v24
  %v584 = vunpack.c.l.b16 %v25
  %v585 = vunpack.c.h.b16 %v25
  %v586 = vunpack.c.l.b16 %v26
  %v587 = vunpack.c.h.b16 %v26
  %v588 = vunpack.c.l.b16 %v27
  %v589 = vunpack.c.h.b16 %v27
  %v590 = vunpack.c.l.b16 %v28
  %v591 = vunpack.c.h.b16 %v28
  %v592 = vunpack.c.l.b16 %v29
  %v593 = vunpack.c.h.b16 %v29
  %v594 = vunpack.c.l.b16 %v30
  %v595 = vunpack.c.h.b16 %v30
  %v596 = vunpack.c.l.b16 %v31
  %v597 = vunpack.c.h.b16 %v31
  %v598 = vunpack.c.l.b16 %v32
  %v599 = vunpack.c.h.b16 %v32
  %v600 = vpack.c.b16 %v568, %v568
  %v601 = vpack.c.b16 %v569, %v569
  %v602 = vpack.c.b16 %v570, %v570
  %v603 = vpack.c.b16 %v571, %v571
  %v604 = vpack.c.b16 %v572, %v572
  %v605 = vpack.c.b16 %v573, %v573
  %v606 = vpack.c.b16 %v574, %v574
  %v607 = vpack.c.b16 %v575, %v575
  %v608 = vpack.c.b16 %v576, %v576
  %v609 = vpack.c.b16 %v577, %v577
  %v610 = vpack.c.b16 %v578, %v578
  %v611 = vpack.c.b16 %v579, %v579
  %v612 = vpack.c.b16 %v580, %v580
  %v613 = vpack.c.b16 %v581, %v581
  %v614 = vpack.c.b16 %v582, %v582
  %v615 = vpack.c.b16 %v583, %v583
  %v616 = vpack.c.b16 %v584, %v584
  %v617 = vpack.c.b16 %v585, %v585
  %v618 = vpack.c.b16 %v586, %v586
  %v619 = vpack.c.b16 %v587, %v587
  %v620 = vpack.c.b16 %v588, %v588
  %v621 = vpack.c.b16 %v589, %v589
  %v622 = vpack.c.b16 %v590, %v590
  %v623 = vpack.c.b16 %v591, %v591
  %v624 = vpack.c.b16 %v592, %v592
  %v625 = vpack.c.b16 %v593, %v593
  %v626 = vpack.c.b16 %v594, %v594
  %v627 = vpack.c.b16 %v595, %v595
  %v628 = vpack.c.b16 %v596, %v596
  %v629 = vpack.c.b16 %v597, %v597
  %v630 = vpack.c.b16 %v598, %v598
  %v631 = vpack.c.b16 %v599, %v599
  %v1176 = vunpack.c.l.b16 %v33
  %v1177 = vunpack.c.l.b16 %v34
  %v1178 = vunpack.c.l.b16 %v35
  %v1179 = vunpack.c.l.b16 %v36
  %v1180 = vunpack.c.l.b16 %v37
  %v1181 = vunpack.c.l.b16 %v38
  %v1182 = vunpack.c.l.b16 %v39
  %v1183 = vunpack.c.l.b16 %v40
  %v1184 = vunpack.c.l.b16 %v41
  %v1185 = vunpack.c.l.b16 %v42
  %v1186 = vunpack.c.l.b16 %v43
  %v1187 = vunpack.c.l.b16 %v44
  %v1188 = vunpack.c.l.b16 %v45
  %v1189 = vunpack.c.l.b16 %v46
  %v1190 = vunpack.c.l.b16 %v47
  %v1191 = vunpack.c.l.b16 %v48
  %v1192 = vunpack.c.l.b16 %v49
  %v1193 = vunpack.c.l.b16 %v50
  %v1194 = vunpack.c.l.b16 %v51
  %v1195 = vunpack.c.l.b16 %v52
  %v1196 = vunpack.c.l.b16 %v53
  %v1197 = vunpack.c.l.b16 %v54
  %v1198 = vunpack.c.l.b16 %v55
  %v1199 = vunpack.c.l.b16 %v56
  %v1200 = vunpack.c.l.b16 %v57
  %v1201 = vunpack.c.l.b16 %v58
  %v1202 = vunpack.c.l.b16 %v59
  %v1203 = vunpack.c.l.b16 %v60
  %v1204 = vunpack.c.l.b16 %v61
  %v1205 = vunpack.c.l.b16 %v62
  %v1206 = vunpack.c.l.b16 %v63
  %v1207 = vunpack.c.l.b16 %v64
  %v1208 = vunpack.c.l.b16 %v65
  %v1209 = vunpack.c.l.b16 %v66
  %v1210 = vunpack.c.l.b16 %v67
  %v1211 = vunpack.c.l.b16 %v68
  %v1212 = vunpack.c.l.b16 %v69
  %v1213 = vunpack.c.l.b16 %v70
  %v1214 = vunpack.c.l.b16 %v71
  %v1215 = vunpack.c.l.b16 %v72
  %v1216 = vunpack.c.l.b16 %v73
  %v1217 = vunpack.c.l.b16 %v74
  %v1218 = vunpack.c.l.b16 %v75
  %v1219 = vunpack.c.l.b16 %v76
  %v1220 = vunpack.c.l.b16 %v77
  %v1221 = vunpack.c.l.b16 %v78
  %v1222 = vunpack.c.l.b16 %v79
  %v1223 = vunpack.c.l.b16 %v80
  %v1224 = vunpack.c.l.b16 %v81
  %v1225 = vunpack.c.l.b16 %v82
  %v1226 = vunpack.c.l.b16 %v83
  %v1227 = vunpack.c.l.b16 %v84
  %v1228 = vunpack.c.l.b16 %v85
  %v1229 = vunpack.c.l.b16 %v86
  %v1230 = vunpack.c.l.b16 %v87
  %v1231 = vunpack.c.l.b16 %v88
  %v1232 = vunpack.c.l.b16 %v89
  %v1233 = vunpack.c.l.b16 %v90
  %v1234 = vunpack.c.l.b16 %v91
  %v1235 = vunpack.c.l.b16 %v92
  %v1236 = vunpack.c.l.b16 %v93
  %v1237 = vunpack.c.l.b16 %v94
  %v1238 = vunpack.c.l.b16 %v95
  %v1239 = vunpack.c.l.b16 %v96
  %v1240 = vunpack.c.l.b16 %v97
  %v1241 = vunpack.c.l.b16 %v98
  %v1242 = vunpack.c.l.b16 %v99
  %v1243 = vunpack.c.l.b16 %v100
  %v1244 = vunpack.c.l.b16 %v101
  %v1245 = vunpack.c.l.b16 %v102
  %v1246 = vunpack.c.l.b16 %v103
  %v1247 = vunpack.c.l.b16 %v104
  %v1248 = vunpack.c.l.b16 %v105
  %v1249 = vunpack.c.l.b16 %v106
  %v1250 = vunpack.c.l.b16 %v107
  %v1251 = vunpack.c.l.b16 %v108
  %v1252 = vunpack.c.l.b16 %v109
  %v1253 = vunpack.c.l.b16 %v110
  %v1254 = vunpack.c.l.b16 %v111
  %v1255 = vunpack.c.l.b16 %v112
  %v1256 = vunpack.c.l.b16 %v113
  %v1257 = vunpack.c.l.b16 %v114
  %v1258 = vunpack.c.l.b16 %v115
  %v1259 = vunpack.c.l.b16 %v116
  %v1260 = vunpack.c.l.b16 %v117
  %v1261 = vunpack.c.l.b16 %v118
  %v1262 = vunpack.c.l.b16 %v119
  %v1263 = vunpack.c.l.b16 %v120
  %v1264 = vunpack.c.l.b16 %v121
  %v1265 = vunpack.c.l.b16 %v122
  %v1266 = vunpack.c.l.b16 %v123
  %v1267 = vunpack.c.l.b16 %v124
  %v1268 = vunpack.c.l.b16 %v125
  %v1269 = vunpack.c.l.b16 %v126
  %v1270 = vunpack.c.l.b16 %v127
  %v1271 = vunpack.c.l.b16 %v128
  %v1272 = vunpack.c.l.b16 %v129
  %v1273 = vunpack.c.l.b16 %v130
  %v1274 = vunpack.c.l.b16 %v131
  %v1275 = vunpack.c.l.b16 %v132
  %v1276 = vunpack.c.l.b16 %v133
  %v1277 = vunpack.c.l.b16 %v134
  %v1278 = vunpack.c.l.b16 %v135
  %v1279 = vunpack.c.l.b16 %v136
  %v1280 = vunpack.c.l.b16 %v137
  %v1281 = vunpack.c.l.b16 %v138
  %v1282 = vunpack.c.l.b16 %v139
  %v1283 = vunpack.c.l.b16 %v140
  %v1284 = vunpack.c.l.b16 %v141
  %v1285 = vunpack.c.l.b16 %v142
  %v1286 = vunpack.c.l.b16 %v143
  %v1287 = vunpack.c.l.b16 %v144
  %v1288 = vunpack.c.l.b16 %v145
  %v1289 = vunpack.c.l.b16 %v146
  %v1290 = vunpack.c.l.b16 %v147
  %v1291 = vunpack.c.l.b16 %v148
  %v1292 = vunpack.c.l.b16 %v149
  %v1293 = vunpack.c.l.b16 %v150
  %v1294 = vunpack.c.l.b16 %v151
  %v1295 = vunpack.c.l.b16 %v152
  %v1296 = vunpack.c.l.b16 %v153
  %v1297 = vunpack.c.l.b16 %v154
  %v1298 = vunpack.c.l.b16 %v155
  %v1299 = vunpack.c.l.b16 %v156
  %v1300 = vunpack.c.l.b16 %v157
  %v1301 = vunpack.c.l.b16 %v158
  %v1302 = vunpack.c.l.b16 %v159
  %v1303 = vunpack.c.l.b16 %v160
  %v1304 = vunpack.c.l.b16 %v161
  %v1305 = vunpack.c.l.b16 %v162
  %v1306 = vunpack.c.l.b16 %v163
  %v1307 = vunpack.c.l.b16 %v164
  %v1308 = vunpack.c.l.b16 %v165
  %v1309 = vunpack.c.l.b16 %v166
  %v1310 = vunpack.c.l.b16 %v167
  %v1311 = vunpack.c.l.b16 %v168
  %v1312 = vunpack.c.l.b16 %v169
  %v1313 = vunpack.c.l.b16 %v170
  %v1314 = vunpack.c.l.b16 %v171
  %v1315 = vunpack.c.l.b16 %v172
  %v1316 = vunpack.c.l.b16 %v173
  %v1317 = vunpack.c.l.b16 %v174
  %v1318 = vunpack.c.l.b16 %v175
  %v1319 = vunpack.c.l.b16 %v176
  %v1320 = vunpack.c.l.b16 %v177
  %v1321 = vunpack.c.l.b16 %v178
  %v1322 = vunpack.c.l.b16 %v179
  %v1323 = vunpack.c.l.b16 %v180
  %v1324 = vunpack.c.l.b16 %v181
  %v1325 = vunpack.c.l.b16 %v182
  %v1326 = vunpack.c.l.b16 %v183
  %v1327 = vunpack.c.l.b16 %v184
  %v1328 = vunpack.c.l.b16 %v185
  %v1329 = vunpack.c.l.b16 %v186
  %v1330 = vunpack.c.l.b16 %v187
  %v1331 = vunpack.c.l.b16 %v188
  %v1332 = vunpack.c.l.b16 %v189
  %v1333 = vunpack.c.l.b16 %v190
  %v1334 = vunpack.c.l.b16 %v191
  %v1335 = vunpack.c.l.b16 %v192
  %v1336 = vunpack.c.l.b16 %v193
  %v1337 = vunpack.c.l.b16 %v194
  %v1338 = vunpack.c.l.b16 %v195
  %v1339 = vunpack.c.l.b16 %v196
  %v1340 = vunpack.c.l.b16 %v197
  %v1341 = vunpack.c.l.b16 %v198
  %v1342 = vunpack.c.l.b16 %v199
  %v1343 = vunpack.c.l.b16 %v200
  %v1344 = vunpack.c.l.b16 %v201
  %v1345 = vunpack.c.l.b16 %v202
  %v1346 = vunpack.c.l.b16 %v203
  %v1347 = vunpack.c.l.b16 %v204
  %v1348 = vunpack.c.l.b16 %v205
  %v1349 = vunpack.c.l.b16 %v206
  %v1350 = vunpack.c.l.b16 %v207
  %v1351 = vunpack.c.l.b16 %v208
  %v1352 = vunpack.c.l.b16 %v209
  %v1353 = vunpack.c.l.b16 %v210
  %v1354 = vunpack.c.l.b16 %v211
  %v1355 = vunpack.c.l.b16 %v212
  %v1356 = vunpack.c.l.b16 %v213
  %v1357 = vunpack.c.l.b16 %v214
  %v1358 = vunpack.c.l.b16 %v215
  %v1359 = vunpack.c.l.b16 %v216
  %v1360 = vunpack.c.l.b16 %v217
  %v1361 = vunpack.c.l.b16 %v218
  %v1362 = vunpack.c.l.b16 %v219
  %v1363 = vunpack.c.l.b16 %v220
  %v1364 = vunpack.c.l.b16 %v221
  %v1365 = vunpack.c.l.b16 %v222
  %v1366 = vunpack.c.l.b16 %v223
  %v1367 = vunpack.c.l.b16 %v224
  %v1368 = vunpack.c.l.b16 %v225
  %v1369 = vunpack.c.l.b16 %v226
  %v1370 = vunpack.c.l.b16 %v227
  %v1371 = vunpack.c.l.b16 %v228
  %v1372 = vunpack.c.l.b16 %v229
  %v1373 = vunpack.c.l.b16 %v230
  %v1374 = vunpack.c.l.b16 %v231
  %v1375 = vunpack.c.l.b16 %v232
  %v1376 = vunpack.c.l.b16 %v233
  %v1377 = vunpack.c.l.b16 %v234
  %v1378 = vunpack.c.l.b16 %v235
  %v1379 = vunpack.c.l.b16 %v236
  %v1380 = vunpack.c.l.b16 %v237
  %v1381 = vunpack.c.l.b16 %v238
  %v1382 = vunpack.c.l.b16 %v239
  %v1383 = vunpack.c.l.b16 %v240
  %v1384 = vunpack.c.l.b16 %v241
  %v1385 = vunpack.c.l.b16 %v242
  %v1386 = vunpack.c.l.b16 %v243
  %v1387 = vunpack.c.l.b16 %v244
  %v1388 = vunpack.c.l.b16 %v245
  %v1389 = vunpack.c.l.b16 %v246
  %v1390 = vunpack.c.l.b16 %v247
  %v1391 = vunpack.c.l.b16 %v248
  %v1392 = vunpack.c.l.b16 %v249
  %v1393 = vunpack.c.l.b16 %v250
  %v1394 = vunpack.c.l.b16 %v251
  %v1395 = vunpack.c.l.b16 %v252
  %v1396 = vunpack.c.l.b16 %v253
  %v1397 = vunpack.c.l.b16 %v254
  %v1398 = vunpack.c.l.b16 %v255
  %v1399 = vunpack.c.l.b16 %v256
  %v1400 = vunpack.c.l.b16 %v257
  %v1401 = vunpack.c.l.b16 %v258
  %v1402 = vunpack.c.l.b16 %v259
  %v1403 = vunpack.c.l.b16 %v260
  %v1404 = vunpack.c.l.b16 %v261
  %v1405 = vunpack.c.l.b16 %v262
  %v1406 = vunpack.c.l.b16 %v263
  %v1407 = vunpack.c.l.b16 %v264
  %v1408 = vunpack.c.l.b16 %v265
  %v1409 = vunpack.c.l.b16 %v266
  %v1410 = vunpack.c.l.b16 %v267
  %v1411 = vunpack.c.l.b16 %v268
  %v1412 = vunpack.c.l.b16 %v269
  %v1413 = vunpack.c.l.b16 %v270
  %v1414 = vunpack.c.l.b16 %v271
  %v1415 = vunpack.c.l.b16 %v272
  %v1416 = vunpack.c.l.b16 %v273
  %v1417 = vunpack.c.l.b16 %v274
  %v1418 = vunpack.c.l.b16 %v275
  %v1419 = vunpack.c.l.b16 %v276
  %v1420 = vunpack.c.l.b16 %v277
  %v1421 = vunpack.c.l.b16 %v278
  %v1422 = vunpack.c.l.b16 %v279
  %v1423 = vunpack.c.l.b16 %v280
  %v1424 = vunpack.c.l.b16 %v281
  %v1425 = vunpack.c.l.b16 %v282
  %v1426 = vunpack.c.l.b16 %v283
  %v1427 = vunpack.c.l.b16 %v284
  %v1428 = vunpack.c.l.b16 %v285
  %v1429 = vunpack.c.l.b16 %v286
  %v1430 = vunpack.c.l.b16 %v287
  %v1431 = vunpack.c.l.b16 %v288
  %v1432 = vunpack.c.l.b16 %v289
  %v1433 = vunpack.c.l.b16 %v290
  %v1434 = vunpack.c.l.b16 %v291
  %v1435 = vunpack.c.l.b16 %v292
  %v1436 = vunpack.c.l.b16 %v293
  %v1437 = vunpack.c.l.b16 %v294
  %v1438 = vunpack.c.l.b16 %v295
  %v1439 = vunpack.c.l.b16 %v296
  %v1440 = vunpack.c.l.b16 %v297
  %v1441 = vunpack.c.l.b16 %v298
  %v1442 = vunpack.c.l.b16 %v299
  %v1443 = vunpack.c.l.b16 %v300
  %v1444 = vunpack.c.l.b16 %v301
  %v1445 = vunpack.c.l.b16 %v302
  %v1446 = vunpack.c.l.b16 %v303
  %v1447 = vunpack.c.l.b16 %v304
  %v1448 = vunpack.c.l.b16 %v305
  %v1449 = vunpack.c.l.b16 %v306
  %v1450 = vunpack.c.l.b16 %v307
  %v1451 = vunpack.c.l.b16 %v308
  %v1452 = vunpack.c.l.b16 %v309
  %v1453 = vunpack.c.l.b16 %v310
  %v1454 = vunpack.c.l.b16 %v311
  %v1455 = vunpack.c.l.b16 %v312
  %v1456 = vunpack.c.l.b16 %v313
  %v1457 = vunpack.c.l.b16 %v314
  %v1458 = vunpack.c.l.b16 %v315
  %v1459 = vunpack.c.l.b16 %v316
  %v1460 = vunpack.c.l.b16 %v317
  %v1461 = vunpack.c.l.b16 %v318
  %v1462 = vunpack.c.l.b16 %v319
  %v1463 = vunpack.c.l.b16 %v320
  %v1464 = vunpack.c.l.b16 %v321
  %v1465 = vunpack.c.l.b16 %v322
  %v1466 = vunpack.c.l.b16 %v323
  %v1467 = vunpack.c.l.b16 %v324
  %v1468 = vunpack.c.l.b16 %v325
  %v1469 = vunpack.c.l.b16 %v326
  %v1470 = vunpack.c.l.b16 %v327
  %v1471 = vunpack.c.l.b16 %v328
  %v1472 = vunpack.c.l.b16 %v329
  %v1473 = vunpack.c.l.b16 %v330
  %v1474 = vunpack.c.l.b16 %v331
  %v1475 = vunpack.c.l.b16 %v332
  %v1476 = vunpack.c.l.b16 %v333
  %v1477 = vunpack.c.l.b16 %v334
  %v1478 = vunpack.c.l.b16 %v335
  %v1479 = vunpack.c.l.b16 %v336
  %v1480 = vunpack.c.l.b16 %v337
  %v1481 = vunpack.c.l.b16 %v338
  %v1482 = vunpack.c.l.b16 %v339
  %v1483 = vunpack.c.l.b16 %v340
  %v1484 = vunpack.c.l.b16 %v341
  %v1485 = vunpack.c.l.b16 %v342
  %v1486 = vunpack.c.l.b16 %v343
  %v1487 = vunpack.c.l.b16 %v344
  %v1488 = vunpack.c.l.b16 %v345
  %v1489 = vunpack.c.l.b16 %v346
  %v1490 = vunpack.c.l.b16 %v347
  %v1491 = vunpack.c.l.b16 %v348
  %v1492 = vunpack.c.l.b16 %v349
  %v1493 = vunpack.c.l.b16 %v350
  %v1494 = vunpack.c.l.b16 %v351
  %v1495 = vunpack.c.l.b16 %v352
  %v1496 = vunpack.c.l.b16 %v353
  %v1497 = vunpack.c.l.b16 %v354
  %v1498 = vunpack.c.l.b16 %v355
  %v1499 = vunpack.c.l.b16 %v356
  %v1500 = vunpack.c.l.b16 %v357
  %v1501 = vunpack.c.l.b16 %v358
  %v1502 = vunpack.c.l.b16 %v359
  %v1503 = vunpack.c.l.b16 %v360
  %v1504 = vunpack.c.l.b16 %v361
  %v1505 = vunpack.c.l.b16 %v362
  %v1506 = vunpack.c.l.b16 %v363
  %v1507 = vunpack.c.l.b16 %v364
  %v1508 = vunpack.c.l.b16 %v365
  %v1509 = vunpack.c.l.b16 %v366
  %v1510 = vunpack.c.l.b16 %v367
  %v1511 = vunpack.c.l.b16 %v368
  %v1512 = vunpack.c.l.b16 %v369
  %v1513 = vunpack.c.l.b16 %v370
  %v1514 = vunpack.c.l.b16 %v371
  %v1515 = vunpack.c.l.b16 %v372
  %v1516 = vunpack.c.l.b16 %v373
  %v1517 = vunpack.c.l.b16 %v374
  %v1518 = vunpack.c.l.b16 %v375
  %v1519 = vunpack.c.l.b16 %v376
  %v1520 = vunpack.c.l.b16 %v377
  %v1521 = vunpack.c.l.b16 %v378
  %v1522 = vunpack.c.l.b16 %v379
  %v1523 = vunpack.c.l.b16 %v380
  %v1524 = vunpack.c.l.b16 %v381
  %v1525 = vunpack.c.l.b16 %v382
  %v1526 = vunpack.c.l.b16 %v383
  %v1527 = vunpack.c.l.b16 %v384
  %v1528 = vunpack.c.l.b16 %v385
  %v1529 = vunpack.c.l.b16 %v386
  %v1530 = vunpack.c.l.b16 %v387
  %v1531 = vunpack.c.l.b16 %v388
  %v1532 = vunpack.c.l.b16 %v389
  %v1533 = vunpack.c.l.b16 %v390
  %v1534 = vunpack.c.l.b16 %v391
  %v1535 = vunpack.c.l.b16 %v392
  %v1536 = vunpack.c.l.b16 %v393
  %v1537 = vunpack.c.l.b16 %v394
  %v1538 = vunpack.c.l.b16 %v395
  %v1539 = vunpack.c.l.b16 %v396
  %v1540 = vunpack.c.l.b16 %v397
  %v1541 = vunpack.c.l.b16 %v398
  %v1542 = vunpack.c.l.b16 %v399
  %v1543 = vunpack.c.l.b16 %v400
  %v1544 = vunpack.c.l.b16 %v401
  %v1545 = vunpack.c.l.b16 %v402
  %v1546 = vunpack.c.l.b16 %v403
  %v1547 = vunpack.c.l.b16 %v404
  %v1548 = vunpack.c.l.b16 %v405
  %v1549 = vunpack.c.l.b16 %v406
  %v1550 = vunpack.c.l.b16 %v407
  %v1551 = vunpack.c.l.b16 %v408
  %v1552 = vunpack.c.l.b16 %v409
  %v1553 = vunpack.c.l.b16 %v410
  %v1554 = vunpack.c.l.b16 %v411
  %v1555 = vunpack.c.l.b16 %v412
  %v1556 = vunpack.c.l.b16 %v413
  %v1557 = vunpack.c.l.b16 %v414
  %v1558 = vunpack.c.l.b16 %v415
  %v1559 = vunpack.c.l.b16 %v416
  %v1560 = vunpack.c.l.b16 %v417
  %v1561 = vunpack.c.l.b16 %v418
  %v1562 = vunpack.c.l.b16 %v419
  %v1563 = vunpack.c.l.b16 %v420
  %v1564 = vunpack.c.l.b16 %v421
  %v1565 = vunpack.c.l.b16 %v422
  %v1566 = vunpack.c.l.b16 %v423
  %v1567 = vunpack.c.l.b16 %v424
  %v1568 = vunpack.c.l.b16 %v425
  %v1569 = vunpack.c.l.b16 %v426
  %v1570 = vunpack.c.l.b16 %v427
  %v1571 = vunpack.c.l.b16 %v428
  %v1572 = vunpack.c.l.b16 %v429
  %v1573 = vunpack.c.l.b16 %v430
  %v1574 = vunpack.c.l.b16 %v431
  %v1575 = vunpack.c.l.b16 %v432
  %v1576 = vunpack.c.l.b16 %v433
  %v1577 = vunpack.c.l.b16 %v434
  %v1578 = vunpack.c.l.b16 %v435
  %v1579 = vunpack.c.l.b16 %v436
  %v1580 = vunpack.c.l.b16 %v437
  %v1581 = vunpack.c.l.b16 %v438
  %v1582 = vunpack.c.l.b16 %v439
  %v1583 = vunpack.c.l.b16 %v440
  %v1584 = vunpack.c.l.b16 %v441
  %v1585 = vunpack.c.l.b16 %v442
  %v1586 = vunpack.c.l.b16 %v443
  %v1587 = vunpack.c.l.b16 %v444
  %v1588 = vunpack.c.l.b16 %v445
  %v1589 = vunpack.c.l.b16 %v446
  %v1590 = vunpack.c.l.b16 %v447
  %v1591 = vunpack.c.l.b16 %v448
  %v1592 = vunpack.c.l.b16 %v449
  %v1593 = vunpack.c.l.b16 %v450
  %v1594 = vunpack.c.l.b16 %v451
  %v1595 = vunpack.c.l.b16 %v452
  %v1596 = vunpack.c.l.b16 %v453
  %v1597 = vunpack.c.l.b16 %v454
  %v1598 = vunpack.c.l.b16 %v455
  %v1599 = vunpack.c.l.b16 %v456
  %v1600 = vunpack.c.l.b16 %v457
  %v1601 = vunpack.c.l.b16 %v458
  %v1602 = vunpack.c.l.b16 %v459
  %v1603 = vunpack.c.l.b16 %v460
  %v1604 = vunpack.c.l.b16 %v461
  %v1605 = vunpack.c.l.b16 %v462
  %v1606 = vunpack.c.l.b16 %v463
  %v1607 = vunpack.c.l.b16 %v464
  %v1608 = vunpack.c.l.b16 %v465
  %v1609 = vunpack.c.l.b16 %v466
  %v1610 = vunpack.c.l.b16 %v467
  %v1611 = vunpack.c.l.b16 %v468
  %v1612 = vunpack.c.l.b16 %v469
  %v1613 = vunpack.c.l.b16 %v470
  %v1614 = vunpack.c.l.b16 %v471
  %v1615 = vunpack.c.l.b16 %v472
  %v1616 = vunpack.c.l.b16 %v473
  %v1617 = vunpack.c.l.b16 %v474
  %v1618 = vunpack.c.l.b16 %v475
  %v1619 = vunpack.c.l.b16 %v476
  %v1620 = vunpack.c.l.b16 %v477
  %v1621 = vunpack.c.l.b16 %v478
  %v1622 = vunpack.c.l.b16 %v479
  %v1623 = vunpack.c.l.b16 %v480
  %v1624 = vunpack.c.l.b16 %v481
  %v1625 = vunpack.c.l.b16 %v482
  %v1626 = vunpack.c.l.b16 %v483
  %v1627 = vunpack.c.l.b16 %v484
  %v1628 = vunpack.c.l.b16 %v485
  %v1629 = vunpack.c.l.b16 %v486
  %v1630 = vunpack.c.l.b16 %v487
  %v1631 = vunpack.c.l.b16 %v488
  %v1632 = vunpack.c.l.b16 %v489
  %v1633 = vunpack.c.l.b16 %v490
  %v1634 = vunpack.c.l.b16 %v491
  %v1635 = vunpack.c.l.b16 %v492
  %v1636 = vunpack.c.l.b16 %v493
  %v1637 = vunpack.c.l.b16 %v494
  %v1638 = vunpack.c.l.b16 %v495
  %v1639 = vunpack.c.l.b16 %v496
  %v1640 = vunpack.c.l.b16 %v497
  %v1641 = vunpack.c.l.b16 %v498
  %v1642 = vunpack.c.l.b16 %v499
  %v1643 = vunpack.c.l.b16 %v500
  %v1644 = vunpack.c.l.b16 %v501
  %v1645 = vunpack.c.l.b16 %v502
  %v1646 = vunpack.c.l.b16 %v503
  %v1647 = vunpack.c.l.b16 %v504
  %v1648 = vunpack.c.l.b16 %v505
  %v1649 = vunpack.c.l.b16 %v506
  %v1650 = vunpack.c.l.b16 %v507
  %v1651 = vunpack.c.l.b16 %v508
  %v1652 = vunpack.c.l.b16 %v509
  %v1653 = vunpack.c.l.b16 %v510
  %v1654 = vunpack.c.l.b16 %v511
  %v1655 = vunpack.c.l.b16 %v512
  %v1656 = vunpack.c.l.b16 %v513
  %v1657 = vunpack.c.l.b16 %v514
  %v1658 = vunpack.c.l.b16 %v515
  %v1659 = vunpack.c.l.b16 %v516
  %v1660 = vunpack.c.l.b16 %v517
  %v1661 = vunpack.c.l.b16 %v518
  %v1662 = vunpack.c.l.b16 %v519
  %v1663 = vunpack.c.l.b16 %v520
  %v1664 = vunpack.c.l.b16 %v521
  %v1665 = vunpack.c.l.b16 %v522
  %v1666 = vunpack.c.l.b16 %v523
  %v1667 = vunpack.c.l.b16 %v524
  %v1668 = vunpack.c.l.b16 %v525
  %v1669 = vunpack.c.l.b16 %v526
  %v1670 = vunpack.c.l.b16 %v527
  %v1671 = vunpack.c.l.b16 %v528
  %v1672 = vunpack.c.l.b16 %v529
  %v1673 = vunpack.c.l.b16 %v530
  %v1674 = vunpack.c.l.b16 %v531
  %v1675 = vunpack.c.l.b16 %v532
  %v1676 = vunpack.c.l.b16 %v533
  %v1677 = vunpack.c.l.b16 %v534
  %v1678 = vunpack.c.l.b16 %v535
  %v1679 = vunpack.c.l.b16 %v536
  %v1680 = vunpack.c.l.b16 %v537
  %v1681 = vunpack.c.l.b16 %v538
  %v1682 = vunpack.c.l.b16 %v539
  %v1683 = vunpack.c.l.b16 %v540
  %v1684 = vunpack.c.l.b16 %v541
  %v1685 = vunpack.c.l.b16 %v542
  %v1686 = vunpack.c.l.b16 %v543
  %v1687 = vunpack.c.l.b16 %v544
  %v1688 = vpack.c.b16 %v1177, %v1176
  %v1689 = vpack.c.b16 %v1179, %v1178
  %v1690 = vpack.c.b16 %v1181, %v1180
  %v1691 = vpack.c.b16 %v1183, %v1182
  %v1692 = vpack.c.b16 %v1185, %v1184
  %v1693 = vpack.c.b16 %v1187, %v1186
  %v1694 = vpack.c.b16 %v1189, %v1188
  %v1695 = vpack.c.b16 %v1191, %v1190
  %v1696 = vpack.c.b16 %v1193, %v1192
  %v1697 = vpack.c.b16 %v1195, %v1194
  %v1698 = vpack.c.b16 %v1197, %v1196
  %v1699 = vpack.c.b16 %v1199, %v1198
  %v1700 = vpack.c.b16 %v1201, %v1200
  %v1701 = vpack.c.b16 %v1203, %v1202
  %v1702 = vpack.c.b16 %v1205, %v1204
  %v1703 = vpack.c.b16 %v1207, %v1206
  %v1704 = vpack.c.b16 %v1209, %v1208
  %v1705 = vpack.c.b16 %v1211, %v1210
  %v1706 = vpack.c.b16 %v1213, %v1212
  %v1707 = vpack.c.b16 %v1215, %v1214
  %v1708 = vpack.c.b16 %v1217, %v1216
  %v1709 = vpack.c.b16 %v1219, %v1218
  %v1710 = vpack.c.b16 %v1221, %v1220
  %v1711 = vpack.c.b16 %v1223, %v1222
  %v1712 = vpack.c.b16 %v1225, %v1224
  %v1713 = vpack.c.b16 %v1227, %v1226
  %v1714 = vpack.c.b16 %v1229, %v1228
  %v1715 = vpack.c.b16 %v1231, %v1230
  %v1716 = vpack.c.b16 %v1233, %v1232
  %v1717 = vpack.c.b16 %v1235, %v1234
  %v1718 = vpack.c.b16 %v1237, %v1236
  %v1719 = vpack.c.b16 %v1239, %v1238
  %v1720 = vpack.c.b16 %v1241, %v1240
  %v1721 = vpack.c.b16 %v1243, %v1242
  %v1722 = vpack.c.b16 %v1245, %v1244
  %v1723 = vpack.c.b16 %v1247, %v1246
  %v1724 = vpack.c.b16 %v1249, %v1248
  %v1725 = vpack.c.b16 %v1251, %v1250
  %v1726 = vpack.c.b16 %v1253, %v1252
  %v1727 = vpack.c.b16 %v1255, %v1254
  %v1728 = vpack.c.b16 %v1257, %v1256
  %v1729 = vpack.c.b16 %v1259, %v1258
  %v1730 = vpack.c.b16 %v1261, %v1260
  %v1731 = vpack.c.b16 %v1263, %v1262
  %v1732 = vpack.c.b16 %v1265, %v1264
  %v1733 = vpack.c.b16 %v1267, %v1266
  %v1734 = vpack.c.b16 %v1269, %v1268
  %v1735 = vpack.c.b16 %v1271, %v1270
  %v1736 = vpack.c.b16 %v1273, %v1272
  %v1737 = vpack.c.b16 %v1275, %v1274
  %v1738 = vpack.c.b16 %v1277, %v1276
  %v1739 = vpack.c.b16 %v1279, %v1278
  %v1740 = vpack.c.b16 %v1281, %v1280
  %v1741 = vpack.c.b16 %v1283, %v1282
  %v1742 = vpack.c.b16 %v1285, %v1284
  %v1743 = vpack.c.b16 %v1287, %v1286
  %v1744 = vpack.c.b16 %v1289, %v1288
  %v1745 = vpack.c.b16 %v1291, %v1290
  %v1746 = vpack.c.b16 %v1293, %v1292
  %v1747 = vpack.c.b16 %v1295, %v1294
  %v1748 = vpack.c.b16 %v1297, %v1296
  %v1749 = vpack.c.b16 %v1299, %v1298
  %v1750 = vpack.c.b16 %v1301, %v1300
  %v1751 = vpack.c.b16 %v1303, %v1302
  %v1752 = vpack.c.b16 %v1305, %v1304
  %v1753 = vpack.c.b16 %v1307, %v1306
  %v1754 = vpack.c.b16 %v1309, %v1308
  %v1755 = vpack.c.b16 %v1311, %v1310
  %v1756 = vpack.c.b16 %v1313, %v1312
  %v1757 = vpack.c.b16 %v1315, %v1314
  %v1758 = vpack.c.b16 %v1317, %v1316
  %v1759 = vpack.c.b16 %v1319, %v1318
  %v1760 = vpack.c.b16 %v1321, %v1320
  %v1761 = vpack.c.b16 %v1323, %v1322
  %v1762 = vpack.c.b16 %v1325, %v1324
  %v1763 = vpack.c.b16 %v1327, %v1326
  %v1764 = vpack.c.b16 %v1329, %v1328
  %v1765 = vpack.c.b16 %v1331, %v1330
  %v1766 = vpack.c.b16 %v1333, %v1332
  %v1767 = vpack.c.b16 %v1335, %v1334
  %v1768 = vpack.c.b16 %v1337, %v1336
  %v1769 = vpack.c.b16 %v1339, %v1338
  %v1770 = vpack.c.b16 %v1341, %v1340
  %v1771 = vpack.c.b16 %v1343, %v1342
  %v1772 = vpack.c.b16 %v1345, %v1344
  %v1773 = vpack.c.b16 %v1347, %v1346
  %v1774 = vpack.c.b16 %v1349, %v1348
  %v1775 = vpack.c.b16 %v1351, %v1350
  %v1776 = vpack.c.b16 %v1353, %v1352
  %v1777 = vpack.c.b16 %v1355, %v1354
  %v1778 = vpack.c.b16 %v1357, %v1356
  %v1779 = vpack.c.b16 %v1359, %v1358
  %v1780 = vpack.c.b16 %v1361, %v1360
  %v1781 = vpack.c.b16 %v1363, %v1362
  %v1782 = vpack.c.b16 %v1365, %v1364
  %v1783 = vpack.c.b16 %v1367, %v1366
  %v1784 = vpack.c.b16 %v1369, %v1368
  %v1785 = vpack.c.b16 %v1371, %v1370
  %v1786 = vpack.c.b16 %v1373, %v1372
  %v1787 = vpack.c.b16 %v1375, %v1374
  %v1788 = vpack.c.b16 %v1377, %v1376
  %v1789 = vpack.c.b16 %v1379, %v1378
  %v1790 = vpack.c.b16 %v1381, %v1380
  %v1791 = vpack.c.b16 %v1383, %v1382
  %v1792 = vpack.c.b16 %v1385, %v1384
  %v1793 = vpack.c.b16 %v1387, %v1386
  %v1794 = vpack.c.b16 %v1389, %v1388
  %v1795 = vpack.c.b16 %v1391, %v1390
  %v1796 = vpack.c.b16 %v1393, %v1392
  %v1797 = vpack.c.b16 %v1395, %v1394
  %v1798 = vpack.c.b16 %v1397, %v1396
  %v1799 = vpack.c.b16 %v1399, %v1398
  %v1800 = vpack.c.b16 %v1401, %v1400
  %v1801 = vpack.c.b16 %v1403, %v1402
  %v1802 = vpack.c.b16 %v1405, %v1404
  %v1803 = vpack.c.b16 %v1407, %v1406
  %v1804 = vpack.c.b16 %v1409, %v1408
  %v1805 = vpack.c.b16 %v1411, %v1410
  %v1806 = vpack.c.b16 %v1413, %v1412
  %v1807 = vpack.c.b16 %v1415, %v1414
  %v1808 = vpack.c.b16 %v1417, %v1416
  %v1809 = vpack.c.b16 %v1419, %v1418
  %v1810 = vpack.c.b16 %v1421, %v1420
  %v1811 = vpack.c.b16 %v1423, %v1422
  %v1812 = vpack.c.b16 %v1425, %v1424
  %v1813 = vpack.c.b16 %v1427, %v1426
  %v1814 = vpack.c.b16 %v1429, %v1428
  %v1815 = vpack.c.b16 %v1431, %v1430
  %v1816 = vpack.c.b16 %v1433, %v1432
  %v1817 = vpack.c.b16 %v1435, %v1434
  %v1818 = vpack.c.b16 %v1437, %v1436
  %v1819 = vpack.c.b16 %v1439, %v1438
  %v1820 = vpack.c.b16 %v1441, %v1440
  %v1821 = vpack.c.b16 %v1443, %v1442
  %v1822 = vpack.c.b16 %v1445, %v1444
  %v1823 = vpack.c.b16 %v1447, %v1446
  %v1824 = vpack.c.b16 %v1449, %v1448
  %v1825 = vpack.c.b16 %v1451, %v1450
  %v1826 = vpack.c.b16 %v1453, %v1452
  %v1827 = vpack.c.b16 %v1455, %v1454
  %v1828 = vpack.c.b16 %v1457, %v1456
  %v1829 = vpack.c.b16 %v1459, %v1458
  %v1830 = vpack.c.b16 %v1461, %v1460
  %v1831 = vpack.c.b16 %v1463, %v1462
  %v1832 = vpack.c.b16 %v1465, %v1464
  %v1833 = vpack.c.b16 %v1467, %v1466
  %v1834 = vpack.c.b16 %v1469, %v1468
  %v1835 = vpack.c.b16 %v1471, %v1470
  %v1836 = vpack.c.b16 %v1473, %v1472
  %v1837 = vpack.c.b16 %v1475, %v1474
  %v1838 = vpack.c.b16 %v1477, %v1476
  %v1839 = vpack.c.b16 %v1479, %v1478
  %v1840 = vpack.c.b16 %v1481, %v1480
  %v1841 = vpack.c.b16 %v1483, %v1482
  %v1842 = vpack.c.b16 %v1485, %v1484
  %v1843 = vpack.c.b16 %v1487, %v1486
  %v1844 = vpack.c.b16 %v1489, %v1488
  %v1845 = vpack.c.b16 %v1491, %v1490
  %v1846 = vpack.c.b16 %v1493, %v1492
  %v1847 = vpack.c.b16 %v1495, %v1494
  %v1848 = vpack.c.b16 %v1497, %v1496
  %v1849 = vpack.c.b16 %v1499, %v1498
  %v1850 = vpack.c.b16 %v1501, %v1500
  %v1851 = vpack.c.b16 %v1503, %v1502
  %v1852 = vpack.c.b16 %v1505, %v1504
  %v1853 = vpack.c.b16 %v1507, %v1506
  %v1854 = vpack.c.b16 %v1509, %v1508
  %v1855 = vpack.c.b16 %v1511, %v1510
  %v1856 = vpack.c.b16 %v1513, %v1512
  %v1857 = vpack.c.b16 %v1515, %v1514
  %v1858 = vpack.c.b16 %v1517, %v1516
  %v1859 = vpack.c.b16 %v1519, %v1518
  %v1860 = vpack.c.b16 %v1521, %v1520
  %v1861 = vpack.c.b16 %v1523, %v1522
  %v1862 = vpack.c.b16 %v1525, %v1524
  %v1863 = vpack.c.b16 %v1527, %v1526
  %v1864 = vpack.c.b16 %v1529, %v1528
  %v1865 = vpack.c.b16 %v1531, %v1530
  %v1866 = vpack.c.b16 %v1533, %v1532
  %v1867 = vpack.c.b16 %v1535, %v1534
  %v1868 = vpack.c.b16 %v1537, %v1536
  %v1869 = vpack.c.b16 %v1539, %v1538
  %v1870 = vpack.c.b16 %v1541, %v1540
  %v1871 = vpack.c.b16 %v1543, %v1542
  %v1872 = vpack.c.b16 %v1545, %v1544
  %v1873 = vpack.c.b16 %v1547, %v1546
  %v1874 = vpack.c.b16 %v1549, %v1548
  %v1875 = vpack.c.b16 %v1551, %v1550
  %v1876 = vpack.c.b16 %v1553, %v1552
  %v1877 = vpack.c.b16 %v1555, %v1554
  %v1878 = vpack.c.b16 %v1557, %v1556
  %v1879 = vpack.c.b16 %v1559, %v1558
  %v1880 = vpack.c.b16 %v1561, %v1560
  %v1881 = vpack.c.b16 %v1563, %v1562
  %v1882 = vpack.c.b16 %v1565, %v1564
  %v1883 = vpack.c.b16 %v1567, %v1566
  %v1884 = vpack.c.b16 %v1569, %v1568
  %v1885 = vpack.c.b16 %v1571, %v1570
  %v1886 = vpack.c.b16 %v1573, %v1572
  %v1887 = vpack.c.b16 %v1575, %v1574
  %v1888 = vpack.c.b16 %v1577, %v1576
  %v1889 = vpack.c.b16 %v1579, %v1578
  %v1890 = vpack.c.b16 %v1581, %v1580
  %v1891 = vpack.c.b16 %v1583, %v1582
  %v1892 = vpack.c.b16 %v1585, %v1584
  %v1893 = vpack.c.b16 %v1587, %v1586
  %v1894 = vpack.c.b16 %v1589, %v1588
  %v1895 = vpack.c.b16 %v1591, %v1590
  %v1896 = vpack.c.b16 %v1593, %v1592
  %v1897 = vpack.c.b16 %v1595, %v1594
  %v1898 = vpack.c.b16 %v1597, %v1596
  %v1899 = vpack.c.b16 %v1599, %v1598
  %v1900 = vpack.c.b16 %v1601, %v1600
  %v1901 = vpack.c.b16 %v1603, %v1602
  %v1902 = vpack.c.b16 %v1605, %v1604
  %v1903 = vpack.c.b16 %v1607, %v1606
  %v1904 = vpack.c.b16 %v1609, %v1608
  %v1905 = vpack.c.b16 %v1611, %v1610
  %v1906 = vpack.c.b16 %v1613, %v1612
  %v1907 = vpack.c.b16 %v1615, %v1614
  %v1908 = vpack.c.b16 %v1617, %v1616
  %v1909 = vpack.c.b16 %v1619, %v1618
  %v1910 = vpack.c.b16 %v1621, %v1620
  %v1911 = vpack.c.b16 %v1623, %v1622
  %v1912 = vpack.c.b16 %v1625, %v1624
  %v1913 = vpack.c.b16 %v1627, %v1626
  %v1914 = vpack.c.b16 %v1629, %v1628
  %v1915 = vpack.c.b16 %v1631, %v1630
  %v1916 = vpack.c.b16 %v1633, %v1632
  %v1917 = vpack.c.b16 %v1635, %v1634
  %v1918 = vpack.c.b16 %v1637, %v1636
  %v1919 = vpack.c.b16 %v1639, %v1638
  %v1920 = vpack.c.b16 %v1641, %v1640
  %v1921 = vpack.c.b16 %v1643, %v1642
  %v1922 = vpack.c.b16 %v1645, %v1644
  %v1923 = vpack.c.b16 %v1647, %v1646
  %v1924 = vpack.c.b16 %v1649, %v1648
  %v1925 = vpack.c.b16 %v1651, %v1650
  %v1926 = vpack.c.b16 %v1653, %v1652
  %v1927 = vpack.c.b16 %v1655, %v1654
  %v1928 = vpack.c.b16 %v1657, %v1656
  %v1929 = vpack.c.b16 %v1659, %v1658
  %v1930 = vpack.c.b16 %v1661, %v1660
  %v1931 = vpack.c.b16 %v1663, %v1662
  %v1932 = vpack.c.b16 %v1665, %v1664
  %v1933 = vpack.c.b16 %v1667, %v1666
  %v1934 = vpack.c.b16 %v1669, %v1668
  %v1935 = vpack.c.b16 %v1671, %v1670
  %v1936 = vpack.c.b16 %v1673, %v1672
  %v1937 = vpack.c.b16 %v1675, %v1674
  %v1938 = vpack.c.b16 %v1677, %v1676
  %v1939 = vpack.c.b16 %v1679, %v1678
  %v1940 = vpack.c.b16 %v1681, %v1680
  %v1941 = vpack.c.b16 %v1683, %v1682
  %v1942 = vpack.c.b16 %v1685, %v1684
  %v1943 = vpack.c.b16 %v1687, %v1686
  %2200 = vmatprep.subr.bf16.mxu0 0
  %2201 = vmatpush1.bf16.msra.mxu0 %v1688
  %2202 = vmatprep.subr.bf16.mxu0 0
  %2203 = vmatpush1.bf16.msra.mxu0 %v1689
  %2204 = vmatprep.subr.bf16.mxu0 0
  %2205 = vmatpush1.bf16.msra.mxu0 %v1690
  %2206 = vmatprep.subr.bf16.mxu0 0
  %2207 = vmatpush1.bf16.msra.mxu0 %v1691
  %2208 = vmatprep.subr.bf16.mxu0 0
  %2209 = vmatpush1.bf16.msra.mxu0 %v1692
  %2210 = vmatprep.subr.bf16.mxu0 0
  %2211 = vmatpush1.bf16.msra.mxu0 %v1693
  %2212 = vmatprep.subr.bf16.mxu0 0
  %2213 = vmatpush1.bf16.msra.mxu0 %v1694
  %2214 = vmatprep.subr.bf16.mxu0 0
  %2215 = vmatpush1.bf16.msra.mxu0 %v1695
  %2216 = vmatprep.subr.bf16.mxu0 0
  %2217 = vmatpush1.bf16.msra.mxu0 %v1696
  %2218 = vmatprep.subr.bf16.mxu0 0
  %2219 = vmatpush1.bf16.msra.mxu0 %v1697
  %2220 = vmatprep.subr.bf16.mxu0 0
  %2221 = vmatpush1.bf16.msra.mxu0 %v1698
  %2222 = vmatprep.subr.bf16.mxu0 0
  %2223 = vmatpush1.bf16.msra.mxu0 %v1699
  %2224 = vmatprep.subr.bf16.mxu0 0
  %2225 = vmatpush1.bf16.msra.mxu0 %v1700
  %2226 = vmatprep.subr.bf16.mxu0 0
  %2227 = vmatpush1.bf16.msra.mxu0 %v1701
  %2228 = vmatprep.subr.bf16.mxu0 0
  %2229 = vmatpush1.bf16.msra.mxu0 %v1702
  %2230 = vmatprep.subr.bf16.mxu0 0
  %2231 = vmatpush1.bf16.msra.mxu0 %v1703
  %2232 = vmatprep.mubr.bf16.mxu0 %v601
  %2233 = vmatmul.mubr.bf16.gmra.mrb[0].mxu0 %v600
  %v2234 = vpop.f32.mrb[0].mxu0
  %v2235 = vadd.f32 %v550, %v2234
  %v2236 = vpop.f32.mrb[0].mxu0
  %v2237 = vpop.f32.mrb[0].mxu0
  %v2238 = vpop.f32.mrb[0].mxu0
  %2239 = vdwg.mxu0
  %2240 = vmatprep.subr.bf16.mxu0 0
  %2241 = vmatpush1.bf16.msra.mxu0 %v1704
  %2242 = vmatprep.subr.bf16.mxu0 0
  %2243 = vmatpush1.bf16.msra.mxu0 %v1705
  %2244 = vmatprep.subr.bf16.mxu0 0
  %2245 = vmatpush1.bf16.msra.mxu0 %v1706
  %2246 = vmatprep.subr.bf16.mxu0 0
  %2247 = vmatpush1.bf16.msra.mxu0 %v1707
  %2248 = vmatprep.subr.bf16.mxu0 0
  %2249 = vmatpush1.bf16.msra.mxu0 %v1708
  %2250 = vmatprep.subr.bf16.mxu0 0
  %2251 = vmatpush1.bf16.msra.mxu0 %v1709
  %2252 = vmatprep.subr.bf16.mxu0 0
  %2253 = vmatpush1.bf16.msra.mxu0 %v1710
  %2254 = vmatprep.subr.bf16.mxu0 0
  %2255 = vmatpush1.bf16.msra.mxu0 %v1711
  %2256 = vmatprep.subr.bf16.mxu0 0
  %2257 = vmatpush1.bf16.msra.mxu0 %v1712
  %2258 = vmatprep.subr.bf16.mxu0 0
  %2259 = vmatpush1.bf16.msra.mxu0 %v1713
  %2260 = vmatprep.subr.bf16.mxu0 0
  %2261 = vmatpush1.bf16.msra.mxu0 %v1714
  %2262 = vmatprep.subr.bf16.mxu0 0
  %2263 = vmatpush1.bf16.msra.mxu0 %v1715
  %2264 = vmatprep.subr.bf16.mxu0 0
  %2265 = vmatpush1.bf16.msra.mxu0 %v1716
  %2266 = vmatprep.subr.bf16.mxu0 0
  %2267 = vmatpush1.bf16.msra.mxu0 %v1717
  %2268 = vmatprep.subr.bf16.mxu0 0
  %2269 = vmatpush1.bf16.msra.mxu0 %v1718
  %2270 = vmatprep.subr.bf16.mxu0 0
  %2271 = vmatpush1.bf16.msra.mxu0 %v1719
  %2272 = vmatprep.mubr.bf16.mxu0 %v603
  %2273 = vmatmul.mubr.bf16.gmra.mrb[0].mxu0 %v602
  %v2274 = vpop.f32.mrb[0].mxu0
  %v2275 = vadd.f32 %v2235, %v2274
  %v2276 = vpop.f32.mrb[0].mxu0
  %v2277 = vpop.f32.mrb[0].mxu0
  %v2278 = vpop.f32.mrb[0].mxu0
  %2279 = vdwg.mxu0
  %2280 = vmatprep.subr.bf16.mxu0 0
  %2281 = vmatpush1.bf16.msra.mxu0 %v1720
  %2282 = vmatprep.subr.bf16.mxu0 0
  %2283 = vmatpush1.bf16.msra.mxu0 %v1721
  %2284 = vmatprep.subr.bf16.mxu0 0
  %2285 = vmatpush1.bf16.msra.mxu0 %v1722
  %2286 = vmatprep.subr.bf16.mxu0 0
  %2287 = vmatpush1.bf16.msra.mxu0 %v1723
  %2288 = vmatprep.subr.bf16.mxu0 0
  %2289 = vmatpush1.bf16.msra.mxu0 %v1724
  %2290 = vmatprep.subr.bf16.mxu0 0
  %2291 = vmatpush1.bf16.msra.mxu0 %v1725
  %2292 = vmatprep.subr.bf16.mxu0 0
  %2293 = vmatpush1.bf16.msra.mxu0 %v1726
  %2294 = vmatprep.subr.bf16.mxu0 0
  %2295 = vmatpush1.bf16.msra.mxu0 %v1727
  %2296 = vmatprep.subr.bf16.mxu0 0
  %2297 = vmatpush1.bf16.msra.mxu0 %v1728
  %2298 = vmatprep.subr.bf16.mxu0 0
  %2299 = vmatpush1.bf16.msra.mxu0 %v1729
  %2300 = vmatprep.subr.bf16.mxu0 0
  %2301 = vmatpush1.bf16.msra.mxu0 %v1730
  %2302 = vmatprep.subr.bf16.mxu0 0
  %2303 = vmatpush1.bf16.msra.mxu0 %v1731
  %2304 = vmatprep.subr.bf16.mxu0 0
  %2305 = vmatpush1.bf16.msra.mxu0 %v1732
  %2306 = vmatprep.subr.bf16.mxu0 0
  %2307 = vmatpush1.bf16.msra.mxu0 %v1733
  %2308 = vmatprep.subr.bf16.mxu0 0
  %2309 = vmatpush1.bf16.msra.mxu0 %v1734
  %2310 = vmatprep.subr.bf16.mxu0 0
  %2311 = vmatpush1.bf16.msra.mxu0 %v1735
  %2312 = vmatprep.mubr.bf16.mxu0 %v605
  %2313 = vmatmul.mubr.bf16.gmra.mrb[0].mxu0 %v604
  %v2314 = vpop.f32.mrb[0].mxu0
  %v2315 = vadd.f32 %v2275, %v2314
  %v2316 = vpop.f32.mrb[0].mxu0
  %v2317 = vpop.f32.mrb[0].mxu0
  %v2318 = vpop.f32.mrb[0].mxu0
  %2319 = vdwg.mxu0
  %2320 = vmatprep.subr.bf16.mxu0 0
  %2321 = vmatpush1.bf16.msra.mxu0 %v1736
  %2322 = vmatprep.subr.bf16.mxu0 0
  %2323 = vmatpush1.bf16.msra.mxu0 %v1737
  %2324 = vmatprep.subr.bf16.mxu0 0
  %2325 = vmatpush1.bf16.msra.mxu0 %v1738
  %2326 = vmatprep.subr.bf16.mxu0 0
  %2327 = vmatpush1.bf16.msra.mxu0 %v1739
  %2328 = vmatprep.subr.bf16.mxu0 0
  %2329 = vmatpush1.bf16.msra.mxu0 %v1740
  %2330 = vmatprep.subr.bf16.mxu0 0
  %2331 = vmatpush1.bf16.msra.mxu0 %v1741
  %2332 = vmatprep.subr.bf16.mxu0 0
  %2333 = vmatpush1.bf16.msra.mxu0 %v1742
  %2334 = vmatprep.subr.bf16.mxu0 0
  %2335 = vmatpush1.bf16.msra.mxu0 %v1743
  %2336 = vmatprep.subr.bf16.mxu0 0
  %2337 = vmatpush1.bf16.msra.mxu0 %v1744
  %2338 = vmatprep.subr.bf16.mxu0 0
  %2339 = vmatpush1.bf16.msra.mxu0 %v1745
  %2340 = vmatprep.subr.bf16.mxu0 0
  %2341 = vmatpush1.bf16.msra.mxu0 %v1746
  %2342 = vmatprep.subr.bf16.mxu0 0
  %2343 = vmatpush1.bf16.msra.mxu0 %v1747
  %2344 = vmatprep.subr.bf16.mxu0 0
  %2345 = vmatpush1.bf16.msra.mxu0 %v1748
  %2346 = vmatprep.subr.bf16.mxu0 0
  %2347 = vmatpush1.bf16.msra.mxu0 %v1749
  %2348 = vmatprep.subr.bf16.mxu0 0
  %2349 = vmatpush1.bf16.msra.mxu0 %v1750
  %2350 = vmatprep.subr.bf16.mxu0 0
  %2351 = vmatpush1.bf16.msra.mxu0 %v1751
  %2352 = vmatprep.mubr.bf16.mxu0 %v607
  %2353 = vmatmul.mubr.bf16.gmra.mrb[0].mxu0 %v606
  %v2354 = vpop.f32.mrb[0].mxu0
  %v2355 = vadd.f32 %v2315, %v2354
  %v2356 = vpop.f32.mrb[0].mxu0
  %v2357 = vpop.f32.mrb[0].mxu0
  %v2358 = vpop.f32.mrb[0].mxu0
  %2359 = vdwg.mxu0
  %2360 = vmatprep.subr.bf16.mxu0 0
  %2361 = vmatpush1.bf16.msra.mxu0 %v1752
  %2362 = vmatprep.subr.bf16.mxu0 0
  %2363 = vmatpush1.bf16.msra.mxu0 %v1753
  %2364 = vmatprep.subr.bf16.mxu0 0
  %2365 = vmatpush1.bf16.msra.mxu0 %v1754
  %2366 = vmatprep.subr.bf16.mxu0 0
  %2367 = vmatpush1.bf16.msra.mxu0 %v1755
  %2368 = vmatprep.subr.bf16.mxu0 0
  %2369 = vmatpush1.bf16.msra.mxu0 %v1756
  %2370 = vmatprep.subr.bf16.mxu0 0
  %2371 = vmatpush1.bf16.msra.mxu0 %v1757
  %2372 = vmatprep.subr.bf16.mxu0 0
  %2373 = vmatpush1.bf16.msra.mxu0 %v1758
  %2374 = vmatprep.subr.bf16.mxu0 0
  %2375 = vmatpush1.bf16.msra.mxu0 %v1759
  %2376 = vmatprep.subr.bf16.mxu0 0
  %2377 = vmatpush1.bf16.msra.mxu0 %v1760
  %2378 = vmatprep.subr.bf16.mxu0 0
  %2379 = vmatpush1.bf16.msra.mxu0 %v1761
  %2380 = vmatprep.subr.bf16.mxu0 0
  %2381 = vmatpush1.bf16.msra.mxu0 %v1762
  %2382 = vmatprep.subr.bf16.mxu0 0
  %2383 = vmatpush1.bf16.msra.mxu0 %v1763
  %2384 = vmatprep.subr.bf16.mxu0 0
  %2385 = vmatpush1.bf16.msra.mxu0 %v1764
  %2386 = vmatprep.subr.bf16.mxu0 0
  %2387 = vmatpush1.bf16.msra.mxu0 %v1765
  %2388 = vmatprep.subr.bf16.mxu0 0
  %2389 = vmatpush1.bf16.msra.mxu0 %v1766
  %2390 = vmatprep.subr.bf16.mxu0 0
  %2391 = vmatpush1.bf16.msra.mxu0 %v1767
  %2392 = vmatprep.mubr.bf16.mxu0 %v609
  %2393 = vmatmul.mubr.bf16.gmra.mrb[0].mxu0 %v608
  %v2394 = vpop.f32.mrb[0].mxu0
  %v2395 = vadd.f32 %v2355, %v2394
  %v2396 = vpop.f32.mrb[0].mxu0
  %v2397 = vpop.f32.mrb[0].mxu0
  %v2398 = vpop.f32.mrb[0].mxu0
  %2399 = vdwg.mxu0
  %2400 = vmatprep.subr.bf16.mxu0 0
  %2401 = vmatpush1.bf16.msra.mxu0 %v1768
  %2402 = vmatprep.subr.bf16.mxu0 0
  %2403 = vmatpush1.bf16.msra.mxu0 %v1769
  %2404 = vmatprep.subr.bf16.mxu0 0
  %2405 = vmatpush1.bf16.msra.mxu0 %v1770
  %2406 = vmatprep.subr.bf16.mxu0 0
  %2407 = vmatpush1.bf16.msra.mxu0 %v1771
  %2408 = vmatprep.subr.bf16.mxu0 0
  %2409 = vmatpush1.bf16.msra.mxu0 %v1772
  %2410 = vmatprep.subr.bf16.mxu0 0
  %2411 = vmatpush1.bf16.msra.mxu0 %v1773
  %2412 = vmatprep.subr.bf16.mxu0 0
  %2413 = vmatpush1.bf16.msra.mxu0 %v1774
  %2414 = vmatprep.subr.bf16.mxu0 0
  %2415 = vmatpush1.bf16.msra.mxu0 %v1775
  %2416 = vmatprep.subr.bf16.mxu0 0
  %2417 = vmatpush1.bf16.msra.mxu0 %v1776
  %2418 = vmatprep.subr.bf16.mxu0 0
  %2419 = vmatpush1.bf16.msra.mxu0 %v1777
  %2420 = vmatprep.subr.bf16.mxu0 0
  %2421 = vmatpush1.bf16.msra.mxu0 %v1778
  %2422 = vmatprep.subr.bf16.mxu0 0
  %2423 = vmatpush1.bf16.msra.mxu0 %v1779
  %2424 = vmatprep.subr.bf16.mxu0 0
  %2425 = vmatpush1.bf16.msra.mxu0 %v1780
  %2426 = vmatprep.subr.bf16.mxu0 0
  %2427 = vmatpush1.bf16.msra.mxu0 %v1781
  %2428 = vmatprep.subr.bf16.mxu0 0
  %2429 = vmatpush1.bf16.msra.mxu0 %v1782
  %2430 = vmatprep.subr.bf16.mxu0 0
  %2431 = vmatpush1.bf16.msra.mxu0 %v1783
  %2432 = vmatprep.mubr.bf16.mxu0 %v611
  %2433 = vmatmul.mubr.bf16.gmra.mrb[0].mxu0 %v610
  %v2434 = vpop.f32.mrb[0].mxu0
  %v2435 = vadd.f32 %v2395, %v2434
  %v2436 = vpop.f32.mrb[0].mxu0
  %v2437 = vpop.f32.mrb[0].mxu0
  %v2438 = vpop.f32.mrb[0].mxu0
  %2439 = vdwg.mxu0
  %2440 = vmatprep.subr.bf16.mxu0 0
  %2441 = vmatpush1.bf16.msra.mxu0 %v1784
  %2442 = vmatprep.subr.bf16.mxu0 0
  %2443 = vmatpush1.bf16.msra.mxu0 %v1785
  %2444 = vmatprep.subr.bf16.mxu0 0
  %2445 = vmatpush1.bf16.msra.mxu0 %v1786
  %2446 = vmatprep.subr.bf16.mxu0 0
  %2447 = vmatpush1.bf16.msra.mxu0 %v1787
  %2448 = vmatprep.subr.bf16.mxu0 0
  %2449 = vmatpush1.bf16.msra.mxu0 %v1788
  %2450 = vmatprep.subr.bf16.mxu0 0
  %2451 = vmatpush1.bf16.msra.mxu0 %v1789
  %2452 = vmatprep.subr.bf16.mxu0 0
  %2453 = vmatpush1.bf16.msra.mxu0 %v1790
  %2454 = vmatprep.subr.bf16.mxu0 0
  %2455 = vmatpush1.bf16.msra.mxu0 %v1791
  %2456 = vmatprep.subr.bf16.mxu0 0
  %2457 = vmatpush1.bf16.msra.mxu0 %v1792
  %2458 = vmatprep.subr.bf16.mxu0 0
  %2459 = vmatpush1.bf16.msra.mxu0 %v1793
  %2460 = vmatprep.subr.bf16.mxu0 0
  %2461 = vmatpush1.bf16.msra.mxu0 %v1794
  %2462 = vmatprep.subr.bf16.mxu0 0
  %2463 = vmatpush1.bf16.msra.mxu0 %v1795
  %2464 = vmatprep.subr.bf16.mxu0 0
  %2465 = vmatpush1.bf16.msra.mxu0 %v1796
  %2466 = vmatprep.subr.bf16.mxu0 0
  %2467 = vmatpush1.bf16.msra.mxu0 %v1797
  %2468 = vmatprep.subr.bf16.mxu0 0
  %2469 = vmatpush1.bf16.msra.mxu0 %v1798
  %2470 = vmatprep.subr.bf16.mxu0 0
  %2471 = vmatpush1.bf16.msra.mxu0 %v1799
  %2472 = vmatprep.mubr.bf16.mxu0 %v613
  %2473 = vmatmul.mubr.bf16.gmra.mrb[0].mxu0 %v612
  %v2474 = vpop.f32.mrb[0].mxu0
  %v2475 = vadd.f32 %v2435, %v2474
  %v2476 = vpop.f32.mrb[0].mxu0
  %v2477 = vpop.f32.mrb[0].mxu0
  %v2478 = vpop.f32.mrb[0].mxu0
  %2479 = vdwg.mxu0
  %2480 = vmatprep.subr.bf16.mxu0 0
  %2481 = vmatpush1.bf16.msra.mxu0 %v1800
  %2482 = vmatprep.subr.bf16.mxu0 0
  %2483 = vmatpush1.bf16.msra.mxu0 %v1801
  %2484 = vmatprep.subr.bf16.mxu0 0
  %2485 = vmatpush1.bf16.msra.mxu0 %v1802
  %2486 = vmatprep.subr.bf16.mxu0 0
  %2487 = vmatpush1.bf16.msra.mxu0 %v1803
  %2488 = vmatprep.subr.bf16.mxu0 0
  %2489 = vmatpush1.bf16.msra.mxu0 %v1804
  %2490 = vmatprep.subr.bf16.mxu0 0
  %2491 = vmatpush1.bf16.msra.mxu0 %v1805
  %2492 = vmatprep.subr.bf16.mxu0 0
  %2493 = vmatpush1.bf16.msra.mxu0 %v1806
  %2494 = vmatprep.subr.bf16.mxu0 0
  %2495 = vmatpush1.bf16.msra.mxu0 %v1807
  %2496 = vmatprep.subr.bf16.mxu0 0
  %2497 = vmatpush1.bf16.msra.mxu0 %v1808
  %2498 = vmatprep.subr.bf16.mxu0 0
  %2499 = vmatpush1.bf16.msra.mxu0 %v1809
  %2500 = vmatprep.subr.bf16.mxu0 0
  %2501 = vmatpush1.bf16.msra.mxu0 %v1810
  %2502 = vmatprep.subr.bf16.mxu0 0
  %2503 = vmatpush1.bf16.msra.mxu0 %v1811
  %2504 = vmatprep.subr.bf16.mxu0 0
  %2505 = vmatpush1.bf16.msra.mxu0 %v1812
  %2506 = vmatprep.subr.bf16.mxu0 0
  %2507 = vmatpush1.bf16.msra.mxu0 %v1813
  %2508 = vmatprep.subr.bf16.mxu0 0
  %2509 = vmatpush1.bf16.msra.mxu0 %v1814
  %2510 = vmatprep.subr.bf16.mxu0 0
  %2511 = vmatpush1.bf16.msra.mxu0 %v1815
  %2512 = vmatprep.mubr.bf16.mxu0 %v615
  %2513 = vmatmul.mubr.bf16.gmra.mrb[0].mxu0 %v614
  %v2514 = vpop.f32.mrb[0].mxu0
  %v2515 = vadd.f32 %v2475, %v2514
  %v2516 = vpop.f32.mrb[0].mxu0
  %v2517 = vpop.f32.mrb[0].mxu0
  %v2518 = vpop.f32.mrb[0].mxu0
  %2519 = vdwg.mxu0
  %2520 = vmatprep.subr.bf16.mxu0 0
  %2521 = vmatpush1.bf16.msra.mxu0 %v1816
  %2522 = vmatprep.subr.bf16.mxu0 0
  %2523 = vmatpush1.bf16.msra.mxu0 %v1817
  %2524 = vmatprep.subr.bf16.mxu0 0
  %2525 = vmatpush1.bf16.msra.mxu0 %v1818
  %2526 = vmatprep.subr.bf16.mxu0 0
  %2527 = vmatpush1.bf16.msra.mxu0 %v1819
  %2528 = vmatprep.subr.bf16.mxu0 0
  %2529 = vmatpush1.bf16.msra.mxu0 %v1820
  %2530 = vmatprep.subr.bf16.mxu0 0
  %2531 = vmatpush1.bf16.msra.mxu0 %v1821
  %2532 = vmatprep.subr.bf16.mxu0 0
  %2533 = vmatpush1.bf16.msra.mxu0 %v1822
  %2534 = vmatprep.subr.bf16.mxu0 0
  %2535 = vmatpush1.bf16.msra.mxu0 %v1823
  %2536 = vmatprep.subr.bf16.mxu0 0
  %2537 = vmatpush1.bf16.msra.mxu0 %v1824
  %2538 = vmatprep.subr.bf16.mxu0 0
  %2539 = vmatpush1.bf16.msra.mxu0 %v1825
  %2540 = vmatprep.subr.bf16.mxu0 0
  %2541 = vmatpush1.bf16.msra.mxu0 %v1826
  %2542 = vmatprep.subr.bf16.mxu0 0
  %2543 = vmatpush1.bf16.msra.mxu0 %v1827
  %2544 = vmatprep.subr.bf16.mxu0 0
  %2545 = vmatpush1.bf16.msra.mxu0 %v1828
  %2546 = vmatprep.subr.bf16.mxu0 0
  %2547 = vmatpush1.bf16.msra.mxu0 %v1829
  %2548 = vmatprep.subr.bf16.mxu0 0
  %2549 = vmatpush1.bf16.msra.mxu0 %v1830
  %2550 = vmatprep.subr.bf16.mxu0 0
  %2551 = vmatpush1.bf16.msra.mxu0 %v1831
  %2552 = vmatprep.mubr.bf16.mxu0 %v617
  %2553 = vmatmul.mubr.bf16.gmra.mrb[0].mxu0 %v616
  %v2554 = vpop.f32.mrb[0].mxu0
  %v2555 = vadd.f32 %v2515, %v2554
  %v2556 = vpop.f32.mrb[0].mxu0
  %v2557 = vpop.f32.mrb[0].mxu0
  %v2558 = vpop.f32.mrb[0].mxu0
  %2559 = vdwg.mxu0
  %2560 = vmatprep.subr.bf16.mxu0 0
  %2561 = vmatpush1.bf16.msra.mxu0 %v1832
  %2562 = vmatprep.subr.bf16.mxu0 0
  %2563 = vmatpush1.bf16.msra.mxu0 %v1833
  %2564 = vmatprep.subr.bf16.mxu0 0
  %2565 = vmatpush1.bf16.msra.mxu0 %v1834
  %2566 = vmatprep.subr.bf16.mxu0 0
  %2567 = vmatpush1.bf16.msra.mxu0 %v1835
  %2568 = vmatprep.subr.bf16.mxu0 0
  %2569 = vmatpush1.bf16.msra.mxu0 %v1836
  %2570 = vmatprep.subr.bf16.mxu0 0
  %2571 = vmatpush1.bf16.msra.mxu0 %v1837
  %2572 = vmatprep.subr.bf16.mxu0 0
  %2573 = vmatpush1.bf16.msra.mxu0 %v1838
  %2574 = vmatprep.subr.bf16.mxu0 0
  %2575 = vmatpush1.bf16.msra.mxu0 %v1839
  %2576 = vmatprep.subr.bf16.mxu0 0
  %2577 = vmatpush1.bf16.msra.mxu0 %v1840
  %2578 = vmatprep.subr.bf16.mxu0 0
  %2579 = vmatpush1.bf16.msra.mxu0 %v1841
  %2580 = vmatprep.subr.bf16.mxu0 0
  %2581 = vmatpush1.bf16.msra.mxu0 %v1842
  %2582 = vmatprep.subr.bf16.mxu0 0
  %2583 = vmatpush1.bf16.msra.mxu0 %v1843
  %2584 = vmatprep.subr.bf16.mxu0 0
  %2585 = vmatpush1.bf16.msra.mxu0 %v1844
  %2586 = vmatprep.subr.bf16.mxu0 0
  %2587 = vmatpush1.bf16.msra.mxu0 %v1845
  %2588 = vmatprep.subr.bf16.mxu0 0
  %2589 = vmatpush1.bf16.msra.mxu0 %v1846
  %2590 = vmatprep.subr.bf16.mxu0 0
  %2591 = vmatpush1.bf16.msra.mxu0 %v1847
  %2592 = vmatprep.mubr.bf16.mxu0 %v619
  %2593 = vmatmul.mubr.bf16.gmra.mrb[0].mxu0 %v618
  %v2594 = vpop.f32.mrb[0].mxu0
  %v2595 = vadd.f32 %v2555, %v2594
  %v2596 = vpop.f32.mrb[0].mxu0
  %v2597 = vpop.f32.mrb[0].mxu0
  %v2598 = vpop.f32.mrb[0].mxu0
  %2599 = vdwg.mxu0
  %2600 = vmatprep.subr.bf16.mxu0 0
  %2601 = vmatpush1.bf16.msra.mxu0 %v1848
  %2602 = vmatprep.subr.bf16.mxu0 0
  %2603 = vmatpush1.bf16.msra.mxu0 %v1849
  %2604 = vmatprep.subr.bf16.mxu0 0
  %2605 = vmatpush1.bf16.msra.mxu0 %v1850
  %2606 = vmatprep.subr.bf16.mxu0 0
  %2607 = vmatpush1.bf16.msra.mxu0 %v1851
  %2608 = vmatprep.subr.bf16.mxu0 0
  %2609 = vmatpush1.bf16.msra.mxu0 %v1852
  %2610 = vmatprep.subr.bf16.mxu0 0
  %2611 = vmatpush1.bf16.msra.mxu0 %v1853
  %2612 = vmatprep.subr.bf16.mxu0 0
  %2613 = vmatpush1.bf16.msra.mxu0 %v1854
  %2614 = vmatprep.subr.bf16.mxu0 0
  %2615 = vmatpush1.bf16.msra.mxu0 %v1855
  %2616 = vmatprep.subr.bf16.mxu0 0
  %2617 = vmatpush1.bf16.msra.mxu0 %v1856
  %2618 = vmatprep.subr.bf16.mxu0 0
  %2619 = vmatpush1.bf16.msra.mxu0 %v1857
  %2620 = vmatprep.subr.bf16.mxu0 0
  %2621 = vmatpush1.bf16.msra.mxu0 %v1858
  %2622 = vmatprep.subr.bf16.mxu0 0
  %2623 = vmatpush1.bf16.msra.mxu0 %v1859
  %2624 = vmatprep.subr.bf16.mxu0 0
  %2625 = vmatpush1.bf16.msra.mxu0 %v1860
  %2626 = vmatprep.subr.bf16.mxu0 0
  %2627 = vmatpush1.bf16.msra.mxu0 %v1861
  %2628 = vmatprep.subr.bf16.mxu0 0
  %2629 = vmatpush1.bf16.msra.mxu0 %v1862
  %2630 = vmatprep.subr.bf16.mxu0 0
  %2631 = vmatpush1.bf16.msra.mxu0 %v1863
  %2632 = vmatprep.mubr.bf16.mxu0 %v621
  %2633 = vmatmul.mubr.bf16.gmra.mrb[0].mxu0 %v620
  %v2634 = vpop.f32.mrb[0].mxu0
  %v2635 = vadd.f32 %v2595, %v2634
  %v2636 = vpop.f32.mrb[0].mxu0
  %v2637 = vpop.f32.mrb[0].mxu0
  %v2638 = vpop.f32.mrb[0].mxu0
  %2639 = vdwg.mxu0
  %2640 = vmatprep.subr.bf16.mxu0 0
  %2641 = vmatpush1.bf16.msra.mxu0 %v1864
  %2642 = vmatprep.subr.bf16.mxu0 0
  %2643 = vmatpush1.bf16.msra.mxu0 %v1865
  %2644 = vmatprep.subr.bf16.mxu0 0
  %2645 = vmatpush1.bf16.msra.mxu0 %v1866
  %2646 = vmatprep.subr.bf16.mxu0 0
  %2647 = vmatpush1.bf16.msra.mxu0 %v1867
  %2648 = vmatprep.subr.bf16.mxu0 0
  %2649 = vmatpush1.bf16.msra.mxu0 %v1868
  %2650 = vmatprep.subr.bf16.mxu0 0
  %2651 = vmatpush1.bf16.msra.mxu0 %v1869
  %2652 = vmatprep.subr.bf16.mxu0 0
  %2653 = vmatpush1.bf16.msra.mxu0 %v1870
  %2654 = vmatprep.subr.bf16.mxu0 0
  %2655 = vmatpush1.bf16.msra.mxu0 %v1871
  %2656 = vmatprep.subr.bf16.mxu0 0
  %2657 = vmatpush1.bf16.msra.mxu0 %v1872
  %2658 = vmatprep.subr.bf16.mxu0 0
  %2659 = vmatpush1.bf16.msra.mxu0 %v1873
  %2660 = vmatprep.subr.bf16.mxu0 0
  %2661 = vmatpush1.bf16.msra.mxu0 %v1874
  %2662 = vmatprep.subr.bf16.mxu0 0
  %2663 = vmatpush1.bf16.msra.mxu0 %v1875
  %2664 = vmatprep.subr.bf16.mxu0 0
  %2665 = vmatpush1.bf16.msra.mxu0 %v1876
  %2666 = vmatprep.subr.bf16.mxu0 0
  %2667 = vmatpush1.bf16.msra.mxu0 %v1877
  %2668 = vmatprep.subr.bf16.mxu0 0
  %2669 = vmatpush1.bf16.msra.mxu0 %v1878
  %2670 = vmatprep.subr.bf16.mxu0 0
  %2671 = vmatpush1.bf16.msra.mxu0 %v1879
  %2672 = vmatprep.mubr.bf16.mxu0 %v623
  %2673 = vmatmul.mubr.bf16.gmra.mrb[0].mxu0 %v622
  %v2674 = vpop.f32.mrb[0].mxu0
  %v2675 = vadd.f32 %v2635, %v2674
  %v2676 = vpop.f32.mrb[0].mxu0
  %v2677 = vpop.f32.mrb[0].mxu0
  %v2678 = vpop.f32.mrb[0].mxu0
  %2679 = vdwg.mxu0
  %2680 = vmatprep.subr.bf16.mxu0 0
  %2681 = vmatpush1.bf16.msra.mxu0 %v1880
  %2682 = vmatprep.subr.bf16.mxu0 0
  %2683 = vmatpush1.bf16.msra.mxu0 %v1881
  %2684 = vmatprep.subr.bf16.mxu0 0
  %2685 = vmatpush1.bf16.msra.mxu0 %v1882
  %2686 = vmatprep.subr.bf16.mxu0 0
  %2687 = vmatpush1.bf16.msra.mxu0 %v1883
  %2688 = vmatprep.subr.bf16.mxu0 0
  %2689 = vmatpush1.bf16.msra.mxu0 %v1884
  %2690 = vmatprep.subr.bf16.mxu0 0
  %2691 = vmatpush1.bf16.msra.mxu0 %v1885
  %2692 = vmatprep.subr.bf16.mxu0 0
  %2693 = vmatpush1.bf16.msra.mxu0 %v1886
  %2694 = vmatprep.subr.bf16.mxu0 0
  %2695 = vmatpush1.bf16.msra.mxu0 %v1887
  %2696 = vmatprep.subr.bf16.mxu0 0
  %2697 = vmatpush1.bf16.msra.mxu0 %v1888
  %2698 = vmatprep.subr.bf16.mxu0 0
  %2699 = vmatpush1.bf16.msra.mxu0 %v1889
  %2700 = vmatprep.subr.bf16.mxu0 0
  %2701 = vmatpush1.bf16.msra.mxu0 %v1890
  %2702 = vmatprep.subr.bf16.mxu0 0
  %2703 = vmatpush1.bf16.msra.mxu0 %v1891
  %2704 = vmatprep.subr.bf16.mxu0 0
  %2705 = vmatpush1.bf16.msra.mxu0 %v1892
  %2706 = vmatprep.subr.bf16.mxu0 0
  %2707 = vmatpush1.bf16.msra.mxu0 %v1893
  %2708 = vmatprep.subr.bf16.mxu0 0
  %2709 = vmatpush1.bf16.msra.mxu0 %v1894
  %2710 = vmatprep.subr.bf16.mxu0 0
  %2711 = vmatpush1.bf16.msra.mxu0 %v1895
  %2712 = vmatprep.mubr.bf16.mxu0 %v625
  %2713 = vmatmul.mubr.bf16.gmra.mrb[0].mxu0 %v624
  %v2714 = vpop.f32.mrb[0].mxu0
  %v2715 = vadd.f32 %v2675, %v2714
  %v2716 = vpop.f32.mrb[0].mxu0
  %v2717 = vpop.f32.mrb[0].mxu0
  %v2718 = vpop.f32.mrb[0].mxu0
  %2719 = vdwg.mxu0
  %2720 = vmatprep.subr.bf16.mxu0 0
  %2721 = vmatpush1.bf16.msra.mxu0 %v1896
  %2722 = vmatprep.subr.bf16.mxu0 0
  %2723 = vmatpush1.bf16.msra.mxu0 %v1897
  %2724 = vmatprep.subr.bf16.mxu0 0
  %2725 = vmatpush1.bf16.msra.mxu0 %v1898
  %2726 = vmatprep.subr.bf16.mxu0 0
  %2727 = vmatpush1.bf16.msra.mxu0 %v1899
  %2728 = vmatprep.subr.bf16.mxu0 0
  %2729 = vmatpush1.bf16.msra.mxu0 %v1900
  %2730 = vmatprep.subr.bf16.mxu0 0
  %2731 = vmatpush1.bf16.msra.mxu0 %v1901
  %2732 = vmatprep.subr.bf16.mxu0 0
  %2733 = vmatpush1.bf16.msra.mxu0 %v1902
  %2734 = vmatprep.subr.bf16.mxu0 0
  %2735 = vmatpush1.bf16.msra.mxu0 %v1903
  %2736 = vmatprep.subr.bf16.mxu0 0
  %2737 = vmatpush1.bf16.msra.mxu0 %v1904
  %2738 = vmatprep.subr.bf16.mxu0 0
  %2739 = vmatpush1.bf16.msra.mxu0 %v1905
  %2740 = vmatprep.subr.bf16.mxu0 0
  %2741 = vmatpush1.bf16.msra.mxu0 %v1906
  %2742 = vmatprep.subr.bf16.mxu0 0
  %2743 = vmatpush1.bf16.msra.mxu0 %v1907
  %2744 = vmatprep.subr.bf16.mxu0 0
  %2745 = vmatpush1.bf16.msra.mxu0 %v1908
  %2746 = vmatprep.subr.bf16.mxu0 0
  %2747 = vmatpush1.bf16.msra.mxu0 %v1909
  %2748 = vmatprep.subr.bf16.mxu0 0
  %2749 = vmatpush1.bf16.msra.mxu0 %v1910
  %2750 = vmatprep.subr.bf16.mxu0 0
  %2751 = vmatpush1.bf16.msra.mxu0 %v1911
  %2752 = vmatprep.mubr.bf16.mxu0 %v627
  %2753 = vmatmul.mubr.bf16.gmra.mrb[0].mxu0 %v626
  %v2754 = vpop.f32.mrb[0].mxu0
  %v2755 = vadd.f32 %v2715, %v2754
  %v2756 = vpop.f32.mrb[0].mxu0
  %v2757 = vpop.f32.mrb[0].mxu0
  %v2758 = vpop.f32.mrb[0].mxu0
  %2759 = vdwg.mxu0
  %2760 = vmatprep.subr.bf16.mxu0 0
  %2761 = vmatpush1.bf16.msra.mxu0 %v1912
  %2762 = vmatprep.subr.bf16.mxu0 0
  %2763 = vmatpush1.bf16.msra.mxu0 %v1913
  %2764 = vmatprep.subr.bf16.mxu0 0
  %2765 = vmatpush1.bf16.msra.mxu0 %v1914
  %2766 = vmatprep.subr.bf16.mxu0 0
  %2767 = vmatpush1.bf16.msra.mxu0 %v1915
  %2768 = vmatprep.subr.bf16.mxu0 0
  %2769 = vmatpush1.bf16.msra.mxu0 %v1916
  %2770 = vmatprep.subr.bf16.mxu0 0
  %2771 = vmatpush1.bf16.msra.mxu0 %v1917
  %2772 = vmatprep.subr.bf16.mxu0 0
  %2773 = vmatpush1.bf16.msra.mxu0 %v1918
  %2774 = vmatprep.subr.bf16.mxu0 0
  %2775 = vmatpush1.bf16.msra.mxu0 %v1919
  %2776 = vmatprep.subr.bf16.mxu0 0
  %2777 = vmatpush1.bf16.msra.mxu0 %v1920
  %2778 = vmatprep.subr.bf16.mxu0 0
  %2779 = vmatpush1.bf16.msra.mxu0 %v1921
  %2780 = vmatprep.subr.bf16.mxu0 0
  %2781 = vmatpush1.bf16.msra.mxu0 %v1922
  %2782 = vmatprep.subr.bf16.mxu0 0
  %2783 = vmatpush1.bf16.msra.mxu0 %v1923
  %2784 = vmatprep.subr.bf16.mxu0 0
  %2785 = vmatpush1.bf16.msra.mxu0 %v1924
  %2786 = vmatprep.subr.bf16.mxu0 0
  %2787 = vmatpush1.bf16.msra.mxu0 %v1925
  %2788 = vmatprep.subr.bf16.mxu0 0
  %2789 = vmatpush1.bf16.msra.mxu0 %v1926
  %2790 = vmatprep.subr.bf16.mxu0 0
  %2791 = vmatpush1.bf16.msra.mxu0 %v1927
  %2792 = vmatprep.mubr.bf16.mxu0 %v629
  %2793 = vmatmul.mubr.bf16.gmra.mrb[0].mxu0 %v628
  %v2794 = vpop.f32.mrb[0].mxu0
  %v2795 = vadd.f32 %v2755, %v2794
  %v2796 = vpop.f32.mrb[0].mxu0
  %v2797 = vpop.f32.mrb[0].mxu0
  %v2798 = vpop.f32.mrb[0].mxu0
  %2799 = vdwg.mxu0
  %2800 = vmatprep.subr.bf16.mxu0 0
  %2801 = vmatpush1.bf16.msra.mxu0 %v1928
  %2802 = vmatprep.subr.bf16.mxu0 0
  %2803 = vmatpush1.bf16.msra.mxu0 %v1929
  %2804 = vmatprep.subr.bf16.mxu0 0
  %2805 = vmatpush1.bf16.msra.mxu0 %v1930
  %2806 = vmatprep.subr.bf16.mxu0 0
  %2807 = vmatpush1.bf16.msra.mxu0 %v1931
  %2808 = vmatprep.subr.bf16.mxu0 0
  %2809 = vmatpush1.bf16.msra.mxu0 %v1932
  %2810 = vmatprep.subr.bf16.mxu0 0
  %2811 = vmatpush1.bf16.msra.mxu0 %v1933
  %2812 = vmatprep.subr.bf16.mxu0 0
  %2813 = vmatpush1.bf16.msra.mxu0 %v1934
  %2814 = vmatprep.subr.bf16.mxu0 0
  %2815 = vmatpush1.bf16.msra.mxu0 %v1935
  %2816 = vmatprep.subr.bf16.mxu0 0
  %2817 = vmatpush1.bf16.msra.mxu0 %v1936
  %2818 = vmatprep.subr.bf16.mxu0 0
  %2819 = vmatpush1.bf16.msra.mxu0 %v1937
  %2820 = vmatprep.subr.bf16.mxu0 0
  %2821 = vmatpush1.bf16.msra.mxu0 %v1938
  %2822 = vmatprep.subr.bf16.mxu0 0
  %2823 = vmatpush1.bf16.msra.mxu0 %v1939
  %2824 = vmatprep.subr.bf16.mxu0 0
  %2825 = vmatpush1.bf16.msra.mxu0 %v1940
  %2826 = vmatprep.subr.bf16.mxu0 0
  %2827 = vmatpush1.bf16.msra.mxu0 %v1941
  %2828 = vmatprep.subr.bf16.mxu0 0
  %2829 = vmatpush1.bf16.msra.mxu0 %v1942
  %2830 = vmatprep.subr.bf16.mxu0 0
  %2831 = vmatpush1.bf16.msra.mxu0 %v1943
  %2832 = vmatprep.mubr.bf16.mxu0 %v631
  %2833 = vmatmul.mubr.bf16.gmra.mrb[0].mxu0 %v630
  %v2834 = vpop.f32.mrb[0].mxu0
  %v2835 = vadd.f32 %v2795, %v2834
  %v2836 = vpop.f32.mrb[0].mxu0
  %v2837 = vpop.f32.mrb[0].mxu0
  %v2838 = vpop.f32.mrb[0].mxu0
  %2839 = vdwg.mxu0
  %vm2840 = vcmp.ge.f32.partialorder %v2835, 0.0
  %v2841 = vmul.f32 %v2835, 0.2
  %v2842 = vsel %vm2840, %v2835, %v2841
  %2843 = vst [vmem:[%s3] sm:$0xff] %v2842
  %v2844 = vlaneseq
  %v2845 = vshrl.u32 %v2844, 7
  %s2846 = smul.u32 0, 8
  %v2847 = vstv %s2846
  %v2848 = vadd.s32 %v2845, %v2847
  %vm2849 = vcmp.lt.s32.totalorder %v2848, 8
  %v2850 = vsel %vm2849, 1, 0
  %v2851 = vcvt.s32.f32 %v2850
  %v2852 = vmul.f32 %v2842, %v2851
  %v2853 = vrot.slane %v2852, 4
  %v2854 = vadd.f32 %v2852, %v2853
  %v2855 = vrot.slane %v2854, 2
  %v2856 = vadd.f32 %v2854, %v2855
  %v2857 = vrot.slane %v2856, 1
  %v2858 = vadd.f32 %v2856, %v2857
  %v2859 = vmul.f32 %v2852, %v2852
  %v2860 = vrot.slane %v2859, 4
  %v2861 = vadd.f32 %v2859, %v2860
  %v2862 = vrot.slane %v2861, 2
  %v2863 = vadd.f32 %v2861, %v2862
  %v2864 = vrot.slane %v2863, 1
  %v2865 = vadd.f32 %v2863, %v2864
  %vm2866 = vcmask 1040384
  %v2867 = vsel %vm2866, %v2858, %v2865
  %2868 = vst [vmem:[%s4] sm:$0x3] %v2867
  // Predicated region
  $region14: #{da_feature_discriminator_v4.10} parent=0 // pred_check
    _
  $region15: #{da_feature_discriminator_v4.10} parent=0 // pred_check_branch
    %2870 = sbr.rel (0) target = $region17
  $region16: #{da_feature_discriminator_v4.10} parent=0 // pred_region
    _
  $region17: #{da_feature_discriminator_v4.10} parent=0 // pred_fallthru
    _
  // Predicated region
  $region18: #{da_feature_discriminator_v4.10} parent=0 // pred_check
    _
  $region19: #{da_feature_discriminator_v4.10} parent=0 // pred_check_branch
    %2872 = sbr.rel (0) target = $region21
  $region20: #{da_feature_discriminator_v4.10} parent=0 // pred_region
    _
  $region21: #{da_feature_discriminator_v4.10} parent=0 // pred_fallthru
    _
  // Predicated region
  $region22: #{da_feature_discriminator_v4.10} parent=0 // pred_check
    _
  $region23: #{da_feature_discriminator_v4.10} parent=0 // pred_check_branch
    %2874 = sbr.rel (0) target = $region25
  $region24: #{da_feature_discriminator_v4.10} parent=0 // pred_region
    _
  $region25: #{da_feature_discriminator_v4.10} parent=0 // pred_fallthru
    _
  // Predicated region
  $region26: #{da_feature_discriminator_v4.10} parent=0 // pred_check
    _
  $region27: #{da_feature_discriminator_v4.10} parent=0 // pred_check_branch
    %2876 = sbr.rel (0) target = $region29
  $region28: #{da_feature_discriminator_v4.10} parent=0 // pred_region
    _
  $region29: #{da_feature_discriminator_v4.10} parent=0 // pred_fallthru
    _

// kernel: da_feature_discriminator_v4.11
$region0: #{da_feature_discriminator_v4.11}
  #allocation0 [shape = 'u32[]', space=smem, size = 0x4, offset = 0x4, fixed_abs, tag = 'smem constant byte address 0x4 - core index']
  #allocation1 [shape = 'u32[144,128]{1,0:T(1,128)}', space=vmem, size = 0x12000, scoped, tag = 'internal scratch']
  %s0 = inlined_call_operand.vmem [shape: f32[8,128], index: 0, kind: input, shape index: {}]
  %s1 = inlined_call_operand.vmem [shape: f32[1,128], index: 1, kind: input, shape index: {}]
  %s2 = inlined_call_operand.vmem [shape: f32[1,128], index: 2, kind: input, shape index: {}]
  %s3 = inlined_call_operand.hbm [shape: f32[8,128], index: 3, kind: output, shape index: {}]
  %s4 = sld [smem:[#allocation0]]
  $region22: #{da_feature_discriminator_v4.11} parent=0
    _
  %s6 = ssub.s32 1, %s4
  %s7 = scalar_select 0, %s6, %s4
  $region1: #{da_feature_discriminator_v4.11} parent=0
    #allocation2 [shape = 'u8[4096]{0}', space=vmem, size = 0x1000, scoped, tag = 'output window, operand 0, single buffered']
    #allocation3 [shape = 's32[1]{0}', space=sflag, size = 0x4, scoped, tag = 'scoped memory for da_feature_discriminator_v4.11']
    %8 = vsyncpa [#allocation3], 0
    // Predicated region
    $region2: #{da_feature_discriminator_v4.11} parent=1 // pred_check
      _
    $region3: #{da_feature_discriminator_v4.11} parent=1 // pred_check_branch
      %10 = sbr.rel (0) target = $region5
    $region4: #{da_feature_discriminator_v4.11} parent=1 // pred_region
      _
    $region5: #{da_feature_discriminator_v4.11} parent=1 // pred_fallthru
      _
    // Predicated region
    $region6: #{da_feature_discriminator_v4.11} parent=1 // pred_check
      _
    $region7: #{da_feature_discriminator_v4.11} parent=1 // pred_check_branch
      %12 = sbr.rel (0) target = $region9
    $region8: #{da_feature_discriminator_v4.11} parent=1 // pred_region
      _
    $region9: #{da_feature_discriminator_v4.11} parent=1 // pred_fallthru
      _
    // Predicated region
    $region10: #{da_feature_discriminator_v4.11} parent=1 // pred_check
      _
    $region11: #{da_feature_discriminator_v4.11} parent=1 // pred_check_branch
      %14 = sbr.rel (0) target = $region13
    $region12: #{da_feature_discriminator_v4.11} parent=1 // pred_region
      _
    $region13: #{da_feature_discriminator_v4.11} parent=1 // pred_fallthru
      _
    %v15 = vld [vmem:[%s0] sm:$0xff]
    %v16 = vld [vmem:[%s1] sm:$0x1]
    %v18 = vlaneseq
    %v19 = vshrl.u32 %v18, 7
    %v20 = vsub.s32 0, %v19
    %v21 = vrot.slane %v16, %v20
    %v23 = vsub.f32 %v15, %v21
    %v24 = vld [vmem:[%s2] sm:$0x1]
    %v26 = vlaneseq
    %v27 = vshrl.u32 %v26, 7
    %v28 = vsub.s32 0, %v27
    %v29 = vrot.slane %v24, %v28
    %v31 = vmul.f32 %v23, %v29
    %32 = vst [vmem:[#allocation2] sm:$0xff] %v31
    // Predicated region
    $region14: #{da_feature_discriminator_v4.11} parent=1 // pred_check
      _
    $region15: #{da_feature_discriminator_v4.11} parent=1 // pred_check_branch
      %34 = sbr.rel (0) target = $region17
    $region16: #{da_feature_discriminator_v4.11} parent=1 // pred_region
      %s36 = ssub.s32 128, 128
      %37 = vsyncadd [#allocation3], %s36
      %s39 = sshll.u32 [#allocation2], 4
      %s40 = int_to_ptr.vmem [resolvable:$true] %s39
      %42 = dma.vmem_to_hbm [thread:$0]  %s40, 128, %s3, [#allocation3]
    $region17: #{da_feature_discriminator_v4.11} parent=1 // pred_fallthru
      _
    // Predicated region
    $region18: #{da_feature_discriminator_v4.11} parent=1 // pred_check
      _
    $region19: #{da_feature_discriminator_v4.11} parent=1 // pred_check_branch
      %44 = sbr.rel (0) target = $region21
    $region20: #{da_feature_discriminator_v4.11} parent=1 // pred_region
      %45 = dma.done [#allocation3], 128
    $region21: #{da_feature_discriminator_v4.11} parent=1 // pred_fallthru
      _
    %46 = vsyncpa [#allocation3], 1

// kernel: da_feature_discriminator_v4.8
$region0: #{da_feature_discriminator_v4.8}
  #allocation0 [shape = 'u32[]', space=smem, size = 0x4, offset = 0x4, fixed_abs, tag = 'smem constant byte address 0x4 - core index']
  #allocation1 [shape = 'u32[144,128]{1,0:T(1,128)}', space=vmem, size = 0x12000, scoped, tag = 'internal scratch']
  %s0 = inlined_call_operand.vmem [shape: bf16[32,8192], index: 0, kind: input, shape index: {}]
  %s1 = inlined_call_operand.vmem [shape: bf16[8192,256], index: 1, kind: input, shape index: {}]
  %s2 = inlined_call_operand.vmem [shape: f32[1,256], index: 2, kind: input, shape index: {}]
  %s3 = inlined_call_operand.vmem [shape: f32[32,256], index: 3, kind: output, shape index: {0}]
  %s4 = inlined_call_operand.vmem [shape: f32[1,2,256], index: 4, kind: output, shape index: {1}]
  %5 = xla_tuple %s3, %s4
  %s6 = sld [smem:[#allocation0]]
  $region30: #{da_feature_discriminator_v4.8} parent=0
    _
  %s8 = ssub.s32 1, %s6
  %s9 = scalar_select 0, %s8, %s6
  // Predicated region
  $region2: #{da_feature_discriminator_v4.8} parent=0 // pred_check
    _
  $region3: #{da_feature_discriminator_v4.8} parent=0 // pred_check_branch
    %11 = sbr.rel (0) target = $region5
  $region4: #{da_feature_discriminator_v4.8} parent=0 // pred_region
    _
  $region5: #{da_feature_discriminator_v4.8} parent=0 // pred_fallthru
    _
  // Predicated region
  $region6: #{da_feature_discriminator_v4.8} parent=0 // pred_check
    _
  $region7: #{da_feature_discriminator_v4.8} parent=0 // pred_check_branch
    %13 = sbr.rel (0) target = $region9
  $region8: #{da_feature_discriminator_v4.8} parent=0 // pred_region
    _
  $region9: #{da_feature_discriminator_v4.8} parent=0 // pred_fallthru
    _
  // Predicated region
  $region10: #{da_feature_discriminator_v4.8} parent=0 // pred_check
    _
  $region11: #{da_feature_discriminator_v4.8} parent=0 // pred_check_branch
    %15 = sbr.rel (0) target = $region13
  $region12: #{da_feature_discriminator_v4.8} parent=0 // pred_region
    _
  $region13: #{da_feature_discriminator_v4.8} parent=0 // pred_fallthru
    _
  %v16 = vld [vmem:[%s0] sm:$0xff]
  %v17 = vld [vmem:[%s0 + $0x8] sm:$0xff]
  %v18 = vld [vmem:[%s0 + $0x10] sm:$0xff]
  %v19 = vld [vmem:[%s0 + $0x18] sm:$0xff]
  %v20 = vld [vmem:[%s0 + $0x20] sm:$0xff]
  %v21 = vld [vmem:[%s0 + $0x28] sm:$0xff]
  %v22 = vld [vmem:[%s0 + $0x30] sm:$0xff]
  %v23 = vld [vmem:[%s0 + $0x38] sm:$0xff]
  %v24 = vld [vmem:[%s0 + $0x40] sm:$0xff]
  %v25 = vld [vmem:[%s0 + $0x48] sm:$0xff]
  %v26 = vld [vmem:[%s0 + $0x50] sm:$0xff]
  %v27 = vld [vmem:[%s0 + $0x58] sm:$0xff]
  %v28 = vld [vmem:[%s0 + $0x60] sm:$0xff]
  %v29 = vld [vmem:[%s0 + $0x68] sm:$0xff]
  %v30 = vld [vmem:[%s0 + $0x70] sm:$0xff]
  %v31 = vld [vmem:[%s0 + $0x78] sm:$0xff]
  %v32 = vld [vmem:[%s0 + $0x80] sm:$0xff]
  %v33 = vld [vmem:[%s0 + $0x88] sm:$0xff]
  %v34 = vld [vmem:[%s0 + $0x90] sm:$0xff]
  %v35 = vld [vmem:[%s0 + $0x98] sm:$0xff]
  %v36 = vld [vmem:[%s0 + $0xa0] sm:$0xff]
  %v37 = vld [vmem:[%s0 + $0xa8] sm:$0xff]
  %v38 = vld [vmem:[%s0 + $0xb0] sm:$0xff]
  %v39 = vld [vmem:[%s0 + $0xb8] sm:$0xff]
  %v40 = vld [vmem:[%s0 + $0xc0] sm:$0xff]
  %v41 = vld [vmem:[%s0 + $0xc8] sm:$0xff]
  %v42 = vld [vmem:[%s0 + $0xd0] sm:$0xff]
  %v43 = vld [vmem:[%s0 + $0xd8] sm:$0xff]
  %v44 = vld [vmem:[%s0 + $0xe0] sm:$0xff]
  %v45 = vld [vmem:[%s0 + $0xe8] sm:$0xff]
  %v46 = vld [vmem:[%s0 + $0xf0] sm:$0xff]
  %v47 = vld [vmem:[%s0 + $0xf8] sm:$0xff]
  %v48 = vld [vmem:[%s0 + $0x100] sm:$0xff]
  %v49 = vld [vmem:[%s0 + $0x108] sm:$0xff]
  %v50 = vld [vmem:[%s0 + $0x110] sm:$0xff]
  %v51 = vld [vmem:[%s0 + $0x118] sm:$0xff]
  %v52 = vld [vmem:[%s0 + $0x120] sm:$0xff]
  %v53 = vld [vmem:[%s0 + $0x128] sm:$0xff]
  %v54 = vld [vmem:[%s0 + $0x130] sm:$0xff]
  %v55 = vld [vmem:[%s0 + $0x138] sm:$0xff]
  %v56 = vld [vmem:[%s0 + $0x140] sm:$0xff]
  %v57 = vld [vmem:[%s0 + $0x148] sm:$0xff]
  %v58 = vld [vmem:[%s0 + $0x150] sm:$0xff]
  %v59 = vld [vmem:[%s0 + $0x158] sm:$0xff]
  %v60 = vld [vmem:[%s0 + $0x160] sm:$0xff]
  %v61 = vld [vmem:[%s0 + $0x168] sm:$0xff]
  %v62 = vld [vmem:[%s0 + $0x170] sm:$0xff]
  %v63 = vld [vmem:[%s0 + $0x178] sm:$0xff]
  %v64 = vld [vmem:[%s0 + $0x180] sm:$0xff]
  %v65 = vld [vmem:[%s0 + $0x188] sm:$0xff]
  %v66 = vld [vmem:[%s0 + $0x190] sm:$0xff]
  %v67 = vld [vmem:[%s0 + $0x198] sm:$0xff]
  %v68 = vld [vmem:[%s0 + $0x1a0] sm:$0xff]
  %v69 = vld [vmem:[%s0 + $0x1a8] sm:$0xff]
  %v70 = vld [vmem:[%s0 + $0x1b0] sm:$0xff]
  %v71 = vld [vmem:[%s0 + $0x1b8] sm:$0xff]
  %v72 = vld [vmem:[%s0 + $0x1c0] sm:$0xff]
  %v73 = vld [vmem:[%s0 + $0x1c8] sm:$0xff]
  %v74 = vld [vmem:[%s0 + $0x1d0] sm:$0xff]
  %v75 = vld [vmem:[%s0 + $0x1d8] sm:$0xff]
  %v76 = vld [vmem:[%s0 + $0x1e0] sm:$0xff]
  %v77 = vld [vmem:[%s0 + $0x1e8] sm:$0xff]
  %v78 = vld [vmem:[%s0 + $0x1f0] sm:$0xff]
  %v79 = vld [vmem:[%s0 + $0x1f8] sm:$0xff]
  %v80 = vld [vmem:[%s0 + $0x200] sm:$0xff]
  %v81 = vld [vmem:[%s0 + $0x208] sm:$0xff]
  %v82 = vld [vmem:[%s0 + $0x210] sm:$0xff]
  %v83 = vld [vmem:[%s0 + $0x218] sm:$0xff]
  %v84 = vld [vmem:[%s0 + $0x220] sm:$0xff]
  %v85 = vld [vmem:[%s0 + $0x228] sm:$0xff]
  %v86 = vld [vmem:[%s0 + $0x230] sm:$0xff]
  %v87 = vld [vmem:[%s0 + $0x238] sm:$0xff]
  %v88 = vld [vmem:[%s0 + $0x240] sm:$0xff]
  %v89 = vld [vmem:[%s0 + $0x248] sm:$0xff]
  %v90 = vld [vmem:[%s0 + $0x250] sm:$0xff]
  %v91 = vld [vmem:[%s0 + $0x258] sm:$0xff]
  %v92 = vld [vmem:[%s0 + $0x260] sm:$0xff]
  %v93 = vld [vmem:[%s0 + $0x268] sm:$0xff]
  %v94 = vld [vmem:[%s0 + $0x270] sm:$0xff]
  %v95 = vld [vmem:[%s0 + $0x278] sm:$0xff]
  %v96 = vld [vmem:[%s0 + $0x280] sm:$0xff]
  %v97 = vld [vmem:[%s0 + $0x288] sm:$0xff]
  %v98 = vld [vmem:[%s0 + $0x290] sm:$0xff]
  %v99 = vld [vmem:[%s0 + $0x298] sm:$0xff]
  %v100 = vld [vmem:[%s0 + $0x2a0] sm:$0xff]
  %v101 = vld [vmem:[%s0 + $0x2a8] sm:$0xff]
  %v102 = vld [vmem:[%s0 + $0x2b0] sm:$0xff]
  %v103 = vld [vmem:[%s0 + $0x2b8] sm:$0xff]
  %v104 = vld [vmem:[%s0 + $0x2c0] sm:$0xff]
  %v105 = vld [vmem:[%s0 + $0x2c8] sm:$0xff]
  %v106 = vld [vmem:[%s0 + $0x2d0] sm:$0xff]
  %v107 = vld [vmem:[%s0 + $0x2d8] sm:$0xff]
  %v108 = vld [vmem:[%s0 + $0x2e0] sm:$0xff]
  %v109 = vld [vmem:[%s0 + $0x2e8] sm:$0xff]
  %v110 = vld [vmem:[%s0 + $0x2f0] sm:$0xff]
  %v111 = vld [vmem:[%s0 + $0x2f8] sm:$0xff]
  %v112 = vld [vmem:[%s0 + $0x300] sm:$0xff]
  %v113 = vld [vmem:[%s0 + $0x308] sm:$0xff]
  %v114 = vld [vmem:[%s0 + $0x310] sm:$0xff]
  %v115 = vld [vmem:[%s0 + $0x318] sm:$0xff]
  %v116 = vld [vmem:[%s0 + $0x320] sm:$0xff]
  %v117 = vld [vmem:[%s0 + $0x328] sm:$0xff]
  %v118 = vld [vmem:[%s0 + $0x330] sm:$0xff]
  %v119 = vld [vmem:[%s0 + $0x338] sm:$0xff]
  %v120 = vld [vmem:[%s0 + $0x340] sm:$0xff]
  %v121 = vld [vmem:[%s0 + $0x348] sm:$0xff]
  %v122 = vld [vmem:[%s0 + $0x350] sm:$0xff]
  %v123 = vld [vmem:[%s0 + $0x358] sm:$0xff]
  %v124 = vld [vmem:[%s0 + $0x360] sm:$0xff]
  %v125 = vld [vmem:[%s0 + $0x368] sm:$0xff]
  %v126 = vld [vmem:[%s0 + $0x370] sm:$0xff]
  %v127 = vld [vmem:[%s0 + $0x378] sm:$0xff]
  %v128 = vld [vmem:[%s0 + $0x380] sm:$0xff]
  %v129 = vld [vmem:[%s0 + $0x388] sm:$0xff]
  %v130 = vld [vmem:[%s0 + $0x390] sm:$0xff]
  %v131 = vld [vmem:[%s0 + $0x398] sm:$0xff]
  %v132 = vld [vmem:[%s0 + $0x3a0] sm:$0xff]
  %v133 = vld [vmem:[%s0 + $0x3a8] sm:$0xff]
  %v134 = vld [vmem:[%s0 + $0x3b0] sm:$0xff]
  %v135 = vld [vmem:[%s0 + $0x3b8] sm:$0xff]
  %v136 = vld [vmem:[%s0 + $0x3c0] sm:$0xff]
  %v137 = vld [vmem:[%s0 + $0x3c8] sm:$0xff]
  %v138 = vld [vmem:[%s0 + $0x3d0] sm:$0xff]
  %v139 = vld [vmem:[%s0 + $0x3d8] sm:$0xff]
  %v140 = vld [vmem:[%s0 + $0x3e0] sm:$0xff]
  %v141 = vld [vmem:[%s0 + $0x3e8] sm:$0xff]
  %v142 = vld [vmem:[%s0 + $0x3f0] sm:$0xff]
  %v143 = vld [vmem:[%s0 + $0x3f8] sm:$0xff]
  %v144 = vld [vmem:[%s1] sm:$0xff]
  %v145 = vld [vmem:[%s1 + $0x8] sm:$0xff]
  %v146 = vld [vmem:[%s1 + $0x10] sm:$0xff]
  %v147 = vld [vmem:[%s1 + $0x18] sm:$0xff]
  %v148 = vld [vmem:[%s1 + $0x20] sm:$0xff]
  %v149 = vld [vmem:[%s1 + $0x28] sm:$0xff]
  %v150 = vld [vmem:[%s1 + $0x30] sm:$0xff]
  %v151 = vld [vmem:[%s1 + $0x38] sm:$0xff]
  %v152 = vld [vmem:[%s1 + $0x40] sm:$0xff]
  %v153 = vld [vmem:[%s1 + $0x48] sm:$0xff]
  %v154 = vld [vmem:[%s1 + $0x50] sm:$0xff]
  %v155 = vld [vmem:[%s1 + $0x58] sm:$0xff]
  %v156 = vld [vmem:[%s1 + $0x60] sm:$0xff]
  %v157 = vld [vmem:[%s1 + $0x68] sm:$0xff]
  %v158 = vld [vmem:[%s1 + $0x70] sm:$0xff]
  %v159 = vld [vmem:[%s1 + $0x78] sm:$0xff]
  %v160 = vld [vmem:[%s1 + $0x80] sm:$0xff]
  %v161 = vld [vmem:[%s1 + $0x88] sm:$0xff]
  %v162 = vld [vmem:[%s1 + $0x90] sm:$0xff]
  %v163 = vld [vmem:[%s1 + $0x98] sm:$0xff]
  %v164 = vld [vmem:[%s1 + $0xa0] sm:$0xff]
  %v165 = vld [vmem:[%s1 + $0xa8] sm:$0xff]
  %v166 = vld [vmem:[%s1 + $0xb0] sm:$0xff]
  %v167 = vld [vmem:[%s1 + $0xb8] sm:$0xff]
  %v168 = vld [vmem:[%s1 + $0xc0] sm:$0xff]
  %v169 = vld [vmem:[%s1 + $0xc8] sm:$0xff]
  %v170 = vld [vmem:[%s1 + $0xd0] sm:$0xff]
  %v171 = vld [vmem:[%s1 + $0xd8] sm:$0xff]
  %v172 = vld [vmem:[%s1 + $0xe0] sm:$0xff]
  %v173 = vld [vmem:[%s1 + $0xe8] sm:$0xff]
  %v174 = vld [vmem:[%s1 + $0xf0] sm:$0xff]
  %v175 = vld [vmem:[%s1 + $0xf8] sm:$0xff]
  %v176 = vld [vmem:[%s1 + $0x100] sm:$0xff]
  %v177 = vld [vmem:[%s1 + $0x108] sm:$0xff]
  %v178 = vld [vmem:[%s1 + $0x110] sm:$0xff]
  %v179 = vld [vmem:[%s1 + $0x118] sm:$0xff]
  %v180 = vld [vmem:[%s1 + $0x120] sm:$0xff]
  %v181 = vld [vmem:[%s1 + $0x128] sm:$0xff]
  %v182 = vld [vmem:[%s1 + $0x130] sm:$0xff]
  %v183 = vld [vmem:[%s1 + $0x138] sm:$0xff]
  %v184 = vld [vmem:[%s1 + $0x140] sm:$0xff]
  %v185 = vld [vmem:[%s1 + $0x148] sm:$0xff]
  %v186 = vld [vmem:[%s1 + $0x150] sm:$0xff]
  %v187 = vld [vmem:[%s1 + $0x158] sm:$0xff]
  %v188 = vld [vmem:[%s1 + $0x160] sm:$0xff]
  %v189 = vld [vmem:[%s1 + $0x168] sm:$0xff]
  %v190 = vld [vmem:[%s1 + $0x170] sm:$0xff]
  %v191 = vld [vmem:[%s1 + $0x178] sm:$0xff]
  %v192 = vld [vmem:[%s1 + $0x180] sm:$0xff]
  %v193 = vld [vmem:[%s1 + $0x188] sm:$0xff]
  %v194 = vld [vmem:[%s1 + $0x190] sm:$0xff]
  %v195 = vld [vmem:[%s1 + $0x198] sm:$0xff]
  %v196 = vld [vmem:[%s1 + $0x1a0] sm:$0xff]
  %v197 = vld [vmem:[%s1 + $0x1a8] sm:$0xff]
  %v198 = vld [vmem:[%s1 + $0x1b0] sm:$0xff]
  %v199 = vld [vmem:[%s1 + $0x1b8] sm:$0xff]
  %v200 = vld [vmem:[%s1 + $0x1c0] sm:$0xff]
  %v201 = vld [vmem:[%s1 + $0x1c8] sm:$0xff]
  %v202 = vld [vmem:[%s1 + $0x1d0] sm:$0xff]
  %v203 = vld [vmem:[%s1 + $0x1d8] sm:$0xff]
  %v204 = vld [vmem:[%s1 + $0x1e0] sm:$0xff]
  %v205 = vld [vmem:[%s1 + $0x1e8] sm:$0xff]
  %v206 = vld [vmem:[%s1 + $0x1f0] sm:$0xff]
  %v207 = vld [vmem:[%s1 + $0x1f8] sm:$0xff]
  %v208 = vld [vmem:[%s1 + $0x200] sm:$0xff]
  %v209 = vld [vmem:[%s1 + $0x208] sm:$0xff]
  %v210 = vld [vmem:[%s1 + $0x210] sm:$0xff]
  %v211 = vld [vmem:[%s1 + $0x218] sm:$0xff]
  %v212 = vld [vmem:[%s1 + $0x220] sm:$0xff]
  %v213 = vld [vmem:[%s1 + $0x228] sm:$0xff]
  %v214 = vld [vmem:[%s1 + $0x230] sm:$0xff]
  %v215 = vld [vmem:[%s1 + $0x238] sm:$0xff]
  %v216 = vld [vmem:[%s1 + $0x240] sm:$0xff]
  %v217 = vld [vmem:[%s1 + $0x248] sm:$0xff]
  %v218 = vld [vmem:[%s1 + $0x250] sm:$0xff]
  %v219 = vld [vmem:[%s1 + $0x258] sm:$0xff]
  %v220 = vld [vmem:[%s1 + $0x260] sm:$0xff]
  %v221 = vld [vmem:[%s1 + $0x268] sm:$0xff]
  %v222 = vld [vmem:[%s1 + $0x270] sm:$0xff]
  %v223 = vld [vmem:[%s1 + $0x278] sm:$0xff]
  %v224 = vld [vmem:[%s1 + $0x280] sm:$0xff]
  %v225 = vld [vmem:[%s1 + $0x288] sm:$0xff]
  %v226 = vld [vmem:[%s1 + $0x290] sm:$0xff]
  %v227 = vld [vmem:[%s1 + $0x298] sm:$0xff]
  %v228 = vld [vmem:[%s1 + $0x2a0] sm:$0xff]
  %v229 = vld [vmem:[%s1 + $0x2a8] sm:$0xff]
  %v230 = vld [vmem:[%s1 + $0x2b0] sm:$0xff]
  %v231 = vld [vmem:[%s1 + $0x2b8] sm:$0xff]
  %v232 = vld [vmem:[%s1 + $0x2c0] sm:$0xff]
  %v233 = vld [vmem:[%s1 + $0x2c8] sm:$0xff]
  %v234 = vld [vmem:[%s1 + $0x2d0] sm:$0xff]
  %v235 = vld [vmem:[%s1 + $0x2d8] sm:$0xff]
  %v236 = vld [vmem:[%s1 + $0x2e0] sm:$0xff]
  %v237 = vld [vmem:[%s1 + $0x2e8] sm:$0xff]
  %v238 = vld [vmem:[%s1 + $0x2f0] sm:$0xff]
  %v239 = vld [vmem:[%s1 + $0x2f8] sm:$0xff]
  %v240 = vld [vmem:[%s1 + $0x300] sm:$0xff]
  %v241 = vld [vmem:[%s1 + $0x308] sm:$0xff]
  %v242 = vld [vmem:[%s1 + $0x310] sm:$0xff]
  %v243 = vld [vmem:[%s1 + $0x318] sm:$0xff]
  %v244 = vld [vmem:[%s1 + $0x320] sm:$0xff]
  %v245 = vld [vmem:[%s1 + $0x328] sm:$0xff]
  %v246 = vld [vmem:[%s1 + $0x330] sm:$0xff]
  %v247 = vld [vmem:[%s1 + $0x338] sm:$0xff]
  %v248 = vld [vmem:[%s1 + $0x340] sm:$0xff]
  %v249 = vld [vmem:[%s1 + $0x348] sm:$0xff]
  %v250 = vld [vmem:[%s1 + $0x350] sm:$0xff]
  %v251 = vld [vmem:[%s1 + $0x358] sm:$0xff]
  %v252 = vld [vmem:[%s1 + $0x360] sm:$0xff]
  %v253 = vld [vmem:[%s1 + $0x368] sm:$0xff]
  %v254 = vld [vmem:[%s1 + $0x370] sm:$0xff]
  %v255 = vld [vmem:[%s1 + $0x378] sm:$0xff]
  %v256 = vld [vmem:[%s1 + $0x380] sm:$0xff]
  %v257 = vld [vmem:[%s1 + $0x388] sm:$0xff]
  %v258 = vld [vmem:[%s1 + $0x390] sm:$0xff]
  %v259 = vld [vmem:[%s1 + $0x398] sm:$0xff]
  %v260 = vld [vmem:[%s1 + $0x3a0] sm:$0xff]
  %v261 = vld [vmem:[%s1 + $0x3a8] sm:$0xff]
  %v262 = vld [vmem:[%s1 + $0x3b0] sm:$0xff]
  %v263 = vld [vmem:[%s1 + $0x3b8] sm:$0xff]
  %v264 = vld [vmem:[%s1 + $0x3c0] sm:$0xff]
  %v265 = vld [vmem:[%s1 + $0x3c8] sm:$0xff]
  %v266 = vld [vmem:[%s1 + $0x3d0] sm:$0xff]
  %v267 = vld [vmem:[%s1 + $0x3d8] sm:$0xff]
  %v268 = vld [vmem:[%s1 + $0x3e0] sm:$0xff]
  %v269 = vld [vmem:[%s1 + $0x3e8] sm:$0xff]
  %v270 = vld [vmem:[%s1 + $0x3f0] sm:$0xff]
  %v271 = vld [vmem:[%s1 + $0x3f8] sm:$0xff]
  %v272 = vld [vmem:[%s1 + $0x400] sm:$0xff]
  %v273 = vld [vmem:[%s1 + $0x408] sm:$0xff]
  %v274 = vld [vmem:[%s1 + $0x410] sm:$0xff]
  %v275 = vld [vmem:[%s1 + $0x418] sm:$0xff]
  %v276 = vld [vmem:[%s1 + $0x420] sm:$0xff]
  %v277 = vld [vmem:[%s1 + $0x428] sm:$0xff]
  %v278 = vld [vmem:[%s1 + $0x430] sm:$0xff]
  %v279 = vld [vmem:[%s1 + $0x438] sm:$0xff]
  %v280 = vld [vmem:[%s1 + $0x440] sm:$0xff]
  %v281 = vld [vmem:[%s1 + $0x448] sm:$0xff]
  %v282 = vld [vmem:[%s1 + $0x450] sm:$0xff]
  %v283 = vld [vmem:[%s1 + $0x458] sm:$0xff]
  %v284 = vld [vmem:[%s1 + $0x460] sm:$0xff]
  %v285 = vld [vmem:[%s1 + $0x468] sm:$0xff]
  %v286 = vld [vmem:[%s1 + $0x470] sm:$0xff]
  %v287 = vld [vmem:[%s1 + $0x478] sm:$0xff]
  %v288 = vld [vmem:[%s1 + $0x480] sm:$0xff]
  %v289 = vld [vmem:[%s1 + $0x488] sm:$0xff]
  %v290 = vld [vmem:[%s1 + $0x490] sm:$0xff]
  %v291 = vld [vmem:[%s1 + $0x498] sm:$0xff]
  %v292 = vld [vmem:[%s1 + $0x4a0] sm:$0xff]
  %v293 = vld [vmem:[%s1 + $0x4a8] sm:$0xff]
  %v294 = vld [vmem:[%s1 + $0x4b0] sm:$0xff]
  %v295 = vld [vmem:[%s1 + $0x4b8] sm:$0xff]
  %v296 = vld [vmem:[%s1 + $0x4c0] sm:$0xff]
  %v297 = vld [vmem:[%s1 + $0x4c8] sm:$0xff]
  %v298 = vld [vmem:[%s1 + $0x4d0] sm:$0xff]
  %v299 = vld [vmem:[%s1 + $0x4d8] sm:$0xff]
  %v300 = vld [vmem:[%s1 + $0x4e0] sm:$0xff]
  %v301 = vld [vmem:[%s1 + $0x4e8] sm:$0xff]
  %v302 = vld [vmem:[%s1 + $0x4f0] sm:$0xff]
  %v303 = vld [vmem:[%s1 + $0x4f8] sm:$0xff]
  %v304 = vld [vmem:[%s1 + $0x500] sm:$0xff]
  %v305 = vld [vmem:[%s1 + $0x508] sm:$0xff]
  %v306 = vld [vmem:[%s1 + $0x510] sm:$0xff]
  %v307 = vld [vmem:[%s1 + $0x518] sm:$0xff]
  %v308 = vld [vmem:[%s1 + $0x520] sm:$0xff]
  %v309 = vld [vmem:[%s1 + $0x528] sm:$0xff]
  %v310 = vld [vmem:[%s1 + $0x530] sm:$0xff]
  %v311 = vld [vmem:[%s1 + $0x538] sm:$0xff]
  %v312 = vld [vmem:[%s1 + $0x540] sm:$0xff]
  %v313 = vld [vmem:[%s1 + $0x548] sm:$0xff]
  %v314 = vld [vmem:[%s1 + $0x550] sm:$0xff]
  %v315 = vld [vmem:[%s1 + $0x558] sm:$0xff]
  %v316 = vld [vmem:[%s1 + $0x560] sm:$0xff]
  %v317 = vld [vmem:[%s1 + $0x568] sm:$0xff]
  %v318 = vld [vmem:[%s1 + $0x570] sm:$0xff]
  %v319 = vld [vmem:[%s1 + $0x578] sm:$0xff]
  %v320 = vld [vmem:[%s1 + $0x580] sm:$0xff]
  %v321 = vld [vmem:[%s1 + $0x588] sm:$0xff]
  %v322 = vld [vmem:[%s1 + $0x590] sm:$0xff]
  %v323 = vld [vmem:[%s1 + $0x598] sm:$0xff]
  %v324 = vld [vmem:[%s1 + $0x5a0] sm:$0xff]
  %v325 = vld [vmem:[%s1 + $0x5a8] sm:$0xff]
  %v326 = vld [vmem:[%s1 + $0x5b0] sm:$0xff]
  %v327 = vld [vmem:[%s1 + $0x5b8] sm:$0xff]
  %v328 = vld [vmem:[%s1 + $0x5c0] sm:$0xff]
  %v329 = vld [vmem:[%s1 + $0x5c8] sm:$0xff]
  %v330 = vld [vmem:[%s1 + $0x5d0] sm:$0xff]
  %v331 = vld [vmem:[%s1 + $0x5d8] sm:$0xff]
  %v332 = vld [vmem:[%s1 + $0x5e0] sm:$0xff]
  %v333 = vld [vmem:[%s1 + $0x5e8] sm:$0xff]
  %v334 = vld [vmem:[%s1 + $0x5f0] sm:$0xff]
  %v335 = vld [vmem:[%s1 + $0x5f8] sm:$0xff]
  %v336 = vld [vmem:[%s1 + $0x600] sm:$0xff]
  %v337 = vld [vmem:[%s1 + $0x608] sm:$0xff]
  %v338 = vld [vmem:[%s1 + $0x610] sm:$0xff]
  %v339 = vld [vmem:[%s1 + $0x618] sm:$0xff]
  %v340 = vld [vmem:[%s1 + $0x620] sm:$0xff]
  %v341 = vld [vmem:[%s1 + $0x628] sm:$0xff]
  %v342 = vld [vmem:[%s1 + $0x630] sm:$0xff]
  %v343 = vld [vmem:[%s1 + $0x638] sm:$0xff]
  %v344 = vld [vmem:[%s1 + $0x640] sm:$0xff]
  %v345 = vld [vmem:[%s1 + $0x648] sm:$0xff]
  %v346 = vld [vmem:[%s1 + $0x650] sm:$0xff]
  %v347 = vld [vmem:[%s1 + $0x658] sm:$0xff]
  %v348 = vld [vmem:[%s1 + $0x660] sm:$0xff]
  %v349 = vld [vmem:[%s1 + $0x668] sm:$0xff]
  %v350 = vld [vmem:[%s1 + $0x670] sm:$0xff]
  %v351 = vld [vmem:[%s1 + $0x678] sm:$0xff]
  %v352 = vld [vmem:[%s1 + $0x680] sm:$0xff]
  %v353 = vld [vmem:[%s1 + $0x688] sm:$0xff]
  %v354 = vld [vmem:[%s1 + $0x690] sm:$0xff]
  %v355 = vld [vmem:[%s1 + $0x698] sm:$0xff]
  %v356 = vld [vmem:[%s1 + $0x6a0] sm:$0xff]
  %v357 = vld [vmem:[%s1 + $0x6a8] sm:$0xff]
  %v358 = vld [vmem:[%s1 + $0x6b0] sm:$0xff]
  %v359 = vld [vmem:[%s1 + $0x6b8] sm:$0xff]
  %v360 = vld [vmem:[%s1 + $0x6c0] sm:$0xff]
  %v361 = vld [vmem:[%s1 + $0x6c8] sm:$0xff]
  %v362 = vld [vmem:[%s1 + $0x6d0] sm:$0xff]
  %v363 = vld [vmem:[%s1 + $0x6d8] sm:$0xff]
  %v364 = vld [vmem:[%s1 + $0x6e0] sm:$0xff]
  %v365 = vld [vmem:[%s1 + $0x6e8] sm:$0xff]
  %v366 = vld [vmem:[%s1 + $0x6f0] sm:$0xff]
  %v367 = vld [vmem:[%s1 + $0x6f8] sm:$0xff]
  %v368 = vld [vmem:[%s1 + $0x700] sm:$0xff]
  %v369 = vld [vmem:[%s1 + $0x708] sm:$0xff]
  %v370 = vld [vmem:[%s1 + $0x710] sm:$0xff]
  %v371 = vld [vmem:[%s1 + $0x718] sm:$0xff]
  %v372 = vld [vmem:[%s1 + $0x720] sm:$0xff]
  %v373 = vld [vmem:[%s1 + $0x728] sm:$0xff]
  %v374 = vld [vmem:[%s1 + $0x730] sm:$0xff]
  %v375 = vld [vmem:[%s1 + $0x738] sm:$0xff]
  %v376 = vld [vmem:[%s1 + $0x740] sm:$0xff]
  %v377 = vld [vmem:[%s1 + $0x748] sm:$0xff]
  %v378 = vld [vmem:[%s1 + $0x750] sm:$0xff]
  %v379 = vld [vmem:[%s1 + $0x758] sm:$0xff]
  %v380 = vld [vmem:[%s1 + $0x760] sm:$0xff]
  %v381 = vld [vmem:[%s1 + $0x768] sm:$0xff]
  %v382 = vld [vmem:[%s1 + $0x770] sm:$0xff]
  %v383 = vld [vmem:[%s1 + $0x778] sm:$0xff]
  %v384 = vld [vmem:[%s1 + $0x780] sm:$0xff]
  %v385 = vld [vmem:[%s1 + $0x788] sm:$0xff]
  %v386 = vld [vmem:[%s1 + $0x790] sm:$0xff]
  %v387 = vld [vmem:[%s1 + $0x798] sm:$0xff]
  %v388 = vld [vmem:[%s1 + $0x7a0] sm:$0xff]
  %v389 = vld [vmem:[%s1 + $0x7a8] sm:$0xff]
  %v390 = vld [vmem:[%s1 + $0x7b0] sm:$0xff]
  %v391 = vld [vmem:[%s1 + $0x7b8] sm:$0xff]
  %v392 = vld [vmem:[%s1 + $0x7c0] sm:$0xff]
  %v393 = vld [vmem:[%s1 + $0x7c8] sm:$0xff]
  %v394 = vld [vmem:[%s1 + $0x7d0] sm:$0xff]
  %v395 = vld [vmem:[%s1 + $0x7d8] sm:$0xff]
  %v396 = vld [vmem:[%s1 + $0x7e0] sm:$0xff]
  %v397 = vld [vmem:[%s1 + $0x7e8] sm:$0xff]
  %v398 = vld [vmem:[%s1 + $0x7f0] sm:$0xff]
  %v399 = vld [vmem:[%s1 + $0x7f8] sm:$0xff]
  %v400 = vld [vmem:[%s1 + $0x800] sm:$0xff]
  %v401 = vld [vmem:[%s1 + $0x808] sm:$0xff]
  %v402 = vld [vmem:[%s1 + $0x810] sm:$0xff]
  %v403 = vld [vmem:[%s1 + $0x818] sm:$0xff]
  %v404 = vld [vmem:[%s1 + $0x820] sm:$0xff]
  %v405 = vld [vmem:[%s1 + $0x828] sm:$0xff]
  %v406 = vld [vmem:[%s1 + $0x830] sm:$0xff]
  %v407 = vld [vmem:[%s1 + $0x838] sm:$0xff]
  %v408 = vld [vmem:[%s1 + $0x840] sm:$0xff]
  %v409 = vld [vmem:[%s1 + $0x848] sm:$0xff]
  %v410 = vld [vmem:[%s1 + $0x850] sm:$0xff]
  %v411 = vld [vmem:[%s1 + $0x858] sm:$0xff]
  %v412 = vld [vmem:[%s1 + $0x860] sm:$0xff]
  %v413 = vld [vmem:[%s1 + $0x868] sm:$0xff]
  %v414 = vld [vmem:[%s1 + $0x870] sm:$0xff]
  %v415 = vld [vmem:[%s1 + $0x878] sm:$0xff]
  %v416 = vld [vmem:[%s1 + $0x880] sm:$0xff]
  %v417 = vld [vmem:[%s1 + $0x888] sm:$0xff]
  %v418 = vld [vmem:[%s1 + $0x890] sm:$0xff]
  %v419 = vld [vmem:[%s1 + $0x898] sm:$0xff]
  %v420 = vld [vmem:[%s1 + $0x8a0] sm:$0xff]
  %v421 = vld [vmem:[%s1 + $0x8a8] sm:$0xff]
  %v422 = vld [vmem:[%s1 + $0x8b0] sm:$0xff]
  %v423 = vld [vmem:[%s1 + $0x8b8] sm:$0xff]
  %v424 = vld [vmem:[%s1 + $0x8c0] sm:$0xff]
  %v425 = vld [vmem:[%s1 + $0x8c8] sm:$0xff]
  %v426 = vld [vmem:[%s1 + $0x8d0] sm:$0xff]
  %v427 = vld [vmem:[%s1 + $0x8d8] sm:$0xff]
  %v428 = vld [vmem:[%s1 + $0x8e0] sm:$0xff]
  %v429 = vld [vmem:[%s1 + $0x8e8] sm:$0xff]
  %v430 = vld [vmem:[%s1 + $0x8f0] sm:$0xff]
  %v431 = vld [vmem:[%s1 + $0x8f8] sm:$0xff]
  %v432 = vld [vmem:[%s1 + $0x900] sm:$0xff]
  %v433 = vld [vmem:[%s1 + $0x908] sm:$0xff]
  %v434 = vld [vmem:[%s1 + $0x910] sm:$0xff]
  %v435 = vld [vmem:[%s1 + $0x918] sm:$0xff]
  %v436 = vld [vmem:[%s1 + $0x920] sm:$0xff]
  %v437 = vld [vmem:[%s1 + $0x928] sm:$0xff]
  %v438 = vld [vmem:[%s1 + $0x930] sm:$0xff]
  %v439 = vld [vmem:[%s1 + $0x938] sm:$0xff]
  %v440 = vld [vmem:[%s1 + $0x940] sm:$0xff]
  %v441 = vld [vmem:[%s1 + $0x948] sm:$0xff]
  %v442 = vld [vmem:[%s1 + $0x950] sm:$0xff]
  %v443 = vld [vmem:[%s1 + $0x958] sm:$0xff]
  %v444 = vld [vmem:[%s1 + $0x960] sm:$0xff]
  %v445 = vld [vmem:[%s1 + $0x968] sm:$0xff]
  %v446 = vld [vmem:[%s1 + $0x970] sm:$0xff]
  %v447 = vld [vmem:[%s1 + $0x978] sm:$0xff]
  %v448 = vld [vmem:[%s1 + $0x980] sm:$0xff]
  %v449 = vld [vmem:[%s1 + $0x988] sm:$0xff]
  %v450 = vld [vmem:[%s1 + $0x990] sm:$0xff]
  %v451 = vld [vmem:[%s1 + $0x998] sm:$0xff]
  %v452 = vld [vmem:[%s1 + $0x9a0] sm:$0xff]
  %v453 = vld [vmem:[%s1 + $0x9a8] sm:$0xff]
  %v454 = vld [vmem:[%s1 + $0x9b0] sm:$0xff]
  %v455 = vld [vmem:[%s1 + $0x9b8] sm:$0xff]
  %v456 = vld [vmem:[%s1 + $0x9c0] sm:$0xff]
  %v457 = vld [vmem:[%s1 + $0x9c8] sm:$0xff]
  %v458 = vld [vmem:[%s1 + $0x9d0] sm:$0xff]
  %v459 = vld [vmem:[%s1 + $0x9d8] sm:$0xff]
  %v460 = vld [vmem:[%s1 + $0x9e0] sm:$0xff]
  %v461 = vld [vmem:[%s1 + $0x9e8] sm:$0xff]
  %v462 = vld [vmem:[%s1 + $0x9f0] sm:$0xff]
  %v463 = vld [vmem:[%s1 + $0x9f8] sm:$0xff]
  %v464 = vld [vmem:[%s1 + $0xa00] sm:$0xff]
  %v465 = vld [vmem:[%s1 + $0xa08] sm:$0xff]
  %v466 = vld [vmem:[%s1 + $0xa10] sm:$0xff]
  %v467 = vld [vmem:[%s1 + $0xa18] sm:$0xff]
  %v468 = vld [vmem:[%s1 + $0xa20] sm:$0xff]
  %v469 = vld [vmem:[%s1 + $0xa28] sm:$0xff]
  %v470 = vld [vmem:[%s1 + $0xa30] sm:$0xff]
  %v471 = vld [vmem:[%s1 + $0xa38] sm:$0xff]
  %v472 = vld [vmem:[%s1 + $0xa40] sm:$0xff]
  %v473 = vld [vmem:[%s1 + $0xa48] sm:$0xff]
  %v474 = vld [vmem:[%s1 + $0xa50] sm:$0xff]
  %v475 = vld [vmem:[%s1 + $0xa58] sm:$0xff]
  %v476 = vld [vmem:[%s1 + $0xa60] sm:$0xff]
  %v477 = vld [vmem:[%s1 + $0xa68] sm:$0xff]
  %v478 = vld [vmem:[%s1 + $0xa70] sm:$0xff]
  %v479 = vld [vmem:[%s1 + $0xa78] sm:$0xff]
  %v480 = vld [vmem:[%s1 + $0xa80] sm:$0xff]
  %v481 = vld [vmem:[%s1 + $0xa88] sm:$0xff]
  %v482 = vld [vmem:[%s1 + $0xa90] sm:$0xff]
  %v483 = vld [vmem:[%s1 + $0xa98] sm:$0xff]
  %v484 = vld [vmem:[%s1 + $0xaa0] sm:$0xff]
  %v485 = vld [vmem:[%s1 + $0xaa8] sm:$0xff]
  %v486 = vld [vmem:[%s1 + $0xab0] sm:$0xff]
  %v487 = vld [vmem:[%s1 + $0xab8] sm:$0xff]
  %v488 = vld [vmem:[%s1 + $0xac0] sm:$0xff]
  %v489 = vld [vmem:[%s1 + $0xac8] sm:$0xff]
  %v490 = vld [vmem:[%s1 + $0xad0] sm:$0xff]
  %v491 = vld [vmem:[%s1 + $0xad8] sm:$0xff]
  %v492 = vld [vmem:[%s1 + $0xae0] sm:$0xff]
  %v493 = vld [vmem:[%s1 + $0xae8] sm:$0xff]
  %v494 = vld [vmem:[%s1 + $0xaf0] sm:$0xff]
  %v495 = vld [vmem:[%s1 + $0xaf8] sm:$0xff]
  %v496 = vld [vmem:[%s1 + $0xb00] sm:$0xff]
  %v497 = vld [vmem:[%s1 + $0xb08] sm:$0xff]
  %v498 = vld [vmem:[%s1 + $0xb10] sm:$0xff]
  %v499 = vld [vmem:[%s1 + $0xb18] sm:$0xff]
  %v500 = vld [vmem:[%s1 + $0xb20] sm:$0xff]
  %v501 = vld [vmem:[%s1 + $0xb28] sm:$0xff]
  %v502 = vld [vmem:[%s1 + $0xb30] sm:$0xff]
  %v503 = vld [vmem:[%s1 + $0xb38] sm:$0xff]
  %v504 = vld [vmem:[%s1 + $0xb40] sm:$0xff]
  %v505 = vld [vmem:[%s1 + $0xb48] sm:$0xff]
  %v506 = vld [vmem:[%s1 + $0xb50] sm:$0xff]
  %v507 = vld [vmem:[%s1 + $0xb58] sm:$0xff]
  %v508 = vld [vmem:[%s1 + $0xb60] sm:$0xff]
  %v509 = vld [vmem:[%s1 + $0xb68] sm:$0xff]
  %v510 = vld [vmem:[%s1 + $0xb70] sm:$0xff]
  %v511 = vld [vmem:[%s1 + $0xb78] sm:$0xff]
  %v512 = vld [vmem:[%s1 + $0xb80] sm:$0xff]
  %v513 = vld [vmem:[%s1 + $0xb88] sm:$0xff]
  %v514 = vld [vmem:[%s1 + $0xb90] sm:$0xff]
  %v515 = vld [vmem:[%s1 + $0xb98] sm:$0xff]
  %v516 = vld [vmem:[%s1 + $0xba0] sm:$0xff]
  %v517 = vld [vmem:[%s1 + $0xba8] sm:$0xff]
  %v518 = vld [vmem:[%s1 + $0xbb0] sm:$0xff]
  %v519 = vld [vmem:[%s1 + $0xbb8] sm:$0xff]
  %v520 = vld [vmem:[%s1 + $0xbc0] sm:$0xff]
  %v521 = vld [vmem:[%s1 + $0xbc8] sm:$0xff]
  %v522 = vld [vmem:[%s1 + $0xbd0] sm:$0xff]
  %v523 = vld [vmem:[%s1 + $0xbd8] sm:$0xff]
  %v524 = vld [vmem:[%s1 + $0xbe0] sm:$0xff]
  %v525 = vld [vmem:[%s1 + $0xbe8] sm:$0xff]
  %v526 = vld [vmem:[%s1 + $0xbf0] sm:$0xff]
  %v527 = vld [vmem:[%s1 + $0xbf8] sm:$0xff]
  %v528 = vld [vmem:[%s1 + $0xc00] sm:$0xff]
  %v529 = vld [vmem:[%s1 + $0xc08] sm:$0xff]
  %v530 = vld [vmem:[%s1 + $0xc10] sm:$0xff]
  %v531 = vld [vmem:[%s1 + $0xc18] sm:$0xff]
  %v532 = vld [vmem:[%s1 + $0xc20] sm:$0xff]
  %v533 = vld [vmem:[%s1 + $0xc28] sm:$0xff]
  %v534 = vld [vmem:[%s1 + $0xc30] sm:$0xff]
  %v535 = vld [vmem:[%s1 + $0xc38] sm:$0xff]
  %v536 = vld [vmem:[%s1 + $0xc40] sm:$0xff]
  %v537 = vld [vmem:[%s1 + $0xc48] sm:$0xff]
  %v538 = vld [vmem:[%s1 + $0xc50] sm:$0xff]
  %v539 = vld [vmem:[%s1 + $0xc58] sm:$0xff]
  %v540 = vld [vmem:[%s1 + $0xc60] sm:$0xff]
  %v541 = vld [vmem:[%s1 + $0xc68] sm:$0xff]
  %v542 = vld [vmem:[%s1 + $0xc70] sm:$0xff]
  %v543 = vld [vmem:[%s1 + $0xc78] sm:$0xff]
  %v544 = vld [vmem:[%s1 + $0xc80] sm:$0xff]
  %v545 = vld [vmem:[%s1 + $0xc88] sm:$0xff]
  %v546 = vld [vmem:[%s1 + $0xc90] sm:$0xff]
  %v547 = vld [vmem:[%s1 + $0xc98] sm:$0xff]
  %v548 = vld [vmem:[%s1 + $0xca0] sm:$0xff]
  %v549 = vld [vmem:[%s1 + $0xca8] sm:$0xff]
  %v550 = vld [vmem:[%s1 + $0xcb0] sm:$0xff]
  %v551 = vld [vmem:[%s1 + $0xcb8] sm:$0xff]
  %v552 = vld [vmem:[%s1 + $0xcc0] sm:$0xff]
  %v553 = vld [vmem:[%s1 + $0xcc8] sm:$0xff]
  %v554 = vld [vmem:[%s1 + $0xcd0] sm:$0xff]
  %v555 = vld [vmem:[%s1 + $0xcd8] sm:$0xff]
  %v556 = vld [vmem:[%s1 + $0xce0] sm:$0xff]
  %v557 = vld [vmem:[%s1 + $0xce8] sm:$0xff]
  %v558 = vld [vmem:[%s1 + $0xcf0] sm:$0xff]
  %v559 = vld [vmem:[%s1 + $0xcf8] sm:$0xff]
  %v560 = vld [vmem:[%s1 + $0xd00] sm:$0xff]
  %v561 = vld [vmem:[%s1 + $0xd08] sm:$0xff]
  %v562 = vld [vmem:[%s1 + $0xd10] sm:$0xff]
  %v563 = vld [vmem:[%s1 + $0xd18] sm:$0xff]
  %v564 = vld [vmem:[%s1 + $0xd20] sm:$0xff]
  %v565 = vld [vmem:[%s1 + $0xd28] sm:$0xff]
  %v566 = vld [vmem:[%s1 + $0xd30] sm:$0xff]
  %v567 = vld [vmem:[%s1 + $0xd38] sm:$0xff]
  %v568 = vld [vmem:[%s1 + $0xd40] sm:$0xff]
  %v569 = vld [vmem:[%s1 + $0xd48] sm:$0xff]
  %v570 = vld [vmem:[%s1 + $0xd50] sm:$0xff]
  %v571 = vld [vmem:[%s1 + $0xd58] sm:$0xff]
  %v572 = vld [vmem:[%s1 + $0xd60] sm:$0xff]
  %v573 = vld [vmem:[%s1 + $0xd68] sm:$0xff]
  %v574 = vld [vmem:[%s1 + $0xd70] sm:$0xff]
  %v575 = vld [vmem:[%s1 + $0xd78] sm:$0xff]
  %v576 = vld [vmem:[%s1 + $0xd80] sm:$0xff]
  %v577 = vld [vmem:[%s1 + $0xd88] sm:$0xff]
  %v578 = vld [vmem:[%s1 + $0xd90] sm:$0xff]
  %v579 = vld [vmem:[%s1 + $0xd98] sm:$0xff]
  %v580 = vld [vmem:[%s1 + $0xda0] sm:$0xff]
  %v581 = vld [vmem:[%s1 + $0xda8] sm:$0xff]
  %v582 = vld [vmem:[%s1 + $0xdb0] sm:$0xff]
  %v583 = vld [vmem:[%s1 + $0xdb8] sm:$0xff]
  %v584 = vld [vmem:[%s1 + $0xdc0] sm:$0xff]
  %v585 = vld [vmem:[%s1 + $0xdc8] sm:$0xff]
  %v586 = vld [vmem:[%s1 + $0xdd0] sm:$0xff]
  %v587 = vld [vmem:[%s1 + $0xdd8] sm:$0xff]
  %v588 = vld [vmem:[%s1 + $0xde0] sm:$0xff]
  %v589 = vld [vmem:[%s1 + $0xde8] sm:$0xff]
  %v590 = vld [vmem:[%s1 + $0xdf0] sm:$0xff]
  %v591 = vld [vmem:[%s1 + $0xdf8] sm:$0xff]
  %v592 = vld [vmem:[%s1 + $0xe00] sm:$0xff]
  %v593 = vld [vmem:[%s1 + $0xe08] sm:$0xff]
  %v594 = vld [vmem:[%s1 + $0xe10] sm:$0xff]
  %v595 = vld [vmem:[%s1 + $0xe18] sm:$0xff]
  %v596 = vld [vmem:[%s1 + $0xe20] sm:$0xff]
  %v597 = vld [vmem:[%s1 + $0xe28] sm:$0xff]
  %v598 = vld [vmem:[%s1 + $0xe30] sm:$0xff]
  %v599 = vld [vmem:[%s1 + $0xe38] sm:$0xff]
  %v600 = vld [vmem:[%s1 + $0xe40] sm:$0xff]
  %v601 = vld [vmem:[%s1 + $0xe48] sm:$0xff]
  %v602 = vld [vmem:[%s1 + $0xe50] sm:$0xff]
  %v603 = vld [vmem:[%s1 + $0xe58] sm:$0xff]
  %v604 = vld [vmem:[%s1 + $0xe60] sm:$0xff]
  %v605 = vld [vmem:[%s1 + $0xe68] sm:$0xff]
  %v606 = vld [vmem:[%s1 + $0xe70] sm:$0xff]
  %v607 = vld [vmem:[%s1 + $0xe78] sm:$0xff]
  %v608 = vld [vmem:[%s1 + $0xe80] sm:$0xff]
  %v609 = vld [vmem:[%s1 + $0xe88] sm:$0xff]
  %v610 = vld [vmem:[%s1 + $0xe90] sm:$0xff]
  %v611 = vld [vmem:[%s1 + $0xe98] sm:$0xff]
  %v612 = vld [vmem:[%s1 + $0xea0] sm:$0xff]
  %v613 = vld [vmem:[%s1 + $0xea8] sm:$0xff]
  %v614 = vld [vmem:[%s1 + $0xeb0] sm:$0xff]
  %v615 = vld [vmem:[%s1 + $0xeb8] sm:$0xff]
  %v616 = vld [vmem:[%s1 + $0xec0] sm:$0xff]
  %v617 = vld [vmem:[%s1 + $0xec8] sm:$0xff]
  %v618 = vld [vmem:[%s1 + $0xed0] sm:$0xff]
  %v619 = vld [vmem:[%s1 + $0xed8] sm:$0xff]
  %v620 = vld [vmem:[%s1 + $0xee0] sm:$0xff]
  %v621 = vld [vmem:[%s1 + $0xee8] sm:$0xff]
  %v622 = vld [vmem:[%s1 + $0xef0] sm:$0xff]
  %v623 = vld [vmem:[%s1 + $0xef8] sm:$0xff]
  %v624 = vld [vmem:[%s1 + $0xf00] sm:$0xff]
  %v625 = vld [vmem:[%s1 + $0xf08] sm:$0xff]
  %v626 = vld [vmem:[%s1 + $0xf10] sm:$0xff]
  %v627 = vld [vmem:[%s1 + $0xf18] sm:$0xff]
  %v628 = vld [vmem:[%s1 + $0xf20] sm:$0xff]
  %v629 = vld [vmem:[%s1 + $0xf28] sm:$0xff]
  %v630 = vld [vmem:[%s1 + $0xf30] sm:$0xff]
  %v631 = vld [vmem:[%s1 + $0xf38] sm:$0xff]
  %v632 = vld [vmem:[%s1 + $0xf40] sm:$0xff]
  %v633 = vld [vmem:[%s1 + $0xf48] sm:$0xff]
  %v634 = vld [vmem:[%s1 + $0xf50] sm:$0xff]
  %v635 = vld [vmem:[%s1 + $0xf58] sm:$0xff]
  %v636 = vld [vmem:[%s1 + $0xf60] sm:$0xff]
  %v637 = vld [vmem:[%s1 + $0xf68] sm:$0xff]
  %v638 = vld [vmem:[%s1 + $0xf70] sm:$0xff]
  %v639 = vld [vmem:[%s1 + $0xf78] sm:$0xff]
  %v640 = vld [vmem:[%s1 + $0xf80] sm:$0xff]
  %v641 = vld [vmem:[%s1 + $0xf88] sm:$0xff]
  %v642 = vld [vmem:[%s1 + $0xf90] sm:$0xff]
  %v643 = vld [vmem:[%s1 + $0xf98] sm:$0xff]
  %v644 = vld [vmem:[%s1 + $0xfa0] sm:$0xff]
  %v645 = vld [vmem:[%s1 + $0xfa8] sm:$0xff]
  %v646 = vld [vmem:[%s1 + $0xfb0] sm:$0xff]
  %v647 = vld [vmem:[%s1 + $0xfb8] sm:$0xff]
  %v648 = vld [vmem:[%s1 + $0xfc0] sm:$0xff]
  %v649 = vld [vmem:[%s1 + $0xfc8] sm:$0xff]
  %v650 = vld [vmem:[%s1 + $0xfd0] sm:$0xff]
  %v651 = vld [vmem:[%s1 + $0xfd8] sm:$0xff]
  %v652 = vld [vmem:[%s1 + $0xfe0] sm:$0xff]
  %v653 = vld [vmem:[%s1 + $0xfe8] sm:$0xff]
  %v654 = vld [vmem:[%s1 + $0xff0] sm:$0xff]
  %v655 = vld [vmem:[%s1 + $0xff8] sm:$0xff]
  %v656 = vld [vmem:[%s1 + $0x1000] sm:$0xff]
  %v657 = vld [vmem:[%s1 + $0x1008] sm:$0xff]
  %v658 = vld [vmem:[%s1 + $0x1010] sm:$0xff]
  %v659 = vld [vmem:[%s1 + $0x1018] sm:$0xff]
  %v660 = vld [vmem:[%s1 + $0x1020] sm:$0xff]
  %v661 = vld [vmem:[%s1 + $0x1028] sm:$0xff]
  %v662 = vld [vmem:[%s1 + $0x1030] sm:$0xff]
  %v663 = vld [vmem:[%s1 + $0x1038] sm:$0xff]
  %v664 = vld [vmem:[%s1 + $0x1040] sm:$0xff]
  %v665 = vld [vmem:[%s1 + $0x1048] sm:$0xff]
  %v666 = vld [vmem:[%s1 + $0x1050] sm:$0xff]
  %v667 = vld [vmem:[%s1 + $0x1058] sm:$0xff]
  %v668 = vld [vmem:[%s1 + $0x1060] sm:$0xff]
  %v669 = vld [vmem:[%s1 + $0x1068] sm:$0xff]
  %v670 = vld [vmem:[%s1 + $0x1070] sm:$0xff]
  %v671 = vld [vmem:[%s1 + $0x1078] sm:$0xff]
  %v672 = vld [vmem:[%s1 + $0x1080] sm:$0xff]
  %v673 = vld [vmem:[%s1 + $0x1088] sm:$0xff]
  %v674 = vld [vmem:[%s1 + $0x1090] sm:$0xff]
  %v675 = vld [vmem:[%s1 + $0x1098] sm:$0xff]
  %v676 = vld [vmem:[%s1 + $0x10a0] sm:$0xff]
  %v677 = vld [vmem:[%s1 + $0x10a8] sm:$0xff]
  %v678 = vld [vmem:[%s1 + $0x10b0] sm:$0xff]
  %v679 = vld [vmem:[%s1 + $0x10b8] sm:$0xff]
  %v680 = vld [vmem:[%s1 + $0x10c0] sm:$0xff]
  %v681 = vld [vmem:[%s1 + $0x10c8] sm:$0xff]
  %v682 = vld [vmem:[%s1 + $0x10d0] sm:$0xff]
  %v683 = vld [vmem:[%s1 + $0x10d8] sm:$0xff]
  %v684 = vld [vmem:[%s1 + $0x10e0] sm:$0xff]
  %v685 = vld [vmem:[%s1 + $0x10e8] sm:$0xff]
  %v686 = vld [vmem:[%s1 + $0x10f0] sm:$0xff]
  %v687 = vld [vmem:[%s1 + $0x10f8] sm:$0xff]
  %v688 = vld [vmem:[%s1 + $0x1100] sm:$0xff]
  %v689 = vld [vmem:[%s1 + $0x1108] sm:$0xff]
  %v690 = vld [vmem:[%s1 + $0x1110] sm:$0xff]
  %v691 = vld [vmem:[%s1 + $0x1118] sm:$0xff]
  %v692 = vld [vmem:[%s1 + $0x1120] sm:$0xff]
  %v693 = vld [vmem:[%s1 + $0x1128] sm:$0xff]
  %v694 = vld [vmem:[%s1 + $0x1130] sm:$0xff]
  %v695 = vld [vmem:[%s1 + $0x1138] sm:$0xff]
  %v696 = vld [vmem:[%s1 + $0x1140] sm:$0xff]
  %v697 = vld [vmem:[%s1 + $0x1148] sm:$0xff]
  %v698 = vld [vmem:[%s1 + $0x1150] sm:$0xff]
  %v699 = vld [vmem:[%s1 + $0x1158] sm:$0xff]
  %v700 = vld [vmem:[%s1 + $0x1160] sm:$0xff]
  %v701 = vld [vmem:[%s1 + $0x1168] sm:$0xff]
  %v702 = vld [vmem:[%s1 + $0x1170] sm:$0xff]
  %v703 = vld [vmem:[%s1 + $0x1178] sm:$0xff]
  %v704 = vld [vmem:[%s1 + $0x1180] sm:$0xff]
  %v705 = vld [vmem:[%s1 + $0x1188] sm:$0xff]
  %v706 = vld [vmem:[%s1 + $0x1190] sm:$0xff]
  %v707 = vld [vmem:[%s1 + $0x1198] sm:$0xff]
  %v708 = vld [vmem:[%s1 + $0x11a0] sm:$0xff]
  %v709 = vld [vmem:[%s1 + $0x11a8] sm:$0xff]
  %v710 = vld [vmem:[%s1 + $0x11b0] sm:$0xff]
  %v711 = vld [vmem:[%s1 + $0x11b8] sm:$0xff]
  %v712 = vld [vmem:[%s1 + $0x11c0] sm:$0xff]
  %v713 = vld [vmem:[%s1 + $0x11c8] sm:$0xff]
  %v714 = vld [vmem:[%s1 + $0x11d0] sm:$0xff]
  %v715 = vld [vmem:[%s1 + $0x11d8] sm:$0xff]
  %v716 = vld [vmem:[%s1 + $0x11e0] sm:$0xff]
  %v717 = vld [vmem:[%s1 + $0x11e8] sm:$0xff]
  %v718 = vld [vmem:[%s1 + $0x11f0] sm:$0xff]
  %v719 = vld [vmem:[%s1 + $0x11f8] sm:$0xff]
  %v720 = vld [vmem:[%s1 + $0x1200] sm:$0xff]
  %v721 = vld [vmem:[%s1 + $0x1208] sm:$0xff]
  %v722 = vld [vmem:[%s1 + $0x1210] sm:$0xff]
  %v723 = vld [vmem:[%s1 + $0x1218] sm:$0xff]
  %v724 = vld [vmem:[%s1 + $0x1220] sm:$0xff]
  %v725 = vld [vmem:[%s1 + $0x1228] sm:$0xff]
  %v726 = vld [vmem:[%s1 + $0x1230] sm:$0xff]
  %v727 = vld [vmem:[%s1 + $0x1238] sm:$0xff]
  %v728 = vld [vmem:[%s1 + $0x1240] sm:$0xff]
  %v729 = vld [vmem:[%s1 + $0x1248] sm:$0xff]
  %v730 = vld [vmem:[%s1 + $0x1250] sm:$0xff]
  %v731 = vld [vmem:[%s1 + $0x1258] sm:$0xff]
  %v732 = vld [vmem:[%s1 + $0x1260] sm:$0xff]
  %v733 = vld [vmem:[%s1 + $0x1268] sm:$0xff]
  %v734 = vld [vmem:[%s1 + $0x1270] sm:$0xff]
  %v735 = vld [vmem:[%s1 + $0x1278] sm:$0xff]
  %v736 = vld [vmem:[%s1 + $0x1280] sm:$0xff]
  %v737 = vld [vmem:[%s1 + $0x1288] sm:$0xff]
  %v738 = vld [vmem:[%s1 + $0x1290] sm:$0xff]
  %v739 = vld [vmem:[%s1 + $0x1298] sm:$0xff]
  %v740 = vld [vmem:[%s1 + $0x12a0] sm:$0xff]
  %v741 = vld [vmem:[%s1 + $0x12a8] sm:$0xff]
  %v742 = vld [vmem:[%s1 + $0x12b0] sm:$0xff]
  %v743 = vld [vmem:[%s1 + $0x12b8] sm:$0xff]
  %v744 = vld [vmem:[%s1 + $0x12c0] sm:$0xff]
  %v745 = vld [vmem:[%s1 + $0x12c8] sm:$0xff]
  %v746 = vld [vmem:[%s1 + $0x12d0] sm:$0xff]
  %v747 = vld [vmem:[%s1 + $0x12d8] sm:$0xff]
  %v748 = vld [vmem:[%s1 + $0x12e0] sm:$0xff]
  %v749 = vld [vmem:[%s1 + $0x12e8] sm:$0xff]
  %v750 = vld [vmem:[%s1 + $0x12f0] sm:$0xff]
  %v751 = vld [vmem:[%s1 + $0x12f8] sm:$0xff]
  %v752 = vld [vmem:[%s1 + $0x1300] sm:$0xff]
  %v753 = vld [vmem:[%s1 + $0x1308] sm:$0xff]
  %v754 = vld [vmem:[%s1 + $0x1310] sm:$0xff]
  %v755 = vld [vmem:[%s1 + $0x1318] sm:$0xff]
  %v756 = vld [vmem:[%s1 + $0x1320] sm:$0xff]
  %v757 = vld [vmem:[%s1 + $0x1328] sm:$0xff]
  %v758 = vld [vmem:[%s1 + $0x1330] sm:$0xff]
  %v759 = vld [vmem:[%s1 + $0x1338] sm:$0xff]
  %v760 = vld [vmem:[%s1 + $0x1340] sm:$0xff]
  %v761 = vld [vmem:[%s1 + $0x1348] sm:$0xff]
  %v762 = vld [vmem:[%s1 + $0x1350] sm:$0xff]
  %v763 = vld [vmem:[%s1 + $0x1358] sm:$0xff]
  %v764 = vld [vmem:[%s1 + $0x1360] sm:$0xff]
  %v765 = vld [vmem:[%s1 + $0x1368] sm:$0xff]
  %v766 = vld [vmem:[%s1 + $0x1370] sm:$0xff]
  %v767 = vld [vmem:[%s1 + $0x1378] sm:$0xff]
  %v768 = vld [vmem:[%s1 + $0x1380] sm:$0xff]
  %v769 = vld [vmem:[%s1 + $0x1388] sm:$0xff]
  %v770 = vld [vmem:[%s1 + $0x1390] sm:$0xff]
  %v771 = vld [vmem:[%s1 + $0x1398] sm:$0xff]
  %v772 = vld [vmem:[%s1 + $0x13a0] sm:$0xff]
  %v773 = vld [vmem:[%s1 + $0x13a8] sm:$0xff]
  %v774 = vld [vmem:[%s1 + $0x13b0] sm:$0xff]
  %v775 = vld [vmem:[%s1 + $0x13b8] sm:$0xff]
  %v776 = vld [vmem:[%s1 + $0x13c0] sm:$0xff]
  %v777 = vld [vmem:[%s1 + $0x13c8] sm:$0xff]
  %v778 = vld [vmem:[%s1 + $0x13d0] sm:$0xff]
  %v779 = vld [vmem:[%s1 + $0x13d8] sm:$0xff]
  %v780 = vld [vmem:[%s1 + $0x13e0] sm:$0xff]
  %v781 = vld [vmem:[%s1 + $0x13e8] sm:$0xff]
  %v782 = vld [vmem:[%s1 + $0x13f0] sm:$0xff]
  %v783 = vld [vmem:[%s1 + $0x13f8] sm:$0xff]
  %v784 = vld [vmem:[%s1 + $0x1400] sm:$0xff]
  %v785 = vld [vmem:[%s1 + $0x1408] sm:$0xff]
  %v786 = vld [vmem:[%s1 + $0x1410] sm:$0xff]
  %v787 = vld [vmem:[%s1 + $0x1418] sm:$0xff]
  %v788 = vld [vmem:[%s1 + $0x1420] sm:$0xff]
  %v789 = vld [vmem:[%s1 + $0x1428] sm:$0xff]
  %v790 = vld [vmem:[%s1 + $0x1430] sm:$0xff]
  %v791 = vld [vmem:[%s1 + $0x1438] sm:$0xff]
  %v792 = vld [vmem:[%s1 + $0x1440] sm:$0xff]
  %v793 = vld [vmem:[%s1 + $0x1448] sm:$0xff]
  %v794 = vld [vmem:[%s1 + $0x1450] sm:$0xff]
  %v795 = vld [vmem:[%s1 + $0x1458] sm:$0xff]
  %v796 = vld [vmem:[%s1 + $0x1460] sm:$0xff]
  %v797 = vld [vmem:[%s1 + $0x1468] sm:$0xff]
  %v798 = vld [vmem:[%s1 + $0x1470] sm:$0xff]
  %v799 = vld [vmem:[%s1 + $0x1478] sm:$0xff]
  %v800 = vld [vmem:[%s1 + $0x1480] sm:$0xff]
  %v801 = vld [vmem:[%s1 + $0x1488] sm:$0xff]
  %v802 = vld [vmem:[%s1 + $0x1490] sm:$0xff]
  %v803 = vld [vmem:[%s1 + $0x1498] sm:$0xff]
  %v804 = vld [vmem:[%s1 + $0x14a0] sm:$0xff]
  %v805 = vld [vmem:[%s1 + $0x14a8] sm:$0xff]
  %v806 = vld [vmem:[%s1 + $0x14b0] sm:$0xff]
  %v807 = vld [vmem:[%s1 + $0x14b8] sm:$0xff]
  %v808 = vld [vmem:[%s1 + $0x14c0] sm:$0xff]
  %v809 = vld [vmem:[%s1 + $0x14c8] sm:$0xff]
  %v810 = vld [vmem:[%s1 + $0x14d0] sm:$0xff]
  %v811 = vld [vmem:[%s1 + $0x14d8] sm:$0xff]
  %v812 = vld [vmem:[%s1 + $0x14e0] sm:$0xff]
  %v813 = vld [vmem:[%s1 + $0x14e8] sm:$0xff]
  %v814 = vld [vmem:[%s1 + $0x14f0] sm:$0xff]
  %v815 = vld [vmem:[%s1 + $0x14f8] sm:$0xff]
  %v816 = vld [vmem:[%s1 + $0x1500] sm:$0xff]
  %v817 = vld [vmem:[%s1 + $0x1508] sm:$0xff]
  %v818 = vld [vmem:[%s1 + $0x1510] sm:$0xff]
  %v819 = vld [vmem:[%s1 + $0x1518] sm:$0xff]
  %v820 = vld [vmem:[%s1 + $0x1520] sm:$0xff]
  %v821 = vld [vmem:[%s1 + $0x1528] sm:$0xff]
  %v822 = vld [vmem:[%s1 + $0x1530] sm:$0xff]
  %v823 = vld [vmem:[%s1 + $0x1538] sm:$0xff]
  %v824 = vld [vmem:[%s1 + $0x1540] sm:$0xff]
  %v825 = vld [vmem:[%s1 + $0x1548] sm:$0xff]
  %v826 = vld [vmem:[%s1 + $0x1550] sm:$0xff]
  %v827 = vld [vmem:[%s1 + $0x1558] sm:$0xff]
  %v828 = vld [vmem:[%s1 + $0x1560] sm:$0xff]
  %v829 = vld [vmem:[%s1 + $0x1568] sm:$0xff]
  %v830 = vld [vmem:[%s1 + $0x1570] sm:$0xff]
  %v831 = vld [vmem:[%s1 + $0x1578] sm:$0xff]
  %v832 = vld [vmem:[%s1 + $0x1580] sm:$0xff]
  %v833 = vld [vmem:[%s1 + $0x1588] sm:$0xff]
  %v834 = vld [vmem:[%s1 + $0x1590] sm:$0xff]
  %v835 = vld [vmem:[%s1 + $0x1598] sm:$0xff]
  %v836 = vld [vmem:[%s1 + $0x15a0] sm:$0xff]
  %v837 = vld [vmem:[%s1 + $0x15a8] sm:$0xff]
  %v838 = vld [vmem:[%s1 + $0x15b0] sm:$0xff]
  %v839 = vld [vmem:[%s1 + $0x15b8] sm:$0xff]
  %v840 = vld [vmem:[%s1 + $0x15c0] sm:$0xff]
  %v841 = vld [vmem:[%s1 + $0x15c8] sm:$0xff]
  %v842 = vld [vmem:[%s1 + $0x15d0] sm:$0xff]
  %v843 = vld [vmem:[%s1 + $0x15d8] sm:$0xff]
  %v844 = vld [vmem:[%s1 + $0x15e0] sm:$0xff]
  %v845 = vld [vmem:[%s1 + $0x15e8] sm:$0xff]
  %v846 = vld [vmem:[%s1 + $0x15f0] sm:$0xff]
  %v847 = vld [vmem:[%s1 + $0x15f8] sm:$0xff]
  %v848 = vld [vmem:[%s1 + $0x1600] sm:$0xff]
  %v849 = vld [vmem:[%s1 + $0x1608] sm:$0xff]
  %v850 = vld [vmem:[%s1 + $0x1610] sm:$0xff]
  %v851 = vld [vmem:[%s1 + $0x1618] sm:$0xff]
  %v852 = vld [vmem:[%s1 + $0x1620] sm:$0xff]
  %v853 = vld [vmem:[%s1 + $0x1628] sm:$0xff]
  %v854 = vld [vmem:[%s1 + $0x1630] sm:$0xff]
  %v855 = vld [vmem:[%s1 + $0x1638] sm:$0xff]
  %v856 = vld [vmem:[%s1 + $0x1640] sm:$0xff]
  %v857 = vld [vmem:[%s1 + $0x1648] sm:$0xff]
  %v858 = vld [vmem:[%s1 + $0x1650] sm:$0xff]
  %v859 = vld [vmem:[%s1 + $0x1658] sm:$0xff]
  %v860 = vld [vmem:[%s1 + $0x1660] sm:$0xff]
  %v861 = vld [vmem:[%s1 + $0x1668] sm:$0xff]
  %v862 = vld [vmem:[%s1 + $0x1670] sm:$0xff]
  %v863 = vld [vmem:[%s1 + $0x1678] sm:$0xff]
  %v864 = vld [vmem:[%s1 + $0x1680] sm:$0xff]
  %v865 = vld [vmem:[%s1 + $0x1688] sm:$0xff]
  %v866 = vld [vmem:[%s1 + $0x1690] sm:$0xff]
  %v867 = vld [vmem:[%s1 + $0x1698] sm:$0xff]
  %v868 = vld [vmem:[%s1 + $0x16a0] sm:$0xff]
  %v869 = vld [vmem:[%s1 + $0x16a8] sm:$0xff]
  %v870 = vld [vmem:[%s1 + $0x16b0] sm:$0xff]
  %v871 = vld [vmem:[%s1 + $0x16b8] sm:$0xff]
  %v872 = vld [vmem:[%s1 + $0x16c0] sm:$0xff]
  %v873 = vld [vmem:[%s1 + $0x16c8] sm:$0xff]
  %v874 = vld [vmem:[%s1 + $0x16d0] sm:$0xff]
  %v875 = vld [vmem:[%s1 + $0x16d8] sm:$0xff]
  %v876 = vld [vmem:[%s1 + $0x16e0] sm:$0xff]
  %v877 = vld [vmem:[%s1 + $0x16e8] sm:$0xff]
  %v878 = vld [vmem:[%s1 + $0x16f0] sm:$0xff]
  %v879 = vld [vmem:[%s1 + $0x16f8] sm:$0xff]
  %v880 = vld [vmem:[%s1 + $0x1700] sm:$0xff]
  %v881 = vld [vmem:[%s1 + $0x1708] sm:$0xff]
  %v882 = vld [vmem:[%s1 + $0x1710] sm:$0xff]
  %v883 = vld [vmem:[%s1 + $0x1718] sm:$0xff]
  %v884 = vld [vmem:[%s1 + $0x1720] sm:$0xff]
  %v885 = vld [vmem:[%s1 + $0x1728] sm:$0xff]
  %v886 = vld [vmem:[%s1 + $0x1730] sm:$0xff]
  %v887 = vld [vmem:[%s1 + $0x1738] sm:$0xff]
  %v888 = vld [vmem:[%s1 + $0x1740] sm:$0xff]
  %v889 = vld [vmem:[%s1 + $0x1748] sm:$0xff]
  %v890 = vld [vmem:[%s1 + $0x1750] sm:$0xff]
  %v891 = vld [vmem:[%s1 + $0x1758] sm:$0xff]
  %v892 = vld [vmem:[%s1 + $0x1760] sm:$0xff]
  %v893 = vld [vmem:[%s1 + $0x1768] sm:$0xff]
  %v894 = vld [vmem:[%s1 + $0x1770] sm:$0xff]
  %v895 = vld [vmem:[%s1 + $0x1778] sm:$0xff]
  %v896 = vld [vmem:[%s1 + $0x1780] sm:$0xff]
  %v897 = vld [vmem:[%s1 + $0x1788] sm:$0xff]
  %v898 = vld [vmem:[%s1 + $0x1790] sm:$0xff]
  %v899 = vld [vmem:[%s1 + $0x1798] sm:$0xff]
  %v900 = vld [vmem:[%s1 + $0x17a0] sm:$0xff]
  %v901 = vld [vmem:[%s1 + $0x17a8] sm:$0xff]
  %v902 = vld [vmem:[%s1 + $0x17b0] sm:$0xff]
  %v903 = vld [vmem:[%s1 + $0x17b8] sm:$0xff]
  %v904 = vld [vmem:[%s1 + $0x17c0] sm:$0xff]
  %v905 = vld [vmem:[%s1 + $0x17c8] sm:$0xff]
  %v906 = vld [vmem:[%s1 + $0x17d0] sm:$0xff]
  %v907 = vld [vmem:[%s1 + $0x17d8] sm:$0xff]
  %v908 = vld [vmem:[%s1 + $0x17e0] sm:$0xff]
  %v909 = vld [vmem:[%s1 + $0x17e8] sm:$0xff]
  %v910 = vld [vmem:[%s1 + $0x17f0] sm:$0xff]
  %v911 = vld [vmem:[%s1 + $0x17f8] sm:$0xff]
  %v912 = vld [vmem:[%s1 + $0x1800] sm:$0xff]
  %v913 = vld [vmem:[%s1 + $0x1808] sm:$0xff]
  %v914 = vld [vmem:[%s1 + $0x1810] sm:$0xff]
  %v915 = vld [vmem:[%s1 + $0x1818] sm:$0xff]
  %v916 = vld [vmem:[%s1 + $0x1820] sm:$0xff]
  %v917 = vld [vmem:[%s1 + $0x1828] sm:$0xff]
  %v918 = vld [vmem:[%s1 + $0x1830] sm:$0xff]
  %v919 = vld [vmem:[%s1 + $0x1838] sm:$0xff]
  %v920 = vld [vmem:[%s1 + $0x1840] sm:$0xff]
  %v921 = vld [vmem:[%s1 + $0x1848] sm:$0xff]
  %v922 = vld [vmem:[%s1 + $0x1850] sm:$0xff]
  %v923 = vld [vmem:[%s1 + $0x1858] sm:$0xff]
  %v924 = vld [vmem:[%s1 + $0x1860] sm:$0xff]
  %v925 = vld [vmem:[%s1 + $0x1868] sm:$0xff]
  %v926 = vld [vmem:[%s1 + $0x1870] sm:$0xff]
  %v927 = vld [vmem:[%s1 + $0x1878] sm:$0xff]
  %v928 = vld [vmem:[%s1 + $0x1880] sm:$0xff]
  %v929 = vld [vmem:[%s1 + $0x1888] sm:$0xff]
  %v930 = vld [vmem:[%s1 + $0x1890] sm:$0xff]
  %v931 = vld [vmem:[%s1 + $0x1898] sm:$0xff]
  %v932 = vld [vmem:[%s1 + $0x18a0] sm:$0xff]
  %v933 = vld [vmem:[%s1 + $0x18a8] sm:$0xff]
  %v934 = vld [vmem:[%s1 + $0x18b0] sm:$0xff]
  %v935 = vld [vmem:[%s1 + $0x18b8] sm:$0xff]
  %v936 = vld [vmem:[%s1 + $0x18c0] sm:$0xff]
  %v937 = vld [vmem:[%s1 + $0x18c8] sm:$0xff]
  %v938 = vld [vmem:[%s1 + $0x18d0] sm:$0xff]
  %v939 = vld [vmem:[%s1 + $0x18d8] sm:$0xff]
  %v940 = vld [vmem:[%s1 + $0x18e0] sm:$0xff]
  %v941 = vld [vmem:[%s1 + $0x18e8] sm:$0xff]
  %v942 = vld [vmem:[%s1 + $0x18f0] sm:$0xff]
  %v943 = vld [vmem:[%s1 + $0x18f8] sm:$0xff]
  %v944 = vld [vmem:[%s1 + $0x1900] sm:$0xff]
  %v945 = vld [vmem:[%s1 + $0x1908] sm:$0xff]
  %v946 = vld [vmem:[%s1 + $0x1910] sm:$0xff]
  %v947 = vld [vmem:[%s1 + $0x1918] sm:$0xff]
  %v948 = vld [vmem:[%s1 + $0x1920] sm:$0xff]
  %v949 = vld [vmem:[%s1 + $0x1928] sm:$0xff]
  %v950 = vld [vmem:[%s1 + $0x1930] sm:$0xff]
  %v951 = vld [vmem:[%s1 + $0x1938] sm:$0xff]
  %v952 = vld [vmem:[%s1 + $0x1940] sm:$0xff]
  %v953 = vld [vmem:[%s1 + $0x1948] sm:$0xff]
  %v954 = vld [vmem:[%s1 + $0x1950] sm:$0xff]
  %v955 = vld [vmem:[%s1 + $0x1958] sm:$0xff]
  %v956 = vld [vmem:[%s1 + $0x1960] sm:$0xff]
  %v957 = vld [vmem:[%s1 + $0x1968] sm:$0xff]
  %v958 = vld [vmem:[%s1 + $0x1970] sm:$0xff]
  %v959 = vld [vmem:[%s1 + $0x1978] sm:$0xff]
  %v960 = vld [vmem:[%s1 + $0x1980] sm:$0xff]
  %v961 = vld [vmem:[%s1 + $0x1988] sm:$0xff]
  %v962 = vld [vmem:[%s1 + $0x1990] sm:$0xff]
  %v963 = vld [vmem:[%s1 + $0x1998] sm:$0xff]
  %v964 = vld [vmem:[%s1 + $0x19a0] sm:$0xff]
  %v965 = vld [vmem:[%s1 + $0x19a8] sm:$0xff]
  %v966 = vld [vmem:[%s1 + $0x19b0] sm:$0xff]
  %v967 = vld [vmem:[%s1 + $0x19b8] sm:$0xff]
  %v968 = vld [vmem:[%s1 + $0x19c0] sm:$0xff]
  %v969 = vld [vmem:[%s1 + $0x19c8] sm:$0xff]
  %v970 = vld [vmem:[%s1 + $0x19d0] sm:$0xff]
  %v971 = vld [vmem:[%s1 + $0x19d8] sm:$0xff]
  %v972 = vld [vmem:[%s1 + $0x19e0] sm:$0xff]
  %v973 = vld [vmem:[%s1 + $0x19e8] sm:$0xff]
  %v974 = vld [vmem:[%s1 + $0x19f0] sm:$0xff]
  %v975 = vld [vmem:[%s1 + $0x19f8] sm:$0xff]
  %v976 = vld [vmem:[%s1 + $0x1a00] sm:$0xff]
  %v977 = vld [vmem:[%s1 + $0x1a08] sm:$0xff]
  %v978 = vld [vmem:[%s1 + $0x1a10] sm:$0xff]
  %v979 = vld [vmem:[%s1 + $0x1a18] sm:$0xff]
  %v980 = vld [vmem:[%s1 + $0x1a20] sm:$0xff]
  %v981 = vld [vmem:[%s1 + $0x1a28] sm:$0xff]
  %v982 = vld [vmem:[%s1 + $0x1a30] sm:$0xff]
  %v983 = vld [vmem:[%s1 + $0x1a38] sm:$0xff]
  %v984 = vld [vmem:[%s1 + $0x1a40] sm:$0xff]
  %v985 = vld [vmem:[%s1 + $0x1a48] sm:$0xff]
  %v986 = vld [vmem:[%s1 + $0x1a50] sm:$0xff]
  %v987 = vld [vmem:[%s1 + $0x1a58] sm:$0xff]
  %v988 = vld [vmem:[%s1 + $0x1a60] sm:$0xff]
  %v989 = vld [vmem:[%s1 + $0x1a68] sm:$0xff]
  %v990 = vld [vmem:[%s1 + $0x1a70] sm:$0xff]
  %v991 = vld [vmem:[%s1 + $0x1a78] sm:$0xff]
  %v992 = vld [vmem:[%s1 + $0x1a80] sm:$0xff]
  %v993 = vld [vmem:[%s1 + $0x1a88] sm:$0xff]
  %v994 = vld [vmem:[%s1 + $0x1a90] sm:$0xff]
  %v995 = vld [vmem:[%s1 + $0x1a98] sm:$0xff]
  %v996 = vld [vmem:[%s1 + $0x1aa0] sm:$0xff]
  %v997 = vld [vmem:[%s1 + $0x1aa8] sm:$0xff]
  %v998 = vld [vmem:[%s1 + $0x1ab0] sm:$0xff]
  %v999 = vld [vmem:[%s1 + $0x1ab8] sm:$0xff]
  %v1000 = vld [vmem:[%s1 + $0x1ac0] sm:$0xff]
  %v1001 = vld [vmem:[%s1 + $0x1ac8] sm:$0xff]
  %v1002 = vld [vmem:[%s1 + $0x1ad0] sm:$0xff]
  %v1003 = vld [vmem:[%s1 + $0x1ad8] sm:$0xff]
  %v1004 = vld [vmem:[%s1 + $0x1ae0] sm:$0xff]
  %v1005 = vld [vmem:[%s1 + $0x1ae8] sm:$0xff]
  %v1006 = vld [vmem:[%s1 + $0x1af0] sm:$0xff]
  %v1007 = vld [vmem:[%s1 + $0x1af8] sm:$0xff]
  %v1008 = vld [vmem:[%s1 + $0x1b00] sm:$0xff]
  %v1009 = vld [vmem:[%s1 + $0x1b08] sm:$0xff]
  %v1010 = vld [vmem:[%s1 + $0x1b10] sm:$0xff]
  %v1011 = vld [vmem:[%s1 + $0x1b18] sm:$0xff]
  %v1012 = vld [vmem:[%s1 + $0x1b20] sm:$0xff]
  %v1013 = vld [vmem:[%s1 + $0x1b28] sm:$0xff]
  %v1014 = vld [vmem:[%s1 + $0x1b30] sm:$0xff]
  %v1015 = vld [vmem:[%s1 + $0x1b38] sm:$0xff]
  %v1016 = vld [vmem:[%s1 + $0x1b40] sm:$0xff]
  %v1017 = vld [vmem:[%s1 + $0x1b48] sm:$0xff]
  %v1018 = vld [vmem:[%s1 + $0x1b50] sm:$0xff]
  %v1019 = vld [vmem:[%s1 + $0x1b58] sm:$0xff]
  %v1020 = vld [vmem:[%s1 + $0x1b60] sm:$0xff]
  %v1021 = vld [vmem:[%s1 + $0x1b68] sm:$0xff]
  %v1022 = vld [vmem:[%s1 + $0x1b70] sm:$0xff]
  %v1023 = vld [vmem:[%s1 + $0x1b78] sm:$0xff]
  %v1024 = vld [vmem:[%s1 + $0x1b80] sm:$0xff]
  %v1025 = vld [vmem:[%s1 + $0x1b88] sm:$0xff]
  %v1026 = vld [vmem:[%s1 + $0x1b90] sm:$0xff]
  %v1027 = vld [vmem:[%s1 + $0x1b98] sm:$0xff]
  %v1028 = vld [vmem:[%s1 + $0x1ba0] sm:$0xff]
  %v1029 = vld [vmem:[%s1 + $0x1ba8] sm:$0xff]
  %v1030 = vld [vmem:[%s1 + $0x1bb0] sm:$0xff]
  %v1031 = vld [vmem:[%s1 + $0x1bb8] sm:$0xff]
  %v1032 = vld [vmem:[%s1 + $0x1bc0] sm:$0xff]
  %v1033 = vld [vmem:[%s1 + $0x1bc8] sm:$0xff]
  %v1034 = vld [vmem:[%s1 + $0x1bd0] sm:$0xff]
  %v1035 = vld [vmem:[%s1 + $0x1bd8] sm:$0xff]
  %v1036 = vld [vmem:[%s1 + $0x1be0] sm:$0xff]
  %v1037 = vld [vmem:[%s1 + $0x1be8] sm:$0xff]
  %v1038 = vld [vmem:[%s1 + $0x1bf0] sm:$0xff]
  %v1039 = vld [vmem:[%s1 + $0x1bf8] sm:$0xff]
  %v1040 = vld [vmem:[%s1 + $0x1c00] sm:$0xff]
  %v1041 = vld [vmem:[%s1 + $0x1c08] sm:$0xff]
  %v1042 = vld [vmem:[%s1 + $0x1c10] sm:$0xff]
  %v1043 = vld [vmem:[%s1 + $0x1c18] sm:$0xff]
  %v1044 = vld [vmem:[%s1 + $0x1c20] sm:$0xff]
  %v1045 = vld [vmem:[%s1 + $0x1c28] sm:$0xff]
  %v1046 = vld [vmem:[%s1 + $0x1c30] sm:$0xff]
  %v1047 = vld [vmem:[%s1 + $0x1c38] sm:$0xff]
  %v1048 = vld [vmem:[%s1 + $0x1c40] sm:$0xff]
  %v1049 = vld [vmem:[%s1 + $0x1c48] sm:$0xff]
  %v1050 = vld [vmem:[%s1 + $0x1c50] sm:$0xff]
  %v1051 = vld [vmem:[%s1 + $0x1c58] sm:$0xff]
  %v1052 = vld [vmem:[%s1 + $0x1c60] sm:$0xff]
  %v1053 = vld [vmem:[%s1 + $0x1c68] sm:$0xff]
  %v1054 = vld [vmem:[%s1 + $0x1c70] sm:$0xff]
  %v1055 = vld [vmem:[%s1 + $0x1c78] sm:$0xff]
  %v1056 = vld [vmem:[%s1 + $0x1c80] sm:$0xff]
  %v1057 = vld [vmem:[%s1 + $0x1c88] sm:$0xff]
  %v1058 = vld [vmem:[%s1 + $0x1c90] sm:$0xff]
  %v1059 = vld [vmem:[%s1 + $0x1c98] sm:$0xff]
  %v1060 = vld [vmem:[%s1 + $0x1ca0] sm:$0xff]
  %v1061 = vld [vmem:[%s1 + $0x1ca8] sm:$0xff]
  %v1062 = vld [vmem:[%s1 + $0x1cb0] sm:$0xff]
  %v1063 = vld [vmem:[%s1 + $0x1cb8] sm:$0xff]
  %v1064 = vld [vmem:[%s1 + $0x1cc0] sm:$0xff]
  %v1065 = vld [vmem:[%s1 + $0x1cc8] sm:$0xff]
  %v1066 = vld [vmem:[%s1 + $0x1cd0] sm:$0xff]
  %v1067 = vld [vmem:[%s1 + $0x1cd8] sm:$0xff]
  %v1068 = vld [vmem:[%s1 + $0x1ce0] sm:$0xff]
  %v1069 = vld [vmem:[%s1 + $0x1ce8] sm:$0xff]
  %v1070 = vld [vmem:[%s1 + $0x1cf0] sm:$0xff]
  %v1071 = vld [vmem:[%s1 + $0x1cf8] sm:$0xff]
  %v1072 = vld [vmem:[%s1 + $0x1d00] sm:$0xff]
  %v1073 = vld [vmem:[%s1 + $0x1d08] sm:$0xff]
  %v1074 = vld [vmem:[%s1 + $0x1d10] sm:$0xff]
  %v1075 = vld [vmem:[%s1 + $0x1d18] sm:$0xff]
  %v1076 = vld [vmem:[%s1 + $0x1d20] sm:$0xff]
  %v1077 = vld [vmem:[%s1 + $0x1d28] sm:$0xff]
  %v1078 = vld [vmem:[%s1 + $0x1d30] sm:$0xff]
  %v1079 = vld [vmem:[%s1 + $0x1d38] sm:$0xff]
  %v1080 = vld [vmem:[%s1 + $0x1d40] sm:$0xff]
  %v1081 = vld [vmem:[%s1 + $0x1d48] sm:$0xff]
  %v1082 = vld [vmem:[%s1 + $0x1d50] sm:$0xff]
  %v1083 = vld [vmem:[%s1 + $0x1d58] sm:$0xff]
  %v1084 = vld [vmem:[%s1 + $0x1d60] sm:$0xff]
  %v1085 = vld [vmem:[%s1 + $0x1d68] sm:$0xff]
  %v1086 = vld [vmem:[%s1 + $0x1d70] sm:$0xff]
  %v1087 = vld [vmem:[%s1 + $0x1d78] sm:$0xff]
  %v1088 = vld [vmem:[%s1 + $0x1d80] sm:$0xff]
  %v1089 = vld [vmem:[%s1 + $0x1d88] sm:$0xff]
  %v1090 = vld [vmem:[%s1 + $0x1d90] sm:$0xff]
  %v1091 = vld [vmem:[%s1 + $0x1d98] sm:$0xff]
  %v1092 = vld [vmem:[%s1 + $0x1da0] sm:$0xff]
  %v1093 = vld [vmem:[%s1 + $0x1da8] sm:$0xff]
  %v1094 = vld [vmem:[%s1 + $0x1db0] sm:$0xff]
  %v1095 = vld [vmem:[%s1 + $0x1db8] sm:$0xff]
  %v1096 = vld [vmem:[%s1 + $0x1dc0] sm:$0xff]
  %v1097 = vld [vmem:[%s1 + $0x1dc8] sm:$0xff]
  %v1098 = vld [vmem:[%s1 + $0x1dd0] sm:$0xff]
  %v1099 = vld [vmem:[%s1 + $0x1dd8] sm:$0xff]
  %v1100 = vld [vmem:[%s1 + $0x1de0] sm:$0xff]
  %v1101 = vld [vmem:[%s1 + $0x1de8] sm:$0xff]
  %v1102 = vld [vmem:[%s1 + $0x1df0] sm:$0xff]
  %v1103 = vld [vmem:[%s1 + $0x1df8] sm:$0xff]
  %v1104 = vld [vmem:[%s1 + $0x1e00] sm:$0xff]
  %v1105 = vld [vmem:[%s1 + $0x1e08] sm:$0xff]
  %v1106 = vld [vmem:[%s1 + $0x1e10] sm:$0xff]
  %v1107 = vld [vmem:[%s1 + $0x1e18] sm:$0xff]
  %v1108 = vld [vmem:[%s1 + $0x1e20] sm:$0xff]
  %v1109 = vld [vmem:[%s1 + $0x1e28] sm:$0xff]
  %v1110 = vld [vmem:[%s1 + $0x1e30] sm:$0xff]
  %v1111 = vld [vmem:[%s1 + $0x1e38] sm:$0xff]
  %v1112 = vld [vmem:[%s1 + $0x1e40] sm:$0xff]
  %v1113 = vld [vmem:[%s1 + $0x1e48] sm:$0xff]
  %v1114 = vld [vmem:[%s1 + $0x1e50] sm:$0xff]
  %v1115 = vld [vmem:[%s1 + $0x1e58] sm:$0xff]
  %v1116 = vld [vmem:[%s1 + $0x1e60] sm:$0xff]
  %v1117 = vld [vmem:[%s1 + $0x1e68] sm:$0xff]
  %v1118 = vld [vmem:[%s1 + $0x1e70] sm:$0xff]
  %v1119 = vld [vmem:[%s1 + $0x1e78] sm:$0xff]
  %v1120 = vld [vmem:[%s1 + $0x1e80] sm:$0xff]
  %v1121 = vld [vmem:[%s1 + $0x1e88] sm:$0xff]
  %v1122 = vld [vmem:[%s1 + $0x1e90] sm:$0xff]
  %v1123 = vld [vmem:[%s1 + $0x1e98] sm:$0xff]
  %v1124 = vld [vmem:[%s1 + $0x1ea0] sm:$0xff]
  %v1125 = vld [vmem:[%s1 + $0x1ea8] sm:$0xff]
  %v1126 = vld [vmem:[%s1 + $0x1eb0] sm:$0xff]
  %v1127 = vld [vmem:[%s1 + $0x1eb8] sm:$0xff]
  %v1128 = vld [vmem:[%s1 + $0x1ec0] sm:$0xff]
  %v1129 = vld [vmem:[%s1 + $0x1ec8] sm:$0xff]
  %v1130 = vld [vmem:[%s1 + $0x1ed0] sm:$0xff]
  %v1131 = vld [vmem:[%s1 + $0x1ed8] sm:$0xff]
  %v1132 = vld [vmem:[%s1 + $0x1ee0] sm:$0xff]
  %v1133 = vld [vmem:[%s1 + $0x1ee8] sm:$0xff]
  %v1134 = vld [vmem:[%s1 + $0x1ef0] sm:$0xff]
  %v1135 = vld [vmem:[%s1 + $0x1ef8] sm:$0xff]
  %v1136 = vld [vmem:[%s1 + $0x1f00] sm:$0xff]
  %v1137 = vld [vmem:[%s1 + $0x1f08] sm:$0xff]
  %v1138 = vld [vmem:[%s1 + $0x1f10] sm:$0xff]
  %v1139 = vld [vmem:[%s1 + $0x1f18] sm:$0xff]
  %v1140 = vld [vmem:[%s1 + $0x1f20] sm:$0xff]
  %v1141 = vld [vmem:[%s1 + $0x1f28] sm:$0xff]
  %v1142 = vld [vmem:[%s1 + $0x1f30] sm:$0xff]
  %v1143 = vld [vmem:[%s1 + $0x1f38] sm:$0xff]
  %v1144 = vld [vmem:[%s1 + $0x1f40] sm:$0xff]
  %v1145 = vld [vmem:[%s1 + $0x1f48] sm:$0xff]
  %v1146 = vld [vmem:[%s1 + $0x1f50] sm:$0xff]
  %v1147 = vld [vmem:[%s1 + $0x1f58] sm:$0xff]
  %v1148 = vld [vmem:[%s1 + $0x1f60] sm:$0xff]
  %v1149 = vld [vmem:[%s1 + $0x1f68] sm:$0xff]
  %v1150 = vld [vmem:[%s1 + $0x1f70] sm:$0xff]
  %v1151 = vld [vmem:[%s1 + $0x1f78] sm:$0xff]
  %v1152 = vld [vmem:[%s1 + $0x1f80] sm:$0xff]
  %v1153 = vld [vmem:[%s1 + $0x1f88] sm:$0xff]
  %v1154 = vld [vmem:[%s1 + $0x1f90] sm:$0xff]
  %v1155 = vld [vmem:[%s1 + $0x1f98] sm:$0xff]
  %v1156 = vld [vmem:[%s1 + $0x1fa0] sm:$0xff]
  %v1157 = vld [vmem:[%s1 + $0x1fa8] sm:$0xff]
  %v1158 = vld [vmem:[%s1 + $0x1fb0] sm:$0xff]
  %v1159 = vld [vmem:[%s1 + $0x1fb8] sm:$0xff]
  %v1160 = vld [vmem:[%s1 + $0x1fc0] sm:$0xff]
  %v1161 = vld [vmem:[%s1 + $0x1fc8] sm:$0xff]
  %v1162 = vld [vmem:[%s1 + $0x1fd0] sm:$0xff]
  %v1163 = vld [vmem:[%s1 + $0x1fd8] sm:$0xff]
  %v1164 = vld [vmem:[%s1 + $0x1fe0] sm:$0xff]
  %v1165 = vld [vmem:[%s1 + $0x1fe8] sm:$0xff]
  %v1166 = vld [vmem:[%s1 + $0x1ff0] sm:$0xff]
  %v1167 = vld [vmem:[%s1 + $0x1ff8] sm:$0xff]
  %v1168 = vld [vmem:[%s2] sm:$0x3]
  %v1170 = vlaneseq
  %v1171 = vshrl.u32 %v1170, 7
  %v1172 = vsub.s32 0, %v1171
  %v1173 = vrot.slane %v1168, %v1172
  %v1174 = vlaneseq
  %v1175 = vshrl.u32 %v1174, 7
  %v1176 = vsub.s32 1, %v1175
  %v1177 = vrot.slane %v1168, %v1176
  %v1308 = vunpack.c.l.b16 %v16
  %v1309 = vunpack.c.h.b16 %v16
  %v1310 = vunpack.c.l.b16 %v17
  %v1311 = vunpack.c.h.b16 %v17
  %v1312 = vunpack.c.l.b16 %v18
  %v1313 = vunpack.c.h.b16 %v18
  %v1314 = vunpack.c.l.b16 %v19
  %v1315 = vunpack.c.h.b16 %v19
  %v1316 = vunpack.c.l.b16 %v20
  %v1317 = vunpack.c.h.b16 %v20
  %v1318 = vunpack.c.l.b16 %v21
  %v1319 = vunpack.c.h.b16 %v21
  %v1320 = vunpack.c.l.b16 %v22
  %v1321 = vunpack.c.h.b16 %v22
  %v1322 = vunpack.c.l.b16 %v23
  %v1323 = vunpack.c.h.b16 %v23
  %v1324 = vunpack.c.l.b16 %v24
  %v1325 = vunpack.c.h.b16 %v24
  %v1326 = vunpack.c.l.b16 %v25
  %v1327 = vunpack.c.h.b16 %v25
  %v1328 = vunpack.c.l.b16 %v26
  %v1329 = vunpack.c.h.b16 %v26
  %v1330 = vunpack.c.l.b16 %v27
  %v1331 = vunpack.c.h.b16 %v27
  %v1332 = vunpack.c.l.b16 %v28
  %v1333 = vunpack.c.h.b16 %v28
  %v1334 = vunpack.c.l.b16 %v29
  %v1335 = vunpack.c.h.b16 %v29
  %v1336 = vunpack.c.l.b16 %v30
  %v1337 = vunpack.c.h.b16 %v30
  %v1338 = vunpack.c.l.b16 %v31
  %v1339 = vunpack.c.h.b16 %v31
  %v1340 = vunpack.c.l.b16 %v32
  %v1341 = vunpack.c.h.b16 %v32
  %v1342 = vunpack.c.l.b16 %v33
  %v1343 = vunpack.c.h.b16 %v33
  %v1344 = vunpack.c.l.b16 %v34
  %v1345 = vunpack.c.h.b16 %v34
  %v1346 = vunpack.c.l.b16 %v35
  %v1347 = vunpack.c.h.b16 %v35
  %v1348 = vunpack.c.l.b16 %v36
  %v1349 = vunpack.c.h.b16 %v36
  %v1350 = vunpack.c.l.b16 %v37
  %v1351 = vunpack.c.h.b16 %v37
  %v1352 = vunpack.c.l.b16 %v38
  %v1353 = vunpack.c.h.b16 %v38
  %v1354 = vunpack.c.l.b16 %v39
  %v1355 = vunpack.c.h.b16 %v39
  %v1356 = vunpack.c.l.b16 %v40
  %v1357 = vunpack.c.h.b16 %v40
  %v1358 = vunpack.c.l.b16 %v41
  %v1359 = vunpack.c.h.b16 %v41
  %v1360 = vunpack.c.l.b16 %v42
  %v1361 = vunpack.c.h.b16 %v42
  %v1362 = vunpack.c.l.b16 %v43
  %v1363 = vunpack.c.h.b16 %v43
  %v1364 = vunpack.c.l.b16 %v44
  %v1365 = vunpack.c.h.b16 %v44
  %v1366 = vunpack.c.l.b16 %v45
  %v1367 = vunpack.c.h.b16 %v45
  %v1368 = vunpack.c.l.b16 %v46
  %v1369 = vunpack.c.h.b16 %v46
  %v1370 = vunpack.c.l.b16 %v47
  %v1371 = vunpack.c.h.b16 %v47
  %v1372 = vunpack.c.l.b16 %v48
  %v1373 = vunpack.c.h.b16 %v48
  %v1374 = vunpack.c.l.b16 %v49
  %v1375 = vunpack.c.h.b16 %v49
  %v1376 = vunpack.c.l.b16 %v50
  %v1377 = vunpack.c.h.b16 %v50
  %v1378 = vunpack.c.l.b16 %v51
  %v1379 = vunpack.c.h.b16 %v51
  %v1380 = vunpack.c.l.b16 %v52
  %v1381 = vunpack.c.h.b16 %v52
  %v1382 = vunpack.c.l.b16 %v53
  %v1383 = vunpack.c.h.b16 %v53
  %v1384 = vunpack.c.l.b16 %v54
  %v1385 = vunpack.c.h.b16 %v54
  %v1386 = vunpack.c.l.b16 %v55
  %v1387 = vunpack.c.h.b16 %v55
  %v1388 = vunpack.c.l.b16 %v56
  %v1389 = vunpack.c.h.b16 %v56
  %v1390 = vunpack.c.l.b16 %v57
  %v1391 = vunpack.c.h.b16 %v57
  %v1392 = vunpack.c.l.b16 %v58
  %v1393 = vunpack.c.h.b16 %v58
  %v1394 = vunpack.c.l.b16 %v59
  %v1395 = vunpack.c.h.b16 %v59
  %v1396 = vunpack.c.l.b16 %v60
  %v1397 = vunpack.c.h.b16 %v60
  %v1398 = vunpack.c.l.b16 %v61
  %v1399 = vunpack.c.h.b16 %v61
  %v1400 = vunpack.c.l.b16 %v62
  %v1401 = vunpack.c.h.b16 %v62
  %v1402 = vunpack.c.l.b16 %v63
  %v1403 = vunpack.c.h.b16 %v63
  %v1404 = vunpack.c.l.b16 %v64
  %v1405 = vunpack.c.h.b16 %v64
  %v1406 = vunpack.c.l.b16 %v65
  %v1407 = vunpack.c.h.b16 %v65
  %v1408 = vunpack.c.l.b16 %v66
  %v1409 = vunpack.c.h.b16 %v66
  %v1410 = vunpack.c.l.b16 %v67
  %v1411 = vunpack.c.h.b16 %v67
  %v1412 = vunpack.c.l.b16 %v68
  %v1413 = vunpack.c.h.b16 %v68
  %v1414 = vunpack.c.l.b16 %v69
  %v1415 = vunpack.c.h.b16 %v69
  %v1416 = vunpack.c.l.b16 %v70
  %v1417 = vunpack.c.h.b16 %v70
  %v1418 = vunpack.c.l.b16 %v71
  %v1419 = vunpack.c.h.b16 %v71
  %v1420 = vunpack.c.l.b16 %v72
  %v1421 = vunpack.c.h.b16 %v72
  %v1422 = vunpack.c.l.b16 %v73
  %v1423 = vunpack.c.h.b16 %v73
  %v1424 = vunpack.c.l.b16 %v74
  %v1425 = vunpack.c.h.b16 %v74
  %v1426 = vunpack.c.l.b16 %v75
  %v1427 = vunpack.c.h.b16 %v75
  %v1428 = vunpack.c.l.b16 %v76
  %v1429 = vunpack.c.h.b16 %v76
  %v1430 = vunpack.c.l.b16 %v77
  %v1431 = vunpack.c.h.b16 %v77
  %v1432 = vunpack.c.l.b16 %v78
  %v1433 = vunpack.c.h.b16 %v78
  %v1434 = vunpack.c.l.b16 %v79
  %v1435 = vunpack.c.h.b16 %v79
  %v1436 = vunpack.c.l.b16 %v80
  %v1437 = vunpack.c.h.b16 %v80
  %v1438 = vunpack.c.l.b16 %v81
  %v1439 = vunpack.c.h.b16 %v81
  %v1440 = vunpack.c.l.b16 %v82
  %v1441 = vunpack.c.h.b16 %v82
  %v1442 = vunpack.c.l.b16 %v83
  %v1443 = vunpack.c.h.b16 %v83
  %v1444 = vunpack.c.l.b16 %v84
  %v1445 = vunpack.c.h.b16 %v84
  %v1446 = vunpack.c.l.b16 %v85
  %v1447 = vunpack.c.h.b16 %v85
  %v1448 = vunpack.c.l.b16 %v86
  %v1449 = vunpack.c.h.b16 %v86
  %v1450 = vunpack.c.l.b16 %v87
  %v1451 = vunpack.c.h.b16 %v87
  %v1452 = vunpack.c.l.b16 %v88
  %v1453 = vunpack.c.h.b16 %v88
  %v1454 = vunpack.c.l.b16 %v89
  %v1455 = vunpack.c.h.b16 %v89
  %v1456 = vunpack.c.l.b16 %v90
  %v1457 = vunpack.c.h.b16 %v90
  %v1458 = vunpack.c.l.b16 %v91
  %v1459 = vunpack.c.h.b16 %v91
  %v1460 = vunpack.c.l.b16 %v92
  %v1461 = vunpack.c.h.b16 %v92
  %v1462 = vunpack.c.l.b16 %v93
  %v1463 = vunpack.c.h.b16 %v93
  %v1464 = vunpack.c.l.b16 %v94
  %v1465 = vunpack.c.h.b16 %v94
  %v1466 = vunpack.c.l.b16 %v95
  %v1467 = vunpack.c.h.b16 %v95
  %v1468 = vunpack.c.l.b16 %v96
  %v1469 = vunpack.c.h.b16 %v96
  %v1470 = vunpack.c.l.b16 %v97
  %v1471 = vunpack.c.h.b16 %v97
  %v1472 = vunpack.c.l.b16 %v98
  %v1473 = vunpack.c.h.b16 %v98
  %v1474 = vunpack.c.l.b16 %v99
  %v1475 = vunpack.c.h.b16 %v99
  %v1476 = vunpack.c.l.b16 %v100
  %v1477 = vunpack.c.h.b16 %v100
  %v1478 = vunpack.c.l.b16 %v101
  %v1479 = vunpack.c.h.b16 %v101
  %v1480 = vunpack.c.l.b16 %v102
  %v1481 = vunpack.c.h.b16 %v102
  %v1482 = vunpack.c.l.b16 %v103
  %v1483 = vunpack.c.h.b16 %v103
  %v1484 = vunpack.c.l.b16 %v104
  %v1485 = vunpack.c.h.b16 %v104
  %v1486 = vunpack.c.l.b16 %v105
  %v1487 = vunpack.c.h.b16 %v105
  %v1488 = vunpack.c.l.b16 %v106
  %v1489 = vunpack.c.h.b16 %v106
  %v1490 = vunpack.c.l.b16 %v107
  %v1491 = vunpack.c.h.b16 %v107
  %v1492 = vunpack.c.l.b16 %v108
  %v1493 = vunpack.c.h.b16 %v108
  %v1494 = vunpack.c.l.b16 %v109
  %v1495 = vunpack.c.h.b16 %v109
  %v1496 = vunpack.c.l.b16 %v110
  %v1497 = vunpack.c.h.b16 %v110
  %v1498 = vunpack.c.l.b16 %v111
  %v1499 = vunpack.c.h.b16 %v111
  %v1500 = vunpack.c.l.b16 %v112
  %v1501 = vunpack.c.h.b16 %v112
  %v1502 = vunpack.c.l.b16 %v113
  %v1503 = vunpack.c.h.b16 %v113
  %v1504 = vunpack.c.l.b16 %v114
  %v1505 = vunpack.c.h.b16 %v114
  %v1506 = vunpack.c.l.b16 %v115
  %v1507 = vunpack.c.h.b16 %v115
  %v1508 = vunpack.c.l.b16 %v116
  %v1509 = vunpack.c.h.b16 %v116
  %v1510 = vunpack.c.l.b16 %v117
  %v1511 = vunpack.c.h.b16 %v117
  %v1512 = vunpack.c.l.b16 %v118
  %v1513 = vunpack.c.h.b16 %v118
  %v1514 = vunpack.c.l.b16 %v119
  %v1515 = vunpack.c.h.b16 %v119
  %v1516 = vunpack.c.l.b16 %v120
  %v1517 = vunpack.c.h.b16 %v120
  %v1518 = vunpack.c.l.b16 %v121
  %v1519 = vunpack.c.h.b16 %v121
  %v1520 = vunpack.c.l.b16 %v122
  %v1521 = vunpack.c.h.b16 %v122
  %v1522 = vunpack.c.l.b16 %v123
  %v1523 = vunpack.c.h.b16 %v123
  %v1524 = vunpack.c.l.b16 %v124
  %v1525 = vunpack.c.h.b16 %v124
  %v1526 = vunpack.c.l.b16 %v125
  %v1527 = vunpack.c.h.b16 %v125
  %v1528 = vunpack.c.l.b16 %v126
  %v1529 = vunpack.c.h.b16 %v126
  %v1530 = vunpack.c.l.b16 %v127
  %v1531 = vunpack.c.h.b16 %v127
  %v1532 = vunpack.c.l.b16 %v128
  %v1533 = vunpack.c.h.b16 %v128
  %v1534 = vunpack.c.l.b16 %v129
  %v1535 = vunpack.c.h.b16 %v129
  %v1536 = vunpack.c.l.b16 %v130
  %v1537 = vunpack.c.h.b16 %v130
  %v1538 = vunpack.c.l.b16 %v131
  %v1539 = vunpack.c.h.b16 %v131
  %v1540 = vunpack.c.l.b16 %v132
  %v1541 = vunpack.c.h.b16 %v132
  %v1542 = vunpack.c.l.b16 %v133
  %v1543 = vunpack.c.h.b16 %v133
  %v1544 = vunpack.c.l.b16 %v134
  %v1545 = vunpack.c.h.b16 %v134
  %v1546 = vunpack.c.l.b16 %v135
  %v1547 = vunpack.c.h.b16 %v135
  %v1548 = vunpack.c.l.b16 %v136
  %v1549 = vunpack.c.h.b16 %v136
  %v1550 = vunpack.c.l.b16 %v137
  %v1551 = vunpack.c.h.b16 %v137
  %v1552 = vunpack.c.l.b16 %v138
  %v1553 = vunpack.c.h.b16 %v138
  %v1554 = vunpack.c.l.b16 %v139
  %v1555 = vunpack.c.h.b16 %v139
  %v1556 = vunpack.c.l.b16 %v140
  %v1557 = vunpack.c.h.b16 %v140
  %v1558 = vunpack.c.l.b16 %v141
  %v1559 = vunpack.c.h.b16 %v141
  %v1560 = vunpack.c.l.b16 %v142
  %v1561 = vunpack.c.h.b16 %v142
  %v1562 = vunpack.c.l.b16 %v143
  %v1563 = vunpack.c.h.b16 %v143
  %v1564 = vpack.c.b16 %v1372, %v1308
  %v1565 = vpack.c.b16 %v1373, %v1309
  %v1566 = vpack.c.b16 %v1374, %v1310
  %v1567 = vpack.c.b16 %v1375, %v1311
  %v1568 = vpack.c.b16 %v1376, %v1312
  %v1569 = vpack.c.b16 %v1377, %v1313
  %v1570 = vpack.c.b16 %v1378, %v1314
  %v1571 = vpack.c.b16 %v1379, %v1315
  %v1572 = vpack.c.b16 %v1380, %v1316
  %v1573 = vpack.c.b16 %v1381, %v1317
  %v1574 = vpack.c.b16 %v1382, %v1318
  %v1575 = vpack.c.b16 %v1383, %v1319
  %v1576 = vpack.c.b16 %v1384, %v1320
  %v1577 = vpack.c.b16 %v1385, %v1321
  %v1578 = vpack.c.b16 %v1386, %v1322
  %v1579 = vpack.c.b16 %v1387, %v1323
  %v1580 = vpack.c.b16 %v1388, %v1324
  %v1581 = vpack.c.b16 %v1389, %v1325
  %v1582 = vpack.c.b16 %v1390, %v1326
  %v1583 = vpack.c.b16 %v1391, %v1327
  %v1584 = vpack.c.b16 %v1392, %v1328
  %v1585 = vpack.c.b16 %v1393, %v1329
  %v1586 = vpack.c.b16 %v1394, %v1330
  %v1587 = vpack.c.b16 %v1395, %v1331
  %v1588 = vpack.c.b16 %v1396, %v1332
  %v1589 = vpack.c.b16 %v1397, %v1333
  %v1590 = vpack.c.b16 %v1398, %v1334
  %v1591 = vpack.c.b16 %v1399, %v1335
  %v1592 = vpack.c.b16 %v1400, %v1336
  %v1593 = vpack.c.b16 %v1401, %v1337
  %v1594 = vpack.c.b16 %v1402, %v1338
  %v1595 = vpack.c.b16 %v1403, %v1339
  %v1596 = vpack.c.b16 %v1404, %v1340
  %v1597 = vpack.c.b16 %v1405, %v1341
  %v1598 = vpack.c.b16 %v1406, %v1342
  %v1599 = vpack.c.b16 %v1407, %v1343
  %v1600 = vpack.c.b16 %v1408, %v1344
  %v1601 = vpack.c.b16 %v1409, %v1345
  %v1602 = vpack.c.b16 %v1410, %v1346
  %v1603 = vpack.c.b16 %v1411, %v1347
  %v1604 = vpack.c.b16 %v1412, %v1348
  %v1605 = vpack.c.b16 %v1413, %v1349
  %v1606 = vpack.c.b16 %v1414, %v1350
  %v1607 = vpack.c.b16 %v1415, %v1351
  %v1608 = vpack.c.b16 %v1416, %v1352
  %v1609 = vpack.c.b16 %v1417, %v1353
  %v1610 = vpack.c.b16 %v1418, %v1354
  %v1611 = vpack.c.b16 %v1419, %v1355
  %v1612 = vpack.c.b16 %v1420, %v1356
  %v1613 = vpack.c.b16 %v1421, %v1357
  %v1614 = vpack.c.b16 %v1422, %v1358
  %v1615 = vpack.c.b16 %v1423, %v1359
  %v1616 = vpack.c.b16 %v1424, %v1360
  %v1617 = vpack.c.b16 %v1425, %v1361
  %v1618 = vpack.c.b16 %v1426, %v1362
  %v1619 = vpack.c.b16 %v1427, %v1363
  %v1620 = vpack.c.b16 %v1428, %v1364
  %v1621 = vpack.c.b16 %v1429, %v1365
  %v1622 = vpack.c.b16 %v1430, %v1366
  %v1623 = vpack.c.b16 %v1431, %v1367
  %v1624 = vpack.c.b16 %v1432, %v1368
  %v1625 = vpack.c.b16 %v1433, %v1369
  %v1626 = vpack.c.b16 %v1434, %v1370
  %v1627 = vpack.c.b16 %v1435, %v1371
  %v1628 = vpack.c.b16 %v1500, %v1436
  %v1629 = vpack.c.b16 %v1501, %v1437
  %v1630 = vpack.c.b16 %v1502, %v1438
  %v1631 = vpack.c.b16 %v1503, %v1439
  %v1632 = vpack.c.b16 %v1504, %v1440
  %v1633 = vpack.c.b16 %v1505, %v1441
  %v1634 = vpack.c.b16 %v1506, %v1442
  %v1635 = vpack.c.b16 %v1507, %v1443
  %v1636 = vpack.c.b16 %v1508, %v1444
  %v1637 = vpack.c.b16 %v1509, %v1445
  %v1638 = vpack.c.b16 %v1510, %v1446
  %v1639 = vpack.c.b16 %v1511, %v1447
  %v1640 = vpack.c.b16 %v1512, %v1448
  %v1641 = vpack.c.b16 %v1513, %v1449
  %v1642 = vpack.c.b16 %v1514, %v1450
  %v1643 = vpack.c.b16 %v1515, %v1451
  %v1644 = vpack.c.b16 %v1516, %v1452
  %v1645 = vpack.c.b16 %v1517, %v1453
  %v1646 = vpack.c.b16 %v1518, %v1454
  %v1647 = vpack.c.b16 %v1519, %v1455
  %v1648 = vpack.c.b16 %v1520, %v1456
  %v1649 = vpack.c.b16 %v1521, %v1457
  %v1650 = vpack.c.b16 %v1522, %v1458
  %v1651 = vpack.c.b16 %v1523, %v1459
  %v1652 = vpack.c.b16 %v1524, %v1460
  %v1653 = vpack.c.b16 %v1525, %v1461
  %v1654 = vpack.c.b16 %v1526, %v1462
  %v1655 = vpack.c.b16 %v1527, %v1463
  %v1656 = vpack.c.b16 %v1528, %v1464
  %v1657 = vpack.c.b16 %v1529, %v1465
  %v1658 = vpack.c.b16 %v1530, %v1466
  %v1659 = vpack.c.b16 %v1531, %v1467
  %v1660 = vpack.c.b16 %v1532, %v1468
  %v1661 = vpack.c.b16 %v1533, %v1469
  %v1662 = vpack.c.b16 %v1534, %v1470
  %v1663 = vpack.c.b16 %v1535, %v1471
  %v1664 = vpack.c.b16 %v1536, %v1472
  %v1665 = vpack.c.b16 %v1537, %v1473
  %v1666 = vpack.c.b16 %v1538, %v1474
  %v1667 = vpack.c.b16 %v1539, %v1475
  %v1668 = vpack.c.b16 %v1540, %v1476
  %v1669 = vpack.c.b16 %v1541, %v1477
  %v1670 = vpack.c.b16 %v1542, %v1478
  %v1671 = vpack.c.b16 %v1543, %v1479
  %v1672 = vpack.c.b16 %v1544, %v1480
  %v1673 = vpack.c.b16 %v1545, %v1481
  %v1674 = vpack.c.b16 %v1546, %v1482
  %v1675 = vpack.c.b16 %v1547, %v1483
  %v1676 = vpack.c.b16 %v1548, %v1484
  %v1677 = vpack.c.b16 %v1549, %v1485
  %v1678 = vpack.c.b16 %v1550, %v1486
  %v1679 = vpack.c.b16 %v1551, %v1487
  %v1680 = vpack.c.b16 %v1552, %v1488
  %v1681 = vpack.c.b16 %v1553, %v1489
  %v1682 = vpack.c.b16 %v1554, %v1490
  %v1683 = vpack.c.b16 %v1555, %v1491
  %v1684 = vpack.c.b16 %v1556, %v1492
  %v1685 = vpack.c.b16 %v1557, %v1493
  %v1686 = vpack.c.b16 %v1558, %v1494
  %v1687 = vpack.c.b16 %v1559, %v1495
  %v1688 = vpack.c.b16 %v1560, %v1496
  %v1689 = vpack.c.b16 %v1561, %v1497
  %v1690 = vpack.c.b16 %v1562, %v1498
  %v1691 = vpack.c.b16 %v1563, %v1499
  %v2844 = vunpack.c.l.b16 %v144
  %v2845 = vunpack.c.h.b16 %v144
  %v2846 = vunpack.c.l.b16 %v145
  %v2847 = vunpack.c.h.b16 %v145
  %v2848 = vunpack.c.l.b16 %v146
  %v2849 = vunpack.c.h.b16 %v146
  %v2850 = vunpack.c.l.b16 %v147
  %v2851 = vunpack.c.h.b16 %v147
  %v2852 = vunpack.c.l.b16 %v148
  %v2853 = vunpack.c.h.b16 %v148
  %v2854 = vunpack.c.l.b16 %v149
  %v2855 = vunpack.c.h.b16 %v149
  %v2856 = vunpack.c.l.b16 %v150
  %v2857 = vunpack.c.h.b16 %v150
  %v2858 = vunpack.c.l.b16 %v151
  %v2859 = vunpack.c.h.b16 %v151
  %v2860 = vunpack.c.l.b16 %v152
  %v2861 = vunpack.c.h.b16 %v152
  %v2862 = vunpack.c.l.b16 %v153
  %v2863 = vunpack.c.h.b16 %v153
  %v2864 = vunpack.c.l.b16 %v154
  %v2865 = vunpack.c.h.b16 %v154
  %v2866 = vunpack.c.l.b16 %v155
  %v2867 = vunpack.c.h.b16 %v155
  %v2868 = vunpack.c.l.b16 %v156
  %v2869 = vunpack.c.h.b16 %v156
  %v2870 = vunpack.c.l.b16 %v157
  %v2871 = vunpack.c.h.b16 %v157
  %v2872 = vunpack.c.l.b16 %v158
  %v2873 = vunpack.c.h.b16 %v158
  %v2874 = vunpack.c.l.b16 %v159
  %v2875 = vunpack.c.h.b16 %v159
  %v2876 = vunpack.c.l.b16 %v160
  %v2877 = vunpack.c.h.b16 %v160
  %v2878 = vunpack.c.l.b16 %v161
  %v2879 = vunpack.c.h.b16 %v161
  %v2880 = vunpack.c.l.b16 %v162
  %v2881 = vunpack.c.h.b16 %v162
  %v2882 = vunpack.c.l.b16 %v163
  %v2883 = vunpack.c.h.b16 %v163
  %v2884 = vunpack.c.l.b16 %v164
  %v2885 = vunpack.c.h.b16 %v164
  %v2886 = vunpack.c.l.b16 %v165
  %v2887 = vunpack.c.h.b16 %v165
  %v2888 = vunpack.c.l.b16 %v166
  %v2889 = vunpack.c.h.b16 %v166
  %v2890 = vunpack.c.l.b16 %v167
  %v2891 = vunpack.c.h.b16 %v167
  %v2892 = vunpack.c.l.b16 %v168
  %v2893 = vunpack.c.h.b16 %v168
  %v2894 = vunpack.c.l.b16 %v169
  %v2895 = vunpack.c.h.b16 %v169
  %v2896 = vunpack.c.l.b16 %v170
  %v2897 = vunpack.c.h.b16 %v170
  %v2898 = vunpack.c.l.b16 %v171
  %v2899 = vunpack.c.h.b16 %v171
  %v2900 = vunpack.c.l.b16 %v172
  %v2901 = vunpack.c.h.b16 %v172
  %v2902 = vunpack.c.l.b16 %v173
  %v2903 = vunpack.c.h.b16 %v173
  %v2904 = vunpack.c.l.b16 %v174
  %v2905 = vunpack.c.h.b16 %v174
  %v2906 = vunpack.c.l.b16 %v175
  %v2907 = vunpack.c.h.b16 %v175
  %v2908 = vunpack.c.l.b16 %v176
  %v2909 = vunpack.c.h.b16 %v176
  %v2910 = vunpack.c.l.b16 %v177
  %v2911 = vunpack.c.h.b16 %v177
  %v2912 = vunpack.c.l.b16 %v178
  %v2913 = vunpack.c.h.b16 %v178
  %v2914 = vunpack.c.l.b16 %v179
  %v2915 = vunpack.c.h.b16 %v179
  %v2916 = vunpack.c.l.b16 %v180
  %v2917 = vunpack.c.h.b16 %v180
  %v2918 = vunpack.c.l.b16 %v181
  %v2919 = vunpack.c.h.b16 %v181
  %v2920 = vunpack.c.l.b16 %v182
  %v2921 = vunpack.c.h.b16 %v182
  %v2922 = vunpack.c.l.b16 %v183
  %v2923 = vunpack.c.h.b16 %v183
  %v2924 = vunpack.c.l.b16 %v184
  %v2925 = vunpack.c.h.b16 %v184
  %v2926 = vunpack.c.l.b16 %v185
  %v2927 = vunpack.c.h.b16 %v185
  %v2928 = vunpack.c.l.b16 %v186
  %v2929 = vunpack.c.h.b16 %v186
  %v2930 = vunpack.c.l.b16 %v187
  %v2931 = vunpack.c.h.b16 %v187
  %v2932 = vunpack.c.l.b16 %v188
  %v2933 = vunpack.c.h.b16 %v188
  %v2934 = vunpack.c.l.b16 %v189
  %v2935 = vunpack.c.h.b16 %v189
  %v2936 = vunpack.c.l.b16 %v190
  %v2937 = vunpack.c.h.b16 %v190
  %v2938 = vunpack.c.l.b16 %v191
  %v2939 = vunpack.c.h.b16 %v191
  %v2940 = vunpack.c.l.b16 %v192
  %v2941 = vunpack.c.h.b16 %v192
  %v2942 = vunpack.c.l.b16 %v193
  %v2943 = vunpack.c.h.b16 %v193
  %v2944 = vunpack.c.l.b16 %v194
  %v2945 = vunpack.c.h.b16 %v194
  %v2946 = vunpack.c.l.b16 %v195
  %v2947 = vunpack.c.h.b16 %v195
  %v2948 = vunpack.c.l.b16 %v196
  %v2949 = vunpack.c.h.b16 %v196
  %v2950 = vunpack.c.l.b16 %v197
  %v2951 = vunpack.c.h.b16 %v197
  %v2952 = vunpack.c.l.b16 %v198
  %v2953 = vunpack.c.h.b16 %v198
  %v2954 = vunpack.c.l.b16 %v199
  %v2955 = vunpack.c.h.b16 %v199
  %v2956 = vunpack.c.l.b16 %v200
  %v2957 = vunpack.c.h.b16 %v200
  %v2958 = vunpack.c.l.b16 %v201
  %v2959 = vunpack.c.h.b16 %v201
  %v2960 = vunpack.c.l.b16 %v202
  %v2961 = vunpack.c.h.b16 %v202
  %v2962 = vunpack.c.l.b16 %v203
  %v2963 = vunpack.c.h.b16 %v203
  %v2964 = vunpack.c.l.b16 %v204
  %v2965 = vunpack.c.h.b16 %v204
  %v2966 = vunpack.c.l.b16 %v205
  %v2967 = vunpack.c.h.b16 %v205
  %v2968 = vunpack.c.l.b16 %v206
  %v2969 = vunpack.c.h.b16 %v206
  %v2970 = vunpack.c.l.b16 %v207
  %v2971 = vunpack.c.h.b16 %v207
  %v2972 = vunpack.c.l.b16 %v208
  %v2973 = vunpack.c.h.b16 %v208
  %v2974 = vunpack.c.l.b16 %v209
  %v2975 = vunpack.c.h.b16 %v209
  %v2976 = vunpack.c.l.b16 %v210
  %v2977 = vunpack.c.h.b16 %v210
  %v2978 = vunpack.c.l.b16 %v211
  %v2979 = vunpack.c.h.b16 %v211
  %v2980 = vunpack.c.l.b16 %v212
  %v2981 = vunpack.c.h.b16 %v212
  %v2982 = vunpack.c.l.b16 %v213
  %v2983 = vunpack.c.h.b16 %v213
  %v2984 = vunpack.c.l.b16 %v214
  %v2985 = vunpack.c.h.b16 %v214
  %v2986 = vunpack.c.l.b16 %v215
  %v2987 = vunpack.c.h.b16 %v215
  %v2988 = vunpack.c.l.b16 %v216
  %v2989 = vunpack.c.h.b16 %v216
  %v2990 = vunpack.c.l.b16 %v217
  %v2991 = vunpack.c.h.b16 %v217
  %v2992 = vunpack.c.l.b16 %v218
  %v2993 = vunpack.c.h.b16 %v218
  %v2994 = vunpack.c.l.b16 %v219
  %v2995 = vunpack.c.h.b16 %v219
  %v2996 = vunpack.c.l.b16 %v220
  %v2997 = vunpack.c.h.b16 %v220
  %v2998 = vunpack.c.l.b16 %v221
  %v2999 = vunpack.c.h.b16 %v221
  %v3000 = vunpack.c.l.b16 %v222
  %v3001 = vunpack.c.h.b16 %v222
  %v3002 = vunpack.c.l.b16 %v223
  %v3003 = vunpack.c.h.b16 %v223
  %v3004 = vunpack.c.l.b16 %v224
  %v3005 = vunpack.c.h.b16 %v224
  %v3006 = vunpack.c.l.b16 %v225
  %v3007 = vunpack.c.h.b16 %v225
  %v3008 = vunpack.c.l.b16 %v226
  %v3009 = vunpack.c.h.b16 %v226
  %v3010 = vunpack.c.l.b16 %v227
  %v3011 = vunpack.c.h.b16 %v227
  %v3012 = vunpack.c.l.b16 %v228
  %v3013 = vunpack.c.h.b16 %v228
  %v3014 = vunpack.c.l.b16 %v229
  %v3015 = vunpack.c.h.b16 %v229
  %v3016 = vunpack.c.l.b16 %v230
  %v3017 = vunpack.c.h.b16 %v230
  %v3018 = vunpack.c.l.b16 %v231
  %v3019 = vunpack.c.h.b16 %v231
  %v3020 = vunpack.c.l.b16 %v232
  %v3021 = vunpack.c.h.b16 %v232
  %v3022 = vunpack.c.l.b16 %v233
  %v3023 = vunpack.c.h.b16 %v233
  %v3024 = vunpack.c.l.b16 %v234
  %v3025 = vunpack.c.h.b16 %v234
  %v3026 = vunpack.c.l.b16 %v235
  %v3027 = vunpack.c.h.b16 %v235
  %v3028 = vunpack.c.l.b16 %v236
  %v3029 = vunpack.c.h.b16 %v236
  %v3030 = vunpack.c.l.b16 %v237
  %v3031 = vunpack.c.h.b16 %v237
  %v3032 = vunpack.c.l.b16 %v238
  %v3033 = vunpack.c.h.b16 %v238
  %v3034 = vunpack.c.l.b16 %v239
  %v3035 = vunpack.c.h.b16 %v239
  %v3036 = vunpack.c.l.b16 %v240
  %v3037 = vunpack.c.h.b16 %v240
  %v3038 = vunpack.c.l.b16 %v241
  %v3039 = vunpack.c.h.b16 %v241
  %v3040 = vunpack.c.l.b16 %v242
  %v3041 = vunpack.c.h.b16 %v242
  %v3042 = vunpack.c.l.b16 %v243
  %v3043 = vunpack.c.h.b16 %v243
  %v3044 = vunpack.c.l.b16 %v244
  %v3045 = vunpack.c.h.b16 %v244
  %v3046 = vunpack.c.l.b16 %v245
  %v3047 = vunpack.c.h.b16 %v245
  %v3048 = vunpack.c.l.b16 %v246
  %v3049 = vunpack.c.h.b16 %v246
  %v3050 = vunpack.c.l.b16 %v247
  %v3051 = vunpack.c.h.b16 %v247
  %v3052 = vunpack.c.l.b16 %v248
  %v3053 = vunpack.c.h.b16 %v248
  %v3054 = vunpack.c.l.b16 %v249
  %v3055 = vunpack.c.h.b16 %v249
  %v3056 = vunpack.c.l.b16 %v250
  %v3057 = vunpack.c.h.b16 %v250
  %v3058 = vunpack.c.l.b16 %v251
  %v3059 = vunpack.c.h.b16 %v251
  %v3060 = vunpack.c.l.b16 %v252
  %v3061 = vunpack.c.h.b16 %v252
  %v3062 = vunpack.c.l.b16 %v253
  %v3063 = vunpack.c.h.b16 %v253
  %v3064 = vunpack.c.l.b16 %v254
  %v3065 = vunpack.c.h.b16 %v254
  %v3066 = vunpack.c.l.b16 %v255
  %v3067 = vunpack.c.h.b16 %v255
  %v3068 = vunpack.c.l.b16 %v256
  %v3069 = vunpack.c.h.b16 %v256
  %v3070 = vunpack.c.l.b16 %v257
  %v3071 = vunpack.c.h.b16 %v257
  %v3072 = vunpack.c.l.b16 %v258
  %v3073 = vunpack.c.h.b16 %v258
  %v3074 = vunpack.c.l.b16 %v259
  %v3075 = vunpack.c.h.b16 %v259
  %v3076 = vunpack.c.l.b16 %v260
  %v3077 = vunpack.c.h.b16 %v260
  %v3078 = vunpack.c.l.b16 %v261
  %v3079 = vunpack.c.h.b16 %v261
  %v3080 = vunpack.c.l.b16 %v262
  %v3081 = vunpack.c.h.b16 %v262
  %v3082 = vunpack.c.l.b16 %v263
  %v3083 = vunpack.c.h.b16 %v263
  %v3084 = vunpack.c.l.b16 %v264
  %v3085 = vunpack.c.h.b16 %v264
  %v3086 = vunpack.c.l.b16 %v265
  %v3087 = vunpack.c.h.b16 %v265
  %v3088 = vunpack.c.l.b16 %v266
  %v3089 = vunpack.c.h.b16 %v266
  %v3090 = vunpack.c.l.b16 %v267
  %v3091 = vunpack.c.h.b16 %v267
  %v3092 = vunpack.c.l.b16 %v268
  %v3093 = vunpack.c.h.b16 %v268
  %v3094 = vunpack.c.l.b16 %v269
  %v3095 = vunpack.c.h.b16 %v269
  %v3096 = vunpack.c.l.b16 %v270
  %v3097 = vunpack.c.h.b16 %v270
  %v3098 = vunpack.c.l.b16 %v271
  %v3099 = vunpack.c.h.b16 %v271
  %v3100 = vunpack.c.l.b16 %v272
  %v3101 = vunpack.c.h.b16 %v272
  %v3102 = vunpack.c.l.b16 %v273
  %v3103 = vunpack.c.h.b16 %v273
  %v3104 = vunpack.c.l.b16 %v274
  %v3105 = vunpack.c.h.b16 %v274
  %v3106 = vunpack.c.l.b16 %v275
  %v3107 = vunpack.c.h.b16 %v275
  %v3108 = vunpack.c.l.b16 %v276
  %v3109 = vunpack.c.h.b16 %v276
  %v3110 = vunpack.c.l.b16 %v277
  %v3111 = vunpack.c.h.b16 %v277
  %v3112 = vunpack.c.l.b16 %v278
  %v3113 = vunpack.c.h.b16 %v278
  %v3114 = vunpack.c.l.b16 %v279
  %v3115 = vunpack.c.h.b16 %v279
  %v3116 = vunpack.c.l.b16 %v280
  %v3117 = vunpack.c.h.b16 %v280
  %v3118 = vunpack.c.l.b16 %v281
  %v3119 = vunpack.c.h.b16 %v281
  %v3120 = vunpack.c.l.b16 %v282
  %v3121 = vunpack.c.h.b16 %v282
  %v3122 = vunpack.c.l.b16 %v283
  %v3123 = vunpack.c.h.b16 %v283
  %v3124 = vunpack.c.l.b16 %v284
  %v3125 = vunpack.c.h.b16 %v284
  %v3126 = vunpack.c.l.b16 %v285
  %v3127 = vunpack.c.h.b16 %v285
  %v3128 = vunpack.c.l.b16 %v286
  %v3129 = vunpack.c.h.b16 %v286
  %v3130 = vunpack.c.l.b16 %v287
  %v3131 = vunpack.c.h.b16 %v287
  %v3132 = vunpack.c.l.b16 %v288
  %v3133 = vunpack.c.h.b16 %v288
  %v3134 = vunpack.c.l.b16 %v289
  %v3135 = vunpack.c.h.b16 %v289
  %v3136 = vunpack.c.l.b16 %v290
  %v3137 = vunpack.c.h.b16 %v290
  %v3138 = vunpack.c.l.b16 %v291
  %v3139 = vunpack.c.h.b16 %v291
  %v3140 = vunpack.c.l.b16 %v292
  %v3141 = vunpack.c.h.b16 %v292
  %v3142 = vunpack.c.l.b16 %v293
  %v3143 = vunpack.c.h.b16 %v293
  %v3144 = vunpack.c.l.b16 %v294
  %v3145 = vunpack.c.h.b16 %v294
  %v3146 = vunpack.c.l.b16 %v295
  %v3147 = vunpack.c.h.b16 %v295
  %v3148 = vunpack.c.l.b16 %v296
  %v3149 = vunpack.c.h.b16 %v296
  %v3150 = vunpack.c.l.b16 %v297
  %v3151 = vunpack.c.h.b16 %v297
  %v3152 = vunpack.c.l.b16 %v298
  %v3153 = vunpack.c.h.b16 %v298
  %v3154 = vunpack.c.l.b16 %v299
  %v3155 = vunpack.c.h.b16 %v299
  %v3156 = vunpack.c.l.b16 %v300
  %v3157 = vunpack.c.h.b16 %v300
  %v3158 = vunpack.c.l.b16 %v301
  %v3159 = vunpack.c.h.b16 %v301
  %v3160 = vunpack.c.l.b16 %v302
  %v3161 = vunpack.c.h.b16 %v302
  %v3162 = vunpack.c.l.b16 %v303
  %v3163 = vunpack.c.h.b16 %v303
  %v3164 = vunpack.c.l.b16 %v304
  %v3165 = vunpack.c.h.b16 %v304
  %v3166 = vunpack.c.l.b16 %v305
  %v3167 = vunpack.c.h.b16 %v305
  %v3168 = vunpack.c.l.b16 %v306
  %v3169 = vunpack.c.h.b16 %v306
  %v3170 = vunpack.c.l.b16 %v307
  %v3171 = vunpack.c.h.b16 %v307
  %v3172 = vunpack.c.l.b16 %v308
  %v3173 = vunpack.c.h.b16 %v308
  %v3174 = vunpack.c.l.b16 %v309
  %v3175 = vunpack.c.h.b16 %v309
  %v3176 = vunpack.c.l.b16 %v310
  %v3177 = vunpack.c.h.b16 %v310
  %v3178 = vunpack.c.l.b16 %v311
  %v3179 = vunpack.c.h.b16 %v311
  %v3180 = vunpack.c.l.b16 %v312
  %v3181 = vunpack.c.h.b16 %v312
  %v3182 = vunpack.c.l.b16 %v313
  %v3183 = vunpack.c.h.b16 %v313
  %v3184 = vunpack.c.l.b16 %v314
  %v3185 = vunpack.c.h.b16 %v314
  %v3186 = vunpack.c.l.b16 %v315
  %v3187 = vunpack.c.h.b16 %v315
  %v3188 = vunpack.c.l.b16 %v316
  %v3189 = vunpack.c.h.b16 %v316
  %v3190 = vunpack.c.l.b16 %v317
  %v3191 = vunpack.c.h.b16 %v317
  %v3192 = vunpack.c.l.b16 %v318
  %v3193 = vunpack.c.h.b16 %v318
  %v3194 = vunpack.c.l.b16 %v319
  %v3195 = vunpack.c.h.b16 %v319
  %v3196 = vunpack.c.l.b16 %v320
  %v3197 = vunpack.c.h.b16 %v320
  %v3198 = vunpack.c.l.b16 %v321
  %v3199 = vunpack.c.h.b16 %v321
  %v3200 = vunpack.c.l.b16 %v322
  %v3201 = vunpack.c.h.b16 %v322
  %v3202 = vunpack.c.l.b16 %v323
  %v3203 = vunpack.c.h.b16 %v323
  %v3204 = vunpack.c.l.b16 %v324
  %v3205 = vunpack.c.h.b16 %v324
  %v3206 = vunpack.c.l.b16 %v325
  %v3207 = vunpack.c.h.b16 %v325
  %v3208 = vunpack.c.l.b16 %v326
  %v3209 = vunpack.c.h.b16 %v326
  %v3210 = vunpack.c.l.b16 %v327
  %v3211 = vunpack.c.h.b16 %v327
  %v3212 = vunpack.c.l.b16 %v328
  %v3213 = vunpack.c.h.b16 %v328
  %v3214 = vunpack.c.l.b16 %v329
  %v3215 = vunpack.c.h.b16 %v329
  %v3216 = vunpack.c.l.b16 %v330
  %v3217 = vunpack.c.h.b16 %v330
  %v3218 = vunpack.c.l.b16 %v331
  %v3219 = vunpack.c.h.b16 %v331
  %v3220 = vunpack.c.l.b16 %v332
  %v3221 = vunpack.c.h.b16 %v332
  %v3222 = vunpack.c.l.b16 %v333
  %v3223 = vunpack.c.h.b16 %v333
  %v3224 = vunpack.c.l.b16 %v334
  %v3225 = vunpack.c.h.b16 %v334
  %v3226 = vunpack.c.l.b16 %v335
  %v3227 = vunpack.c.h.b16 %v335
  %v3228 = vunpack.c.l.b16 %v336
  %v3229 = vunpack.c.h.b16 %v336
  %v3230 = vunpack.c.l.b16 %v337
  %v3231 = vunpack.c.h.b16 %v337
  %v3232 = vunpack.c.l.b16 %v338
  %v3233 = vunpack.c.h.b16 %v338
  %v3234 = vunpack.c.l.b16 %v339
  %v3235 = vunpack.c.h.b16 %v339
  %v3236 = vunpack.c.l.b16 %v340
  %v3237 = vunpack.c.h.b16 %v340
  %v3238 = vunpack.c.l.b16 %v341
  %v3239 = vunpack.c.h.b16 %v341
  %v3240 = vunpack.c.l.b16 %v342
  %v3241 = vunpack.c.h.b16 %v342
  %v3242 = vunpack.c.l.b16 %v343
  %v3243 = vunpack.c.h.b16 %v343
  %v3244 = vunpack.c.l.b16 %v344
  %v3245 = vunpack.c.h.b16 %v344
  %v3246 = vunpack.c.l.b16 %v345
  %v3247 = vunpack.c.h.b16 %v345
  %v3248 = vunpack.c.l.b16 %v346
  %v3249 = vunpack.c.h.b16 %v346
  %v3250 = vunpack.c.l.b16 %v347
  %v3251 = vunpack.c.h.b16 %v347
  %v3252 = vunpack.c.l.b16 %v348
  %v3253 = vunpack.c.h.b16 %v348
  %v3254 = vunpack.c.l.b16 %v349
  %v3255 = vunpack.c.h.b16 %v349
  %v3256 = vunpack.c.l.b16 %v350
  %v3257 = vunpack.c.h.b16 %v350
  %v3258 = vunpack.c.l.b16 %v351
  %v3259 = vunpack.c.h.b16 %v351
  %v3260 = vunpack.c.l.b16 %v352
  %v3261 = vunpack.c.h.b16 %v352
  %v3262 = vunpack.c.l.b16 %v353
  %v3263 = vunpack.c.h.b16 %v353
  %v3264 = vunpack.c.l.b16 %v354
  %v3265 = vunpack.c.h.b16 %v354
  %v3266 = vunpack.c.l.b16 %v355
  %v3267 = vunpack.c.h.b16 %v355
  %v3268 = vunpack.c.l.b16 %v356
  %v3269 = vunpack.c.h.b16 %v356
  %v3270 = vunpack.c.l.b16 %v357
  %v3271 = vunpack.c.h.b16 %v357
  %v3272 = vunpack.c.l.b16 %v358
  %v3273 = vunpack.c.h.b16 %v358
  %v3274 = vunpack.c.l.b16 %v359
  %v3275 = vunpack.c.h.b16 %v359
  %v3276 = vunpack.c.l.b16 %v360
  %v3277 = vunpack.c.h.b16 %v360
  %v3278 = vunpack.c.l.b16 %v361
  %v3279 = vunpack.c.h.b16 %v361
  %v3280 = vunpack.c.l.b16 %v362
  %v3281 = vunpack.c.h.b16 %v362
  %v3282 = vunpack.c.l.b16 %v363
  %v3283 = vunpack.c.h.b16 %v363
  %v3284 = vunpack.c.l.b16 %v364
  %v3285 = vunpack.c.h.b16 %v364
  %v3286 = vunpack.c.l.b16 %v365
  %v3287 = vunpack.c.h.b16 %v365
  %v3288 = vunpack.c.l.b16 %v366
  %v3289 = vunpack.c.h.b16 %v366
  %v3290 = vunpack.c.l.b16 %v367
  %v3291 = vunpack.c.h.b16 %v367
  %v3292 = vunpack.c.l.b16 %v368
  %v3293 = vunpack.c.h.b16 %v368
  %v3294 = vunpack.c.l.b16 %v369
  %v3295 = vunpack.c.h.b16 %v369
  %v3296 = vunpack.c.l.b16 %v370
  %v3297 = vunpack.c.h.b16 %v370
  %v3298 = vunpack.c.l.b16 %v371
  %v3299 = vunpack.c.h.b16 %v371
  %v3300 = vunpack.c.l.b16 %v372
  %v3301 = vunpack.c.h.b16 %v372
  %v3302 = vunpack.c.l.b16 %v373
  %v3303 = vunpack.c.h.b16 %v373
  %v3304 = vunpack.c.l.b16 %v374
  %v3305 = vunpack.c.h.b16 %v374
  %v3306 = vunpack.c.l.b16 %v375
  %v3307 = vunpack.c.h.b16 %v375
  %v3308 = vunpack.c.l.b16 %v376
  %v3309 = vunpack.c.h.b16 %v376
  %v3310 = vunpack.c.l.b16 %v377
  %v3311 = vunpack.c.h.b16 %v377
  %v3312 = vunpack.c.l.b16 %v378
  %v3313 = vunpack.c.h.b16 %v378
  %v3314 = vunpack.c.l.b16 %v379
  %v3315 = vunpack.c.h.b16 %v379
  %v3316 = vunpack.c.l.b16 %v380
  %v3317 = vunpack.c.h.b16 %v380
  %v3318 = vunpack.c.l.b16 %v381
  %v3319 = vunpack.c.h.b16 %v381
  %v3320 = vunpack.c.l.b16 %v382
  %v3321 = vunpack.c.h.b16 %v382
  %v3322 = vunpack.c.l.b16 %v383
  %v3323 = vunpack.c.h.b16 %v383
  %v3324 = vunpack.c.l.b16 %v384
  %v3325 = vunpack.c.h.b16 %v384
  %v3326 = vunpack.c.l.b16 %v385
  %v3327 = vunpack.c.h.b16 %v385
  %v3328 = vunpack.c.l.b16 %v386
  %v3329 = vunpack.c.h.b16 %v386
  %v3330 = vunpack.c.l.b16 %v387
  %v3331 = vunpack.c.h.b16 %v387
  %v3332 = vunpack.c.l.b16 %v388
  %v3333 = vunpack.c.h.b16 %v388
  %v3334 = vunpack.c.l.b16 %v389
  %v3335 = vunpack.c.h.b16 %v389
  %v3336 = vunpack.c.l.b16 %v390
  %v3337 = vunpack.c.h.b16 %v390
  %v3338 = vunpack.c.l.b16 %v391
  %v3339 = vunpack.c.h.b16 %v391
  %v3340 = vunpack.c.l.b16 %v392
  %v3341 = vunpack.c.h.b16 %v392
  %v3342 = vunpack.c.l.b16 %v393
  %v3343 = vunpack.c.h.b16 %v393
  %v3344 = vunpack.c.l.b16 %v394
  %v3345 = vunpack.c.h.b16 %v394
  %v3346 = vunpack.c.l.b16 %v395
  %v3347 = vunpack.c.h.b16 %v395
  %v3348 = vunpack.c.l.b16 %v396
  %v3349 = vunpack.c.h.b16 %v396
  %v3350 = vunpack.c.l.b16 %v397
  %v3351 = vunpack.c.h.b16 %v397
  %v3352 = vunpack.c.l.b16 %v398
  %v3353 = vunpack.c.h.b16 %v398
  %v3354 = vunpack.c.l.b16 %v399
  %v3355 = vunpack.c.h.b16 %v399
  %v3356 = vunpack.c.l.b16 %v400
  %v3357 = vunpack.c.h.b16 %v400
  %v3358 = vunpack.c.l.b16 %v401
  %v3359 = vunpack.c.h.b16 %v401
  %v3360 = vunpack.c.l.b16 %v402
  %v3361 = vunpack.c.h.b16 %v402
  %v3362 = vunpack.c.l.b16 %v403
  %v3363 = vunpack.c.h.b16 %v403
  %v3364 = vunpack.c.l.b16 %v404
  %v3365 = vunpack.c.h.b16 %v404
  %v3366 = vunpack.c.l.b16 %v405
  %v3367 = vunpack.c.h.b16 %v405
  %v3368 = vunpack.c.l.b16 %v406
  %v3369 = vunpack.c.h.b16 %v406
  %v3370 = vunpack.c.l.b16 %v407
  %v3371 = vunpack.c.h.b16 %v407
  %v3372 = vunpack.c.l.b16 %v408
  %v3373 = vunpack.c.h.b16 %v408
  %v3374 = vunpack.c.l.b16 %v409
  %v3375 = vunpack.c.h.b16 %v409
  %v3376 = vunpack.c.l.b16 %v410
  %v3377 = vunpack.c.h.b16 %v410
  %v3378 = vunpack.c.l.b16 %v411
  %v3379 = vunpack.c.h.b16 %v411
  %v3380 = vunpack.c.l.b16 %v412
  %v3381 = vunpack.c.h.b16 %v412
  %v3382 = vunpack.c.l.b16 %v413
  %v3383 = vunpack.c.h.b16 %v413
  %v3384 = vunpack.c.l.b16 %v414
  %v3385 = vunpack.c.h.b16 %v414
  %v3386 = vunpack.c.l.b16 %v415
  %v3387 = vunpack.c.h.b16 %v415
  %v3388 = vunpack.c.l.b16 %v416
  %v3389 = vunpack.c.h.b16 %v416
  %v3390 = vunpack.c.l.b16 %v417
  %v3391 = vunpack.c.h.b16 %v417
  %v3392 = vunpack.c.l.b16 %v418
  %v3393 = vunpack.c.h.b16 %v418
  %v3394 = vunpack.c.l.b16 %v419
  %v3395 = vunpack.c.h.b16 %v419
  %v3396 = vunpack.c.l.b16 %v420
  %v3397 = vunpack.c.h.b16 %v420
  %v3398 = vunpack.c.l.b16 %v421
  %v3399 = vunpack.c.h.b16 %v421
  %v3400 = vunpack.c.l.b16 %v422
  %v3401 = vunpack.c.h.b16 %v422
  %v3402 = vunpack.c.l.b16 %v423
  %v3403 = vunpack.c.h.b16 %v423
  %v3404 = vunpack.c.l.b16 %v424
  %v3405 = vunpack.c.h.b16 %v424
  %v3406 = vunpack.c.l.b16 %v425
  %v3407 = vunpack.c.h.b16 %v425
  %v3408 = vunpack.c.l.b16 %v426
  %v3409 = vunpack.c.h.b16 %v426
  %v3410 = vunpack.c.l.b16 %v427
  %v3411 = vunpack.c.h.b16 %v427
  %v3412 = vunpack.c.l.b16 %v428
  %v3413 = vunpack.c.h.b16 %v428
  %v3414 = vunpack.c.l.b16 %v429
  %v3415 = vunpack.c.h.b16 %v429
  %v3416 = vunpack.c.l.b16 %v430
  %v3417 = vunpack.c.h.b16 %v430
  %v3418 = vunpack.c.l.b16 %v431
  %v3419 = vunpack.c.h.b16 %v431
  %v3420 = vunpack.c.l.b16 %v432
  %v3421 = vunpack.c.h.b16 %v432
  %v3422 = vunpack.c.l.b16 %v433
  %v3423 = vunpack.c.h.b16 %v433
  %v3424 = vunpack.c.l.b16 %v434
  %v3425 = vunpack.c.h.b16 %v434
  %v3426 = vunpack.c.l.b16 %v435
  %v3427 = vunpack.c.h.b16 %v435
  %v3428 = vunpack.c.l.b16 %v436
  %v3429 = vunpack.c.h.b16 %v436
  %v3430 = vunpack.c.l.b16 %v437
  %v3431 = vunpack.c.h.b16 %v437
  %v3432 = vunpack.c.l.b16 %v438
  %v3433 = vunpack.c.h.b16 %v438
  %v3434 = vunpack.c.l.b16 %v439
  %v3435 = vunpack.c.h.b16 %v439
  %v3436 = vunpack.c.l.b16 %v440
  %v3437 = vunpack.c.h.b16 %v440
  %v3438 = vunpack.c.l.b16 %v441
  %v3439 = vunpack.c.h.b16 %v441
  %v3440 = vunpack.c.l.b16 %v442
  %v3441 = vunpack.c.h.b16 %v442
  %v3442 = vunpack.c.l.b16 %v443
  %v3443 = vunpack.c.h.b16 %v443
  %v3444 = vunpack.c.l.b16 %v444
  %v3445 = vunpack.c.h.b16 %v444
  %v3446 = vunpack.c.l.b16 %v445
  %v3447 = vunpack.c.h.b16 %v445
  %v3448 = vunpack.c.l.b16 %v446
  %v3449 = vunpack.c.h.b16 %v446
  %v3450 = vunpack.c.l.b16 %v447
  %v3451 = vunpack.c.h.b16 %v447
  %v3452 = vunpack.c.l.b16 %v448
  %v3453 = vunpack.c.h.b16 %v448
  %v3454 = vunpack.c.l.b16 %v449
  %v3455 = vunpack.c.h.b16 %v449
  %v3456 = vunpack.c.l.b16 %v450
  %v3457 = vunpack.c.h.b16 %v450
  %v3458 = vunpack.c.l.b16 %v451
  %v3459 = vunpack.c.h.b16 %v451
  %v3460 = vunpack.c.l.b16 %v452
  %v3461 = vunpack.c.h.b16 %v452
  %v3462 = vunpack.c.l.b16 %v453
  %v3463 = vunpack.c.h.b16 %v453
  %v3464 = vunpack.c.l.b16 %v454
  %v3465 = vunpack.c.h.b16 %v454
  %v3466 = vunpack.c.l.b16 %v455
  %v3467 = vunpack.c.h.b16 %v455
  %v3468 = vunpack.c.l.b16 %v456
  %v3469 = vunpack.c.h.b16 %v456
  %v3470 = vunpack.c.l.b16 %v457
  %v3471 = vunpack.c.h.b16 %v457
  %v3472 = vunpack.c.l.b16 %v458
  %v3473 = vunpack.c.h.b16 %v458
  %v3474 = vunpack.c.l.b16 %v459
  %v3475 = vunpack.c.h.b16 %v459
  %v3476 = vunpack.c.l.b16 %v460
  %v3477 = vunpack.c.h.b16 %v460
  %v3478 = vunpack.c.l.b16 %v461
  %v3479 = vunpack.c.h.b16 %v461
  %v3480 = vunpack.c.l.b16 %v462
  %v3481 = vunpack.c.h.b16 %v462
  %v3482 = vunpack.c.l.b16 %v463
  %v3483 = vunpack.c.h.b16 %v463
  %v3484 = vunpack.c.l.b16 %v464
  %v3485 = vunpack.c.h.b16 %v464
  %v3486 = vunpack.c.l.b16 %v465
  %v3487 = vunpack.c.h.b16 %v465
  %v3488 = vunpack.c.l.b16 %v466
  %v3489 = vunpack.c.h.b16 %v466
  %v3490 = vunpack.c.l.b16 %v467
  %v3491 = vunpack.c.h.b16 %v467
  %v3492 = vunpack.c.l.b16 %v468
  %v3493 = vunpack.c.h.b16 %v468
  %v3494 = vunpack.c.l.b16 %v469
  %v3495 = vunpack.c.h.b16 %v469
  %v3496 = vunpack.c.l.b16 %v470
  %v3497 = vunpack.c.h.b16 %v470
  %v3498 = vunpack.c.l.b16 %v471
  %v3499 = vunpack.c.h.b16 %v471
  %v3500 = vunpack.c.l.b16 %v472
  %v3501 = vunpack.c.h.b16 %v472
  %v3502 = vunpack.c.l.b16 %v473
  %v3503 = vunpack.c.h.b16 %v473
  %v3504 = vunpack.c.l.b16 %v474
  %v3505 = vunpack.c.h.b16 %v474
  %v3506 = vunpack.c.l.b16 %v475
  %v3507 = vunpack.c.h.b16 %v475
  %v3508 = vunpack.c.l.b16 %v476
  %v3509 = vunpack.c.h.b16 %v476
  %v3510 = vunpack.c.l.b16 %v477
  %v3511 = vunpack.c.h.b16 %v477
  %v3512 = vunpack.c.l.b16 %v478
  %v3513 = vunpack.c.h.b16 %v478
  %v3514 = vunpack.c.l.b16 %v479
  %v3515 = vunpack.c.h.b16 %v479
  %v3516 = vunpack.c.l.b16 %v480
  %v3517 = vunpack.c.h.b16 %v480
  %v3518 = vunpack.c.l.b16 %v481
  %v3519 = vunpack.c.h.b16 %v481
  %v3520 = vunpack.c.l.b16 %v482
  %v3521 = vunpack.c.h.b16 %v482
  %v3522 = vunpack.c.l.b16 %v483
  %v3523 = vunpack.c.h.b16 %v483
  %v3524 = vunpack.c.l.b16 %v484
  %v3525 = vunpack.c.h.b16 %v484
  %v3526 = vunpack.c.l.b16 %v485
  %v3527 = vunpack.c.h.b16 %v485
  %v3528 = vunpack.c.l.b16 %v486
  %v3529 = vunpack.c.h.b16 %v486
  %v3530 = vunpack.c.l.b16 %v487
  %v3531 = vunpack.c.h.b16 %v487
  %v3532 = vunpack.c.l.b16 %v488
  %v3533 = vunpack.c.h.b16 %v488
  %v3534 = vunpack.c.l.b16 %v489
  %v3535 = vunpack.c.h.b16 %v489
  %v3536 = vunpack.c.l.b16 %v490
  %v3537 = vunpack.c.h.b16 %v490
  %v3538 = vunpack.c.l.b16 %v491
  %v3539 = vunpack.c.h.b16 %v491
  %v3540 = vunpack.c.l.b16 %v492
  %v3541 = vunpack.c.h.b16 %v492
  %v3542 = vunpack.c.l.b16 %v493
  %v3543 = vunpack.c.h.b16 %v493
  %v3544 = vunpack.c.l.b16 %v494
  %v3545 = vunpack.c.h.b16 %v494
  %v3546 = vunpack.c.l.b16 %v495
  %v3547 = vunpack.c.h.b16 %v495
  %v3548 = vunpack.c.l.b16 %v496
  %v3549 = vunpack.c.h.b16 %v496
  %v3550 = vunpack.c.l.b16 %v497
  %v3551 = vunpack.c.h.b16 %v497
  %v3552 = vunpack.c.l.b16 %v498
  %v3553 = vunpack.c.h.b16 %v498
  %v3554 = vunpack.c.l.b16 %v499
  %v3555 = vunpack.c.h.b16 %v499
  %v3556 = vunpack.c.l.b16 %v500
  %v3557 = vunpack.c.h.b16 %v500
  %v3558 = vunpack.c.l.b16 %v501
  %v3559 = vunpack.c.h.b16 %v501
  %v3560 = vunpack.c.l.b16 %v502
  %v3561 = vunpack.c.h.b16 %v502
  %v3562 = vunpack.c.l.b16 %v503
  %v3563 = vunpack.c.h.b16 %v503
  %v3564 = vunpack.c.l.b16 %v504
  %v3565 = vunpack.c.h.b16 %v504
  %v3566 = vunpack.c.l.b16 %v505
  %v3567 = vunpack.c.h.b16 %v505
  %v3568 = vunpack.c.l.b16 %v506
  %v3569 = vunpack.c.h.b16 %v506
  %v3570 = vunpack.c.l.b16 %v507
  %v3571 = vunpack.c.h.b16 %v507
  %v3572 = vunpack.c.l.b16 %v508
  %v3573 = vunpack.c.h.b16 %v508
  %v3574 = vunpack.c.l.b16 %v509
  %v3575 = vunpack.c.h.b16 %v509
  %v3576 = vunpack.c.l.b16 %v510
  %v3577 = vunpack.c.h.b16 %v510
  %v3578 = vunpack.c.l.b16 %v511
  %v3579 = vunpack.c.h.b16 %v511
  %v3580 = vunpack.c.l.b16 %v512
  %v3581 = vunpack.c.h.b16 %v512
  %v3582 = vunpack.c.l.b16 %v513
  %v3583 = vunpack.c.h.b16 %v513
  %v3584 = vunpack.c.l.b16 %v514
  %v3585 = vunpack.c.h.b16 %v514
  %v3586 = vunpack.c.l.b16 %v515
  %v3587 = vunpack.c.h.b16 %v515
  %v3588 = vunpack.c.l.b16 %v516
  %v3589 = vunpack.c.h.b16 %v516
  %v3590 = vunpack.c.l.b16 %v517
  %v3591 = vunpack.c.h.b16 %v517
  %v3592 = vunpack.c.l.b16 %v518
  %v3593 = vunpack.c.h.b16 %v518
  %v3594 = vunpack.c.l.b16 %v519
  %v3595 = vunpack.c.h.b16 %v519
  %v3596 = vunpack.c.l.b16 %v520
  %v3597 = vunpack.c.h.b16 %v520
  %v3598 = vunpack.c.l.b16 %v521
  %v3599 = vunpack.c.h.b16 %v521
  %v3600 = vunpack.c.l.b16 %v522
  %v3601 = vunpack.c.h.b16 %v522
  %v3602 = vunpack.c.l.b16 %v523
  %v3603 = vunpack.c.h.b16 %v523
  %v3604 = vunpack.c.l.b16 %v524
  %v3605 = vunpack.c.h.b16 %v524
  %v3606 = vunpack.c.l.b16 %v525
  %v3607 = vunpack.c.h.b16 %v525
  %v3608 = vunpack.c.l.b16 %v526
  %v3609 = vunpack.c.h.b16 %v526
  %v3610 = vunpack.c.l.b16 %v527
  %v3611 = vunpack.c.h.b16 %v527
  %v3612 = vunpack.c.l.b16 %v528
  %v3613 = vunpack.c.h.b16 %v528
  %v3614 = vunpack.c.l.b16 %v529
  %v3615 = vunpack.c.h.b16 %v529
  %v3616 = vunpack.c.l.b16 %v530
  %v3617 = vunpack.c.h.b16 %v530
  %v3618 = vunpack.c.l.b16 %v531
  %v3619 = vunpack.c.h.b16 %v531
  %v3620 = vunpack.c.l.b16 %v532
  %v3621 = vunpack.c.h.b16 %v532
  %v3622 = vunpack.c.l.b16 %v533
  %v3623 = vunpack.c.h.b16 %v533
  %v3624 = vunpack.c.l.b16 %v534
  %v3625 = vunpack.c.h.b16 %v534
  %v3626 = vunpack.c.l.b16 %v535
  %v3627 = vunpack.c.h.b16 %v535
  %v3628 = vunpack.c.l.b16 %v536
  %v3629 = vunpack.c.h.b16 %v536
  %v3630 = vunpack.c.l.b16 %v537
  %v3631 = vunpack.c.h.b16 %v537
  %v3632 = vunpack.c.l.b16 %v538
  %v3633 = vunpack.c.h.b16 %v538
  %v3634 = vunpack.c.l.b16 %v539
  %v3635 = vunpack.c.h.b16 %v539
  %v3636 = vunpack.c.l.b16 %v540
  %v3637 = vunpack.c.h.b16 %v540
  %v3638 = vunpack.c.l.b16 %v541
  %v3639 = vunpack.c.h.b16 %v541
  %v3640 = vunpack.c.l.b16 %v542
  %v3641 = vunpack.c.h.b16 %v542
  %v3642 = vunpack.c.l.b16 %v543
  %v3643 = vunpack.c.h.b16 %v543
  %v3644 = vunpack.c.l.b16 %v544
  %v3645 = vunpack.c.h.b16 %v544
  %v3646 = vunpack.c.l.b16 %v545
  %v3647 = vunpack.c.h.b16 %v545
  %v3648 = vunpack.c.l.b16 %v546
  %v3649 = vunpack.c.h.b16 %v546
  %v3650 = vunpack.c.l.b16 %v547
  %v3651 = vunpack.c.h.b16 %v547
  %v3652 = vunpack.c.l.b16 %v548
  %v3653 = vunpack.c.h.b16 %v548
  %v3654 = vunpack.c.l.b16 %v549
  %v3655 = vunpack.c.h.b16 %v549
  %v3656 = vunpack.c.l.b16 %v550
  %v3657 = vunpack.c.h.b16 %v550
  %v3658 = vunpack.c.l.b16 %v551
  %v3659 = vunpack.c.h.b16 %v551
  %v3660 = vunpack.c.l.b16 %v552
  %v3661 = vunpack.c.h.b16 %v552
  %v3662 = vunpack.c.l.b16 %v553
  %v3663 = vunpack.c.h.b16 %v553
  %v3664 = vunpack.c.l.b16 %v554
  %v3665 = vunpack.c.h.b16 %v554
  %v3666 = vunpack.c.l.b16 %v555
  %v3667 = vunpack.c.h.b16 %v555
  %v3668 = vunpack.c.l.b16 %v556
  %v3669 = vunpack.c.h.b16 %v556
  %v3670 = vunpack.c.l.b16 %v557
  %v3671 = vunpack.c.h.b16 %v557
  %v3672 = vunpack.c.l.b16 %v558
  %v3673 = vunpack.c.h.b16 %v558
  %v3674 = vunpack.c.l.b16 %v559
  %v3675 = vunpack.c.h.b16 %v559
  %v3676 = vunpack.c.l.b16 %v560
  %v3677 = vunpack.c.h.b16 %v560
  %v3678 = vunpack.c.l.b16 %v561
  %v3679 = vunpack.c.h.b16 %v561
  %v3680 = vunpack.c.l.b16 %v562
  %v3681 = vunpack.c.h.b16 %v562
  %v3682 = vunpack.c.l.b16 %v563
  %v3683 = vunpack.c.h.b16 %v563
  %v3684 = vunpack.c.l.b16 %v564
  %v3685 = vunpack.c.h.b16 %v564
  %v3686 = vunpack.c.l.b16 %v565
  %v3687 = vunpack.c.h.b16 %v565
  %v3688 = vunpack.c.l.b16 %v566
  %v3689 = vunpack.c.h.b16 %v566
  %v3690 = vunpack.c.l.b16 %v567
  %v3691 = vunpack.c.h.b16 %v567
  %v3692 = vunpack.c.l.b16 %v568
  %v3693 = vunpack.c.h.b16 %v568
  %v3694 = vunpack.c.l.b16 %v569
  %v3695 = vunpack.c.h.b16 %v569
  %v3696 = vunpack.c.l.b16 %v570
  %v3697 = vunpack.c.h.b16 %v570
  %v3698 = vunpack.c.l.b16 %v571
  %v3699 = vunpack.c.h.b16 %v571
  %v3700 = vunpack.c.l.b16 %v572
  %v3701 = vunpack.c.h.b16 %v572
  %v3702 = vunpack.c.l.b16 %v573
  %v3703 = vunpack.c.h.b16 %v573
  %v3704 = vunpack.c.l.b16 %v574
  %v3705 = vunpack.c.h.b16 %v574
  %v3706 = vunpack.c.l.b16 %v575
  %v3707 = vunpack.c.h.b16 %v575
  %v3708 = vunpack.c.l.b16 %v576
  %v3709 = vunpack.c.h.b16 %v576
  %v3710 = vunpack.c.l.b16 %v577
  %v3711 = vunpack.c.h.b16 %v577
  %v3712 = vunpack.c.l.b16 %v578
  %v3713 = vunpack.c.h.b16 %v578
  %v3714 = vunpack.c.l.b16 %v579
  %v3715 = vunpack.c.h.b16 %v579
  %v3716 = vunpack.c.l.b16 %v580
  %v3717 = vunpack.c.h.b16 %v580
  %v3718 = vunpack.c.l.b16 %v581
  %v3719 = vunpack.c.h.b16 %v581
  %v3720 = vunpack.c.l.b16 %v582
  %v3721 = vunpack.c.h.b16 %v582
  %v3722 = vunpack.c.l.b16 %v583
  %v3723 = vunpack.c.h.b16 %v583
  %v3724 = vunpack.c.l.b16 %v584
  %v3725 = vunpack.c.h.b16 %v584
  %v3726 = vunpack.c.l.b16 %v585
  %v3727 = vunpack.c.h.b16 %v585
  %v3728 = vunpack.c.l.b16 %v586
  %v3729 = vunpack.c.h.b16 %v586
  %v3730 = vunpack.c.l.b16 %v587
  %v3731 = vunpack.c.h.b16 %v587
  %v3732 = vunpack.c.l.b16 %v588
  %v3733 = vunpack.c.h.b16 %v588
  %v3734 = vunpack.c.l.b16 %v589
  %v3735 = vunpack.c.h.b16 %v589
  %v3736 = vunpack.c.l.b16 %v590
  %v3737 = vunpack.c.h.b16 %v590
  %v3738 = vunpack.c.l.b16 %v591
  %v3739 = vunpack.c.h.b16 %v591
  %v3740 = vunpack.c.l.b16 %v592
  %v3741 = vunpack.c.h.b16 %v592
  %v3742 = vunpack.c.l.b16 %v593
  %v3743 = vunpack.c.h.b16 %v593
  %v3744 = vunpack.c.l.b16 %v594
  %v3745 = vunpack.c.h.b16 %v594
  %v3746 = vunpack.c.l.b16 %v595
  %v3747 = vunpack.c.h.b16 %v595
  %v3748 = vunpack.c.l.b16 %v596
  %v3749 = vunpack.c.h.b16 %v596
  %v3750 = vunpack.c.l.b16 %v597
  %v3751 = vunpack.c.h.b16 %v597
  %v3752 = vunpack.c.l.b16 %v598
  %v3753 = vunpack.c.h.b16 %v598
  %v3754 = vunpack.c.l.b16 %v599
  %v3755 = vunpack.c.h.b16 %v599
  %v3756 = vunpack.c.l.b16 %v600
  %v3757 = vunpack.c.h.b16 %v600
  %v3758 = vunpack.c.l.b16 %v601
  %v3759 = vunpack.c.h.b16 %v601
  %v3760 = vunpack.c.l.b16 %v602
  %v3761 = vunpack.c.h.b16 %v602
  %v3762 = vunpack.c.l.b16 %v603
  %v3763 = vunpack.c.h.b16 %v603
  %v3764 = vunpack.c.l.b16 %v604
  %v3765 = vunpack.c.h.b16 %v604
  %v3766 = vunpack.c.l.b16 %v605
  %v3767 = vunpack.c.h.b16 %v605
  %v3768 = vunpack.c.l.b16 %v606
  %v3769 = vunpack.c.h.b16 %v606
  %v3770 = vunpack.c.l.b16 %v607
  %v3771 = vunpack.c.h.b16 %v607
  %v3772 = vunpack.c.l.b16 %v608
  %v3773 = vunpack.c.h.b16 %v608
  %v3774 = vunpack.c.l.b16 %v609
  %v3775 = vunpack.c.h.b16 %v609
  %v3776 = vunpack.c.l.b16 %v610
  %v3777 = vunpack.c.h.b16 %v610
  %v3778 = vunpack.c.l.b16 %v611
  %v3779 = vunpack.c.h.b16 %v611
  %v3780 = vunpack.c.l.b16 %v612
  %v3781 = vunpack.c.h.b16 %v612
  %v3782 = vunpack.c.l.b16 %v613
  %v3783 = vunpack.c.h.b16 %v613
  %v3784 = vunpack.c.l.b16 %v614
  %v3785 = vunpack.c.h.b16 %v614
  %v3786 = vunpack.c.l.b16 %v615
  %v3787 = vunpack.c.h.b16 %v615
  %v3788 = vunpack.c.l.b16 %v616
  %v3789 = vunpack.c.h.b16 %v616
  %v3790 = vunpack.c.l.b16 %v617
  %v3791 = vunpack.c.h.b16 %v617
  %v3792 = vunpack.c.l.b16 %v618
  %v3793 = vunpack.c.h.b16 %v618
  %v3794 = vunpack.c.l.b16 %v619
  %v3795 = vunpack.c.h.b16 %v619
  %v3796 = vunpack.c.l.b16 %v620
  %v3797 = vunpack.c.h.b16 %v620
  %v3798 = vunpack.c.l.b16 %v621
  %v3799 = vunpack.c.h.b16 %v621
  %v3800 = vunpack.c.l.b16 %v622
  %v3801 = vunpack.c.h.b16 %v622
  %v3802 = vunpack.c.l.b16 %v623
  %v3803 = vunpack.c.h.b16 %v623
  %v3804 = vunpack.c.l.b16 %v624
  %v3805 = vunpack.c.h.b16 %v624
  %v3806 = vunpack.c.l.b16 %v625
  %v3807 = vunpack.c.h.b16 %v625
  %v3808 = vunpack.c.l.b16 %v626
  %v3809 = vunpack.c.h.b16 %v626
  %v3810 = vunpack.c.l.b16 %v627
  %v3811 = vunpack.c.h.b16 %v627
  %v3812 = vunpack.c.l.b16 %v628
  %v3813 = vunpack.c.h.b16 %v628
  %v3814 = vunpack.c.l.b16 %v629
  %v3815 = vunpack.c.h.b16 %v629
  %v3816 = vunpack.c.l.b16 %v630
  %v3817 = vunpack.c.h.b16 %v630
  %v3818 = vunpack.c.l.b16 %v631
  %v3819 = vunpack.c.h.b16 %v631
  %v3820 = vunpack.c.l.b16 %v632
  %v3821 = vunpack.c.h.b16 %v632
  %v3822 = vunpack.c.l.b16 %v633
  %v3823 = vunpack.c.h.b16 %v633
  %v3824 = vunpack.c.l.b16 %v634
  %v3825 = vunpack.c.h.b16 %v634
  %v3826 = vunpack.c.l.b16 %v635
  %v3827 = vunpack.c.h.b16 %v635
  %v3828 = vunpack.c.l.b16 %v636
  %v3829 = vunpack.c.h.b16 %v636
  %v3830 = vunpack.c.l.b16 %v637
  %v3831 = vunpack.c.h.b16 %v637
  %v3832 = vunpack.c.l.b16 %v638
  %v3833 = vunpack.c.h.b16 %v638
  %v3834 = vunpack.c.l.b16 %v639
  %v3835 = vunpack.c.h.b16 %v639
  %v3836 = vunpack.c.l.b16 %v640
  %v3837 = vunpack.c.h.b16 %v640
  %v3838 = vunpack.c.l.b16 %v641
  %v3839 = vunpack.c.h.b16 %v641
  %v3840 = vunpack.c.l.b16 %v642
  %v3841 = vunpack.c.h.b16 %v642
  %v3842 = vunpack.c.l.b16 %v643
  %v3843 = vunpack.c.h.b16 %v643
  %v3844 = vunpack.c.l.b16 %v644
  %v3845 = vunpack.c.h.b16 %v644
  %v3846 = vunpack.c.l.b16 %v645
  %v3847 = vunpack.c.h.b16 %v645
  %v3848 = vunpack.c.l.b16 %v646
  %v3849 = vunpack.c.h.b16 %v646
  %v3850 = vunpack.c.l.b16 %v647
  %v3851 = vunpack.c.h.b16 %v647
  %v3852 = vunpack.c.l.b16 %v648
  %v3853 = vunpack.c.h.b16 %v648
  %v3854 = vunpack.c.l.b16 %v649
  %v3855 = vunpack.c.h.b16 %v649
  %v3856 = vunpack.c.l.b16 %v650
  %v3857 = vunpack.c.h.b16 %v650
  %v3858 = vunpack.c.l.b16 %v651
  %v3859 = vunpack.c.h.b16 %v651
  %v3860 = vunpack.c.l.b16 %v652
  %v3861 = vunpack.c.h.b16 %v652
  %v3862 = vunpack.c.l.b16 %v653
  %v3863 = vunpack.c.h.b16 %v653
  %v3864 = vunpack.c.l.b16 %v654
  %v3865 = vunpack.c.h.b16 %v654
  %v3866 = vunpack.c.l.b16 %v655
  %v3867 = vunpack.c.h.b16 %v655
  %v3868 = vunpack.c.l.b16 %v656
  %v3869 = vunpack.c.h.b16 %v656
  %v3870 = vunpack.c.l.b16 %v657
  %v3871 = vunpack.c.h.b16 %v657
  %v3872 = vunpack.c.l.b16 %v658
  %v3873 = vunpack.c.h.b16 %v658
  %v3874 = vunpack.c.l.b16 %v659
  %v3875 = vunpack.c.h.b16 %v659
  %v3876 = vunpack.c.l.b16 %v660
  %v3877 = vunpack.c.h.b16 %v660
  %v3878 = vunpack.c.l.b16 %v661
  %v3879 = vunpack.c.h.b16 %v661
  %v3880 = vunpack.c.l.b16 %v662
  %v3881 = vunpack.c.h.b16 %v662
  %v3882 = vunpack.c.l.b16 %v663
  %v3883 = vunpack.c.h.b16 %v663
  %v3884 = vunpack.c.l.b16 %v664
  %v3885 = vunpack.c.h.b16 %v664
  %v3886 = vunpack.c.l.b16 %v665
  %v3887 = vunpack.c.h.b16 %v665
  %v3888 = vunpack.c.l.b16 %v666
  %v3889 = vunpack.c.h.b16 %v666
  %v3890 = vunpack.c.l.b16 %v667
  %v3891 = vunpack.c.h.b16 %v667
  %v3892 = vunpack.c.l.b16 %v668
  %v3893 = vunpack.c.h.b16 %v668
  %v3894 = vunpack.c.l.b16 %v669
  %v3895 = vunpack.c.h.b16 %v669
  %v3896 = vunpack.c.l.b16 %v670
  %v3897 = vunpack.c.h.b16 %v670
  %v3898 = vunpack.c.l.b16 %v671
  %v3899 = vunpack.c.h.b16 %v671
  %v3900 = vunpack.c.l.b16 %v672
  %v3901 = vunpack.c.h.b16 %v672
  %v3902 = vunpack.c.l.b16 %v673
  %v3903 = vunpack.c.h.b16 %v673
  %v3904 = vunpack.c.l.b16 %v674
  %v3905 = vunpack.c.h.b16 %v674
  %v3906 = vunpack.c.l.b16 %v675
  %v3907 = vunpack.c.h.b16 %v675
  %v3908 = vunpack.c.l.b16 %v676
  %v3909 = vunpack.c.h.b16 %v676
  %v3910 = vunpack.c.l.b16 %v677
  %v3911 = vunpack.c.h.b16 %v677
  %v3912 = vunpack.c.l.b16 %v678
  %v3913 = vunpack.c.h.b16 %v678
  %v3914 = vunpack.c.l.b16 %v679
  %v3915 = vunpack.c.h.b16 %v679
  %v3916 = vunpack.c.l.b16 %v680
  %v3917 = vunpack.c.h.b16 %v680
  %v3918 = vunpack.c.l.b16 %v681
  %v3919 = vunpack.c.h.b16 %v681
  %v3920 = vunpack.c.l.b16 %v682
  %v3921 = vunpack.c.h.b16 %v682
  %v3922 = vunpack.c.l.b16 %v683
  %v3923 = vunpack.c.h.b16 %v683
  %v3924 = vunpack.c.l.b16 %v684
  %v3925 = vunpack.c.h.b16 %v684
  %v3926 = vunpack.c.l.b16 %v685
  %v3927 = vunpack.c.h.b16 %v685
  %v3928 = vunpack.c.l.b16 %v686
  %v3929 = vunpack.c.h.b16 %v686
  %v3930 = vunpack.c.l.b16 %v687
  %v3931 = vunpack.c.h.b16 %v687
  %v3932 = vunpack.c.l.b16 %v688
  %v3933 = vunpack.c.h.b16 %v688
  %v3934 = vunpack.c.l.b16 %v689
  %v3935 = vunpack.c.h.b16 %v689
  %v3936 = vunpack.c.l.b16 %v690
  %v3937 = vunpack.c.h.b16 %v690
  %v3938 = vunpack.c.l.b16 %v691
  %v3939 = vunpack.c.h.b16 %v691
  %v3940 = vunpack.c.l.b16 %v692
  %v3941 = vunpack.c.h.b16 %v692
  %v3942 = vunpack.c.l.b16 %v693
  %v3943 = vunpack.c.h.b16 %v693
  %v3944 = vunpack.c.l.b16 %v694
  %v3945 = vunpack.c.h.b16 %v694
  %v3946 = vunpack.c.l.b16 %v695
  %v3947 = vunpack.c.h.b16 %v695
  %v3948 = vunpack.c.l.b16 %v696
  %v3949 = vunpack.c.h.b16 %v696
  %v3950 = vunpack.c.l.b16 %v697
  %v3951 = vunpack.c.h.b16 %v697
  %v3952 = vunpack.c.l.b16 %v698
  %v3953 = vunpack.c.h.b16 %v698
  %v3954 = vunpack.c.l.b16 %v699
  %v3955 = vunpack.c.h.b16 %v699
  %v3956 = vunpack.c.l.b16 %v700
  %v3957 = vunpack.c.h.b16 %v700
  %v3958 = vunpack.c.l.b16 %v701
  %v3959 = vunpack.c.h.b16 %v701
  %v3960 = vunpack.c.l.b16 %v702
  %v3961 = vunpack.c.h.b16 %v702
  %v3962 = vunpack.c.l.b16 %v703
  %v3963 = vunpack.c.h.b16 %v703
  %v3964 = vunpack.c.l.b16 %v704
  %v3965 = vunpack.c.h.b16 %v704
  %v3966 = vunpack.c.l.b16 %v705
  %v3967 = vunpack.c.h.b16 %v705
  %v3968 = vunpack.c.l.b16 %v706
  %v3969 = vunpack.c.h.b16 %v706
  %v3970 = vunpack.c.l.b16 %v707
  %v3971 = vunpack.c.h.b16 %v707
  %v3972 = vunpack.c.l.b16 %v708
  %v3973 = vunpack.c.h.b16 %v708
  %v3974 = vunpack.c.l.b16 %v709
  %v3975 = vunpack.c.h.b16 %v709
  %v3976 = vunpack.c.l.b16 %v710
  %v3977 = vunpack.c.h.b16 %v710
  %v3978 = vunpack.c.l.b16 %v711
  %v3979 = vunpack.c.h.b16 %v711
  %v3980 = vunpack.c.l.b16 %v712
  %v3981 = vunpack.c.h.b16 %v712
  %v3982 = vunpack.c.l.b16 %v713
  %v3983 = vunpack.c.h.b16 %v713
  %v3984 = vunpack.c.l.b16 %v714
  %v3985 = vunpack.c.h.b16 %v714
  %v3986 = vunpack.c.l.b16 %v715
  %v3987 = vunpack.c.h.b16 %v715
  %v3988 = vunpack.c.l.b16 %v716
  %v3989 = vunpack.c.h.b16 %v716
  %v3990 = vunpack.c.l.b16 %v717
  %v3991 = vunpack.c.h.b16 %v717
  %v3992 = vunpack.c.l.b16 %v718
  %v3993 = vunpack.c.h.b16 %v718
  %v3994 = vunpack.c.l.b16 %v719
  %v3995 = vunpack.c.h.b16 %v719
  %v3996 = vunpack.c.l.b16 %v720
  %v3997 = vunpack.c.h.b16 %v720
  %v3998 = vunpack.c.l.b16 %v721
  %v3999 = vunpack.c.h.b16 %v721
  %v4000 = vunpack.c.l.b16 %v722
  %v4001 = vunpack.c.h.b16 %v722
  %v4002 = vunpack.c.l.b16 %v723
  %v4003 = vunpack.c.h.b16 %v723
  %v4004 = vunpack.c.l.b16 %v724
  %v4005 = vunpack.c.h.b16 %v724
  %v4006 = vunpack.c.l.b16 %v725
  %v4007 = vunpack.c.h.b16 %v725
  %v4008 = vunpack.c.l.b16 %v726
  %v4009 = vunpack.c.h.b16 %v726
  %v4010 = vunpack.c.l.b16 %v727
  %v4011 = vunpack.c.h.b16 %v727
  %v4012 = vunpack.c.l.b16 %v728
  %v4013 = vunpack.c.h.b16 %v728
  %v4014 = vunpack.c.l.b16 %v729
  %v4015 = vunpack.c.h.b16 %v729
  %v4016 = vunpack.c.l.b16 %v730
  %v4017 = vunpack.c.h.b16 %v730
  %v4018 = vunpack.c.l.b16 %v731
  %v4019 = vunpack.c.h.b16 %v731
  %v4020 = vunpack.c.l.b16 %v732
  %v4021 = vunpack.c.h.b16 %v732
  %v4022 = vunpack.c.l.b16 %v733
  %v4023 = vunpack.c.h.b16 %v733
  %v4024 = vunpack.c.l.b16 %v734
  %v4025 = vunpack.c.h.b16 %v734
  %v4026 = vunpack.c.l.b16 %v735
  %v4027 = vunpack.c.h.b16 %v735
  %v4028 = vunpack.c.l.b16 %v736
  %v4029 = vunpack.c.h.b16 %v736
  %v4030 = vunpack.c.l.b16 %v737
  %v4031 = vunpack.c.h.b16 %v737
  %v4032 = vunpack.c.l.b16 %v738
  %v4033 = vunpack.c.h.b16 %v738
  %v4034 = vunpack.c.l.b16 %v739
  %v4035 = vunpack.c.h.b16 %v739
  %v4036 = vunpack.c.l.b16 %v740
  %v4037 = vunpack.c.h.b16 %v740
  %v4038 = vunpack.c.l.b16 %v741
  %v4039 = vunpack.c.h.b16 %v741
  %v4040 = vunpack.c.l.b16 %v742
  %v4041 = vunpack.c.h.b16 %v742
  %v4042 = vunpack.c.l.b16 %v743
  %v4043 = vunpack.c.h.b16 %v743
  %v4044 = vunpack.c.l.b16 %v744
  %v4045 = vunpack.c.h.b16 %v744
  %v4046 = vunpack.c.l.b16 %v745
  %v4047 = vunpack.c.h.b16 %v745
  %v4048 = vunpack.c.l.b16 %v746
  %v4049 = vunpack.c.h.b16 %v746
  %v4050 = vunpack.c.l.b16 %v747
  %v4051 = vunpack.c.h.b16 %v747
  %v4052 = vunpack.c.l.b16 %v748
  %v4053 = vunpack.c.h.b16 %v748
  %v4054 = vunpack.c.l.b16 %v749
  %v4055 = vunpack.c.h.b16 %v749
  %v4056 = vunpack.c.l.b16 %v750
  %v4057 = vunpack.c.h.b16 %v750
  %v4058 = vunpack.c.l.b16 %v751
  %v4059 = vunpack.c.h.b16 %v751
  %v4060 = vunpack.c.l.b16 %v752
  %v4061 = vunpack.c.h.b16 %v752
  %v4062 = vunpack.c.l.b16 %v753
  %v4063 = vunpack.c.h.b16 %v753
  %v4064 = vunpack.c.l.b16 %v754
  %v4065 = vunpack.c.h.b16 %v754
  %v4066 = vunpack.c.l.b16 %v755
  %v4067 = vunpack.c.h.b16 %v755
  %v4068 = vunpack.c.l.b16 %v756
  %v4069 = vunpack.c.h.b16 %v756
  %v4070 = vunpack.c.l.b16 %v757
  %v4071 = vunpack.c.h.b16 %v757
  %v4072 = vunpack.c.l.b16 %v758
  %v4073 = vunpack.c.h.b16 %v758
  %v4074 = vunpack.c.l.b16 %v759
  %v4075 = vunpack.c.h.b16 %v759
  %v4076 = vunpack.c.l.b16 %v760
  %v4077 = vunpack.c.h.b16 %v760
  %v4078 = vunpack.c.l.b16 %v761
  %v4079 = vunpack.c.h.b16 %v761
  %v4080 = vunpack.c.l.b16 %v762
  %v4081 = vunpack.c.h.b16 %v762
  %v4082 = vunpack.c.l.b16 %v763
  %v4083 = vunpack.c.h.b16 %v763
  %v4084 = vunpack.c.l.b16 %v764
  %v4085 = vunpack.c.h.b16 %v764
  %v4086 = vunpack.c.l.b16 %v765
  %v4087 = vunpack.c.h.b16 %v765
  %v4088 = vunpack.c.l.b16 %v766
  %v4089 = vunpack.c.h.b16 %v766
  %v4090 = vunpack.c.l.b16 %v767
  %v4091 = vunpack.c.h.b16 %v767
  %v4092 = vunpack.c.l.b16 %v768
  %v4093 = vunpack.c.h.b16 %v768
  %v4094 = vunpack.c.l.b16 %v769
  %v4095 = vunpack.c.h.b16 %v769
  %v4096 = vunpack.c.l.b16 %v770
  %v4097 = vunpack.c.h.b16 %v770
  %v4098 = vunpack.c.l.b16 %v771
  %v4099 = vunpack.c.h.b16 %v771
  %v4100 = vunpack.c.l.b16 %v772
  %v4101 = vunpack.c.h.b16 %v772
  %v4102 = vunpack.c.l.b16 %v773
  %v4103 = vunpack.c.h.b16 %v773
  %v4104 = vunpack.c.l.b16 %v774
  %v4105 = vunpack.c.h.b16 %v774
  %v4106 = vunpack.c.l.b16 %v775
  %v4107 = vunpack.c.h.b16 %v775
  %v4108 = vunpack.c.l.b16 %v776
  %v4109 = vunpack.c.h.b16 %v776
  %v4110 = vunpack.c.l.b16 %v777
  %v4111 = vunpack.c.h.b16 %v777
  %v4112 = vunpack.c.l.b16 %v778
  %v4113 = vunpack.c.h.b16 %v778
  %v4114 = vunpack.c.l.b16 %v779
  %v4115 = vunpack.c.h.b16 %v779
  %v4116 = vunpack.c.l.b16 %v780
  %v4117 = vunpack.c.h.b16 %v780
  %v4118 = vunpack.c.l.b16 %v781
  %v4119 = vunpack.c.h.b16 %v781
  %v4120 = vunpack.c.l.b16 %v782
  %v4121 = vunpack.c.h.b16 %v782
  %v4122 = vunpack.c.l.b16 %v783
  %v4123 = vunpack.c.h.b16 %v783
  %v4124 = vunpack.c.l.b16 %v784
  %v4125 = vunpack.c.h.b16 %v784
  %v4126 = vunpack.c.l.b16 %v785
  %v4127 = vunpack.c.h.b16 %v785
  %v4128 = vunpack.c.l.b16 %v786
  %v4129 = vunpack.c.h.b16 %v786
  %v4130 = vunpack.c.l.b16 %v787
  %v4131 = vunpack.c.h.b16 %v787
  %v4132 = vunpack.c.l.b16 %v788
  %v4133 = vunpack.c.h.b16 %v788
  %v4134 = vunpack.c.l.b16 %v789
  %v4135 = vunpack.c.h.b16 %v789
  %v4136 = vunpack.c.l.b16 %v790
  %v4137 = vunpack.c.h.b16 %v790
  %v4138 = vunpack.c.l.b16 %v791
  %v4139 = vunpack.c.h.b16 %v791
  %v4140 = vunpack.c.l.b16 %v792
  %v4141 = vunpack.c.h.b16 %v792
  %v4142 = vunpack.c.l.b16 %v793
  %v4143 = vunpack.c.h.b16 %v793
  %v4144 = vunpack.c.l.b16 %v794
  %v4145 = vunpack.c.h.b16 %v794
  %v4146 = vunpack.c.l.b16 %v795
  %v4147 = vunpack.c.h.b16 %v795
  %v4148 = vunpack.c.l.b16 %v796
  %v4149 = vunpack.c.h.b16 %v796
  %v4150 = vunpack.c.l.b16 %v797
  %v4151 = vunpack.c.h.b16 %v797
  %v4152 = vunpack.c.l.b16 %v798
  %v4153 = vunpack.c.h.b16 %v798
  %v4154 = vunpack.c.l.b16 %v799
  %v4155 = vunpack.c.h.b16 %v799
  %v4156 = vunpack.c.l.b16 %v800
  %v4157 = vunpack.c.h.b16 %v800
  %v4158 = vunpack.c.l.b16 %v801
  %v4159 = vunpack.c.h.b16 %v801
  %v4160 = vunpack.c.l.b16 %v802
  %v4161 = vunpack.c.h.b16 %v802
  %v4162 = vunpack.c.l.b16 %v803
  %v4163 = vunpack.c.h.b16 %v803
  %v4164 = vunpack.c.l.b16 %v804
  %v4165 = vunpack.c.h.b16 %v804
  %v4166 = vunpack.c.l.b16 %v805
  %v4167 = vunpack.c.h.b16 %v805
  %v4168 = vunpack.c.l.b16 %v806
  %v4169 = vunpack.c.h.b16 %v806
  %v4170 = vunpack.c.l.b16 %v807
  %v4171 = vunpack.c.h.b16 %v807
  %v4172 = vunpack.c.l.b16 %v808
  %v4173 = vunpack.c.h.b16 %v808
  %v4174 = vunpack.c.l.b16 %v809
  %v4175 = vunpack.c.h.b16 %v809
  %v4176 = vunpack.c.l.b16 %v810
  %v4177 = vunpack.c.h.b16 %v810
  %v4178 = vunpack.c.l.b16 %v811
  %v4179 = vunpack.c.h.b16 %v811
  %v4180 = vunpack.c.l.b16 %v812
  %v4181 = vunpack.c.h.b16 %v812
  %v4182 = vunpack.c.l.b16 %v813
  %v4183 = vunpack.c.h.b16 %v813
  %v4184 = vunpack.c.l.b16 %v814
  %v4185 = vunpack.c.h.b16 %v814
  %v4186 = vunpack.c.l.b16 %v815
  %v4187 = vunpack.c.h.b16 %v815
  %v4188 = vunpack.c.l.b16 %v816
  %v4189 = vunpack.c.h.b16 %v816
  %v4190 = vunpack.c.l.b16 %v817
  %v4191 = vunpack.c.h.b16 %v817
  %v4192 = vunpack.c.l.b16 %v818
  %v4193 = vunpack.c.h.b16 %v818
  %v4194 = vunpack.c.l.b16 %v819
  %v4195 = vunpack.c.h.b16 %v819
  %v4196 = vunpack.c.l.b16 %v820
  %v4197 = vunpack.c.h.b16 %v820
  %v4198 = vunpack.c.l.b16 %v821
  %v4199 = vunpack.c.h.b16 %v821
  %v4200 = vunpack.c.l.b16 %v822
  %v4201 = vunpack.c.h.b16 %v822
  %v4202 = vunpack.c.l.b16 %v823
  %v4203 = vunpack.c.h.b16 %v823
  %v4204 = vunpack.c.l.b16 %v824
  %v4205 = vunpack.c.h.b16 %v824
  %v4206 = vunpack.c.l.b16 %v825
  %v4207 = vunpack.c.h.b16 %v825
  %v4208 = vunpack.c.l.b16 %v826
  %v4209 = vunpack.c.h.b16 %v826
  %v4210 = vunpack.c.l.b16 %v827
  %v4211 = vunpack.c.h.b16 %v827
  %v4212 = vunpack.c.l.b16 %v828
  %v4213 = vunpack.c.h.b16 %v828
  %v4214 = vunpack.c.l.b16 %v829
  %v4215 = vunpack.c.h.b16 %v829
  %v4216 = vunpack.c.l.b16 %v830
  %v4217 = vunpack.c.h.b16 %v830
  %v4218 = vunpack.c.l.b16 %v831
  %v4219 = vunpack.c.h.b16 %v831
  %v4220 = vunpack.c.l.b16 %v832
  %v4221 = vunpack.c.h.b16 %v832
  %v4222 = vunpack.c.l.b16 %v833
  %v4223 = vunpack.c.h.b16 %v833
  %v4224 = vunpack.c.l.b16 %v834
  %v4225 = vunpack.c.h.b16 %v834
  %v4226 = vunpack.c.l.b16 %v835
  %v4227 = vunpack.c.h.b16 %v835
  %v4228 = vunpack.c.l.b16 %v836
  %v4229 = vunpack.c.h.b16 %v836
  %v4230 = vunpack.c.l.b16 %v837
  %v4231 = vunpack.c.h.b16 %v837
  %v4232 = vunpack.c.l.b16 %v838
  %v4233 = vunpack.c.h.b16 %v838
  %v4234 = vunpack.c.l.b16 %v839
  %v4235 = vunpack.c.h.b16 %v839
  %v4236 = vunpack.c.l.b16 %v840
  %v4237 = vunpack.c.h.b16 %v840
  %v4238 = vunpack.c.l.b16 %v841
  %v4239 = vunpack.c.h.b16 %v841
  %v4240 = vunpack.c.l.b16 %v842
  %v4241 = vunpack.c.h.b16 %v842
  %v4242 = vunpack.c.l.b16 %v843
  %v4243 = vunpack.c.h.b16 %v843
  %v4244 = vunpack.c.l.b16 %v844
  %v4245 = vunpack.c.h.b16 %v844
  %v4246 = vunpack.c.l.b16 %v845
  %v4247 = vunpack.c.h.b16 %v845
  %v4248 = vunpack.c.l.b16 %v846
  %v4249 = vunpack.c.h.b16 %v846
  %v4250 = vunpack.c.l.b16 %v847
  %v4251 = vunpack.c.h.b16 %v847
  %v4252 = vunpack.c.l.b16 %v848
  %v4253 = vunpack.c.h.b16 %v848
  %v4254 = vunpack.c.l.b16 %v849
  %v4255 = vunpack.c.h.b16 %v849
  %v4256 = vunpack.c.l.b16 %v850
  %v4257 = vunpack.c.h.b16 %v850
  %v4258 = vunpack.c.l.b16 %v851
  %v4259 = vunpack.c.h.b16 %v851
  %v4260 = vunpack.c.l.b16 %v852
  %v4261 = vunpack.c.h.b16 %v852
  %v4262 = vunpack.c.l.b16 %v853
  %v4263 = vunpack.c.h.b16 %v853
  %v4264 = vunpack.c.l.b16 %v854
  %v4265 = vunpack.c.h.b16 %v854
  %v4266 = vunpack.c.l.b16 %v855
  %v4267 = vunpack.c.h.b16 %v855
  %v4268 = vunpack.c.l.b16 %v856
  %v4269 = vunpack.c.h.b16 %v856
  %v4270 = vunpack.c.l.b16 %v857
  %v4271 = vunpack.c.h.b16 %v857
  %v4272 = vunpack.c.l.b16 %v858
  %v4273 = vunpack.c.h.b16 %v858
  %v4274 = vunpack.c.l.b16 %v859
  %v4275 = vunpack.c.h.b16 %v859
  %v4276 = vunpack.c.l.b16 %v860
  %v4277 = vunpack.c.h.b16 %v860
  %v4278 = vunpack.c.l.b16 %v861
  %v4279 = vunpack.c.h.b16 %v861
  %v4280 = vunpack.c.l.b16 %v862
  %v4281 = vunpack.c.h.b16 %v862
  %v4282 = vunpack.c.l.b16 %v863
  %v4283 = vunpack.c.h.b16 %v863
  %v4284 = vunpack.c.l.b16 %v864
  %v4285 = vunpack.c.h.b16 %v864
  %v4286 = vunpack.c.l.b16 %v865
  %v4287 = vunpack.c.h.b16 %v865
  %v4288 = vunpack.c.l.b16 %v866
  %v4289 = vunpack.c.h.b16 %v866
  %v4290 = vunpack.c.l.b16 %v867
  %v4291 = vunpack.c.h.b16 %v867
  %v4292 = vunpack.c.l.b16 %v868
  %v4293 = vunpack.c.h.b16 %v868
  %v4294 = vunpack.c.l.b16 %v869
  %v4295 = vunpack.c.h.b16 %v869
  %v4296 = vunpack.c.l.b16 %v870
  %v4297 = vunpack.c.h.b16 %v870
  %v4298 = vunpack.c.l.b16 %v871
  %v4299 = vunpack.c.h.b16 %v871
  %v4300 = vunpack.c.l.b16 %v872
  %v4301 = vunpack.c.h.b16 %v872
  %v4302 = vunpack.c.l.b16 %v873
  %v4303 = vunpack.c.h.b16 %v873
  %v4304 = vunpack.c.l.b16 %v874
  %v4305 = vunpack.c.h.b16 %v874
  %v4306 = vunpack.c.l.b16 %v875
  %v4307 = vunpack.c.h.b16 %v875
  %v4308 = vunpack.c.l.b16 %v876
  %v4309 = vunpack.c.h.b16 %v876
  %v4310 = vunpack.c.l.b16 %v877
  %v4311 = vunpack.c.h.b16 %v877
  %v4312 = vunpack.c.l.b16 %v878
  %v4313 = vunpack.c.h.b16 %v878
  %v4314 = vunpack.c.l.b16 %v879
  %v4315 = vunpack.c.h.b16 %v879
  %v4316 = vunpack.c.l.b16 %v880
  %v4317 = vunpack.c.h.b16 %v880
  %v4318 = vunpack.c.l.b16 %v881
  %v4319 = vunpack.c.h.b16 %v881
  %v4320 = vunpack.c.l.b16 %v882
  %v4321 = vunpack.c.h.b16 %v882
  %v4322 = vunpack.c.l.b16 %v883
  %v4323 = vunpack.c.h.b16 %v883
  %v4324 = vunpack.c.l.b16 %v884
  %v4325 = vunpack.c.h.b16 %v884
  %v4326 = vunpack.c.l.b16 %v885
  %v4327 = vunpack.c.h.b16 %v885
  %v4328 = vunpack.c.l.b16 %v886
  %v4329 = vunpack.c.h.b16 %v886
  %v4330 = vunpack.c.l.b16 %v887
  %v4331 = vunpack.c.h.b16 %v887
  %v4332 = vunpack.c.l.b16 %v888
  %v4333 = vunpack.c.h.b16 %v888
  %v4334 = vunpack.c.l.b16 %v889
  %v4335 = vunpack.c.h.b16 %v889
  %v4336 = vunpack.c.l.b16 %v890
  %v4337 = vunpack.c.h.b16 %v890
  %v4338 = vunpack.c.l.b16 %v891
  %v4339 = vunpack.c.h.b16 %v891
  %v4340 = vunpack.c.l.b16 %v892
  %v4341 = vunpack.c.h.b16 %v892
  %v4342 = vunpack.c.l.b16 %v893
  %v4343 = vunpack.c.h.b16 %v893
  %v4344 = vunpack.c.l.b16 %v894
  %v4345 = vunpack.c.h.b16 %v894
  %v4346 = vunpack.c.l.b16 %v895
  %v4347 = vunpack.c.h.b16 %v895
  %v4348 = vunpack.c.l.b16 %v896
  %v4349 = vunpack.c.h.b16 %v896
  %v4350 = vunpack.c.l.b16 %v897
  %v4351 = vunpack.c.h.b16 %v897
  %v4352 = vunpack.c.l.b16 %v898
  %v4353 = vunpack.c.h.b16 %v898
  %v4354 = vunpack.c.l.b16 %v899
  %v4355 = vunpack.c.h.b16 %v899
  %v4356 = vunpack.c.l.b16 %v900
  %v4357 = vunpack.c.h.b16 %v900
  %v4358 = vunpack.c.l.b16 %v901
  %v4359 = vunpack.c.h.b16 %v901
  %v4360 = vunpack.c.l.b16 %v902
  %v4361 = vunpack.c.h.b16 %v902
  %v4362 = vunpack.c.l.b16 %v903
  %v4363 = vunpack.c.h.b16 %v903
  %v4364 = vunpack.c.l.b16 %v904
  %v4365 = vunpack.c.h.b16 %v904
  %v4366 = vunpack.c.l.b16 %v905
  %v4367 = vunpack.c.h.b16 %v905
  %v4368 = vunpack.c.l.b16 %v906
  %v4369 = vunpack.c.h.b16 %v906
  %v4370 = vunpack.c.l.b16 %v907
  %v4371 = vunpack.c.h.b16 %v907
  %v4372 = vunpack.c.l.b16 %v908
  %v4373 = vunpack.c.h.b16 %v908
  %v4374 = vunpack.c.l.b16 %v909
  %v4375 = vunpack.c.h.b16 %v909
  %v4376 = vunpack.c.l.b16 %v910
  %v4377 = vunpack.c.h.b16 %v910
  %v4378 = vunpack.c.l.b16 %v911
  %v4379 = vunpack.c.h.b16 %v911
  %v4380 = vunpack.c.l.b16 %v912
  %v4381 = vunpack.c.h.b16 %v912
  %v4382 = vunpack.c.l.b16 %v913
  %v4383 = vunpack.c.h.b16 %v913
  %v4384 = vunpack.c.l.b16 %v914
  %v4385 = vunpack.c.h.b16 %v914
  %v4386 = vunpack.c.l.b16 %v915
  %v4387 = vunpack.c.h.b16 %v915
  %v4388 = vunpack.c.l.b16 %v916
  %v4389 = vunpack.c.h.b16 %v916
  %v4390 = vunpack.c.l.b16 %v917
  %v4391 = vunpack.c.h.b16 %v917
  %v4392 = vunpack.c.l.b16 %v918
  %v4393 = vunpack.c.h.b16 %v918
  %v4394 = vunpack.c.l.b16 %v919
  %v4395 = vunpack.c.h.b16 %v919
  %v4396 = vunpack.c.l.b16 %v920
  %v4397 = vunpack.c.h.b16 %v920
  %v4398 = vunpack.c.l.b16 %v921
  %v4399 = vunpack.c.h.b16 %v921
  %v4400 = vunpack.c.l.b16 %v922
  %v4401 = vunpack.c.h.b16 %v922
  %v4402 = vunpack.c.l.b16 %v923
  %v4403 = vunpack.c.h.b16 %v923
  %v4404 = vunpack.c.l.b16 %v924
  %v4405 = vunpack.c.h.b16 %v924
  %v4406 = vunpack.c.l.b16 %v925
  %v4407 = vunpack.c.h.b16 %v925
  %v4408 = vunpack.c.l.b16 %v926
  %v4409 = vunpack.c.h.b16 %v926
  %v4410 = vunpack.c.l.b16 %v927
  %v4411 = vunpack.c.h.b16 %v927
  %v4412 = vunpack.c.l.b16 %v928
  %v4413 = vunpack.c.h.b16 %v928
  %v4414 = vunpack.c.l.b16 %v929
  %v4415 = vunpack.c.h.b16 %v929
  %v4416 = vunpack.c.l.b16 %v930
  %v4417 = vunpack.c.h.b16 %v930
  %v4418 = vunpack.c.l.b16 %v931
  %v4419 = vunpack.c.h.b16 %v931
  %v4420 = vunpack.c.l.b16 %v932
  %v4421 = vunpack.c.h.b16 %v932
  %v4422 = vunpack.c.l.b16 %v933
  %v4423 = vunpack.c.h.b16 %v933
  %v4424 = vunpack.c.l.b16 %v934
  %v4425 = vunpack.c.h.b16 %v934
  %v4426 = vunpack.c.l.b16 %v935
  %v4427 = vunpack.c.h.b16 %v935
  %v4428 = vunpack.c.l.b16 %v936
  %v4429 = vunpack.c.h.b16 %v936
  %v4430 = vunpack.c.l.b16 %v937
  %v4431 = vunpack.c.h.b16 %v937
  %v4432 = vunpack.c.l.b16 %v938
  %v4433 = vunpack.c.h.b16 %v938
  %v4434 = vunpack.c.l.b16 %v939
  %v4435 = vunpack.c.h.b16 %v939
  %v4436 = vunpack.c.l.b16 %v940
  %v4437 = vunpack.c.h.b16 %v940
  %v4438 = vunpack.c.l.b16 %v941
  %v4439 = vunpack.c.h.b16 %v941
  %v4440 = vunpack.c.l.b16 %v942
  %v4441 = vunpack.c.h.b16 %v942
  %v4442 = vunpack.c.l.b16 %v943
  %v4443 = vunpack.c.h.b16 %v943
  %v4444 = vunpack.c.l.b16 %v944
  %v4445 = vunpack.c.h.b16 %v944
  %v4446 = vunpack.c.l.b16 %v945
  %v4447 = vunpack.c.h.b16 %v945
  %v4448 = vunpack.c.l.b16 %v946
  %v4449 = vunpack.c.h.b16 %v946
  %v4450 = vunpack.c.l.b16 %v947
  %v4451 = vunpack.c.h.b16 %v947
  %v4452 = vunpack.c.l.b16 %v948
  %v4453 = vunpack.c.h.b16 %v948
  %v4454 = vunpack.c.l.b16 %v949
  %v4455 = vunpack.c.h.b16 %v949
  %v4456 = vunpack.c.l.b16 %v950
  %v4457 = vunpack.c.h.b16 %v950
  %v4458 = vunpack.c.l.b16 %v951
  %v4459 = vunpack.c.h.b16 %v951
  %v4460 = vunpack.c.l.b16 %v952
  %v4461 = vunpack.c.h.b16 %v952
  %v4462 = vunpack.c.l.b16 %v953
  %v4463 = vunpack.c.h.b16 %v953
  %v4464 = vunpack.c.l.b16 %v954
  %v4465 = vunpack.c.h.b16 %v954
  %v4466 = vunpack.c.l.b16 %v955
  %v4467 = vunpack.c.h.b16 %v955
  %v4468 = vunpack.c.l.b16 %v956
  %v4469 = vunpack.c.h.b16 %v956
  %v4470 = vunpack.c.l.b16 %v957
  %v4471 = vunpack.c.h.b16 %v957
  %v4472 = vunpack.c.l.b16 %v958
  %v4473 = vunpack.c.h.b16 %v958
  %v4474 = vunpack.c.l.b16 %v959
  %v4475 = vunpack.c.h.b16 %v959
  %v4476 = vunpack.c.l.b16 %v960
  %v4477 = vunpack.c.h.b16 %v960
  %v4478 = vunpack.c.l.b16 %v961
  %v4479 = vunpack.c.h.b16 %v961
  %v4480 = vunpack.c.l.b16 %v962
  %v4481 = vunpack.c.h.b16 %v962
  %v4482 = vunpack.c.l.b16 %v963
  %v4483 = vunpack.c.h.b16 %v963
  %v4484 = vunpack.c.l.b16 %v964
  %v4485 = vunpack.c.h.b16 %v964
  %v4486 = vunpack.c.l.b16 %v965
  %v4487 = vunpack.c.h.b16 %v965
  %v4488 = vunpack.c.l.b16 %v966
  %v4489 = vunpack.c.h.b16 %v966
  %v4490 = vunpack.c.l.b16 %v967
  %v4491 = vunpack.c.h.b16 %v967
  %v4492 = vunpack.c.l.b16 %v968
  %v4493 = vunpack.c.h.b16 %v968
  %v4494 = vunpack.c.l.b16 %v969
  %v4495 = vunpack.c.h.b16 %v969
  %v4496 = vunpack.c.l.b16 %v970
  %v4497 = vunpack.c.h.b16 %v970
  %v4498 = vunpack.c.l.b16 %v971
  %v4499 = vunpack.c.h.b16 %v971
  %v4500 = vunpack.c.l.b16 %v972
  %v4501 = vunpack.c.h.b16 %v972
  %v4502 = vunpack.c.l.b16 %v973
  %v4503 = vunpack.c.h.b16 %v973
  %v4504 = vunpack.c.l.b16 %v974
  %v4505 = vunpack.c.h.b16 %v974
  %v4506 = vunpack.c.l.b16 %v975
  %v4507 = vunpack.c.h.b16 %v975
  %v4508 = vunpack.c.l.b16 %v976
  %v4509 = vunpack.c.h.b16 %v976
  %v4510 = vunpack.c.l.b16 %v977
  %v4511 = vunpack.c.h.b16 %v977
  %v4512 = vunpack.c.l.b16 %v978
  %v4513 = vunpack.c.h.b16 %v978
  %v4514 = vunpack.c.l.b16 %v979
  %v4515 = vunpack.c.h.b16 %v979
  %v4516 = vunpack.c.l.b16 %v980
  %v4517 = vunpack.c.h.b16 %v980
  %v4518 = vunpack.c.l.b16 %v981
  %v4519 = vunpack.c.h.b16 %v981
  %v4520 = vunpack.c.l.b16 %v982
  %v4521 = vunpack.c.h.b16 %v982
  %v4522 = vunpack.c.l.b16 %v983
  %v4523 = vunpack.c.h.b16 %v983
  %v4524 = vunpack.c.l.b16 %v984
  %v4525 = vunpack.c.h.b16 %v984
  %v4526 = vunpack.c.l.b16 %v985
  %v4527 = vunpack.c.h.b16 %v985
  %v4528 = vunpack.c.l.b16 %v986
  %v4529 = vunpack.c.h.b16 %v986
  %v4530 = vunpack.c.l.b16 %v987
  %v4531 = vunpack.c.h.b16 %v987
  %v4532 = vunpack.c.l.b16 %v988
  %v4533 = vunpack.c.h.b16 %v988
  %v4534 = vunpack.c.l.b16 %v989
  %v4535 = vunpack.c.h.b16 %v989
  %v4536 = vunpack.c.l.b16 %v990
  %v4537 = vunpack.c.h.b16 %v990
  %v4538 = vunpack.c.l.b16 %v991
  %v4539 = vunpack.c.h.b16 %v991
  %v4540 = vunpack.c.l.b16 %v992
  %v4541 = vunpack.c.h.b16 %v992
  %v4542 = vunpack.c.l.b16 %v993
  %v4543 = vunpack.c.h.b16 %v993
  %v4544 = vunpack.c.l.b16 %v994
  %v4545 = vunpack.c.h.b16 %v994
  %v4546 = vunpack.c.l.b16 %v995
  %v4547 = vunpack.c.h.b16 %v995
  %v4548 = vunpack.c.l.b16 %v996
  %v4549 = vunpack.c.h.b16 %v996
  %v4550 = vunpack.c.l.b16 %v997
  %v4551 = vunpack.c.h.b16 %v997
  %v4552 = vunpack.c.l.b16 %v998
  %v4553 = vunpack.c.h.b16 %v998
  %v4554 = vunpack.c.l.b16 %v999
  %v4555 = vunpack.c.h.b16 %v999
  %v4556 = vunpack.c.l.b16 %v1000
  %v4557 = vunpack.c.h.b16 %v1000
  %v4558 = vunpack.c.l.b16 %v1001
  %v4559 = vunpack.c.h.b16 %v1001
  %v4560 = vunpack.c.l.b16 %v1002
  %v4561 = vunpack.c.h.b16 %v1002
  %v4562 = vunpack.c.l.b16 %v1003
  %v4563 = vunpack.c.h.b16 %v1003
  %v4564 = vunpack.c.l.b16 %v1004
  %v4565 = vunpack.c.h.b16 %v1004
  %v4566 = vunpack.c.l.b16 %v1005
  %v4567 = vunpack.c.h.b16 %v1005
  %v4568 = vunpack.c.l.b16 %v1006
  %v4569 = vunpack.c.h.b16 %v1006
  %v4570 = vunpack.c.l.b16 %v1007
  %v4571 = vunpack.c.h.b16 %v1007
  %v4572 = vunpack.c.l.b16 %v1008
  %v4573 = vunpack.c.h.b16 %v1008
  %v4574 = vunpack.c.l.b16 %v1009
  %v4575 = vunpack.c.h.b16 %v1009
  %v4576 = vunpack.c.l.b16 %v1010
  %v4577 = vunpack.c.h.b16 %v1010
  %v4578 = vunpack.c.l.b16 %v1011
  %v4579 = vunpack.c.h.b16 %v1011
  %v4580 = vunpack.c.l.b16 %v1012
  %v4581 = vunpack.c.h.b16 %v1012
  %v4582 = vunpack.c.l.b16 %v1013
  %v4583 = vunpack.c.h.b16 %v1013
  %v4584 = vunpack.c.l.b16 %v1014
  %v4585 = vunpack.c.h.b16 %v1014
  %v4586 = vunpack.c.l.b16 %v1015
  %v4587 = vunpack.c.h.b16 %v1015
  %v4588 = vunpack.c.l.b16 %v1016
  %v4589 = vunpack.c.h.b16 %v1016
  %v4590 = vunpack.c.l.b16 %v1017
  %v4591 = vunpack.c.h.b16 %v1017
  %v4592 = vunpack.c.l.b16 %v1018
  %v4593 = vunpack.c.h.b16 %v1018
  %v4594 = vunpack.c.l.b16 %v1019
  %v4595 = vunpack.c.h.b16 %v1019
  %v4596 = vunpack.c.l.b16 %v1020
  %v4597 = vunpack.c.h.b16 %v1020
  %v4598 = vunpack.c.l.b16 %v1021
  %v4599 = vunpack.c.h.b16 %v1021
  %v4600 = vunpack.c.l.b16 %v1022
  %v4601 = vunpack.c.h.b16 %v1022
  %v4602 = vunpack.c.l.b16 %v1023
  %v4603 = vunpack.c.h.b16 %v1023
  %v4604 = vunpack.c.l.b16 %v1024
  %v4605 = vunpack.c.h.b16 %v1024
  %v4606 = vunpack.c.l.b16 %v1025
  %v4607 = vunpack.c.h.b16 %v1025
  %v4608 = vunpack.c.l.b16 %v1026
  %v4609 = vunpack.c.h.b16 %v1026
  %v4610 = vunpack.c.l.b16 %v1027
  %v4611 = vunpack.c.h.b16 %v1027
  %v4612 = vunpack.c.l.b16 %v1028
  %v4613 = vunpack.c.h.b16 %v1028
  %v4614 = vunpack.c.l.b16 %v1029
  %v4615 = vunpack.c.h.b16 %v1029
  %v4616 = vunpack.c.l.b16 %v1030
  %v4617 = vunpack.c.h.b16 %v1030
  %v4618 = vunpack.c.l.b16 %v1031
  %v4619 = vunpack.c.h.b16 %v1031
  %v4620 = vunpack.c.l.b16 %v1032
  %v4621 = vunpack.c.h.b16 %v1032
  %v4622 = vunpack.c.l.b16 %v1033
  %v4623 = vunpack.c.h.b16 %v1033
  %v4624 = vunpack.c.l.b16 %v1034
  %v4625 = vunpack.c.h.b16 %v1034
  %v4626 = vunpack.c.l.b16 %v1035
  %v4627 = vunpack.c.h.b16 %v1035
  %v4628 = vunpack.c.l.b16 %v1036
  %v4629 = vunpack.c.h.b16 %v1036
  %v4630 = vunpack.c.l.b16 %v1037
  %v4631 = vunpack.c.h.b16 %v1037
  %v4632 = vunpack.c.l.b16 %v1038
  %v4633 = vunpack.c.h.b16 %v1038
  %v4634 = vunpack.c.l.b16 %v1039
  %v4635 = vunpack.c.h.b16 %v1039
  %v4636 = vunpack.c.l.b16 %v1040
  %v4637 = vunpack.c.h.b16 %v1040
  %v4638 = vunpack.c.l.b16 %v1041
  %v4639 = vunpack.c.h.b16 %v1041
  %v4640 = vunpack.c.l.b16 %v1042
  %v4641 = vunpack.c.h.b16 %v1042
  %v4642 = vunpack.c.l.b16 %v1043
  %v4643 = vunpack.c.h.b16 %v1043
  %v4644 = vunpack.c.l.b16 %v1044
  %v4645 = vunpack.c.h.b16 %v1044
  %v4646 = vunpack.c.l.b16 %v1045
  %v4647 = vunpack.c.h.b16 %v1045
  %v4648 = vunpack.c.l.b16 %v1046
  %v4649 = vunpack.c.h.b16 %v1046
  %v4650 = vunpack.c.l.b16 %v1047
  %v4651 = vunpack.c.h.b16 %v1047
  %v4652 = vunpack.c.l.b16 %v1048
  %v4653 = vunpack.c.h.b16 %v1048
  %v4654 = vunpack.c.l.b16 %v1049
  %v4655 = vunpack.c.h.b16 %v1049
  %v4656 = vunpack.c.l.b16 %v1050
  %v4657 = vunpack.c.h.b16 %v1050
  %v4658 = vunpack.c.l.b16 %v1051
  %v4659 = vunpack.c.h.b16 %v1051
  %v4660 = vunpack.c.l.b16 %v1052
  %v4661 = vunpack.c.h.b16 %v1052
  %v4662 = vunpack.c.l.b16 %v1053
  %v4663 = vunpack.c.h.b16 %v1053
  %v4664 = vunpack.c.l.b16 %v1054
  %v4665 = vunpack.c.h.b16 %v1054
  %v4666 = vunpack.c.l.b16 %v1055
  %v4667 = vunpack.c.h.b16 %v1055
  %v4668 = vunpack.c.l.b16 %v1056
  %v4669 = vunpack.c.h.b16 %v1056
  %v4670 = vunpack.c.l.b16 %v1057
  %v4671 = vunpack.c.h.b16 %v1057
  %v4672 = vunpack.c.l.b16 %v1058
  %v4673 = vunpack.c.h.b16 %v1058
  %v4674 = vunpack.c.l.b16 %v1059
  %v4675 = vunpack.c.h.b16 %v1059
  %v4676 = vunpack.c.l.b16 %v1060
  %v4677 = vunpack.c.h.b16 %v1060
  %v4678 = vunpack.c.l.b16 %v1061
  %v4679 = vunpack.c.h.b16 %v1061
  %v4680 = vunpack.c.l.b16 %v1062
  %v4681 = vunpack.c.h.b16 %v1062
  %v4682 = vunpack.c.l.b16 %v1063
  %v4683 = vunpack.c.h.b16 %v1063
  %v4684 = vunpack.c.l.b16 %v1064
  %v4685 = vunpack.c.h.b16 %v1064
  %v4686 = vunpack.c.l.b16 %v1065
  %v4687 = vunpack.c.h.b16 %v1065
  %v4688 = vunpack.c.l.b16 %v1066
  %v4689 = vunpack.c.h.b16 %v1066
  %v4690 = vunpack.c.l.b16 %v1067
  %v4691 = vunpack.c.h.b16 %v1067
  %v4692 = vunpack.c.l.b16 %v1068
  %v4693 = vunpack.c.h.b16 %v1068
  %v4694 = vunpack.c.l.b16 %v1069
  %v4695 = vunpack.c.h.b16 %v1069
  %v4696 = vunpack.c.l.b16 %v1070
  %v4697 = vunpack.c.h.b16 %v1070
  %v4698 = vunpack.c.l.b16 %v1071
  %v4699 = vunpack.c.h.b16 %v1071
  %v4700 = vunpack.c.l.b16 %v1072
  %v4701 = vunpack.c.h.b16 %v1072
  %v4702 = vunpack.c.l.b16 %v1073
  %v4703 = vunpack.c.h.b16 %v1073
  %v4704 = vunpack.c.l.b16 %v1074
  %v4705 = vunpack.c.h.b16 %v1074
  %v4706 = vunpack.c.l.b16 %v1075
  %v4707 = vunpack.c.h.b16 %v1075
  %v4708 = vunpack.c.l.b16 %v1076
  %v4709 = vunpack.c.h.b16 %v1076
  %v4710 = vunpack.c.l.b16 %v1077
  %v4711 = vunpack.c.h.b16 %v1077
  %v4712 = vunpack.c.l.b16 %v1078
  %v4713 = vunpack.c.h.b16 %v1078
  %v4714 = vunpack.c.l.b16 %v1079
  %v4715 = vunpack.c.h.b16 %v1079
  %v4716 = vunpack.c.l.b16 %v1080
  %v4717 = vunpack.c.h.b16 %v1080
  %v4718 = vunpack.c.l.b16 %v1081
  %v4719 = vunpack.c.h.b16 %v1081
  %v4720 = vunpack.c.l.b16 %v1082
  %v4721 = vunpack.c.h.b16 %v1082
  %v4722 = vunpack.c.l.b16 %v1083
  %v4723 = vunpack.c.h.b16 %v1083
  %v4724 = vunpack.c.l.b16 %v1084
  %v4725 = vunpack.c.h.b16 %v1084
  %v4726 = vunpack.c.l.b16 %v1085
  %v4727 = vunpack.c.h.b16 %v1085
  %v4728 = vunpack.c.l.b16 %v1086
  %v4729 = vunpack.c.h.b16 %v1086
  %v4730 = vunpack.c.l.b16 %v1087
  %v4731 = vunpack.c.h.b16 %v1087
  %v4732 = vunpack.c.l.b16 %v1088
  %v4733 = vunpack.c.h.b16 %v1088
  %v4734 = vunpack.c.l.b16 %v1089
  %v4735 = vunpack.c.h.b16 %v1089
  %v4736 = vunpack.c.l.b16 %v1090
  %v4737 = vunpack.c.h.b16 %v1090
  %v4738 = vunpack.c.l.b16 %v1091
  %v4739 = vunpack.c.h.b16 %v1091
  %v4740 = vunpack.c.l.b16 %v1092
  %v4741 = vunpack.c.h.b16 %v1092
  %v4742 = vunpack.c.l.b16 %v1093
  %v4743 = vunpack.c.h.b16 %v1093
  %v4744 = vunpack.c.l.b16 %v1094
  %v4745 = vunpack.c.h.b16 %v1094
  %v4746 = vunpack.c.l.b16 %v1095
  %v4747 = vunpack.c.h.b16 %v1095
  %v4748 = vunpack.c.l.b16 %v1096
  %v4749 = vunpack.c.h.b16 %v1096
  %v4750 = vunpack.c.l.b16 %v1097
  %v4751 = vunpack.c.h.b16 %v1097
  %v4752 = vunpack.c.l.b16 %v1098
  %v4753 = vunpack.c.h.b16 %v1098
  %v4754 = vunpack.c.l.b16 %v1099
  %v4755 = vunpack.c.h.b16 %v1099
  %v4756 = vunpack.c.l.b16 %v1100
  %v4757 = vunpack.c.h.b16 %v1100
  %v4758 = vunpack.c.l.b16 %v1101
  %v4759 = vunpack.c.h.b16 %v1101
  %v4760 = vunpack.c.l.b16 %v1102
  %v4761 = vunpack.c.h.b16 %v1102
  %v4762 = vunpack.c.l.b16 %v1103
  %v4763 = vunpack.c.h.b16 %v1103
  %v4764 = vunpack.c.l.b16 %v1104
  %v4765 = vunpack.c.h.b16 %v1104
  %v4766 = vunpack.c.l.b16 %v1105
  %v4767 = vunpack.c.h.b16 %v1105
  %v4768 = vunpack.c.l.b16 %v1106
  %v4769 = vunpack.c.h.b16 %v1106
  %v4770 = vunpack.c.l.b16 %v1107
  %v4771 = vunpack.c.h.b16 %v1107
  %v4772 = vunpack.c.l.b16 %v1108
  %v4773 = vunpack.c.h.b16 %v1108
  %v4774 = vunpack.c.l.b16 %v1109
  %v4775 = vunpack.c.h.b16 %v1109
  %v4776 = vunpack.c.l.b16 %v1110
  %v4777 = vunpack.c.h.b16 %v1110
  %v4778 = vunpack.c.l.b16 %v1111
  %v4779 = vunpack.c.h.b16 %v1111
  %v4780 = vunpack.c.l.b16 %v1112
  %v4781 = vunpack.c.h.b16 %v1112
  %v4782 = vunpack.c.l.b16 %v1113
  %v4783 = vunpack.c.h.b16 %v1113
  %v4784 = vunpack.c.l.b16 %v1114
  %v4785 = vunpack.c.h.b16 %v1114
  %v4786 = vunpack.c.l.b16 %v1115
  %v4787 = vunpack.c.h.b16 %v1115
  %v4788 = vunpack.c.l.b16 %v1116
  %v4789 = vunpack.c.h.b16 %v1116
  %v4790 = vunpack.c.l.b16 %v1117
  %v4791 = vunpack.c.h.b16 %v1117
  %v4792 = vunpack.c.l.b16 %v1118
  %v4793 = vunpack.c.h.b16 %v1118
  %v4794 = vunpack.c.l.b16 %v1119
  %v4795 = vunpack.c.h.b16 %v1119
  %v4796 = vunpack.c.l.b16 %v1120
  %v4797 = vunpack.c.h.b16 %v1120
  %v4798 = vunpack.c.l.b16 %v1121
  %v4799 = vunpack.c.h.b16 %v1121
  %v4800 = vunpack.c.l.b16 %v1122
  %v4801 = vunpack.c.h.b16 %v1122
  %v4802 = vunpack.c.l.b16 %v1123
  %v4803 = vunpack.c.h.b16 %v1123
  %v4804 = vunpack.c.l.b16 %v1124
  %v4805 = vunpack.c.h.b16 %v1124
  %v4806 = vunpack.c.l.b16 %v1125
  %v4807 = vunpack.c.h.b16 %v1125
  %v4808 = vunpack.c.l.b16 %v1126
  %v4809 = vunpack.c.h.b16 %v1126
  %v4810 = vunpack.c.l.b16 %v1127
  %v4811 = vunpack.c.h.b16 %v1127
  %v4812 = vunpack.c.l.b16 %v1128
  %v4813 = vunpack.c.h.b16 %v1128
  %v4814 = vunpack.c.l.b16 %v1129
  %v4815 = vunpack.c.h.b16 %v1129
  %v4816 = vunpack.c.l.b16 %v1130
  %v4817 = vunpack.c.h.b16 %v1130
  %v4818 = vunpack.c.l.b16 %v1131
  %v4819 = vunpack.c.h.b16 %v1131
  %v4820 = vunpack.c.l.b16 %v1132
  %v4821 = vunpack.c.h.b16 %v1132
  %v4822 = vunpack.c.l.b16 %v1133
  %v4823 = vunpack.c.h.b16 %v1133
  %v4824 = vunpack.c.l.b16 %v1134
  %v4825 = vunpack.c.h.b16 %v1134
  %v4826 = vunpack.c.l.b16 %v1135
  %v4827 = vunpack.c.h.b16 %v1135
  %v4828 = vunpack.c.l.b16 %v1136
  %v4829 = vunpack.c.h.b16 %v1136
  %v4830 = vunpack.c.l.b16 %v1137
  %v4831 = vunpack.c.h.b16 %v1137
  %v4832 = vunpack.c.l.b16 %v1138
  %v4833 = vunpack.c.h.b16 %v1138
  %v4834 = vunpack.c.l.b16 %v1139
  %v4835 = vunpack.c.h.b16 %v1139
  %v4836 = vunpack.c.l.b16 %v1140
  %v4837 = vunpack.c.h.b16 %v1140
  %v4838 = vunpack.c.l.b16 %v1141
  %v4839 = vunpack.c.h.b16 %v1141
  %v4840 = vunpack.c.l.b16 %v1142
  %v4841 = vunpack.c.h.b16 %v1142
  %v4842 = vunpack.c.l.b16 %v1143
  %v4843 = vunpack.c.h.b16 %v1143
  %v4844 = vunpack.c.l.b16 %v1144
  %v4845 = vunpack.c.h.b16 %v1144
  %v4846 = vunpack.c.l.b16 %v1145
  %v4847 = vunpack.c.h.b16 %v1145
  %v4848 = vunpack.c.l.b16 %v1146
  %v4849 = vunpack.c.h.b16 %v1146
  %v4850 = vunpack.c.l.b16 %v1147
  %v4851 = vunpack.c.h.b16 %v1147
  %v4852 = vunpack.c.l.b16 %v1148
  %v4853 = vunpack.c.h.b16 %v1148
  %v4854 = vunpack.c.l.b16 %v1149
  %v4855 = vunpack.c.h.b16 %v1149
  %v4856 = vunpack.c.l.b16 %v1150
  %v4857 = vunpack.c.h.b16 %v1150
  %v4858 = vunpack.c.l.b16 %v1151
  %v4859 = vunpack.c.h.b16 %v1151
  %v4860 = vunpack.c.l.b16 %v1152
  %v4861 = vunpack.c.h.b16 %v1152
  %v4862 = vunpack.c.l.b16 %v1153
  %v4863 = vunpack.c.h.b16 %v1153
  %v4864 = vunpack.c.l.b16 %v1154
  %v4865 = vunpack.c.h.b16 %v1154
  %v4866 = vunpack.c.l.b16 %v1155
  %v4867 = vunpack.c.h.b16 %v1155
  %v4868 = vunpack.c.l.b16 %v1156
  %v4869 = vunpack.c.h.b16 %v1156
  %v4870 = vunpack.c.l.b16 %v1157
  %v4871 = vunpack.c.h.b16 %v1157
  %v4872 = vunpack.c.l.b16 %v1158
  %v4873 = vunpack.c.h.b16 %v1158
  %v4874 = vunpack.c.l.b16 %v1159
  %v4875 = vunpack.c.h.b16 %v1159
  %v4876 = vunpack.c.l.b16 %v1160
  %v4877 = vunpack.c.h.b16 %v1160
  %v4878 = vunpack.c.l.b16 %v1161
  %v4879 = vunpack.c.h.b16 %v1161
  %v4880 = vunpack.c.l.b16 %v1162
  %v4881 = vunpack.c.h.b16 %v1162
  %v4882 = vunpack.c.l.b16 %v1163
  %v4883 = vunpack.c.h.b16 %v1163
  %v4884 = vunpack.c.l.b16 %v1164
  %v4885 = vunpack.c.h.b16 %v1164
  %v4886 = vunpack.c.l.b16 %v1165
  %v4887 = vunpack.c.h.b16 %v1165
  %v4888 = vunpack.c.l.b16 %v1166
  %v4889 = vunpack.c.h.b16 %v1166
  %v4890 = vunpack.c.l.b16 %v1167
  %v4891 = vunpack.c.h.b16 %v1167
  %v4892 = vpack.c.b16 %v2846, %v2844
  %v4893 = vpack.c.b16 %v2847, %v2845
  %v4894 = vpack.c.b16 %v2850, %v2848
  %v4895 = vpack.c.b16 %v2851, %v2849
  %v4896 = vpack.c.b16 %v2854, %v2852
  %v4897 = vpack.c.b16 %v2855, %v2853
  %v4898 = vpack.c.b16 %v2858, %v2856
  %v4899 = vpack.c.b16 %v2859, %v2857
  %v4900 = vpack.c.b16 %v2862, %v2860
  %v4901 = vpack.c.b16 %v2863, %v2861
  %v4902 = vpack.c.b16 %v2866, %v2864
  %v4903 = vpack.c.b16 %v2867, %v2865
  %v4904 = vpack.c.b16 %v2870, %v2868
  %v4905 = vpack.c.b16 %v2871, %v2869
  %v4906 = vpack.c.b16 %v2874, %v2872
  %v4907 = vpack.c.b16 %v2875, %v2873
  %v4908 = vpack.c.b16 %v2878, %v2876
  %v4909 = vpack.c.b16 %v2879, %v2877
  %v4910 = vpack.c.b16 %v2882, %v2880
  %v4911 = vpack.c.b16 %v2883, %v2881
  %v4912 = vpack.c.b16 %v2886, %v2884
  %v4913 = vpack.c.b16 %v2887, %v2885
  %v4914 = vpack.c.b16 %v2890, %v2888
  %v4915 = vpack.c.b16 %v2891, %v2889
  %v4916 = vpack.c.b16 %v2894, %v2892
  %v4917 = vpack.c.b16 %v2895, %v2893
  %v4918 = vpack.c.b16 %v2898, %v2896
  %v4919 = vpack.c.b16 %v2899, %v2897
  %v4920 = vpack.c.b16 %v2902, %v2900
  %v4921 = vpack.c.b16 %v2903, %v2901
  %v4922 = vpack.c.b16 %v2906, %v2904
  %v4923 = vpack.c.b16 %v2907, %v2905
  %v4924 = vpack.c.b16 %v2910, %v2908
  %v4925 = vpack.c.b16 %v2911, %v2909
  %v4926 = vpack.c.b16 %v2914, %v2912
  %v4927 = vpack.c.b16 %v2915, %v2913
  %v4928 = vpack.c.b16 %v2918, %v2916
  %v4929 = vpack.c.b16 %v2919, %v2917
  %v4930 = vpack.c.b16 %v2922, %v2920
  %v4931 = vpack.c.b16 %v2923, %v2921
  %v4932 = vpack.c.b16 %v2926, %v2924
  %v4933 = vpack.c.b16 %v2927, %v2925
  %v4934 = vpack.c.b16 %v2930, %v2928
  %v4935 = vpack.c.b16 %v2931, %v2929
  %v4936 = vpack.c.b16 %v2934, %v2932
  %v4937 = vpack.c.b16 %v2935, %v2933
  %v4938 = vpack.c.b16 %v2938, %v2936
  %v4939 = vpack.c.b16 %v2939, %v2937
  %v4940 = vpack.c.b16 %v2942, %v2940
  %v4941 = vpack.c.b16 %v2943, %v2941
  %v4942 = vpack.c.b16 %v2946, %v2944
  %v4943 = vpack.c.b16 %v2947, %v2945
  %v4944 = vpack.c.b16 %v2950, %v2948
  %v4945 = vpack.c.b16 %v2951, %v2949
  %v4946 = vpack.c.b16 %v2954, %v2952
  %v4947 = vpack.c.b16 %v2955, %v2953
  %v4948 = vpack.c.b16 %v2958, %v2956
  %v4949 = vpack.c.b16 %v2959, %v2957
  %v4950 = vpack.c.b16 %v2962, %v2960
  %v4951 = vpack.c.b16 %v2963, %v2961
  %v4952 = vpack.c.b16 %v2966, %v2964
  %v4953 = vpack.c.b16 %v2967, %v2965
  %v4954 = vpack.c.b16 %v2970, %v2968
  %v4955 = vpack.c.b16 %v2971, %v2969
  %v4956 = vpack.c.b16 %v2974, %v2972
  %v4957 = vpack.c.b16 %v2975, %v2973
  %v4958 = vpack.c.b16 %v2978, %v2976
  %v4959 = vpack.c.b16 %v2979, %v2977
  %v4960 = vpack.c.b16 %v2982, %v2980
  %v4961 = vpack.c.b16 %v2983, %v2981
  %v4962 = vpack.c.b16 %v2986, %v2984
  %v4963 = vpack.c.b16 %v2987, %v2985
  %v4964 = vpack.c.b16 %v2990, %v2988
  %v4965 = vpack.c.b16 %v2991, %v2989
  %v4966 = vpack.c.b16 %v2994, %v2992
  %v4967 = vpack.c.b16 %v2995, %v2993
  %v4968 = vpack.c.b16 %v2998, %v2996
  %v4969 = vpack.c.b16 %v2999, %v2997
  %v4970 = vpack.c.b16 %v3002, %v3000
  %v4971 = vpack.c.b16 %v3003, %v3001
  %v4972 = vpack.c.b16 %v3006, %v3004
  %v4973 = vpack.c.b16 %v3007, %v3005
  %v4974 = vpack.c.b16 %v3010, %v3008
  %v4975 = vpack.c.b16 %v3011, %v3009
  %v4976 = vpack.c.b16 %v3014, %v3012
  %v4977 = vpack.c.b16 %v3015, %v3013
  %v4978 = vpack.c.b16 %v3018, %v3016
  %v4979 = vpack.c.b16 %v3019, %v3017
  %v4980 = vpack.c.b16 %v3022, %v3020
  %v4981 = vpack.c.b16 %v3023, %v3021
  %v4982 = vpack.c.b16 %v3026, %v3024
  %v4983 = vpack.c.b16 %v3027, %v3025
  %v4984 = vpack.c.b16 %v3030, %v3028
  %v4985 = vpack.c.b16 %v3031, %v3029
  %v4986 = vpack.c.b16 %v3034, %v3032
  %v4987 = vpack.c.b16 %v3035, %v3033
  %v4988 = vpack.c.b16 %v3038, %v3036
  %v4989 = vpack.c.b16 %v3039, %v3037
  %v4990 = vpack.c.b16 %v3042, %v3040
  %v4991 = vpack.c.b16 %v3043, %v3041
  %v4992 = vpack.c.b16 %v3046, %v3044
  %v4993 = vpack.c.b16 %v3047, %v3045
  %v4994 = vpack.c.b16 %v3050, %v3048
  %v4995 = vpack.c.b16 %v3051, %v3049
  %v4996 = vpack.c.b16 %v3054, %v3052
  %v4997 = vpack.c.b16 %v3055, %v3053
  %v4998 = vpack.c.b16 %v3058, %v3056
  %v4999 = vpack.c.b16 %v3059, %v3057
  %v5000 = vpack.c.b16 %v3062, %v3060
  %v5001 = vpack.c.b16 %v3063, %v3061
  %v5002 = vpack.c.b16 %v3066, %v3064
  %v5003 = vpack.c.b16 %v3067, %v3065
  %v5004 = vpack.c.b16 %v3070, %v3068
  %v5005 = vpack.c.b16 %v3071, %v3069
  %v5006 = vpack.c.b16 %v3074, %v3072
  %v5007 = vpack.c.b16 %v3075, %v3073
  %v5008 = vpack.c.b16 %v3078, %v3076
  %v5009 = vpack.c.b16 %v3079, %v3077
  %v5010 = vpack.c.b16 %v3082, %v3080
  %v5011 = vpack.c.b16 %v3083, %v3081
  %v5012 = vpack.c.b16 %v3086, %v3084
  %v5013 = vpack.c.b16 %v3087, %v3085
  %v5014 = vpack.c.b16 %v3090, %v3088
  %v5015 = vpack.c.b16 %v3091, %v3089
  %v5016 = vpack.c.b16 %v3094, %v3092
  %v5017 = vpack.c.b16 %v3095, %v3093
  %v5018 = vpack.c.b16 %v3098, %v3096
  %v5019 = vpack.c.b16 %v3099, %v3097
  %v5020 = vpack.c.b16 %v3102, %v3100
  %v5021 = vpack.c.b16 %v3103, %v3101
  %v5022 = vpack.c.b16 %v3106, %v3104
  %v5023 = vpack.c.b16 %v3107, %v3105
  %v5024 = vpack.c.b16 %v3110, %v3108
  %v5025 = vpack.c.b16 %v3111, %v3109
  %v5026 = vpack.c.b16 %v3114, %v3112
  %v5027 = vpack.c.b16 %v3115, %v3113
  %v5028 = vpack.c.b16 %v3118, %v3116
  %v5029 = vpack.c.b16 %v3119, %v3117
  %v5030 = vpack.c.b16 %v3122, %v3120
  %v5031 = vpack.c.b16 %v3123, %v3121
  %v5032 = vpack.c.b16 %v3126, %v3124
  %v5033 = vpack.c.b16 %v3127, %v3125
  %v5034 = vpack.c.b16 %v3130, %v3128
  %v5035 = vpack.c.b16 %v3131, %v3129
  %v5036 = vpack.c.b16 %v3134, %v3132
  %v5037 = vpack.c.b16 %v3135, %v3133
  %v5038 = vpack.c.b16 %v3138, %v3136
  %v5039 = vpack.c.b16 %v3139, %v3137
  %v5040 = vpack.c.b16 %v3142, %v3140
  %v5041 = vpack.c.b16 %v3143, %v3141
  %v5042 = vpack.c.b16 %v3146, %v3144
  %v5043 = vpack.c.b16 %v3147, %v3145
  %v5044 = vpack.c.b16 %v3150, %v3148
  %v5045 = vpack.c.b16 %v3151, %v3149
  %v5046 = vpack.c.b16 %v3154, %v3152
  %v5047 = vpack.c.b16 %v3155, %v3153
  %v5048 = vpack.c.b16 %v3158, %v3156
  %v5049 = vpack.c.b16 %v3159, %v3157
  %v5050 = vpack.c.b16 %v3162, %v3160
  %v5051 = vpack.c.b16 %v3163, %v3161
  %v5052 = vpack.c.b16 %v3166, %v3164
  %v5053 = vpack.c.b16 %v3167, %v3165
  %v5054 = vpack.c.b16 %v3170, %v3168
  %v5055 = vpack.c.b16 %v3171, %v3169
  %v5056 = vpack.c.b16 %v3174, %v3172
  %v5057 = vpack.c.b16 %v3175, %v3173
  %v5058 = vpack.c.b16 %v3178, %v3176
  %v5059 = vpack.c.b16 %v3179, %v3177
  %v5060 = vpack.c.b16 %v3182, %v3180
  %v5061 = vpack.c.b16 %v3183, %v3181
  %v5062 = vpack.c.b16 %v3186, %v3184
  %v5063 = vpack.c.b16 %v3187, %v3185
  %v5064 = vpack.c.b16 %v3190, %v3188
  %v5065 = vpack.c.b16 %v3191, %v3189
  %v5066 = vpack.c.b16 %v3194, %v3192
  %v5067 = vpack.c.b16 %v3195, %v3193
  %v5068 = vpack.c.b16 %v3198, %v3196
  %v5069 = vpack.c.b16 %v3199, %v3197
  %v5070 = vpack.c.b16 %v3202, %v3200
  %v5071 = vpack.c.b16 %v3203, %v3201
  %v5072 = vpack.c.b16 %v3206, %v3204
  %v5073 = vpack.c.b16 %v3207, %v3205
  %v5074 = vpack.c.b16 %v3210, %v3208
  %v5075 = vpack.c.b16 %v3211, %v3209
  %v5076 = vpack.c.b16 %v3214, %v3212
  %v5077 = vpack.c.b16 %v3215, %v3213
  %v5078 = vpack.c.b16 %v3218, %v3216
  %v5079 = vpack.c.b16 %v3219, %v3217
  %v5080 = vpack.c.b16 %v3222, %v3220
  %v5081 = vpack.c.b16 %v3223, %v3221
  %v5082 = vpack.c.b16 %v3226, %v3224
  %v5083 = vpack.c.b16 %v3227, %v3225
  %v5084 = vpack.c.b16 %v3230, %v3228
  %v5085 = vpack.c.b16 %v3231, %v3229
  %v5086 = vpack.c.b16 %v3234, %v3232
  %v5087 = vpack.c.b16 %v3235, %v3233
  %v5088 = vpack.c.b16 %v3238, %v3236
  %v5089 = vpack.c.b16 %v3239, %v3237
  %v5090 = vpack.c.b16 %v3242, %v3240
  %v5091 = vpack.c.b16 %v3243, %v3241
  %v5092 = vpack.c.b16 %v3246, %v3244
  %v5093 = vpack.c.b16 %v3247, %v3245
  %v5094 = vpack.c.b16 %v3250, %v3248
  %v5095 = vpack.c.b16 %v3251, %v3249
  %v5096 = vpack.c.b16 %v3254, %v3252
  %v5097 = vpack.c.b16 %v3255, %v3253
  %v5098 = vpack.c.b16 %v3258, %v3256
  %v5099 = vpack.c.b16 %v3259, %v3257
  %v5100 = vpack.c.b16 %v3262, %v3260
  %v5101 = vpack.c.b16 %v3263, %v3261
  %v5102 = vpack.c.b16 %v3266, %v3264
  %v5103 = vpack.c.b16 %v3267, %v3265
  %v5104 = vpack.c.b16 %v3270, %v3268
  %v5105 = vpack.c.b16 %v3271, %v3269
  %v5106 = vpack.c.b16 %v3274, %v3272
  %v5107 = vpack.c.b16 %v3275, %v3273
  %v5108 = vpack.c.b16 %v3278, %v3276
  %v5109 = vpack.c.b16 %v3279, %v3277
  %v5110 = vpack.c.b16 %v3282, %v3280
  %v5111 = vpack.c.b16 %v3283, %v3281
  %v5112 = vpack.c.b16 %v3286, %v3284
  %v5113 = vpack.c.b16 %v3287, %v3285
  %v5114 = vpack.c.b16 %v3290, %v3288
  %v5115 = vpack.c.b16 %v3291, %v3289
  %v5116 = vpack.c.b16 %v3294, %v3292
  %v5117 = vpack.c.b16 %v3295, %v3293
  %v5118 = vpack.c.b16 %v3298, %v3296
  %v5119 = vpack.c.b16 %v3299, %v3297
  %v5120 = vpack.c.b16 %v3302, %v3300
  %v5121 = vpack.c.b16 %v3303, %v3301
  %v5122 = vpack.c.b16 %v3306, %v3304
  %v5123 = vpack.c.b16 %v3307, %v3305
  %v5124 = vpack.c.b16 %v3310, %v3308
  %v5125 = vpack.c.b16 %v3311, %v3309
  %v5126 = vpack.c.b16 %v3314, %v3312
  %v5127 = vpack.c.b16 %v3315, %v3313
  %v5128 = vpack.c.b16 %v3318, %v3316
  %v5129 = vpack.c.b16 %v3319, %v3317
  %v5130 = vpack.c.b16 %v3322, %v3320
  %v5131 = vpack.c.b16 %v3323, %v3321
  %v5132 = vpack.c.b16 %v3326, %v3324
  %v5133 = vpack.c.b16 %v3327, %v3325
  %v5134 = vpack.c.b16 %v3330, %v3328
  %v5135 = vpack.c.b16 %v3331, %v3329
  %v5136 = vpack.c.b16 %v3334, %v3332
  %v5137 = vpack.c.b16 %v3335, %v3333
  %v5138 = vpack.c.b16 %v3338, %v3336
  %v5139 = vpack.c.b16 %v3339, %v3337
  %v5140 = vpack.c.b16 %v3342, %v3340
  %v5141 = vpack.c.b16 %v3343, %v3341
  %v5142 = vpack.c.b16 %v3346, %v3344
  %v5143 = vpack.c.b16 %v3347, %v3345
  %v5144 = vpack.c.b16 %v3350, %v3348
  %v5145 = vpack.c.b16 %v3351, %v3349
  %v5146 = vpack.c.b16 %v3354, %v3352
  %v5147 = vpack.c.b16 %v3355, %v3353
  %v5148 = vpack.c.b16 %v3358, %v3356
  %v5149 = vpack.c.b16 %v3359, %v3357
  %v5150 = vpack.c.b16 %v3362, %v3360
  %v5151 = vpack.c.b16 %v3363, %v3361
  %v5152 = vpack.c.b16 %v3366, %v3364
  %v5153 = vpack.c.b16 %v3367, %v3365
  %v5154 = vpack.c.b16 %v3370, %v3368
  %v5155 = vpack.c.b16 %v3371, %v3369
  %v5156 = vpack.c.b16 %v3374, %v3372
  %v5157 = vpack.c.b16 %v3375, %v3373
  %v5158 = vpack.c.b16 %v3378, %v3376
  %v5159 = vpack.c.b16 %v3379, %v3377
  %v5160 = vpack.c.b16 %v3382, %v3380
  %v5161 = vpack.c.b16 %v3383, %v3381
  %v5162 = vpack.c.b16 %v3386, %v3384
  %v5163 = vpack.c.b16 %v3387, %v3385
  %v5164 = vpack.c.b16 %v3390, %v3388
  %v5165 = vpack.c.b16 %v3391, %v3389
  %v5166 = vpack.c.b16 %v3394, %v3392
  %v5167 = vpack.c.b16 %v3395, %v3393
  %v5168 = vpack.c.b16 %v3398, %v3396
  %v5169 = vpack.c.b16 %v3399, %v3397
  %v5170 = vpack.c.b16 %v3402, %v3400
  %v5171 = vpack.c.b16 %v3403, %v3401
  %v5172 = vpack.c.b16 %v3406, %v3404
  %v5173 = vpack.c.b16 %v3407, %v3405
  %v5174 = vpack.c.b16 %v3410, %v3408
  %v5175 = vpack.c.b16 %v3411, %v3409
  %v5176 = vpack.c.b16 %v3414, %v3412
  %v5177 = vpack.c.b16 %v3415, %v3413
  %v5178 = vpack.c.b16 %v3418, %v3416
  %v5179 = vpack.c.b16 %v3419, %v3417
  %v5180 = vpack.c.b16 %v3422, %v3420
  %v5181 = vpack.c.b16 %v3423, %v3421
  %v5182 = vpack.c.b16 %v3426, %v3424
  %v5183 = vpack.c.b16 %v3427, %v3425
  %v5184 = vpack.c.b16 %v3430, %v3428
  %v5185 = vpack.c.b16 %v3431, %v3429
  %v5186 = vpack.c.b16 %v3434, %v3432
  %v5187 = vpack.c.b16 %v3435, %v3433
  %v5188 = vpack.c.b16 %v3438, %v3436
  %v5189 = vpack.c.b16 %v3439, %v3437
  %v5190 = vpack.c.b16 %v3442, %v3440
  %v5191 = vpack.c.b16 %v3443, %v3441
  %v5192 = vpack.c.b16 %v3446, %v3444
  %v5193 = vpack.c.b16 %v3447, %v3445
  %v5194 = vpack.c.b16 %v3450, %v3448
  %v5195 = vpack.c.b16 %v3451, %v3449
  %v5196 = vpack.c.b16 %v3454, %v3452
  %v5197 = vpack.c.b16 %v3455, %v3453
  %v5198 = vpack.c.b16 %v3458, %v3456
  %v5199 = vpack.c.b16 %v3459, %v3457
  %v5200 = vpack.c.b16 %v3462, %v3460
  %v5201 = vpack.c.b16 %v3463, %v3461
  %v5202 = vpack.c.b16 %v3466, %v3464
  %v5203 = vpack.c.b16 %v3467, %v3465
  %v5204 = vpack.c.b16 %v3470, %v3468
  %v5205 = vpack.c.b16 %v3471, %v3469
  %v5206 = vpack.c.b16 %v3474, %v3472
  %v5207 = vpack.c.b16 %v3475, %v3473
  %v5208 = vpack.c.b16 %v3478, %v3476
  %v5209 = vpack.c.b16 %v3479, %v3477
  %v5210 = vpack.c.b16 %v3482, %v3480
  %v5211 = vpack.c.b16 %v3483, %v3481
  %v5212 = vpack.c.b16 %v3486, %v3484
  %v5213 = vpack.c.b16 %v3487, %v3485
  %v5214 = vpack.c.b16 %v3490, %v3488
  %v5215 = vpack.c.b16 %v3491, %v3489
  %v5216 = vpack.c.b16 %v3494, %v3492
  %v5217 = vpack.c.b16 %v3495, %v3493
  %v5218 = vpack.c.b16 %v3498, %v3496
  %v5219 = vpack.c.b16 %v3499, %v3497
  %v5220 = vpack.c.b16 %v3502, %v3500
  %v5221 = vpack.c.b16 %v3503, %v3501
  %v5222 = vpack.c.b16 %v3506, %v3504
  %v5223 = vpack.c.b16 %v3507, %v3505
  %v5224 = vpack.c.b16 %v3510, %v3508
  %v5225 = vpack.c.b16 %v3511, %v3509
  %v5226 = vpack.c.b16 %v3514, %v3512
  %v5227 = vpack.c.b16 %v3515, %v3513
  %v5228 = vpack.c.b16 %v3518, %v3516
  %v5229 = vpack.c.b16 %v3519, %v3517
  %v5230 = vpack.c.b16 %v3522, %v3520
  %v5231 = vpack.c.b16 %v3523, %v3521
  %v5232 = vpack.c.b16 %v3526, %v3524
  %v5233 = vpack.c.b16 %v3527, %v3525
  %v5234 = vpack.c.b16 %v3530, %v3528
  %v5235 = vpack.c.b16 %v3531, %v3529
  %v5236 = vpack.c.b16 %v3534, %v3532
  %v5237 = vpack.c.b16 %v3535, %v3533
  %v5238 = vpack.c.b16 %v3538, %v3536
  %v5239 = vpack.c.b16 %v3539, %v3537
  %v5240 = vpack.c.b16 %v3542, %v3540
  %v5241 = vpack.c.b16 %v3543, %v3541
  %v5242 = vpack.c.b16 %v3546, %v3544
  %v5243 = vpack.c.b16 %v3547, %v3545
  %v5244 = vpack.c.b16 %v3550, %v3548
  %v5245 = vpack.c.b16 %v3551, %v3549
  %v5246 = vpack.c.b16 %v3554, %v3552
  %v5247 = vpack.c.b16 %v3555, %v3553
  %v5248 = vpack.c.b16 %v3558, %v3556
  %v5249 = vpack.c.b16 %v3559, %v3557
  %v5250 = vpack.c.b16 %v3562, %v3560
  %v5251 = vpack.c.b16 %v3563, %v3561
  %v5252 = vpack.c.b16 %v3566, %v3564
  %v5253 = vpack.c.b16 %v3567, %v3565
  %v5254 = vpack.c.b16 %v3570, %v3568
  %v5255 = vpack.c.b16 %v3571, %v3569
  %v5256 = vpack.c.b16 %v3574, %v3572
  %v5257 = vpack.c.b16 %v3575, %v3573
  %v5258 = vpack.c.b16 %v3578, %v3576
  %v5259 = vpack.c.b16 %v3579, %v3577
  %v5260 = vpack.c.b16 %v3582, %v3580
  %v5261 = vpack.c.b16 %v3583, %v3581
  %v5262 = vpack.c.b16 %v3586, %v3584
  %v5263 = vpack.c.b16 %v3587, %v3585
  %v5264 = vpack.c.b16 %v3590, %v3588
  %v5265 = vpack.c.b16 %v3591, %v3589
  %v5266 = vpack.c.b16 %v3594, %v3592
  %v5267 = vpack.c.b16 %v3595, %v3593
  %v5268 = vpack.c.b16 %v3598, %v3596
  %v5269 = vpack.c.b16 %v3599, %v3597
  %v5270 = vpack.c.b16 %v3602, %v3600
  %v5271 = vpack.c.b16 %v3603, %v3601
  %v5272 = vpack.c.b16 %v3606, %v3604
  %v5273 = vpack.c.b16 %v3607, %v3605
  %v5274 = vpack.c.b16 %v3610, %v3608
  %v5275 = vpack.c.b16 %v3611, %v3609
  %v5276 = vpack.c.b16 %v3614, %v3612
  %v5277 = vpack.c.b16 %v3615, %v3613
  %v5278 = vpack.c.b16 %v3618, %v3616
  %v5279 = vpack.c.b16 %v3619, %v3617
  %v5280 = vpack.c.b16 %v3622, %v3620
  %v5281 = vpack.c.b16 %v3623, %v3621
  %v5282 = vpack.c.b16 %v3626, %v3624
  %v5283 = vpack.c.b16 %v3627, %v3625
  %v5284 = vpack.c.b16 %v3630, %v3628
  %v5285 = vpack.c.b16 %v3631, %v3629
  %v5286 = vpack.c.b16 %v3634, %v3632
  %v5287 = vpack.c.b16 %v3635, %v3633
  %v5288 = vpack.c.b16 %v3638, %v3636
  %v5289 = vpack.c.b16 %v3639, %v3637
  %v5290 = vpack.c.b16 %v3642, %v3640
  %v5291 = vpack.c.b16 %v3643, %v3641
  %v5292 = vpack.c.b16 %v3646, %v3644
  %v5293 = vpack.c.b16 %v3647, %v3645
  %v5294 = vpack.c.b16 %v3650, %v3648
  %v5295 = vpack.c.b16 %v3651, %v3649
  %v5296 = vpack.c.b16 %v3654, %v3652
  %v5297 = vpack.c.b16 %v3655, %v3653
  %v5298 = vpack.c.b16 %v3658, %v3656
  %v5299 = vpack.c.b16 %v3659, %v3657
  %v5300 = vpack.c.b16 %v3662, %v3660
  %v5301 = vpack.c.b16 %v3663, %v3661
  %v5302 = vpack.c.b16 %v3666, %v3664
  %v5303 = vpack.c.b16 %v3667, %v3665
  %v5304 = vpack.c.b16 %v3670, %v3668
  %v5305 = vpack.c.b16 %v3671, %v3669
  %v5306 = vpack.c.b16 %v3674, %v3672
  %v5307 = vpack.c.b16 %v3675, %v3673
  %v5308 = vpack.c.b16 %v3678, %v3676
  %v5309 = vpack.c.b16 %v3679, %v3677
  %v5310 = vpack.c.b16 %v3682, %v3680
  %v5311 = vpack.c.b16 %v3683, %v3681
  %v5312 = vpack.c.b16 %v3686, %v3684
  %v5313 = vpack.c.b16 %v3687, %v3685
  %v5314 = vpack.c.b16 %v3690, %v3688
  %v5315 = vpack.c.b16 %v3691, %v3689
  %v5316 = vpack.c.b16 %v3694, %v3692
  %v5317 = vpack.c.b16 %v3695, %v3693
  %v5318 = vpack.c.b16 %v3698, %v3696
  %v5319 = vpack.c.b16 %v3699, %v3697
  %v5320 = vpack.c.b16 %v3702, %v3700
  %v5321 = vpack.c.b16 %v3703, %v3701
  %v5322 = vpack.c.b16 %v3706, %v3704
  %v5323 = vpack.c.b16 %v3707, %v3705
  %v5324 = vpack.c.b16 %v3710, %v3708
  %v5325 = vpack.c.b16 %v3711, %v3709
  %v5326 = vpack.c.b16 %v3714, %v3712
  %v5327 = vpack.c.b16 %v3715, %v3713
  %v5328 = vpack.c.b16 %v3718, %v3716
  %v5329 = vpack.c.b16 %v3719, %v3717
  %v5330 = vpack.c.b16 %v3722, %v3720
  %v5331 = vpack.c.b16 %v3723, %v3721
  %v5332 = vpack.c.b16 %v3726, %v3724
  %v5333 = vpack.c.b16 %v3727, %v3725
  %v5334 = vpack.c.b16 %v3730, %v3728
  %v5335 = vpack.c.b16 %v3731, %v3729
  %v5336 = vpack.c.b16 %v3734, %v3732
  %v5337 = vpack.c.b16 %v3735, %v3733
  %v5338 = vpack.c.b16 %v3738, %v3736
  %v5339 = vpack.c.b16 %v3739, %v3737
  %v5340 = vpack.c.b16 %v3742, %v3740
  %v5341 = vpack.c.b16 %v3743, %v3741
  %v5342 = vpack.c.b16 %v3746, %v3744
  %v5343 = vpack.c.b16 %v3747, %v3745
  %v5344 = vpack.c.b16 %v3750, %v3748
  %v5345 = vpack.c.b16 %v3751, %v3749
  %v5346 = vpack.c.b16 %v3754, %v3752
  %v5347 = vpack.c.b16 %v3755, %v3753
  %v5348 = vpack.c.b16 %v3758, %v3756
  %v5349 = vpack.c.b16 %v3759, %v3757
  %v5350 = vpack.c.b16 %v3762, %v3760
  %v5351 = vpack.c.b16 %v3763, %v3761
  %v5352 = vpack.c.b16 %v3766, %v3764
  %v5353 = vpack.c.b16 %v3767, %v3765
  %v5354 = vpack.c.b16 %v3770, %v3768
  %v5355 = vpack.c.b16 %v3771, %v3769
  %v5356 = vpack.c.b16 %v3774, %v3772
  %v5357 = vpack.c.b16 %v3775, %v3773
  %v5358 = vpack.c.b16 %v3778, %v3776
  %v5359 = vpack.c.b16 %v3779, %v3777
  %v5360 = vpack.c.b16 %v3782, %v3780
  %v5361 = vpack.c.b16 %v3783, %v3781
  %v5362 = vpack.c.b16 %v3786, %v3784
  %v5363 = vpack.c.b16 %v3787, %v3785
  %v5364 = vpack.c.b16 %v3790, %v3788
  %v5365 = vpack.c.b16 %v3791, %v3789
  %v5366 = vpack.c.b16 %v3794, %v3792
  %v5367 = vpack.c.b16 %v3795, %v3793
  %v5368 = vpack.c.b16 %v3798, %v3796
  %v5369 = vpack.c.b16 %v3799, %v3797
  %v5370 = vpack.c.b16 %v3802, %v3800
  %v5371 = vpack.c.b16 %v3803, %v3801
  %v5372 = vpack.c.b16 %v3806, %v3804
  %v5373 = vpack.c.b16 %v3807, %v3805
  %v5374 = vpack.c.b16 %v3810, %v3808
  %v5375 = vpack.c.b16 %v3811, %v3809
  %v5376 = vpack.c.b16 %v3814, %v3812
  %v5377 = vpack.c.b16 %v3815, %v3813
  %v5378 = vpack.c.b16 %v3818, %v3816
  %v5379 = vpack.c.b16 %v3819, %v3817
  %v5380 = vpack.c.b16 %v3822, %v3820
  %v5381 = vpack.c.b16 %v3823, %v3821
  %v5382 = vpack.c.b16 %v3826, %v3824
  %v5383 = vpack.c.b16 %v3827, %v3825
  %v5384 = vpack.c.b16 %v3830, %v3828
  %v5385 = vpack.c.b16 %v3831, %v3829
  %v5386 = vpack.c.b16 %v3834, %v3832
  %v5387 = vpack.c.b16 %v3835, %v3833
  %v5388 = vpack.c.b16 %v3838, %v3836
  %v5389 = vpack.c.b16 %v3839, %v3837
  %v5390 = vpack.c.b16 %v3842, %v3840
  %v5391 = vpack.c.b16 %v3843, %v3841
  %v5392 = vpack.c.b16 %v3846, %v3844
  %v5393 = vpack.c.b16 %v3847, %v3845
  %v5394 = vpack.c.b16 %v3850, %v3848
  %v5395 = vpack.c.b16 %v3851, %v3849
  %v5396 = vpack.c.b16 %v3854, %v3852
  %v5397 = vpack.c.b16 %v3855, %v3853
  %v5398 = vpack.c.b16 %v3858, %v3856
  %v5399 = vpack.c.b16 %v3859, %v3857
  %v5400 = vpack.c.b16 %v3862, %v3860
  %v5401 = vpack.c.b16 %v3863, %v3861
  %v5402 = vpack.c.b16 %v3866, %v3864
  %v5403 = vpack.c.b16 %v3867, %v3865
  %v5404 = vpack.c.b16 %v3870, %v3868
  %v5405 = vpack.c.b16 %v3871, %v3869
  %v5406 = vpack.c.b16 %v3874, %v3872
  %v5407 = vpack.c.b16 %v3875, %v3873
  %v5408 = vpack.c.b16 %v3878, %v3876
  %v5409 = vpack.c.b16 %v3879, %v3877
  %v5410 = vpack.c.b16 %v3882, %v3880
  %v5411 = vpack.c.b16 %v3883, %v3881
  %v5412 = vpack.c.b16 %v3886, %v3884
  %v5413 = vpack.c.b16 %v3887, %v3885
  %v5414 = vpack.c.b16 %v3890, %v3888
  %v5415 = vpack.c.b16 %v3891, %v3889
  %v5416 = vpack.c.b16 %v3894, %v3892
  %v5417 = vpack.c.b16 %v3895, %v3893
  %v5418 = vpack.c.b16 %v3898, %v3896
  %v5419 = vpack.c.b16 %v3899, %v3897
  %v5420 = vpack.c.b16 %v3902, %v3900
  %v5421 = vpack.c.b16 %v3903, %v3901
  %v5422 = vpack.c.b16 %v3906, %v3904
  %v5423 = vpack.c.b16 %v3907, %v3905
  %v5424 = vpack.c.b16 %v3910, %v3908
  %v5425 = vpack.c.b16 %v3911, %v3909
  %v5426 = vpack.c.b16 %v3914, %v3912
  %v5427 = vpack.c.b16 %v3915, %v3913
  %v5428 = vpack.c.b16 %v3918, %v3916
  %v5429 = vpack.c.b16 %v3919, %v3917
  %v5430 = vpack.c.b16 %v3922, %v3920
  %v5431 = vpack.c.b16 %v3923, %v3921
  %v5432 = vpack.c.b16 %v3926, %v3924
  %v5433 = vpack.c.b16 %v3927, %v3925
  %v5434 = vpack.c.b16 %v3930, %v3928
  %v5435 = vpack.c.b16 %v3931, %v3929
  %v5436 = vpack.c.b16 %v3934, %v3932
  %v5437 = vpack.c.b16 %v3935, %v3933
  %v5438 = vpack.c.b16 %v3938, %v3936
  %v5439 = vpack.c.b16 %v3939, %v3937
  %v5440 = vpack.c.b16 %v3942, %v3940
  %v5441 = vpack.c.b16 %v3943, %v3941
  %v5442 = vpack.c.b16 %v3946, %v3944
  %v5443 = vpack.c.b16 %v3947, %v3945
  %v5444 = vpack.c.b16 %v3950, %v3948
  %v5445 = vpack.c.b16 %v3951, %v3949
  %v5446 = vpack.c.b16 %v3954, %v3952
  %v5447 = vpack.c.b16 %v3955, %v3953
  %v5448 = vpack.c.b16 %v3958, %v3956
  %v5449 = vpack.c.b16 %v3959, %v3957
  %v5450 = vpack.c.b16 %v3962, %v3960
  %v5451 = vpack.c.b16 %v3963, %v3961
  %v5452 = vpack.c.b16 %v3966, %v3964
  %v5453 = vpack.c.b16 %v3967, %v3965
  %v5454 = vpack.c.b16 %v3970, %v3968
  %v5455 = vpack.c.b16 %v3971, %v3969
  %v5456 = vpack.c.b16 %v3974, %v3972
  %v5457 = vpack.c.b16 %v3975, %v3973
  %v5458 = vpack.c.b16 %v3978, %v3976
  %v5459 = vpack.c.b16 %v3979, %v3977
  %v5460 = vpack.c.b16 %v3982, %v3980
  %v5461 = vpack.c.b16 %v3983, %v3981
  %v5462 = vpack.c.b16 %v3986, %v3984
  %v5463 = vpack.c.b16 %v3987, %v3985
  %v5464 = vpack.c.b16 %v3990, %v3988
  %v5465 = vpack.c.b16 %v3991, %v3989
  %v5466 = vpack.c.b16 %v3994, %v3992
  %v5467 = vpack.c.b16 %v3995, %v3993
  %v5468 = vpack.c.b16 %v3998, %v3996
  %v5469 = vpack.c.b16 %v3999, %v3997
  %v5470 = vpack.c.b16 %v4002, %v4000
  %v5471 = vpack.c.b16 %v4003, %v4001
  %v5472 = vpack.c.b16 %v4006, %v4004
  %v5473 = vpack.c.b16 %v4007, %v4005
  %v5474 = vpack.c.b16 %v4010, %v4008
  %v5475 = vpack.c.b16 %v4011, %v4009
  %v5476 = vpack.c.b16 %v4014, %v4012
  %v5477 = vpack.c.b16 %v4015, %v4013
  %v5478 = vpack.c.b16 %v4018, %v4016
  %v5479 = vpack.c.b16 %v4019, %v4017
  %v5480 = vpack.c.b16 %v4022, %v4020
  %v5481 = vpack.c.b16 %v4023, %v4021
  %v5482 = vpack.c.b16 %v4026, %v4024
  %v5483 = vpack.c.b16 %v4027, %v4025
  %v5484 = vpack.c.b16 %v4030, %v4028
  %v5485 = vpack.c.b16 %v4031, %v4029
  %v5486 = vpack.c.b16 %v4034, %v4032
  %v5487 = vpack.c.b16 %v4035, %v4033
  %v5488 = vpack.c.b16 %v4038, %v4036
  %v5489 = vpack.c.b16 %v4039, %v4037
  %v5490 = vpack.c.b16 %v4042, %v4040
  %v5491 = vpack.c.b16 %v4043, %v4041
  %v5492 = vpack.c.b16 %v4046, %v4044
  %v5493 = vpack.c.b16 %v4047, %v4045
  %v5494 = vpack.c.b16 %v4050, %v4048
  %v5495 = vpack.c.b16 %v4051, %v4049
  %v5496 = vpack.c.b16 %v4054, %v4052
  %v5497 = vpack.c.b16 %v4055, %v4053
  %v5498 = vpack.c.b16 %v4058, %v4056
  %v5499 = vpack.c.b16 %v4059, %v4057
  %v5500 = vpack.c.b16 %v4062, %v4060
  %v5501 = vpack.c.b16 %v4063, %v4061
  %v5502 = vpack.c.b16 %v4066, %v4064
  %v5503 = vpack.c.b16 %v4067, %v4065
  %v5504 = vpack.c.b16 %v4070, %v4068
  %v5505 = vpack.c.b16 %v4071, %v4069
  %v5506 = vpack.c.b16 %v4074, %v4072
  %v5507 = vpack.c.b16 %v4075, %v4073
  %v5508 = vpack.c.b16 %v4078, %v4076
  %v5509 = vpack.c.b16 %v4079, %v4077
  %v5510 = vpack.c.b16 %v4082, %v4080
  %v5511 = vpack.c.b16 %v4083, %v4081
  %v5512 = vpack.c.b16 %v4086, %v4084
  %v5513 = vpack.c.b16 %v4087, %v4085
  %v5514 = vpack.c.b16 %v4090, %v4088
  %v5515 = vpack.c.b16 %v4091, %v4089
  %v5516 = vpack.c.b16 %v4094, %v4092
  %v5517 = vpack.c.b16 %v4095, %v4093
  %v5518 = vpack.c.b16 %v4098, %v4096
  %v5519 = vpack.c.b16 %v4099, %v4097
  %v5520 = vpack.c.b16 %v4102, %v4100
  %v5521 = vpack.c.b16 %v4103, %v4101
  %v5522 = vpack.c.b16 %v4106, %v4104
  %v5523 = vpack.c.b16 %v4107, %v4105
  %v5524 = vpack.c.b16 %v4110, %v4108
  %v5525 = vpack.c.b16 %v4111, %v4109
  %v5526 = vpack.c.b16 %v4114, %v4112
  %v5527 = vpack.c.b16 %v4115, %v4113
  %v5528 = vpack.c.b16 %v4118, %v4116
  %v5529 = vpack.c.b16 %v4119, %v4117
  %v5530 = vpack.c.b16 %v4122, %v4120
  %v5531 = vpack.c.b16 %v4123, %v4121
  %v5532 = vpack.c.b16 %v4126, %v4124
  %v5533 = vpack.c.b16 %v4127, %v4125
  %v5534 = vpack.c.b16 %v4130, %v4128
  %v5535 = vpack.c.b16 %v4131, %v4129
  %v5536 = vpack.c.b16 %v4134, %v4132
  %v5537 = vpack.c.b16 %v4135, %v4133
  %v5538 = vpack.c.b16 %v4138, %v4136
  %v5539 = vpack.c.b16 %v4139, %v4137
  %v5540 = vpack.c.b16 %v4142, %v4140
  %v5541 = vpack.c.b16 %v4143, %v4141
  %v5542 = vpack.c.b16 %v4146, %v4144
  %v5543 = vpack.c.b16 %v4147, %v4145
  %v5544 = vpack.c.b16 %v4150, %v4148
  %v5545 = vpack.c.b16 %v4151, %v4149
  %v5546 = vpack.c.b16 %v4154, %v4152
  %v5547 = vpack.c.b16 %v4155, %v4153
  %v5548 = vpack.c.b16 %v4158, %v4156
  %v5549 = vpack.c.b16 %v4159, %v4157
  %v5550 = vpack.c.b16 %v4162, %v4160
  %v5551 = vpack.c.b16 %v4163, %v4161
  %v5552 = vpack.c.b16 %v4166, %v4164
  %v5553 = vpack.c.b16 %v4167, %v4165
  %v5554 = vpack.c.b16 %v4170, %v4168
  %v5555 = vpack.c.b16 %v4171, %v4169
  %v5556 = vpack.c.b16 %v4174, %v4172
  %v5557 = vpack.c.b16 %v4175, %v4173
  %v5558 = vpack.c.b16 %v4178, %v4176
  %v5559 = vpack.c.b16 %v4179, %v4177
  %v5560 = vpack.c.b16 %v4182, %v4180
  %v5561 = vpack.c.b16 %v4183, %v4181
  %v5562 = vpack.c.b16 %v4186, %v4184
  %v5563 = vpack.c.b16 %v4187, %v4185
  %v5564 = vpack.c.b16 %v4190, %v4188
  %v5565 = vpack.c.b16 %v4191, %v4189
  %v5566 = vpack.c.b16 %v4194, %v4192
  %v5567 = vpack.c.b16 %v4195, %v4193
  %v5568 = vpack.c.b16 %v4198, %v4196
  %v5569 = vpack.c.b16 %v4199, %v4197
  %v5570 = vpack.c.b16 %v4202, %v4200
  %v5571 = vpack.c.b16 %v4203, %v4201
  %v5572 = vpack.c.b16 %v4206, %v4204
  %v5573 = vpack.c.b16 %v4207, %v4205
  %v5574 = vpack.c.b16 %v4210, %v4208
  %v5575 = vpack.c.b16 %v4211, %v4209
  %v5576 = vpack.c.b16 %v4214, %v4212
  %v5577 = vpack.c.b16 %v4215, %v4213
  %v5578 = vpack.c.b16 %v4218, %v4216
  %v5579 = vpack.c.b16 %v4219, %v4217
  %v5580 = vpack.c.b16 %v4222, %v4220
  %v5581 = vpack.c.b16 %v4223, %v4221
  %v5582 = vpack.c.b16 %v4226, %v4224
  %v5583 = vpack.c.b16 %v4227, %v4225
  %v5584 = vpack.c.b16 %v4230, %v4228
  %v5585 = vpack.c.b16 %v4231, %v4229
  %v5586 = vpack.c.b16 %v4234, %v4232
  %v5587 = vpack.c.b16 %v4235, %v4233
  %v5588 = vpack.c.b16 %v4238, %v4236
  %v5589 = vpack.c.b16 %v4239, %v4237
  %v5590 = vpack.c.b16 %v4242, %v4240
  %v5591 = vpack.c.b16 %v4243, %v4241
  %v5592 = vpack.c.b16 %v4246, %v4244
  %v5593 = vpack.c.b16 %v4247, %v4245
  %v5594 = vpack.c.b16 %v4250, %v4248
  %v5595 = vpack.c.b16 %v4251, %v4249
  %v5596 = vpack.c.b16 %v4254, %v4252
  %v5597 = vpack.c.b16 %v4255, %v4253
  %v5598 = vpack.c.b16 %v4258, %v4256
  %v5599 = vpack.c.b16 %v4259, %v4257
  %v5600 = vpack.c.b16 %v4262, %v4260
  %v5601 = vpack.c.b16 %v4263, %v4261
  %v5602 = vpack.c.b16 %v4266, %v4264
  %v5603 = vpack.c.b16 %v4267, %v4265
  %v5604 = vpack.c.b16 %v4270, %v4268
  %v5605 = vpack.c.b16 %v4271, %v4269
  %v5606 = vpack.c.b16 %v4274, %v4272
  %v5607 = vpack.c.b16 %v4275, %v4273
  %v5608 = vpack.c.b16 %v4278, %v4276
  %v5609 = vpack.c.b16 %v4279, %v4277
  %v5610 = vpack.c.b16 %v4282, %v4280
  %v5611 = vpack.c.b16 %v4283, %v4281
  %v5612 = vpack.c.b16 %v4286, %v4284
  %v5613 = vpack.c.b16 %v4287, %v4285
  %v5614 = vpack.c.b16 %v4290, %v4288
  %v5615 = vpack.c.b16 %v4291, %v4289
  %v5616 = vpack.c.b16 %v4294, %v4292
  %v5617 = vpack.c.b16 %v4295, %v4293
  %v5618 = vpack.c.b16 %v4298, %v4296
  %v5619 = vpack.c.b16 %v4299, %v4297
  %v5620 = vpack.c.b16 %v4302, %v4300
  %v5621 = vpack.c.b16 %v4303, %v4301
  %v5622 = vpack.c.b16 %v4306, %v4304
  %v5623 = vpack.c.b16 %v4307, %v4305
  %v5624 = vpack.c.b16 %v4310, %v4308
  %v5625 = vpack.c.b16 %v4311, %v4309
  %v5626 = vpack.c.b16 %v4314, %v4312
  %v5627 = vpack.c.b16 %v4315, %v4313
  %v5628 = vpack.c.b16 %v4318, %v4316
  %v5629 = vpack.c.b16 %v4319, %v4317
  %v5630 = vpack.c.b16 %v4322, %v4320
  %v5631 = vpack.c.b16 %v4323, %v4321
  %v5632 = vpack.c.b16 %v4326, %v4324
  %v5633 = vpack.c.b16 %v4327, %v4325
  %v5634 = vpack.c.b16 %v4330, %v4328
  %v5635 = vpack.c.b16 %v4331, %v4329
  %v5636 = vpack.c.b16 %v4334, %v4332
  %v5637 = vpack.c.b16 %v4335, %v4333
  %v5638 = vpack.c.b16 %v4338, %v4336
  %v5639 = vpack.c.b16 %v4339, %v4337
  %v5640 = vpack.c.b16 %v4342, %v4340
  %v5641 = vpack.c.b16 %v4343, %v4341
  %v5642 = vpack.c.b16 %v4346, %v4344
  %v5643 = vpack.c.b16 %v4347, %v4345
  %v5644 = vpack.c.b16 %v4350, %v4348
  %v5645 = vpack.c.b16 %v4351, %v4349
  %v5646 = vpack.c.b16 %v4354, %v4352
  %v5647 = vpack.c.b16 %v4355, %v4353
  %v5648 = vpack.c.b16 %v4358, %v4356
  %v5649 = vpack.c.b16 %v4359, %v4357
  %v5650 = vpack.c.b16 %v4362, %v4360
  %v5651 = vpack.c.b16 %v4363, %v4361
  %v5652 = vpack.c.b16 %v4366, %v4364
  %v5653 = vpack.c.b16 %v4367, %v4365
  %v5654 = vpack.c.b16 %v4370, %v4368
  %v5655 = vpack.c.b16 %v4371, %v4369
  %v5656 = vpack.c.b16 %v4374, %v4372
  %v5657 = vpack.c.b16 %v4375, %v4373
  %v5658 = vpack.c.b16 %v4378, %v4376
  %v5659 = vpack.c.b16 %v4379, %v4377
  %v5660 = vpack.c.b16 %v4382, %v4380
  %v5661 = vpack.c.b16 %v4383, %v4381
  %v5662 = vpack.c.b16 %v4386, %v4384
  %v5663 = vpack.c.b16 %v4387, %v4385
  %v5664 = vpack.c.b16 %v4390, %v4388
  %v5665 = vpack.c.b16 %v4391, %v4389
  %v5666 = vpack.c.b16 %v4394, %v4392
  %v5667 = vpack.c.b16 %v4395, %v4393
  %v5668 = vpack.c.b16 %v4398, %v4396
  %v5669 = vpack.c.b16 %v4399, %v4397
  %v5670 = vpack.c.b16 %v4402, %v4400
  %v5671 = vpack.c.b16 %v4403, %v4401
  %v5672 = vpack.c.b16 %v4406, %v4404
  %v5673 = vpack.c.b16 %v4407, %v4405
  %v5674 = vpack.c.b16 %v4410, %v4408
  %v5675 = vpack.c.b16 %v4411, %v4409
  %v5676 = vpack.c.b16 %v4414, %v4412
  %v5677 = vpack.c.b16 %v4415, %v4413
  %v5678 = vpack.c.b16 %v4418, %v4416
  %v5679 = vpack.c.b16 %v4419, %v4417
  %v5680 = vpack.c.b16 %v4422, %v4420
  %v5681 = vpack.c.b16 %v4423, %v4421
  %v5682 = vpack.c.b16 %v4426, %v4424
  %v5683 = vpack.c.b16 %v4427, %v4425
  %v5684 = vpack.c.b16 %v4430, %v4428
  %v5685 = vpack.c.b16 %v4431, %v4429
  %v5686 = vpack.c.b16 %v4434, %v4432
  %v5687 = vpack.c.b16 %v4435, %v4433
  %v5688 = vpack.c.b16 %v4438, %v4436
  %v5689 = vpack.c.b16 %v4439, %v4437
  %v5690 = vpack.c.b16 %v4442, %v4440
  %v5691 = vpack.c.b16 %v4443, %v4441
  %v5692 = vpack.c.b16 %v4446, %v4444
  %v5693 = vpack.c.b16 %v4447, %v4445
  %v5694 = vpack.c.b16 %v4450, %v4448
  %v5695 = vpack.c.b16 %v4451, %v4449
  %v5696 = vpack.c.b16 %v4454, %v4452
  %v5697 = vpack.c.b16 %v4455, %v4453
  %v5698 = vpack.c.b16 %v4458, %v4456
  %v5699 = vpack.c.b16 %v4459, %v4457
  %v5700 = vpack.c.b16 %v4462, %v4460
  %v5701 = vpack.c.b16 %v4463, %v4461
  %v5702 = vpack.c.b16 %v4466, %v4464
  %v5703 = vpack.c.b16 %v4467, %v4465
  %v5704 = vpack.c.b16 %v4470, %v4468
  %v5705 = vpack.c.b16 %v4471, %v4469
  %v5706 = vpack.c.b16 %v4474, %v4472
  %v5707 = vpack.c.b16 %v4475, %v4473
  %v5708 = vpack.c.b16 %v4478, %v4476
  %v5709 = vpack.c.b16 %v4479, %v4477
  %v5710 = vpack.c.b16 %v4482, %v4480
  %v5711 = vpack.c.b16 %v4483, %v4481
  %v5712 = vpack.c.b16 %v4486, %v4484
  %v5713 = vpack.c.b16 %v4487, %v4485
  %v5714 = vpack.c.b16 %v4490, %v4488
  %v5715 = vpack.c.b16 %v4491, %v4489
  %v5716 = vpack.c.b16 %v4494, %v4492
  %v5717 = vpack.c.b16 %v4495, %v4493
  %v5718 = vpack.c.b16 %v4498, %v4496
  %v5719 = vpack.c.b16 %v4499, %v4497
  %v5720 = vpack.c.b16 %v4502, %v4500
  %v5721 = vpack.c.b16 %v4503, %v4501
  %v5722 = vpack.c.b16 %v4506, %v4504
  %v5723 = vpack.c.b16 %v4507, %v4505
  %v5724 = vpack.c.b16 %v4510, %v4508
  %v5725 = vpack.c.b16 %v4511, %v4509
  %v5726 = vpack.c.b16 %v4514, %v4512
  %v5727 = vpack.c.b16 %v4515, %v4513
  %v5728 = vpack.c.b16 %v4518, %v4516
  %v5729 = vpack.c.b16 %v4519, %v4517
  %v5730 = vpack.c.b16 %v4522, %v4520
  %v5731 = vpack.c.b16 %v4523, %v4521
  %v5732 = vpack.c.b16 %v4526, %v4524
  %v5733 = vpack.c.b16 %v4527, %v4525
  %v5734 = vpack.c.b16 %v4530, %v4528
  %v5735 = vpack.c.b16 %v4531, %v4529
  %v5736 = vpack.c.b16 %v4534, %v4532
  %v5737 = vpack.c.b16 %v4535, %v4533
  %v5738 = vpack.c.b16 %v4538, %v4536
  %v5739 = vpack.c.b16 %v4539, %v4537
  %v5740 = vpack.c.b16 %v4542, %v4540
  %v5741 = vpack.c.b16 %v4543, %v4541
  %v5742 = vpack.c.b16 %v4546, %v4544
  %v5743 = vpack.c.b16 %v4547, %v4545
  %v5744 = vpack.c.b16 %v4550, %v4548
  %v5745 = vpack.c.b16 %v4551, %v4549
  %v5746 = vpack.c.b16 %v4554, %v4552
  %v5747 = vpack.c.b16 %v4555, %v4553
  %v5748 = vpack.c.b16 %v4558, %v4556
  %v5749 = vpack.c.b16 %v4559, %v4557
  %v5750 = vpack.c.b16 %v4562, %v4560
  %v5751 = vpack.c.b16 %v4563, %v4561
  %v5752 = vpack.c.b16 %v4566, %v4564
  %v5753 = vpack.c.b16 %v4567, %v4565
  %v5754 = vpack.c.b16 %v4570, %v4568
  %v5755 = vpack.c.b16 %v4571, %v4569
  %v5756 = vpack.c.b16 %v4574, %v4572
  %v5757 = vpack.c.b16 %v4575, %v4573
  %v5758 = vpack.c.b16 %v4578, %v4576
  %v5759 = vpack.c.b16 %v4579, %v4577
  %v5760 = vpack.c.b16 %v4582, %v4580
  %v5761 = vpack.c.b16 %v4583, %v4581
  %v5762 = vpack.c.b16 %v4586, %v4584
  %v5763 = vpack.c.b16 %v4587, %v4585
  %v5764 = vpack.c.b16 %v4590, %v4588
  %v5765 = vpack.c.b16 %v4591, %v4589
  %v5766 = vpack.c.b16 %v4594, %v4592
  %v5767 = vpack.c.b16 %v4595, %v4593
  %v5768 = vpack.c.b16 %v4598, %v4596
  %v5769 = vpack.c.b16 %v4599, %v4597
  %v5770 = vpack.c.b16 %v4602, %v4600
  %v5771 = vpack.c.b16 %v4603, %v4601
  %v5772 = vpack.c.b16 %v4606, %v4604
  %v5773 = vpack.c.b16 %v4607, %v4605
  %v5774 = vpack.c.b16 %v4610, %v4608
  %v5775 = vpack.c.b16 %v4611, %v4609
  %v5776 = vpack.c.b16 %v4614, %v4612
  %v5777 = vpack.c.b16 %v4615, %v4613
  %v5778 = vpack.c.b16 %v4618, %v4616
  %v5779 = vpack.c.b16 %v4619, %v4617
  %v5780 = vpack.c.b16 %v4622, %v4620
  %v5781 = vpack.c.b16 %v4623, %v4621
  %v5782 = vpack.c.b16 %v4626, %v4624
  %v5783 = vpack.c.b16 %v4627, %v4625
  %v5784 = vpack.c.b16 %v4630, %v4628
  %v5785 = vpack.c.b16 %v4631, %v4629
  %v5786 = vpack.c.b16 %v4634, %v4632
  %v5787 = vpack.c.b16 %v4635, %v4633
  %v5788 = vpack.c.b16 %v4638, %v4636
  %v5789 = vpack.c.b16 %v4639, %v4637
  %v5790 = vpack.c.b16 %v4642, %v4640
  %v5791 = vpack.c.b16 %v4643, %v4641
  %v5792 = vpack.c.b16 %v4646, %v4644
  %v5793 = vpack.c.b16 %v4647, %v4645
  %v5794 = vpack.c.b16 %v4650, %v4648
  %v5795 = vpack.c.b16 %v4651, %v4649
  %v5796 = vpack.c.b16 %v4654, %v4652
  %v5797 = vpack.c.b16 %v4655, %v4653
  %v5798 = vpack.c.b16 %v4658, %v4656
  %v5799 = vpack.c.b16 %v4659, %v4657
  %v5800 = vpack.c.b16 %v4662, %v4660
  %v5801 = vpack.c.b16 %v4663, %v4661
  %v5802 = vpack.c.b16 %v4666, %v4664
  %v5803 = vpack.c.b16 %v4667, %v4665
  %v5804 = vpack.c.b16 %v4670, %v4668
  %v5805 = vpack.c.b16 %v4671, %v4669
  %v5806 = vpack.c.b16 %v4674, %v4672
  %v5807 = vpack.c.b16 %v4675, %v4673
  %v5808 = vpack.c.b16 %v4678, %v4676
  %v5809 = vpack.c.b16 %v4679, %v4677
  %v5810 = vpack.c.b16 %v4682, %v4680
  %v5811 = vpack.c.b16 %v4683, %v4681
  %v5812 = vpack.c.b16 %v4686, %v4684
  %v5813 = vpack.c.b16 %v4687, %v4685
  %v5814 = vpack.c.b16 %v4690, %v4688
  %v5815 = vpack.c.b16 %v4691, %v4689
  %v5816 = vpack.c.b16 %v4694, %v4692
  %v5817 = vpack.c.b16 %v4695, %v4693
  %v5818 = vpack.c.b16 %v4698, %v4696
  %v5819 = vpack.c.b16 %v4699, %v4697
  %v5820 = vpack.c.b16 %v4702, %v4700
  %v5821 = vpack.c.b16 %v4703, %v4701
  %v5822 = vpack.c.b16 %v4706, %v4704
  %v5823 = vpack.c.b16 %v4707, %v4705
  %v5824 = vpack.c.b16 %v4710, %v4708
  %v5825 = vpack.c.b16 %v4711, %v4709
  %v5826 = vpack.c.b16 %v4714, %v4712
  %v5827 = vpack.c.b16 %v4715, %v4713
  %v5828 = vpack.c.b16 %v4718, %v4716
  %v5829 = vpack.c.b16 %v4719, %v4717
  %v5830 = vpack.c.b16 %v4722, %v4720
  %v5831 = vpack.c.b16 %v4723, %v4721
  %v5832 = vpack.c.b16 %v4726, %v4724
  %v5833 = vpack.c.b16 %v4727, %v4725
  %v5834 = vpack.c.b16 %v4730, %v4728
  %v5835 = vpack.c.b16 %v4731, %v4729
  %v5836 = vpack.c.b16 %v4734, %v4732
  %v5837 = vpack.c.b16 %v4735, %v4733
  %v5838 = vpack.c.b16 %v4738, %v4736
  %v5839 = vpack.c.b16 %v4739, %v4737
  %v5840 = vpack.c.b16 %v4742, %v4740
  %v5841 = vpack.c.b16 %v4743, %v4741
  %v5842 = vpack.c.b16 %v4746, %v4744
  %v5843 = vpack.c.b16 %v4747, %v4745
  %v5844 = vpack.c.b16 %v4750, %v4748
  %v5845 = vpack.c.b16 %v4751, %v4749
  %v5846 = vpack.c.b16 %v4754, %v4752
  %v5847 = vpack.c.b16 %v4755, %v4753
  %v5848 = vpack.c.b16 %v4758, %v4756
  %v5849 = vpack.c.b16 %v4759, %v4757
  %v5850 = vpack.c.b16 %v4762, %v4760
  %v5851 = vpack.c.b16 %v4763, %v4761
  %v5852 = vpack.c.b16 %v4766, %v4764
  %v5853 = vpack.c.b16 %v4767, %v4765
  %v5854 = vpack.c.b16 %v4770, %v4768
  %v5855 = vpack.c.b16 %v4771, %v4769
  %v5856 = vpack.c.b16 %v4774, %v4772
  %v5857 = vpack.c.b16 %v4775, %v4773
  %v5858 = vpack.c.b16 %v4778, %v4776
  %v5859 = vpack.c.b16 %v4779, %v4777
  %v5860 = vpack.c.b16 %v4782, %v4780
  %v5861 = vpack.c.b16 %v4783, %v4781
  %v5862 = vpack.c.b16 %v4786, %v4784
  %v5863 = vpack.c.b16 %v4787, %v4785
  %v5864 = vpack.c.b16 %v4790, %v4788
  %v5865 = vpack.c.b16 %v4791, %v4789
  %v5866 = vpack.c.b16 %v4794, %v4792
  %v5867 = vpack.c.b16 %v4795, %v4793
  %v5868 = vpack.c.b16 %v4798, %v4796
  %v5869 = vpack.c.b16 %v4799, %v4797
  %v5870 = vpack.c.b16 %v4802, %v4800
  %v5871 = vpack.c.b16 %v4803, %v4801
  %v5872 = vpack.c.b16 %v4806, %v4804
  %v5873 = vpack.c.b16 %v4807, %v4805
  %v5874 = vpack.c.b16 %v4810, %v4808
  %v5875 = vpack.c.b16 %v4811, %v4809
  %v5876 = vpack.c.b16 %v4814, %v4812
  %v5877 = vpack.c.b16 %v4815, %v4813
  %v5878 = vpack.c.b16 %v4818, %v4816
  %v5879 = vpack.c.b16 %v4819, %v4817
  %v5880 = vpack.c.b16 %v4822, %v4820
  %v5881 = vpack.c.b16 %v4823, %v4821
  %v5882 = vpack.c.b16 %v4826, %v4824
  %v5883 = vpack.c.b16 %v4827, %v4825
  %v5884 = vpack.c.b16 %v4830, %v4828
  %v5885 = vpack.c.b16 %v4831, %v4829
  %v5886 = vpack.c.b16 %v4834, %v4832
  %v5887 = vpack.c.b16 %v4835, %v4833
  %v5888 = vpack.c.b16 %v4838, %v4836
  %v5889 = vpack.c.b16 %v4839, %v4837
  %v5890 = vpack.c.b16 %v4842, %v4840
  %v5891 = vpack.c.b16 %v4843, %v4841
  %v5892 = vpack.c.b16 %v4846, %v4844
  %v5893 = vpack.c.b16 %v4847, %v4845
  %v5894 = vpack.c.b16 %v4850, %v4848
  %v5895 = vpack.c.b16 %v4851, %v4849
  %v5896 = vpack.c.b16 %v4854, %v4852
  %v5897 = vpack.c.b16 %v4855, %v4853
  %v5898 = vpack.c.b16 %v4858, %v4856
  %v5899 = vpack.c.b16 %v4859, %v4857
  %v5900 = vpack.c.b16 %v4862, %v4860
  %v5901 = vpack.c.b16 %v4863, %v4861
  %v5902 = vpack.c.b16 %v4866, %v4864
  %v5903 = vpack.c.b16 %v4867, %v4865
  %v5904 = vpack.c.b16 %v4870, %v4868
  %v5905 = vpack.c.b16 %v4871, %v4869
  %v5906 = vpack.c.b16 %v4874, %v4872
  %v5907 = vpack.c.b16 %v4875, %v4873
  %v5908 = vpack.c.b16 %v4878, %v4876
  %v5909 = vpack.c.b16 %v4879, %v4877
  %v5910 = vpack.c.b16 %v4882, %v4880
  %v5911 = vpack.c.b16 %v4883, %v4881
  %v5912 = vpack.c.b16 %v4886, %v4884
  %v5913 = vpack.c.b16 %v4887, %v4885
  %v5914 = vpack.c.b16 %v4890, %v4888
  %v5915 = vpack.c.b16 %v4891, %v4889
  %6940 = vmatprep.subr.bf16.mxu0 %v4893
  %6941 = vmatpush1.bf16.msra.mxu0 %v4892
  %6942 = vmatprep.subr.bf16.mxu0 %v4895
  %6943 = vmatpush1.bf16.msra.mxu0 %v4894
  %6944 = vmatprep.subr.bf16.mxu0 %v4897
  %6945 = vmatpush1.bf16.msra.mxu0 %v4896
  %6946 = vmatprep.subr.bf16.mxu0 %v4899
  %6947 = vmatpush1.bf16.msra.mxu0 %v4898
  %6948 = vmatprep.subr.bf16.mxu0 %v4901
  %6949 = vmatpush1.bf16.msra.mxu0 %v4900
  %6950 = vmatprep.subr.bf16.mxu0 %v4903
  %6951 = vmatpush1.bf16.msra.mxu0 %v4902
  %6952 = vmatprep.subr.bf16.mxu0 %v4905
  %6953 = vmatpush1.bf16.msra.mxu0 %v4904
  %6954 = vmatprep.subr.bf16.mxu0 %v4907
  %6955 = vmatpush1.bf16.msra.mxu0 %v4906
  %6956 = vmatprep.subr.bf16.mxu0 %v4909
  %6957 = vmatpush1.bf16.msra.mxu0 %v4908
  %6958 = vmatprep.subr.bf16.mxu0 %v4911
  %6959 = vmatpush1.bf16.msra.mxu0 %v4910
  %6960 = vmatprep.subr.bf16.mxu0 %v4913
  %6961 = vmatpush1.bf16.msra.mxu0 %v4912
  %6962 = vmatprep.subr.bf16.mxu0 %v4915
  %6963 = vmatpush1.bf16.msra.mxu0 %v4914
  %6964 = vmatprep.subr.bf16.mxu0 %v4917
  %6965 = vmatpush1.bf16.msra.mxu0 %v4916
  %6966 = vmatprep.subr.bf16.mxu0 %v4919
  %6967 = vmatpush1.bf16.msra.mxu0 %v4918
  %6968 = vmatprep.subr.bf16.mxu0 %v4921
  %6969 = vmatpush1.bf16.msra.mxu0 %v4920
  %6970 = vmatprep.subr.bf16.mxu0 %v4923
  %6971 = vmatpush1.bf16.msra.mxu0 %v4922
  %6972 = vmatprep.mubr.bf16.mxu0 %v1565
  %6973 = vmatmul.mubr.bf16.gmra.mrb[0].mxu0 %v1564
  %v6974 = vpop.f32.mrb[0].mxu0
  %v6975 = vadd.f32 %v1173, %v6974
  %v6976 = vpop.f32.mrb[0].mxu0
  %v6977 = vadd.f32 %v1177, %v6976
  %v6978 = vpop.f32.mrb[0].mxu0
  %v6979 = vadd.f32 %v1173, %v6978
  %v6980 = vpop.f32.mrb[0].mxu0
  %v6981 = vadd.f32 %v1177, %v6980
  %6982 = vmatprep.mubr.bf16.mxu0 %v1629
  %6983 = vmatmul.mubr.bf16.gmra.mrb[0].mxu0 %v1628
  %v6984 = vpop.f32.mrb[0].mxu0
  %v6985 = vadd.f32 %v1173, %v6984
  %v6986 = vpop.f32.mrb[0].mxu0
  %v6987 = vadd.f32 %v1177, %v6986
  %v6988 = vpop.f32.mrb[0].mxu0
  %v6989 = vadd.f32 %v1173, %v6988
  %v6990 = vpop.f32.mrb[0].mxu0
  %v6991 = vadd.f32 %v1177, %v6990
  %6992 = vdwg.mxu0
  %6993 = vmatprep.subr.bf16.mxu0 %v4925
  %6994 = vmatpush1.bf16.msra.mxu0 %v4924
  %6995 = vmatprep.subr.bf16.mxu0 %v4927
  %6996 = vmatpush1.bf16.msra.mxu0 %v4926
  %6997 = vmatprep.subr.bf16.mxu0 %v4929
  %6998 = vmatpush1.bf16.msra.mxu0 %v4928
  %6999 = vmatprep.subr.bf16.mxu0 %v4931
  %7000 = vmatpush1.bf16.msra.mxu0 %v4930
  %7001 = vmatprep.subr.bf16.mxu0 %v4933
  %7002 = vmatpush1.bf16.msra.mxu0 %v4932
  %7003 = vmatprep.subr.bf16.mxu0 %v4935
  %7004 = vmatpush1.bf16.msra.mxu0 %v4934
  %7005 = vmatprep.subr.bf16.mxu0 %v4937
  %7006 = vmatpush1.bf16.msra.mxu0 %v4936
  %7007 = vmatprep.subr.bf16.mxu0 %v4939
  %7008 = vmatpush1.bf16.msra.mxu0 %v4938
  %7009 = vmatprep.subr.bf16.mxu0 %v4941
  %7010 = vmatpush1.bf16.msra.mxu0 %v4940
  %7011 = vmatprep.subr.bf16.mxu0 %v4943
  %7012 = vmatpush1.bf16.msra.mxu0 %v4942
  %7013 = vmatprep.subr.bf16.mxu0 %v4945
  %7014 = vmatpush1.bf16.msra.mxu0 %v4944
  %7015 = vmatprep.subr.bf16.mxu0 %v4947
  %7016 = vmatpush1.bf16.msra.mxu0 %v4946
  %7017 = vmatprep.subr.bf16.mxu0 %v4949
  %7018 = vmatpush1.bf16.msra.mxu0 %v4948
  %7019 = vmatprep.subr.bf16.mxu0 %v4951
  %7020 = vmatpush1.bf16.msra.mxu0 %v4950
  %7021 = vmatprep.subr.bf16.mxu0 %v4953
  %7022 = vmatpush1.bf16.msra.mxu0 %v4952
  %7023 = vmatprep.subr.bf16.mxu0 %v4955
  %7024 = vmatpush1.bf16.msra.mxu0 %v4954
  %7025 = vmatprep.mubr.bf16.mxu0 %v1567
  %7026 = vmatmul.mubr.bf16.gmra.mrb[0].mxu0 %v1566
  %v7027 = vpop.f32.mrb[0].mxu0
  %v7028 = vadd.f32 %v6975, %v7027
  %v7029 = vpop.f32.mrb[0].mxu0
  %v7030 = vadd.f32 %v6977, %v7029
  %v7031 = vpop.f32.mrb[0].mxu0
  %v7032 = vadd.f32 %v6979, %v7031
  %v7033 = vpop.f32.mrb[0].mxu0
  %v7034 = vadd.f32 %v6981, %v7033
  %7035 = vmatprep.mubr.bf16.mxu0 %v1631
  %7036 = vmatmul.mubr.bf16.gmra.mrb[0].mxu0 %v1630
  %v7037 = vpop.f32.mrb[0].mxu0
  %v7038 = vadd.f32 %v6985, %v7037
  %v7039 = vpop.f32.mrb[0].mxu0
  %v7040 = vadd.f32 %v6987, %v7039
  %v7041 = vpop.f32.mrb[0].mxu0
  %v7042 = vadd.f32 %v6989, %v7041
  %v7043 = vpop.f32.mrb[0].mxu0
  %v7044 = vadd.f32 %v6991, %v7043
  %7045 = vdwg.mxu0
  %7046 = vmatprep.subr.bf16.mxu0 %v4957
  %7047 = vmatpush1.bf16.msra.mxu0 %v4956
  %7048 = vmatprep.subr.bf16.mxu0 %v4959
  %7049 = vmatpush1.bf16.msra.mxu0 %v4958
  %7050 = vmatprep.subr.bf16.mxu0 %v4961
  %7051 = vmatpush1.bf16.msra.mxu0 %v4960
  %7052 = vmatprep.subr.bf16.mxu0 %v4963
  %7053 = vmatpush1.bf16.msra.mxu0 %v4962
  %7054 = vmatprep.subr.bf16.mxu0 %v4965
  %7055 = vmatpush1.bf16.msra.mxu0 %v4964
  %7056 = vmatprep.subr.bf16.mxu0 %v4967
  %7057 = vmatpush1.bf16.msra.mxu0 %v4966
  %7058 = vmatprep.subr.bf16.mxu0 %v4969
  %7059 = vmatpush1.bf16.msra.mxu0 %v4968
  %7060 = vmatprep.subr.bf16.mxu0 %v4971
  %7061 = vmatpush1.bf16.msra.mxu0 %v4970
  %7062 = vmatprep.subr.bf16.mxu0 %v4973
  %7063 = vmatpush1.bf16.msra.mxu0 %v4972
  %7064 = vmatprep.subr.bf16.mxu0 %v4975
  %7065 = vmatpush1.bf16.msra.mxu0 %v4974
  %7066 = vmatprep.subr.bf16.mxu0 %v4977
  %7067 = vmatpush1.bf16.msra.mxu0 %v4976
  %7068 = vmatprep.subr.bf16.mxu0 %v4979
  %7069 = vmatpush1.bf16.msra.mxu0 %v4978
  %7070 = vmatprep.subr.bf16.mxu0 %v4981
  %7071 = vmatpush1.bf16.msra.mxu0 %v4980
  %7072 = vmatprep.subr.bf16.mxu0 %v4983
  %7073 = vmatpush1.bf16.msra.mxu0 %v4982
  %7074 = vmatprep.subr.bf16.mxu0 %v4985
  %7075 = vmatpush1.bf16.msra.mxu0 %v4984
  %7076 = vmatprep.subr.bf16.mxu0 %v4987
  %7077 = vmatpush1.bf16.msra.mxu0 %v4986
  %7078 = vmatprep.mubr.bf16.mxu0 %v1569
  %7079 = vmatmul.mubr.bf16.gmra.mrb[0].mxu0 %v1568
  %v7080 = vpop.f32.mrb[0].mxu0
  %v7081 = vadd.f32 %v7028, %v7080
  %v7082 = vpop.f32.mrb[0].mxu0
  %v7083 = vadd.f32 %v7030, %v7082
  %v7084 = vpop.f32.mrb[0].mxu0
  %v7085 = vadd.f32 %v7032, %v7084
  %v7086 = vpop.f32.mrb[0].mxu0
  %v7087 = vadd.f32 %v7034, %v7086
  %7088 = vmatprep.mubr.bf16.mxu0 %v1633
  %7089 = vmatmul.mubr.bf16.gmra.mrb[0].mxu0 %v1632
  %v7090 = vpop.f32.mrb[0].mxu0
  %v7091 = vadd.f32 %v7038, %v7090
  %v7092 = vpop.f32.mrb[0].mxu0
  %v7093 = vadd.f32 %v7040, %v7092
  %v7094 = vpop.f32.mrb[0].mxu0
  %v7095 = vadd.f32 %v7042, %v7094
  %v7096 = vpop.f32.mrb[0].mxu0
  %v7097 = vadd.f32 %v7044, %v7096
  %7098 = vdwg.mxu0
  %7099 = vmatprep.subr.bf16.mxu0 %v4989
  %7100 = vmatpush1.bf16.msra.mxu0 %v4988
  %7101 = vmatprep.subr.bf16.mxu0 %v4991
  %7102 = vmatpush1.bf16.msra.mxu0 %v4990
  %7103 = vmatprep.subr.bf16.mxu0 %v4993
  %7104 = vmatpush1.bf16.msra.mxu0 %v4992
  %7105 = vmatprep.subr.bf16.mxu0 %v4995
  %7106 = vmatpush1.bf16.msra.mxu0 %v4994
  %7107 = vmatprep.subr.bf16.mxu0 %v4997
  %7108 = vmatpush1.bf16.msra.mxu0 %v4996
  %7109 = vmatprep.subr.bf16.mxu0 %v4999
  %7110 = vmatpush1.bf16.msra.mxu0 %v4998
  %7111 = vmatprep.subr.bf16.mxu0 %v5001
  %7112 = vmatpush1.bf16.msra.mxu0 %v5000
  %7113 = vmatprep.subr.bf16.mxu0 %v5003
  %7114 = vmatpush1.bf16.msra.mxu0 %v5002
  %7115 = vmatprep.subr.bf16.mxu0 %v5005
  %7116 = vmatpush1.bf16.msra.mxu0 %v5004
  %7117 = vmatprep.subr.bf16.mxu0 %v5007
  %7118 = vmatpush1.bf16.msra.mxu0 %v5006
  %7119 = vmatprep.subr.bf16.mxu0 %v5009
  %7120 = vmatpush1.bf16.msra.mxu0 %v5008
  %7121 = vmatprep.subr.bf16.mxu0 %v5011
  %7122 = vmatpush1.bf16.msra.mxu0 %v5010
  %7123 = vmatprep.subr.bf16.mxu0 %v5013
  %7124 = vmatpush1.bf16.msra.mxu0 %v5012
  %7125 = vmatprep.subr.bf16.mxu0 %v5015
  %7126 = vmatpush1.bf16.msra.mxu0 %v5014
  %7127 = vmatprep.subr.bf16.mxu0 %v5017
  %7128 = vmatpush1.bf16.msra.mxu0 %v5016
  %7129 = vmatprep.subr.bf16.mxu0 %v5019
  %7130 = vmatpush1.bf16.msra.mxu0 %v5018
  %7131 = vmatprep.mubr.bf16.mxu0 %v1571
  %7132 = vmatmul.mubr.bf16.gmra.mrb[0].mxu0 %v1570
  %v7133 = vpop.f32.mrb[0].mxu0
  %v7134 = vadd.f32 %v7081, %v7133
  %v7135 = vpop.f32.mrb[0].mxu0
  %v7136 = vadd.f32 %v7083, %v7135
  %v7137 = vpop.f32.mrb[0].mxu0
  %v7138 = vadd.f32 %v7085, %v7137
  %v7139 = vpop.f32.mrb[0].mxu0
  %v7140 = vadd.f32 %v7087, %v7139
  %7141 = vmatprep.mubr.bf16.mxu0 %v1635
  %7142 = vmatmul.mubr.bf16.gmra.mrb[0].mxu0 %v1634
  %v7143 = vpop.f32.mrb[0].mxu0
  %v7144 = vadd.f32 %v7091, %v7143
  %v7145 = vpop.f32.mrb[0].mxu0
  %v7146 = vadd.f32 %v7093, %v7145
  %v7147 = vpop.f32.mrb[0].mxu0
  %v7148 = vadd.f32 %v7095, %v7147
  %v7149 = vpop.f32.mrb[0].mxu0
  %v7150 = vadd.f32 %v7097, %v7149
  %7151 = vdwg.mxu0
  %7152 = vmatprep.subr.bf16.mxu0 %v5021
  %7153 = vmatpush1.bf16.msra.mxu0 %v5020
  %7154 = vmatprep.subr.bf16.mxu0 %v5023
  %7155 = vmatpush1.bf16.msra.mxu0 %v5022
  %7156 = vmatprep.subr.bf16.mxu0 %v5025
  %7157 = vmatpush1.bf16.msra.mxu0 %v5024
  %7158 = vmatprep.subr.bf16.mxu0 %v5027
  %7159 = vmatpush1.bf16.msra.mxu0 %v5026
  %7160 = vmatprep.subr.bf16.mxu0 %v5029
  %7161 = vmatpush1.bf16.msra.mxu0 %v5028
  %7162 = vmatprep.subr.bf16.mxu0 %v5031
  %7163 = vmatpush1.bf16.msra.mxu0 %v5030
  %7164 = vmatprep.subr.bf16.mxu0 %v5033
  %7165 = vmatpush1.bf16.msra.mxu0 %v5032
  %7166 = vmatprep.subr.bf16.mxu0 %v5035
  %7167 = vmatpush1.bf16.msra.mxu0 %v5034
  %7168 = vmatprep.subr.bf16.mxu0 %v5037
  %7169 = vmatpush1.bf16.msra.mxu0 %v5036
  %7170 = vmatprep.subr.bf16.mxu0 %v5039
  %7171 = vmatpush1.bf16.msra.mxu0 %v5038
  %7172 = vmatprep.subr.bf16.mxu0 %v5041
  %7173 = vmatpush1.bf16.msra.mxu0 %v5040
  %7174 = vmatprep.subr.bf16.mxu0 %v5043
  %7175 = vmatpush1.bf16.msra.mxu0 %v5042
  %7176 = vmatprep.subr.bf16.mxu0 %v5045
  %7177 = vmatpush1.bf16.msra.mxu0 %v5044
  %7178 = vmatprep.subr.bf16.mxu0 %v5047
  %7179 = vmatpush1.bf16.msra.mxu0 %v5046
  %7180 = vmatprep.subr.bf16.mxu0 %v5049
  %7181 = vmatpush1.bf16.msra.mxu0 %v5048
  %7182 = vmatprep.subr.bf16.mxu0 %v5051
  %7183 = vmatpush1.bf16.msra.mxu0 %v5050
  %7184 = vmatprep.mubr.bf16.mxu0 %v1573
  %7185 = vmatmul.mubr.bf16.gmra.mrb[0].mxu0 %v1572
  %v7186 = vpop.f32.mrb[0].mxu0
  %v7187 = vadd.f32 %v7134, %v7186
  %v7188 = vpop.f32.mrb[0].mxu0
  %v7189 = vadd.f32 %v7136, %v7188
  %v7190 = vpop.f32.mrb[0].mxu0
  %v7191 = vadd.f32 %v7138, %v7190
  %v7192 = vpop.f32.mrb[0].mxu0
  %v7193 = vadd.f32 %v7140, %v7192
  %7194 = vmatprep.mubr.bf16.mxu0 %v1637
  %7195 = vmatmul.mubr.bf16.gmra.mrb[0].mxu0 %v1636
  %v7196 = vpop.f32.mrb[0].mxu0
  %v7197 = vadd.f32 %v7144, %v7196
  %v7198 = vpop.f32.mrb[0].mxu0
  %v7199 = vadd.f32 %v7146, %v7198
  %v7200 = vpop.f32.mrb[0].mxu0
  %v7201 = vadd.f32 %v7148, %v7200
  %v7202 = vpop.f32.mrb[0].mxu0
  %v7203 = vadd.f32 %v7150, %v7202
  %7204 = vdwg.mxu0
  %7205 = vmatprep.subr.bf16.mxu0 %v5053
  %7206 = vmatpush1.bf16.msra.mxu0 %v5052
  %7207 = vmatprep.subr.bf16.mxu0 %v5055
  %7208 = vmatpush1.bf16.msra.mxu0 %v5054
  %7209 = vmatprep.subr.bf16.mxu0 %v5057
  %7210 = vmatpush1.bf16.msra.mxu0 %v5056
  %7211 = vmatprep.subr.bf16.mxu0 %v5059
  %7212 = vmatpush1.bf16.msra.mxu0 %v5058
  %7213 = vmatprep.subr.bf16.mxu0 %v5061
  %7214 = vmatpush1.bf16.msra.mxu0 %v5060
  %7215 = vmatprep.subr.bf16.mxu0 %v5063
  %7216 = vmatpush1.bf16.msra.mxu0 %v5062
  %7217 = vmatprep.subr.bf16.mxu0 %v5065
  %7218 = vmatpush1.bf16.msra.mxu0 %v5064
  %7219 = vmatprep.subr.bf16.mxu0 %v5067
  %7220 = vmatpush1.bf16.msra.mxu0 %v5066
  %7221 = vmatprep.subr.bf16.mxu0 %v5069
  %7222 = vmatpush1.bf16.msra.mxu0 %v5068
  %7223 = vmatprep.subr.bf16.mxu0 %v5071
  %7224 = vmatpush1.bf16.msra.mxu0 %v5070
  %7225 = vmatprep.subr.bf16.mxu0 %v5073
  %7226 = vmatpush1.bf16.msra.mxu0 %v5072
  %7227 = vmatprep.subr.bf16.mxu0 %v5075
  %7228 = vmatpush1.bf16.msra.mxu0 %v5074
  %7229 = vmatprep.subr.bf16.mxu0 %v5077
  %7230 = vmatpush1.bf16.msra.mxu0 %v5076
  %7231 = vmatprep.subr.bf16.mxu0 %v5079
  %7232 = vmatpush1.bf16.msra.mxu0 %v5078
  %7233 = vmatprep.subr.bf16.mxu0 %v5081
  %7234 = vmatpush1.bf16.msra.mxu0 %v5080
  %7235 = vmatprep.subr.bf16.mxu0 %v5083
  %7236 = vmatpush1.bf16.msra.mxu0 %v5082
  %7237 = vmatprep.mubr.bf16.mxu0 %v1575
  %7238 = vmatmul.mubr.bf16.gmra.mrb[0].mxu0 %v1574
  %v7239 = vpop.f32.mrb[0].mxu0
  %v7240 = vadd.f32 %v7187, %v7239
  %v7241 = vpop.f32.mrb[0].mxu0
  %v7242 = vadd.f32 %v7189, %v7241
  %v7243 = vpop.f32.mrb[0].mxu0
  %v7244 = vadd.f32 %v7191, %v7243
  %v7245 = vpop.f32.mrb[0].mxu0
  %v7246 = vadd.f32 %v7193, %v7245
  %7247 = vmatprep.mubr.bf16.mxu0 %v1639
  %7248 = vmatmul.mubr.bf16.gmra.mrb[0].mxu0 %v1638
  %v7249 = vpop.f32.mrb[0].mxu0
  %v7250 = vadd.f32 %v7197, %v7249
  %v7251 = vpop.f32.mrb[0].mxu0
  %v7252 = vadd.f32 %v7199, %v7251
  %v7253 = vpop.f32.mrb[0].mxu0
  %v7254 = vadd.f32 %v7201, %v7253
  %v7255 = vpop.f32.mrb[0].mxu0
  %v7256 = vadd.f32 %v7203, %v7255
  %7257 = vdwg.mxu0
  %7258 = vmatprep.subr.bf16.mxu0 %v5085
  %7259 = vmatpush1.bf16.msra.mxu0 %v5084
  %7260 = vmatprep.subr.bf16.mxu0 %v5087
  %7261 = vmatpush1.bf16.msra.mxu0 %v5086
  %7262 = vmatprep.subr.bf16.mxu0 %v5089
  %7263 = vmatpush1.bf16.msra.mxu0 %v5088
  %7264 = vmatprep.subr.bf16.mxu0 %v5091
  %7265 = vmatpush1.bf16.msra.mxu0 %v5090
  %7266 = vmatprep.subr.bf16.mxu0 %v5093
  %7267 = vmatpush1.bf16.msra.mxu0 %v5092
  %7268 = vmatprep.subr.bf16.mxu0 %v5095
  %7269 = vmatpush1.bf16.msra.mxu0 %v5094
  %7270 = vmatprep.subr.bf16.mxu0 %v5097
  %7271 = vmatpush1.bf16.msra.mxu0 %v5096
  %7272 = vmatprep.subr.bf16.mxu0 %v5099
  %7273 = vmatpush1.bf16.msra.mxu0 %v5098
  %7274 = vmatprep.subr.bf16.mxu0 %v5101
  %7275 = vmatpush1.bf16.msra.mxu0 %v5100
  %7276 = vmatprep.subr.bf16.mxu0 %v5103
  %7277 = vmatpush1.bf16.msra.mxu0 %v5102
  %7278 = vmatprep.subr.bf16.mxu0 %v5105
  %7279 = vmatpush1.bf16.msra.mxu0 %v5104
  %7280 = vmatprep.subr.bf16.mxu0 %v5107
  %7281 = vmatpush1.bf16.msra.mxu0 %v5106
  %7282 = vmatprep.subr.bf16.mxu0 %v5109
  %7283 = vmatpush1.bf16.msra.mxu0 %v5108
  %7284 = vmatprep.subr.bf16.mxu0 %v5111
  %7285 = vmatpush1.bf16.msra.mxu0 %v5110
  %7286 = vmatprep.subr.bf16.mxu0 %v5113
  %7287 = vmatpush1.bf16.msra.mxu0 %v5112
  %7288 = vmatprep.subr.bf16.mxu0 %v5115
  %7289 = vmatpush1.bf16.msra.mxu0 %v5114
  %7290 = vmatprep.mubr.bf16.mxu0 %v1577
  %7291 = vmatmul.mubr.bf16.gmra.mrb[0].mxu0 %v1576
  %v7292 = vpop.f32.mrb[0].mxu0
  %v7293 = vadd.f32 %v7240, %v7292
  %v7294 = vpop.f32.mrb[0].mxu0
  %v7295 = vadd.f32 %v7242, %v7294
  %v7296 = vpop.f32.mrb[0].mxu0
  %v7297 = vadd.f32 %v7244, %v7296
  %v7298 = vpop.f32.mrb[0].mxu0
  %v7299 = vadd.f32 %v7246, %v7298
  %7300 = vmatprep.mubr.bf16.mxu0 %v1641
  %7301 = vmatmul.mubr.bf16.gmra.mrb[0].mxu0 %v1640
  %v7302 = vpop.f32.mrb[0].mxu0
  %v7303 = vadd.f32 %v7250, %v7302
  %v7304 = vpop.f32.mrb[0].mxu0
  %v7305 = vadd.f32 %v7252, %v7304
  %v7306 = vpop.f32.mrb[0].mxu0
  %v7307 = vadd.f32 %v7254, %v7306
  %v7308 = vpop.f32.mrb[0].mxu0
  %v7309 = vadd.f32 %v7256, %v7308
  %7310 = vdwg.mxu0
  %7311 = vmatprep.subr.bf16.mxu0 %v5117
  %7312 = vmatpush1.bf16.msra.mxu0 %v5116
  %7313 = vmatprep.subr.bf16.mxu0 %v5119
  %7314 = vmatpush1.bf16.msra.mxu0 %v5118
  %7315 = vmatprep.subr.bf16.mxu0 %v5121
  %7316 = vmatpush1.bf16.msra.mxu0 %v5120
  %7317 = vmatprep.subr.bf16.mxu0 %v5123
  %7318 = vmatpush1.bf16.msra.mxu0 %v5122
  %7319 = vmatprep.subr.bf16.mxu0 %v5125
  %7320 = vmatpush1.bf16.msra.mxu0 %v5124
  %7321 = vmatprep.subr.bf16.mxu0 %v5127
  %7322 = vmatpush1.bf16.msra.mxu0 %v5126
  %7323 = vmatprep.subr.bf16.mxu0 %v5129
  %7324 = vmatpush1.bf16.msra.mxu0 %v5128
  %7325 = vmatprep.subr.bf16.mxu0 %v5131
  %7326 = vmatpush1.bf16.msra.mxu0 %v5130
  %7327 = vmatprep.subr.bf16.mxu0 %v5133
  %7328 = vmatpush1.bf16.msra.mxu0 %v5132
  %7329 = vmatprep.subr.bf16.mxu0 %v5135
  %7330 = vmatpush1.bf16.msra.mxu0 %v5134
  %7331 = vmatprep.subr.bf16.mxu0 %v5137
  %7332 = vmatpush1.bf16.msra.mxu0 %v5136
  %7333 = vmatprep.subr.bf16.mxu0 %v5139
  %7334 = vmatpush1.bf16.msra.mxu0 %v5138
  %7335 = vmatprep.subr.bf16.mxu0 %v5141
  %7336 = vmatpush1.bf16.msra.mxu0 %v5140
  %7337 = vmatprep.subr.bf16.mxu0 %v5143
  %7338 = vmatpush1.bf16.msra.mxu0 %v5142
  %7339 = vmatprep.subr.bf16.mxu0 %v5145
  %7340 = vmatpush1.bf16.msra.mxu0 %v5144
  %7341 = vmatprep.subr.bf16.mxu0 %v5147
  %7342 = vmatpush1.bf16.msra.mxu0 %v5146
  %7343 = vmatprep.mubr.bf16.mxu0 %v1579
  %7344 = vmatmul.mubr.bf16.gmra.mrb[0].mxu0 %v1578
  %v7345 = vpop.f32.mrb[0].mxu0
  %v7346 = vadd.f32 %v7293, %v7345
  %v7347 = vpop.f32.mrb[0].mxu0
  %v7348 = vadd.f32 %v7295, %v7347
  %v7349 = vpop.f32.mrb[0].mxu0
  %v7350 = vadd.f32 %v7297, %v7349
  %v7351 = vpop.f32.mrb[0].mxu0
  %v7352 = vadd.f32 %v7299, %v7351
  %7353 = vmatprep.mubr.bf16.mxu0 %v1643
  %7354 = vmatmul.mubr.bf16.gmra.mrb[0].mxu0 %v1642
  %v7355 = vpop.f32.mrb[0].mxu0
  %v7356 = vadd.f32 %v7303, %v7355
  %v7357 = vpop.f32.mrb[0].mxu0
  %v7358 = vadd.f32 %v7305, %v7357
  %v7359 = vpop.f32.mrb[0].mxu0
  %v7360 = vadd.f32 %v7307, %v7359
  %v7361 = vpop.f32.mrb[0].mxu0
  %v7362 = vadd.f32 %v7309, %v7361
  %7363 = vdwg.mxu0
  %7364 = vmatprep.subr.bf16.mxu0 %v5149
  %7365 = vmatpush1.bf16.msra.mxu0 %v5148
  %7366 = vmatprep.subr.bf16.mxu0 %v5151
  %7367 = vmatpush1.bf16.msra.mxu0 %v5150
  %7368 = vmatprep.subr.bf16.mxu0 %v5153
  %7369 = vmatpush1.bf16.msra.mxu0 %v5152
  %7370 = vmatprep.subr.bf16.mxu0 %v5155
  %7371 = vmatpush1.bf16.msra.mxu0 %v5154
  %7372 = vmatprep.subr.bf16.mxu0 %v5157
  %7373 = vmatpush1.bf16.msra.mxu0 %v5156
  %7374 = vmatprep.subr.bf16.mxu0 %v5159
  %7375 = vmatpush1.bf16.msra.mxu0 %v5158
  %7376 = vmatprep.subr.bf16.mxu0 %v5161
  %7377 = vmatpush1.bf16.msra.mxu0 %v5160
  %7378 = vmatprep.subr.bf16.mxu0 %v5163
  %7379 = vmatpush1.bf16.msra.mxu0 %v5162
  %7380 = vmatprep.subr.bf16.mxu0 %v5165
  %7381 = vmatpush1.bf16.msra.mxu0 %v5164
  %7382 = vmatprep.subr.bf16.mxu0 %v5167
  %7383 = vmatpush1.bf16.msra.mxu0 %v5166
  %7384 = vmatprep.subr.bf16.mxu0 %v5169
  %7385 = vmatpush1.bf16.msra.mxu0 %v5168
  %7386 = vmatprep.subr.bf16.mxu0 %v5171
  %7387 = vmatpush1.bf16.msra.mxu0 %v5170
  %7388 = vmatprep.subr.bf16.mxu0 %v5173
  %7389 = vmatpush1.bf16.msra.mxu0 %v5172
  %7390 = vmatprep.subr.bf16.mxu0 %v5175
  %7391 = vmatpush1.bf16.msra.mxu0 %v5174
  %7392 = vmatprep.subr.bf16.mxu0 %v5177
  %7393 = vmatpush1.bf16.msra.mxu0 %v5176
  %7394 = vmatprep.subr.bf16.mxu0 %v5179
  %7395 = vmatpush1.bf16.msra.mxu0 %v5178
  %7396 = vmatprep.mubr.bf16.mxu0 %v1581
  %7397 = vmatmul.mubr.bf16.gmra.mrb[0].mxu0 %v1580
  %v7398 = vpop.f32.mrb[0].mxu0
  %v7399 = vadd.f32 %v7346, %v7398
  %v7400 = vpop.f32.mrb[0].mxu0
  %v7401 = vadd.f32 %v7348, %v7400
  %v7402 = vpop.f32.mrb[0].mxu0
  %v7403 = vadd.f32 %v7350, %v7402
  %v7404 = vpop.f32.mrb[0].mxu0
  %v7405 = vadd.f32 %v7352, %v7404
  %7406 = vmatprep.mubr.bf16.mxu0 %v1645
  %7407 = vmatmul.mubr.bf16.gmra.mrb[0].mxu0 %v1644
  %v7408 = vpop.f32.mrb[0].mxu0
  %v7409 = vadd.f32 %v7356, %v7408
  %v7410 = vpop.f32.mrb[0].mxu0
  %v7411 = vadd.f32 %v7358, %v7410
  %v7412 = vpop.f32.mrb[0].mxu0
  %v7413 = vadd.f32 %v7360, %v7412
  %v7414 = vpop.f32.mrb[0].mxu0
  %v7415 = vadd.f32 %v7362, %v7414
  %7416 = vdwg.mxu0
  %7417 = vmatprep.subr.bf16.mxu0 %v5181
  %7418 = vmatpush1.bf16.msra.mxu0 %v5180
  %7419 = vmatprep.subr.bf16.mxu0 %v5183
  %7420 = vmatpush1.bf16.msra.mxu0 %v5182
  %7421 = vmatprep.subr.bf16.mxu0 %v5185
  %7422 = vmatpush1.bf16.msra.mxu0 %v5184
  %7423 = vmatprep.subr.bf16.mxu0 %v5187
  %7424 = vmatpush1.bf16.msra.mxu0 %v5186
  %7425 = vmatprep.subr.bf16.mxu0 %v5189
  %7426 = vmatpush1.bf16.msra.mxu0 %v5188
  %7427 = vmatprep.subr.bf16.mxu0 %v5191
  %7428 = vmatpush1.bf16.msra.mxu0 %v5190
  %7429 = vmatprep.subr.bf16.mxu0 %v5193
  %7430 = vmatpush1.bf16.msra.mxu0 %v5192
  %7431 = vmatprep.subr.bf16.mxu0 %v5195
  %7432 = vmatpush1.bf16.msra.mxu0 %v5194
  %7433 = vmatprep.subr.bf16.mxu0 %v5197
  %7434 = vmatpush1.bf16.msra.mxu0 %v5196
  %7435 = vmatprep.subr.bf16.mxu0 %v5199
  %7436 = vmatpush1.bf16.msra.mxu0 %v5198
  %7437 = vmatprep.subr.bf16.mxu0 %v5201
  %7438 = vmatpush1.bf16.msra.mxu0 %v5200
  %7439 = vmatprep.subr.bf16.mxu0 %v5203
  %7440 = vmatpush1.bf16.msra.mxu0 %v5202
  %7441 = vmatprep.subr.bf16.mxu0 %v5205
  %7442 = vmatpush1.bf16.msra.mxu0 %v5204
  %7443 = vmatprep.subr.bf16.mxu0 %v5207
  %7444 = vmatpush1.bf16.msra.mxu0 %v5206
  %7445 = vmatprep.subr.bf16.mxu0 %v5209
  %7446 = vmatpush1.bf16.msra.mxu0 %v5208
  %7447 = vmatprep.subr.bf16.mxu0 %v5211
  %7448 = vmatpush1.bf16.msra.mxu0 %v5210
  %7449 = vmatprep.mubr.bf16.mxu0 %v1583
  %7450 = vmatmul.mubr.bf16.gmra.mrb[0].mxu0 %v1582
  %v7451 = vpop.f32.mrb[0].mxu0
  %v7452 = vadd.f32 %v7399, %v7451
  %v7453 = vpop.f32.mrb[0].mxu0
  %v7454 = vadd.f32 %v7401, %v7453
  %v7455 = vpop.f32.mrb[0].mxu0
  %v7456 = vadd.f32 %v7403, %v7455
  %v7457 = vpop.f32.mrb[0].mxu0
  %v7458 = vadd.f32 %v7405, %v7457
  %7459 = vmatprep.mubr.bf16.mxu0 %v1647
  %7460 = vmatmul.mubr.bf16.gmra.mrb[0].mxu0 %v1646
  %v7461 = vpop.f32.mrb[0].mxu0
  %v7462 = vadd.f32 %v7409, %v7461
  %v7463 = vpop.f32.mrb[0].mxu0
  %v7464 = vadd.f32 %v7411, %v7463
  %v7465 = vpop.f32.mrb[0].mxu0
  %v7466 = vadd.f32 %v7413, %v7465
  %v7467 = vpop.f32.mrb[0].mxu0
  %v7468 = vadd.f32 %v7415, %v7467
  %7469 = vdwg.mxu0
  %7470 = vmatprep.subr.bf16.mxu0 %v5213
  %7471 = vmatpush1.bf16.msra.mxu0 %v5212
  %7472 = vmatprep.subr.bf16.mxu0 %v5215
  %7473 = vmatpush1.bf16.msra.mxu0 %v5214
  %7474 = vmatprep.subr.bf16.mxu0 %v5217
  %7475 = vmatpush1.bf16.msra.mxu0 %v5216
  %7476 = vmatprep.subr.bf16.mxu0 %v5219
  %7477 = vmatpush1.bf16.msra.mxu0 %v5218
  %7478 = vmatprep.subr.bf16.mxu0 %v5221
  %7479 = vmatpush1.bf16.msra.mxu0 %v5220
  %7480 = vmatprep.subr.bf16.mxu0 %v5223
  %7481 = vmatpush1.bf16.msra.mxu0 %v5222
  %7482 = vmatprep.subr.bf16.mxu0 %v5225
  %7483 = vmatpush1.bf16.msra.mxu0 %v5224
  %7484 = vmatprep.subr.bf16.mxu0 %v5227
  %7485 = vmatpush1.bf16.msra.mxu0 %v5226
  %7486 = vmatprep.subr.bf16.mxu0 %v5229
  %7487 = vmatpush1.bf16.msra.mxu0 %v5228
  %7488 = vmatprep.subr.bf16.mxu0 %v5231
  %7489 = vmatpush1.bf16.msra.mxu0 %v5230
  %7490 = vmatprep.subr.bf16.mxu0 %v5233
  %7491 = vmatpush1.bf16.msra.mxu0 %v5232
  %7492 = vmatprep.subr.bf16.mxu0 %v5235
  %7493 = vmatpush1.bf16.msra.mxu0 %v5234
  %7494 = vmatprep.subr.bf16.mxu0 %v5237
  %7495 = vmatpush1.bf16.msra.mxu0 %v5236
  %7496 = vmatprep.subr.bf16.mxu0 %v5239
  %7497 = vmatpush1.bf16.msra.mxu0 %v5238
  %7498 = vmatprep.subr.bf16.mxu0 %v5241
  %7499 = vmatpush1.bf16.msra.mxu0 %v5240
  %7500 = vmatprep.subr.bf16.mxu0 %v5243
  %7501 = vmatpush1.bf16.msra.mxu0 %v5242
  %7502 = vmatprep.mubr.bf16.mxu0 %v1585
  %7503 = vmatmul.mubr.bf16.gmra.mrb[0].mxu0 %v1584
  %v7504 = vpop.f32.mrb[0].mxu0
  %v7505 = vadd.f32 %v7452, %v7504
  %v7506 = vpop.f32.mrb[0].mxu0
  %v7507 = vadd.f32 %v7454, %v7506
  %v7508 = vpop.f32.mrb[0].mxu0
  %v7509 = vadd.f32 %v7456, %v7508
  %v7510 = vpop.f32.mrb[0].mxu0
  %v7511 = vadd.f32 %v7458, %v7510
  %7512 = vmatprep.mubr.bf16.mxu0 %v1649
  %7513 = vmatmul.mubr.bf16.gmra.mrb[0].mxu0 %v1648
  %v7514 = vpop.f32.mrb[0].mxu0
  %v7515 = vadd.f32 %v7462, %v7514
  %v7516 = vpop.f32.mrb[0].mxu0
  %v7517 = vadd.f32 %v7464, %v7516
  %v7518 = vpop.f32.mrb[0].mxu0
  %v7519 = vadd.f32 %v7466, %v7518
  %v7520 = vpop.f32.mrb[0].mxu0
  %v7521 = vadd.f32 %v7468, %v7520
  %7522 = vdwg.mxu0
  %7523 = vmatprep.subr.bf16.mxu0 %v5245
  %7524 = vmatpush1.bf16.msra.mxu0 %v5244
  %7525 = vmatprep.subr.bf16.mxu0 %v5247
  %7526 = vmatpush1.bf16.msra.mxu0 %v5246
  %7527 = vmatprep.subr.bf16.mxu0 %v5249
  %7528 = vmatpush1.bf16.msra.mxu0 %v5248
  %7529 = vmatprep.subr.bf16.mxu0 %v5251
  %7530 = vmatpush1.bf16.msra.mxu0 %v5250
  %7531 = vmatprep.subr.bf16.mxu0 %v5253
  %7532 = vmatpush1.bf16.msra.mxu0 %v5252
  %7533 = vmatprep.subr.bf16.mxu0 %v5255
  %7534 = vmatpush1.bf16.msra.mxu0 %v5254
  %7535 = vmatprep.subr.bf16.mxu0 %v5257
  %7536 = vmatpush1.bf16.msra.mxu0 %v5256
  %7537 = vmatprep.subr.bf16.mxu0 %v5259
  %7538 = vmatpush1.bf16.msra.mxu0 %v5258
  %7539 = vmatprep.subr.bf16.mxu0 %v5261
  %7540 = vmatpush1.bf16.msra.mxu0 %v5260
  %7541 = vmatprep.subr.bf16.mxu0 %v5263
  %7542 = vmatpush1.bf16.msra.mxu0 %v5262
  %7543 = vmatprep.subr.bf16.mxu0 %v5265
  %7544 = vmatpush1.bf16.msra.mxu0 %v5264
  %7545 = vmatprep.subr.bf16.mxu0 %v5267
  %7546 = vmatpush1.bf16.msra.mxu0 %v5266
  %7547 = vmatprep.subr.bf16.mxu0 %v5269
  %7548 = vmatpush1.bf16.msra.mxu0 %v5268
  %7549 = vmatprep.subr.bf16.mxu0 %v5271
  %7550 = vmatpush1.bf16.msra.mxu0 %v5270
  %7551 = vmatprep.subr.bf16.mxu0 %v5273
  %7552 = vmatpush1.bf16.msra.mxu0 %v5272
  %7553 = vmatprep.subr.bf16.mxu0 %v5275
  %7554 = vmatpush1.bf16.msra.mxu0 %v5274
  %7555 = vmatprep.mubr.bf16.mxu0 %v1587
  %7556 = vmatmul.mubr.bf16.gmra.mrb[0].mxu0 %v1586
  %v7557 = vpop.f32.mrb[0].mxu0
  %v7558 = vadd.f32 %v7505, %v7557
  %v7559 = vpop.f32.mrb[0].mxu0
  %v7560 = vadd.f32 %v7507, %v7559
  %v7561 = vpop.f32.mrb[0].mxu0
  %v7562 = vadd.f32 %v7509, %v7561
  %v7563 = vpop.f32.mrb[0].mxu0
  %v7564 = vadd.f32 %v7511, %v7563
  %7565 = vmatprep.mubr.bf16.mxu0 %v1651
  %7566 = vmatmul.mubr.bf16.gmra.mrb[0].mxu0 %v1650
  %v7567 = vpop.f32.mrb[0].mxu0
  %v7568 = vadd.f32 %v7515, %v7567
  %v7569 = vpop.f32.mrb[0].mxu0
  %v7570 = vadd.f32 %v7517, %v7569
  %v7571 = vpop.f32.mrb[0].mxu0
  %v7572 = vadd.f32 %v7519, %v7571
  %v7573 = vpop.f32.mrb[0].mxu0
  %v7574 = vadd.f32 %v7521, %v7573
  %7575 = vdwg.mxu0
  %7576 = vmatprep.subr.bf16.mxu0 %v5277
  %7577 = vmatpush1.bf16.msra.mxu0 %v5276
  %7578 = vmatprep.subr.bf16.mxu0 %v5279
  %7579 = vmatpush1.bf16.msra.mxu0 %v5278
  %7580 = vmatprep.subr.bf16.mxu0 %v5281
  %7581 = vmatpush1.bf16.msra.mxu0 %v5280
  %7582 = vmatprep.subr.bf16.mxu0 %v5283
  %7583 = vmatpush1.bf16.msra.mxu0 %v5282
  %7584 = vmatprep.subr.bf16.mxu0 %v5285
  %7585 = vmatpush1.bf16.msra.mxu0 %v5284
  %7586 = vmatprep.subr.bf16.mxu0 %v5287
  %7587 = vmatpush1.bf16.msra.mxu0 %v5286
  %7588 = vmatprep.subr.bf16.mxu0 %v5289
  %7589 = vmatpush1.bf16.msra.mxu0 %v5288
  %7590 = vmatprep.subr.bf16.mxu0 %v5291
  %7591 = vmatpush1.bf16.msra.mxu0 %v5290
  %7592 = vmatprep.subr.bf16.mxu0 %v5293
  %7593 = vmatpush1.bf16.msra.mxu0 %v5292
  %7594 = vmatprep.subr.bf16.mxu0 %v5295
  %7595 = vmatpush1.bf16.msra.mxu0 %v5294
  %7596 = vmatprep.subr.bf16.mxu0 %v5297
  %7597 = vmatpush1.bf16.msra.mxu0 %v5296
  %7598 = vmatprep.subr.bf16.mxu0 %v5299
  %7599 = vmatpush1.bf16.msra.mxu0 %v5298
  %7600 = vmatprep.subr.bf16.mxu0 %v5301
  %7601 = vmatpush1.bf16.msra.mxu0 %v5300
  %7602 = vmatprep.subr.bf16.mxu0 %v5303
  %7603 = vmatpush1.bf16.msra.mxu0 %v5302
  %7604 = vmatprep.subr.bf16.mxu0 %v5305
  %7605 = vmatpush1.bf16.msra.mxu0 %v5304
  %7606 = vmatprep.subr.bf16.mxu0 %v5307
  %7607 = vmatpush1.bf16.msra.mxu0 %v5306
  %7608 = vmatprep.mubr.bf16.mxu0 %v1589
  %7609 = vmatmul.mubr.bf16.gmra.mrb[0].mxu0 %v1588
  %v7610 = vpop.f32.mrb[0].mxu0
  %v7611 = vadd.f32 %v7558, %v7610
  %v7612 = vpop.f32.mrb[0].mxu0
  %v7613 = vadd.f32 %v7560, %v7612
  %v7614 = vpop.f32.mrb[0].mxu0
  %v7615 = vadd.f32 %v7562, %v7614
  %v7616 = vpop.f32.mrb[0].mxu0
  %v7617 = vadd.f32 %v7564, %v7616
  %7618 = vmatprep.mubr.bf16.mxu0 %v1653
  %7619 = vmatmul.mubr.bf16.gmra.mrb[0].mxu0 %v1652
  %v7620 = vpop.f32.mrb[0].mxu0
  %v7621 = vadd.f32 %v7568, %v7620
  %v7622 = vpop.f32.mrb[0].mxu0
  %v7623 = vadd.f32 %v7570, %v7622
  %v7624 = vpop.f32.mrb[0].mxu0
  %v7625 = vadd.f32 %v7572, %v7624
  %v7626 = vpop.f32.mrb[0].mxu0
  %v7627 = vadd.f32 %v7574, %v7626
  %7628 = vdwg.mxu0
  %7629 = vmatprep.subr.bf16.mxu0 %v5309
  %7630 = vmatpush1.bf16.msra.mxu0 %v5308
  %7631 = vmatprep.subr.bf16.mxu0 %v5311
  %7632 = vmatpush1.bf16.msra.mxu0 %v5310
  %7633 = vmatprep.subr.bf16.mxu0 %v5313
  %7634 = vmatpush1.bf16.msra.mxu0 %v5312
  %7635 = vmatprep.subr.bf16.mxu0 %v5315
  %7636 = vmatpush1.bf16.msra.mxu0 %v5314
  %7637 = vmatprep.subr.bf16.mxu0 %v5317
  %7638 = vmatpush1.bf16.msra.mxu0 %v5316
  %7639 = vmatprep.subr.bf16.mxu0 %v5319
  %7640 = vmatpush1.bf16.msra.mxu0 %v5318
  %7641 = vmatprep.subr.bf16.mxu0 %v5321
  %7642 = vmatpush1.bf16.msra.mxu0 %v5320
  %7643 = vmatprep.subr.bf16.mxu0 %v5323
  %7644 = vmatpush1.bf16.msra.mxu0 %v5322
  %7645 = vmatprep.subr.bf16.mxu0 %v5325
  %7646 = vmatpush1.bf16.msra.mxu0 %v5324
  %7647 = vmatprep.subr.bf16.mxu0 %v5327
  %7648 = vmatpush1.bf16.msra.mxu0 %v5326
  %7649 = vmatprep.subr.bf16.mxu0 %v5329
  %7650 = vmatpush1.bf16.msra.mxu0 %v5328
  %7651 = vmatprep.subr.bf16.mxu0 %v5331
  %7652 = vmatpush1.bf16.msra.mxu0 %v5330
  %7653 = vmatprep.subr.bf16.mxu0 %v5333
  %7654 = vmatpush1.bf16.msra.mxu0 %v5332
  %7655 = vmatprep.subr.bf16.mxu0 %v5335
  %7656 = vmatpush1.bf16.msra.mxu0 %v5334
  %7657 = vmatprep.subr.bf16.mxu0 %v5337
  %7658 = vmatpush1.bf16.msra.mxu0 %v5336
  %7659 = vmatprep.subr.bf16.mxu0 %v5339
  %7660 = vmatpush1.bf16.msra.mxu0 %v5338
  %7661 = vmatprep.mubr.bf16.mxu0 %v1591
  %7662 = vmatmul.mubr.bf16.gmra.mrb[0].mxu0 %v1590
  %v7663 = vpop.f32.mrb[0].mxu0
  %v7664 = vadd.f32 %v7611, %v7663
  %v7665 = vpop.f32.mrb[0].mxu0
  %v7666 = vadd.f32 %v7613, %v7665
  %v7667 = vpop.f32.mrb[0].mxu0
  %v7668 = vadd.f32 %v7615, %v7667
  %v7669 = vpop.f32.mrb[0].mxu0
  %v7670 = vadd.f32 %v7617, %v7669
  %7671 = vmatprep.mubr.bf16.mxu0 %v1655
  %7672 = vmatmul.mubr.bf16.gmra.mrb[0].mxu0 %v1654
  %v7673 = vpop.f32.mrb[0].mxu0
  %v7674 = vadd.f32 %v7621, %v7673
  %v7675 = vpop.f32.mrb[0].mxu0
  %v7676 = vadd.f32 %v7623, %v7675
  %v7677 = vpop.f32.mrb[0].mxu0
  %v7678 = vadd.f32 %v7625, %v7677
  %v7679 = vpop.f32.mrb[0].mxu0
  %v7680 = vadd.f32 %v7627, %v7679
  %7681 = vdwg.mxu0
  %7682 = vmatprep.subr.bf16.mxu0 %v5341
  %7683 = vmatpush1.bf16.msra.mxu0 %v5340
  %7684 = vmatprep.subr.bf16.mxu0 %v5343
  %7685 = vmatpush1.bf16.msra.mxu0 %v5342
  %7686 = vmatprep.subr.bf16.mxu0 %v5345
  %7687 = vmatpush1.bf16.msra.mxu0 %v5344
  %7688 = vmatprep.subr.bf16.mxu0 %v5347
  %7689 = vmatpush1.bf16.msra.mxu0 %v5346
  %7690 = vmatprep.subr.bf16.mxu0 %v5349
  %7691 = vmatpush1.bf16.msra.mxu0 %v5348
  %7692 = vmatprep.subr.bf16.mxu0 %v5351
  %7693 = vmatpush1.bf16.msra.mxu0 %v5350
  %7694 = vmatprep.subr.bf16.mxu0 %v5353
  %7695 = vmatpush1.bf16.msra.mxu0 %v5352
  %7696 = vmatprep.subr.bf16.mxu0 %v5355
  %7697 = vmatpush1.bf16.msra.mxu0 %v5354
  %7698 = vmatprep.subr.bf16.mxu0 %v5357
  %7699 = vmatpush1.bf16.msra.mxu0 %v5356
  %7700 = vmatprep.subr.bf16.mxu0 %v5359
  %7701 = vmatpush1.bf16.msra.mxu0 %v5358
  %7702 = vmatprep.subr.bf16.mxu0 %v5361
  %7703 = vmatpush1.bf16.msra.mxu0 %v5360
  %7704 = vmatprep.subr.bf16.mxu0 %v5363
  %7705 = vmatpush1.bf16.msra.mxu0 %v5362
  %7706 = vmatprep.subr.bf16.mxu0 %v5365
  %7707 = vmatpush1.bf16.msra.mxu0 %v5364
  %7708 = vmatprep.subr.bf16.mxu0 %v5367
  %7709 = vmatpush1.bf16.msra.mxu0 %v5366
  %7710 = vmatprep.subr.bf16.mxu0 %v5369
  %7711 = vmatpush1.bf16.msra.mxu0 %v5368
  %7712 = vmatprep.subr.bf16.mxu0 %v5371
  %7713 = vmatpush1.bf16.msra.mxu0 %v5370
  %7714 = vmatprep.mubr.bf16.mxu0 %v1593
  %7715 = vmatmul.mubr.bf16.gmra.mrb[0].mxu0 %v1592
  %v7716 = vpop.f32.mrb[0].mxu0
  %v7717 = vadd.f32 %v7664, %v7716
  %v7718 = vpop.f32.mrb[0].mxu0
  %v7719 = vadd.f32 %v7666, %v7718
  %v7720 = vpop.f32.mrb[0].mxu0
  %v7721 = vadd.f32 %v7668, %v7720
  %v7722 = vpop.f32.mrb[0].mxu0
  %v7723 = vadd.f32 %v7670, %v7722
  %7724 = vmatprep.mubr.bf16.mxu0 %v1657
  %7725 = vmatmul.mubr.bf16.gmra.mrb[0].mxu0 %v1656
  %v7726 = vpop.f32.mrb[0].mxu0
  %v7727 = vadd.f32 %v7674, %v7726
  %v7728 = vpop.f32.mrb[0].mxu0
  %v7729 = vadd.f32 %v7676, %v7728
  %v7730 = vpop.f32.mrb[0].mxu0
  %v7731 = vadd.f32 %v7678, %v7730
  %v7732 = vpop.f32.mrb[0].mxu0
  %v7733 = vadd.f32 %v7680, %v7732
  %7734 = vdwg.mxu0
  %7735 = vmatprep.subr.bf16.mxu0 %v5373
  %7736 = vmatpush1.bf16.msra.mxu0 %v5372
  %7737 = vmatprep.subr.bf16.mxu0 %v5375
  %7738 = vmatpush1.bf16.msra.mxu0 %v5374
  %7739 = vmatprep.subr.bf16.mxu0 %v5377
  %7740 = vmatpush1.bf16.msra.mxu0 %v5376
  %7741 = vmatprep.subr.bf16.mxu0 %v5379
  %7742 = vmatpush1.bf16.msra.mxu0 %v5378
  %7743 = vmatprep.subr.bf16.mxu0 %v5381
  %7744 = vmatpush1.bf16.msra.mxu0 %v5380
  %7745 = vmatprep.subr.bf16.mxu0 %v5383
  %7746 = vmatpush1.bf16.msra.mxu0 %v5382
  %7747 = vmatprep.subr.bf16.mxu0 %v5385
  %7748 = vmatpush1.bf16.msra.mxu0 %v5384
  %7749 = vmatprep.subr.bf16.mxu0 %v5387
  %7750 = vmatpush1.bf16.msra.mxu0 %v5386
  %7751 = vmatprep.subr.bf16.mxu0 %v5389
  %7752 = vmatpush1.bf16.msra.mxu0 %v5388
  %7753 = vmatprep.subr.bf16.mxu0 %v5391
  %7754 = vmatpush1.bf16.msra.mxu0 %v5390
  %7755 = vmatprep.subr.bf16.mxu0 %v5393
  %7756 = vmatpush1.bf16.msra.mxu0 %v5392
  %7757 = vmatprep.subr.bf16.mxu0 %v5395
  %7758 = vmatpush1.bf16.msra.mxu0 %v5394
  %7759 = vmatprep.subr.bf16.mxu0 %v5397
  %7760 = vmatpush1.bf16.msra.mxu0 %v5396
  %7761 = vmatprep.subr.bf16.mxu0 %v5399
  %7762 = vmatpush1.bf16.msra.mxu0 %v5398
  %7763 = vmatprep.subr.bf16.mxu0 %v5401
  %7764 = vmatpush1.bf16.msra.mxu0 %v5400
  %7765 = vmatprep.subr.bf16.mxu0 %v5403
  %7766 = vmatpush1.bf16.msra.mxu0 %v5402
  %7767 = vmatprep.mubr.bf16.mxu0 %v1595
  %7768 = vmatmul.mubr.bf16.gmra.mrb[0].mxu0 %v1594
  %v7769 = vpop.f32.mrb[0].mxu0
  %v7770 = vadd.f32 %v7717, %v7769
  %v7771 = vpop.f32.mrb[0].mxu0
  %v7772 = vadd.f32 %v7719, %v7771
  %v7773 = vpop.f32.mrb[0].mxu0
  %v7774 = vadd.f32 %v7721, %v7773
  %v7775 = vpop.f32.mrb[0].mxu0
  %v7776 = vadd.f32 %v7723, %v7775
  %7777 = vmatprep.mubr.bf16.mxu0 %v1659
  %7778 = vmatmul.mubr.bf16.gmra.mrb[0].mxu0 %v1658
  %v7779 = vpop.f32.mrb[0].mxu0
  %v7780 = vadd.f32 %v7727, %v7779
  %v7781 = vpop.f32.mrb[0].mxu0
  %v7782 = vadd.f32 %v7729, %v7781
  %v7783 = vpop.f32.mrb[0].mxu0
  %v7784 = vadd.f32 %v7731, %v7783
  %v7785 = vpop.f32.mrb[0].mxu0
  %v7786 = vadd.f32 %v7733, %v7785
  %7787 = vdwg.mxu0
  %7788 = vmatprep.subr.bf16.mxu0 %v5405
  %7789 = vmatpush1.bf16.msra.mxu0 %v5404
  %7790 = vmatprep.subr.bf16.mxu0 %v5407
  %7791 = vmatpush1.bf16.msra.mxu0 %v5406
  %7792 = vmatprep.subr.bf16.mxu0 %v5409
  %7793 = vmatpush1.bf16.msra.mxu0 %v5408
  %7794 = vmatprep.subr.bf16.mxu0 %v5411
  %7795 = vmatpush1.bf16.msra.mxu0 %v5410
  %7796 = vmatprep.subr.bf16.mxu0 %v5413
  %7797 = vmatpush1.bf16.msra.mxu0 %v5412
  %7798 = vmatprep.subr.bf16.mxu0 %v5415
  %7799 = vmatpush1.bf16.msra.mxu0 %v5414
  %7800 = vmatprep.subr.bf16.mxu0 %v5417
  %7801 = vmatpush1.bf16.msra.mxu0 %v5416
  %7802 = vmatprep.subr.bf16.mxu0 %v5419
  %7803 = vmatpush1.bf16.msra.mxu0 %v5418
  %7804 = vmatprep.subr.bf16.mxu0 %v5421
  %7805 = vmatpush1.bf16.msra.mxu0 %v5420
  %7806 = vmatprep.subr.bf16.mxu0 %v5423
  %7807 = vmatpush1.bf16.msra.mxu0 %v5422
  %7808 = vmatprep.subr.bf16.mxu0 %v5425
  %7809 = vmatpush1.bf16.msra.mxu0 %v5424
  %7810 = vmatprep.subr.bf16.mxu0 %v5427
  %7811 = vmatpush1.bf16.msra.mxu0 %v5426
  %7812 = vmatprep.subr.bf16.mxu0 %v5429
  %7813 = vmatpush1.bf16.msra.mxu0 %v5428
  %7814 = vmatprep.subr.bf16.mxu0 %v5431
  %7815 = vmatpush1.bf16.msra.mxu0 %v5430
  %7816 = vmatprep.subr.bf16.mxu0 %v5433
  %7817 = vmatpush1.bf16.msra.mxu0 %v5432
  %7818 = vmatprep.subr.bf16.mxu0 %v5435
  %7819 = vmatpush1.bf16.msra.mxu0 %v5434
  %7820 = vmatprep.mubr.bf16.mxu0 %v1597
  %7821 = vmatmul.mubr.bf16.gmra.mrb[0].mxu0 %v1596
  %v7822 = vpop.f32.mrb[0].mxu0
  %v7823 = vadd.f32 %v7770, %v7822
  %v7824 = vpop.f32.mrb[0].mxu0
  %v7825 = vadd.f32 %v7772, %v7824
  %v7826 = vpop.f32.mrb[0].mxu0
  %v7827 = vadd.f32 %v7774, %v7826
  %v7828 = vpop.f32.mrb[0].mxu0
  %v7829 = vadd.f32 %v7776, %v7828
  %7830 = vmatprep.mubr.bf16.mxu0 %v1661
  %7831 = vmatmul.mubr.bf16.gmra.mrb[0].mxu0 %v1660
  %v7832 = vpop.f32.mrb[0].mxu0
  %v7833 = vadd.f32 %v7780, %v7832
  %v7834 = vpop.f32.mrb[0].mxu0
  %v7835 = vadd.f32 %v7782, %v7834
  %v7836 = vpop.f32.mrb[0].mxu0
  %v7837 = vadd.f32 %v7784, %v7836
  %v7838 = vpop.f32.mrb[0].mxu0
  %v7839 = vadd.f32 %v7786, %v7838
  %7840 = vdwg.mxu0
  %7841 = vmatprep.subr.bf16.mxu0 %v5437
  %7842 = vmatpush1.bf16.msra.mxu0 %v5436
  %7843 = vmatprep.subr.bf16.mxu0 %v5439
  %7844 = vmatpush1.bf16.msra.mxu0 %v5438
  %7845 = vmatprep.subr.bf16.mxu0 %v5441
  %7846 = vmatpush1.bf16.msra.mxu0 %v5440
  %7847 = vmatprep.subr.bf16.mxu0 %v5443
  %7848 = vmatpush1.bf16.msra.mxu0 %v5442
  %7849 = vmatprep.subr.bf16.mxu0 %v5445
  %7850 = vmatpush1.bf16.msra.mxu0 %v5444
  %7851 = vmatprep.subr.bf16.mxu0 %v5447
  %7852 = vmatpush1.bf16.msra.mxu0 %v5446
  %7853 = vmatprep.subr.bf16.mxu0 %v5449
  %7854 = vmatpush1.bf16.msra.mxu0 %v5448
  %7855 = vmatprep.subr.bf16.mxu0 %v5451
  %7856 = vmatpush1.bf16.msra.mxu0 %v5450
  %7857 = vmatprep.subr.bf16.mxu0 %v5453
  %7858 = vmatpush1.bf16.msra.mxu0 %v5452
  %7859 = vmatprep.subr.bf16.mxu0 %v5455
  %7860 = vmatpush1.bf16.msra.mxu0 %v5454
  %7861 = vmatprep.subr.bf16.mxu0 %v5457
  %7862 = vmatpush1.bf16.msra.mxu0 %v5456
  %7863 = vmatprep.subr.bf16.mxu0 %v5459
  %7864 = vmatpush1.bf16.msra.mxu0 %v5458
  %7865 = vmatprep.subr.bf16.mxu0 %v5461
  %7866 = vmatpush1.bf16.msra.mxu0 %v5460
  %7867 = vmatprep.subr.bf16.mxu0 %v5463
  %7868 = vmatpush1.bf16.msra.mxu0 %v5462
  %7869 = vmatprep.subr.bf16.mxu0 %v5465
  %7870 = vmatpush1.bf16.msra.mxu0 %v5464
  %7871 = vmatprep.subr.bf16.mxu0 %v5467
  %7872 = vmatpush1.bf16.msra.mxu0 %v5466
  %7873 = vmatprep.mubr.bf16.mxu0 %v1599
  %7874 = vmatmul.mubr.bf16.gmra.mrb[0].mxu0 %v1598
  %v7875 = vpop.f32.mrb[0].mxu0
  %v7876 = vadd.f32 %v7823, %v7875
  %v7877 = vpop.f32.mrb[0].mxu0
  %v7878 = vadd.f32 %v7825, %v7877
  %v7879 = vpop.f32.mrb[0].mxu0
  %v7880 = vadd.f32 %v7827, %v7879
  %v7881 = vpop.f32.mrb[0].mxu0
  %v7882 = vadd.f32 %v7829, %v7881
  %7883 = vmatprep.mubr.bf16.mxu0 %v1663
  %7884 = vmatmul.mubr.bf16.gmra.mrb[0].mxu0 %v1662
  %v7885 = vpop.f32.mrb[0].mxu0
  %v7886 = vadd.f32 %v7833, %v7885
  %v7887 = vpop.f32.mrb[0].mxu0
  %v7888 = vadd.f32 %v7835, %v7887
  %v7889 = vpop.f32.mrb[0].mxu0
  %v7890 = vadd.f32 %v7837, %v7889
  %v7891 = vpop.f32.mrb[0].mxu0
  %v7892 = vadd.f32 %v7839, %v7891
  %7893 = vdwg.mxu0
  %7894 = vmatprep.subr.bf16.mxu0 %v5469
  %7895 = vmatpush1.bf16.msra.mxu0 %v5468
  %7896 = vmatprep.subr.bf16.mxu0 %v5471
  %7897 = vmatpush1.bf16.msra.mxu0 %v5470
  %7898 = vmatprep.subr.bf16.mxu0 %v5473
  %7899 = vmatpush1.bf16.msra.mxu0 %v5472
  %7900 = vmatprep.subr.bf16.mxu0 %v5475
  %7901 = vmatpush1.bf16.msra.mxu0 %v5474
  %7902 = vmatprep.subr.bf16.mxu0 %v5477
  %7903 = vmatpush1.bf16.msra.mxu0 %v5476
  %7904 = vmatprep.subr.bf16.mxu0 %v5479
  %7905 = vmatpush1.bf16.msra.mxu0 %v5478
  %7906 = vmatprep.subr.bf16.mxu0 %v5481
  %7907 = vmatpush1.bf16.msra.mxu0 %v5480
  %7908 = vmatprep.subr.bf16.mxu0 %v5483
  %7909 = vmatpush1.bf16.msra.mxu0 %v5482
  %7910 = vmatprep.subr.bf16.mxu0 %v5485
  %7911 = vmatpush1.bf16.msra.mxu0 %v5484
  %7912 = vmatprep.subr.bf16.mxu0 %v5487
  %7913 = vmatpush1.bf16.msra.mxu0 %v5486
  %7914 = vmatprep.subr.bf16.mxu0 %v5489
  %7915 = vmatpush1.bf16.msra.mxu0 %v5488
  %7916 = vmatprep.subr.bf16.mxu0 %v5491
  %7917 = vmatpush1.bf16.msra.mxu0 %v5490
  %7918 = vmatprep.subr.bf16.mxu0 %v5493
  %7919 = vmatpush1.bf16.msra.mxu0 %v5492
  %7920 = vmatprep.subr.bf16.mxu0 %v5495
  %7921 = vmatpush1.bf16.msra.mxu0 %v5494
  %7922 = vmatprep.subr.bf16.mxu0 %v5497
  %7923 = vmatpush1.bf16.msra.mxu0 %v5496
  %7924 = vmatprep.subr.bf16.mxu0 %v5499
  %7925 = vmatpush1.bf16.msra.mxu0 %v5498
  %7926 = vmatprep.mubr.bf16.mxu0 %v1601
  %7927 = vmatmul.mubr.bf16.gmra.mrb[0].mxu0 %v1600
  %v7928 = vpop.f32.mrb[0].mxu0
  %v7929 = vadd.f32 %v7876, %v7928
  %v7930 = vpop.f32.mrb[0].mxu0
  %v7931 = vadd.f32 %v7878, %v7930
  %v7932 = vpop.f32.mrb[0].mxu0
  %v7933 = vadd.f32 %v7880, %v7932
  %v7934 = vpop.f32.mrb[0].mxu0
  %v7935 = vadd.f32 %v7882, %v7934
  %7936 = vmatprep.mubr.bf16.mxu0 %v1665
  %7937 = vmatmul.mubr.bf16.gmra.mrb[0].mxu0 %v1664
  %v7938 = vpop.f32.mrb[0].mxu0
  %v7939 = vadd.f32 %v7886, %v7938
  %v7940 = vpop.f32.mrb[0].mxu0
  %v7941 = vadd.f32 %v7888, %v7940
  %v7942 = vpop.f32.mrb[0].mxu0
  %v7943 = vadd.f32 %v7890, %v7942
  %v7944 = vpop.f32.mrb[0].mxu0
  %v7945 = vadd.f32 %v7892, %v7944
  %7946 = vdwg.mxu0
  %7947 = vmatprep.subr.bf16.mxu0 %v5501
  %7948 = vmatpush1.bf16.msra.mxu0 %v5500
  %7949 = vmatprep.subr.bf16.mxu0 %v5503
  %7950 = vmatpush1.bf16.msra.mxu0 %v5502
  %7951 = vmatprep.subr.bf16.mxu0 %v5505
  %7952 = vmatpush1.bf16.msra.mxu0 %v5504
  %7953 = vmatprep.subr.bf16.mxu0 %v5507
  %7954 = vmatpush1.bf16.msra.mxu0 %v5506
  %7955 = vmatprep.subr.bf16.mxu0 %v5509
  %7956 = vmatpush1.bf16.msra.mxu0 %v5508
  %7957 = vmatprep.subr.bf16.mxu0 %v5511
  %7958 = vmatpush1.bf16.msra.mxu0 %v5510
  %7959 = vmatprep.subr.bf16.mxu0 %v5513
  %7960 = vmatpush1.bf16.msra.mxu0 %v5512
  %7961 = vmatprep.subr.bf16.mxu0 %v5515
  %7962 = vmatpush1.bf16.msra.mxu0 %v5514
  %7963 = vmatprep.subr.bf16.mxu0 %v5517
  %7964 = vmatpush1.bf16.msra.mxu0 %v5516
  %7965 = vmatprep.subr.bf16.mxu0 %v5519
  %7966 = vmatpush1.bf16.msra.mxu0 %v5518
  %7967 = vmatprep.subr.bf16.mxu0 %v5521
  %7968 = vmatpush1.bf16.msra.mxu0 %v5520
  %7969 = vmatprep.subr.bf16.mxu0 %v5523
  %7970 = vmatpush1.bf16.msra.mxu0 %v5522
  %7971 = vmatprep.subr.bf16.mxu0 %v5525
  %7972 = vmatpush1.bf16.msra.mxu0 %v5524
  %7973 = vmatprep.subr.bf16.mxu0 %v5527
  %7974 = vmatpush1.bf16.msra.mxu0 %v5526
  %7975 = vmatprep.subr.bf16.mxu0 %v5529
  %7976 = vmatpush1.bf16.msra.mxu0 %v5528
  %7977 = vmatprep.subr.bf16.mxu0 %v5531
  %7978 = vmatpush1.bf16.msra.mxu0 %v5530
  %7979 = vmatprep.mubr.bf16.mxu0 %v1603
  %7980 = vmatmul.mubr.bf16.gmra.mrb[0].mxu0 %v1602
  %v7981 = vpop.f32.mrb[0].mxu0
  %v7982 = vadd.f32 %v7929, %v7981
  %v7983 = vpop.f32.mrb[0].mxu0
  %v7984 = vadd.f32 %v7931, %v7983
  %v7985 = vpop.f32.mrb[0].mxu0
  %v7986 = vadd.f32 %v7933, %v7985
  %v7987 = vpop.f32.mrb[0].mxu0
  %v7988 = vadd.f32 %v7935, %v7987
  %7989 = vmatprep.mubr.bf16.mxu0 %v1667
  %7990 = vmatmul.mubr.bf16.gmra.mrb[0].mxu0 %v1666
  %v7991 = vpop.f32.mrb[0].mxu0
  %v7992 = vadd.f32 %v7939, %v7991
  %v7993 = vpop.f32.mrb[0].mxu0
  %v7994 = vadd.f32 %v7941, %v7993
  %v7995 = vpop.f32.mrb[0].mxu0
  %v7996 = vadd.f32 %v7943, %v7995
  %v7997 = vpop.f32.mrb[0].mxu0
  %v7998 = vadd.f32 %v7945, %v7997
  %7999 = vdwg.mxu0
  %8000 = vmatprep.subr.bf16.mxu0 %v5533
  %8001 = vmatpush1.bf16.msra.mxu0 %v5532
  %8002 = vmatprep.subr.bf16.mxu0 %v5535
  %8003 = vmatpush1.bf16.msra.mxu0 %v5534
  %8004 = vmatprep.subr.bf16.mxu0 %v5537
  %8005 = vmatpush1.bf16.msra.mxu0 %v5536
  %8006 = vmatprep.subr.bf16.mxu0 %v5539
  %8007 = vmatpush1.bf16.msra.mxu0 %v5538
  %8008 = vmatprep.subr.bf16.mxu0 %v5541
  %8009 = vmatpush1.bf16.msra.mxu0 %v5540
  %8010 = vmatprep.subr.bf16.mxu0 %v5543
  %8011 = vmatpush1.bf16.msra.mxu0 %v5542
  %8012 = vmatprep.subr.bf16.mxu0 %v5545
  %8013 = vmatpush1.bf16.msra.mxu0 %v5544
  %8014 = vmatprep.subr.bf16.mxu0 %v5547
  %8015 = vmatpush1.bf16.msra.mxu0 %v5546
  %8016 = vmatprep.subr.bf16.mxu0 %v5549
  %8017 = vmatpush1.bf16.msra.mxu0 %v5548
  %8018 = vmatprep.subr.bf16.mxu0 %v5551
  %8019 = vmatpush1.bf16.msra.mxu0 %v5550
  %8020 = vmatprep.subr.bf16.mxu0 %v5553
  %8021 = vmatpush1.bf16.msra.mxu0 %v5552
  %8022 = vmatprep.subr.bf16.mxu0 %v5555
  %8023 = vmatpush1.bf16.msra.mxu0 %v5554
  %8024 = vmatprep.subr.bf16.mxu0 %v5557
  %8025 = vmatpush1.bf16.msra.mxu0 %v5556
  %8026 = vmatprep.subr.bf16.mxu0 %v5559
  %8027 = vmatpush1.bf16.msra.mxu0 %v5558
  %8028 = vmatprep.subr.bf16.mxu0 %v5561
  %8029 = vmatpush1.bf16.msra.mxu0 %v5560
  %8030 = vmatprep.subr.bf16.mxu0 %v5563
  %8031 = vmatpush1.bf16.msra.mxu0 %v5562
  %8032 = vmatprep.mubr.bf16.mxu0 %v1605
  %8033 = vmatmul.mubr.bf16.gmra.mrb[0].mxu0 %v1604
  %v8034 = vpop.f32.mrb[0].mxu0
  %v8035 = vadd.f32 %v7982, %v8034
  %v8036 = vpop.f32.mrb[0].mxu0
  %v8037 = vadd.f32 %v7984, %v8036
  %v8038 = vpop.f32.mrb[0].mxu0
  %v8039 = vadd.f32 %v7986, %v8038
  %v8040 = vpop.f32.mrb[0].mxu0
  %v8041 = vadd.f32 %v7988, %v8040
  %8042 = vmatprep.mubr.bf16.mxu0 %v1669
  %8043 = vmatmul.mubr.bf16.gmra.mrb[0].mxu0 %v1668
  %v8044 = vpop.f32.mrb[0].mxu0
  %v8045 = vadd.f32 %v7992, %v8044
  %v8046 = vpop.f32.mrb[0].mxu0
  %v8047 = vadd.f32 %v7994, %v8046
  %v8048 = vpop.f32.mrb[0].mxu0
  %v8049 = vadd.f32 %v7996, %v8048
  %v8050 = vpop.f32.mrb[0].mxu0
  %v8051 = vadd.f32 %v7998, %v8050
  %8052 = vdwg.mxu0
  %8053 = vmatprep.subr.bf16.mxu0 %v5565
  %8054 = vmatpush1.bf16.msra.mxu0 %v5564
  %8055 = vmatprep.subr.bf16.mxu0 %v5567
  %8056 = vmatpush1.bf16.msra.mxu0 %v5566
  %8057 = vmatprep.subr.bf16.mxu0 %v5569
  %8058 = vmatpush1.bf16.msra.mxu0 %v5568
  %8059 = vmatprep.subr.bf16.mxu0 %v5571
  %8060 = vmatpush1.bf16.msra.mxu0 %v5570
  %8061 = vmatprep.subr.bf16.mxu0 %v5573
  %8062 = vmatpush1.bf16.msra.mxu0 %v5572
  %8063 = vmatprep.subr.bf16.mxu0 %v5575
  %8064 = vmatpush1.bf16.msra.mxu0 %v5574
  %8065 = vmatprep.subr.bf16.mxu0 %v5577
  %8066 = vmatpush1.bf16.msra.mxu0 %v5576
  %8067 = vmatprep.subr.bf16.mxu0 %v5579
  %8068 = vmatpush1.bf16.msra.mxu0 %v5578
  %8069 = vmatprep.subr.bf16.mxu0 %v5581
  %8070 = vmatpush1.bf16.msra.mxu0 %v5580
  %8071 = vmatprep.subr.bf16.mxu0 %v5583
  %8072 = vmatpush1.bf16.msra.mxu0 %v5582
  %8073 = vmatprep.subr.bf16.mxu0 %v5585
  %8074 = vmatpush1.bf16.msra.mxu0 %v5584
  %8075 = vmatprep.subr.bf16.mxu0 %v5587
  %8076 = vmatpush1.bf16.msra.mxu0 %v5586
  %8077 = vmatprep.subr.bf16.mxu0 %v5589
  %8078 = vmatpush1.bf16.msra.mxu0 %v5588
  %8079 = vmatprep.subr.bf16.mxu0 %v5591
  %8080 = vmatpush1.bf16.msra.mxu0 %v5590
  %8081 = vmatprep.subr.bf16.mxu0 %v5593
  %8082 = vmatpush1.bf16.msra.mxu0 %v5592
  %8083 = vmatprep.subr.bf16.mxu0 %v5595
  %8084 = vmatpush1.bf16.msra.mxu0 %v5594
  %8085 = vmatprep.mubr.bf16.mxu0 %v1607
  %8086 = vmatmul.mubr.bf16.gmra.mrb[0].mxu0 %v1606
  %v8087 = vpop.f32.mrb[0].mxu0
  %v8088 = vadd.f32 %v8035, %v8087
  %v8089 = vpop.f32.mrb[0].mxu0
  %v8090 = vadd.f32 %v8037, %v8089
  %v8091 = vpop.f32.mrb[0].mxu0
  %v8092 = vadd.f32 %v8039, %v8091
  %v8093 = vpop.f32.mrb[0].mxu0
  %v8094 = vadd.f32 %v8041, %v8093
  %8095 = vmatprep.mubr.bf16.mxu0 %v1671
  %8096 = vmatmul.mubr.bf16.gmra.mrb[0].mxu0 %v1670
  %v8097 = vpop.f32.mrb[0].mxu0
  %v8098 = vadd.f32 %v8045, %v8097
  %v8099 = vpop.f32.mrb[0].mxu0
  %v8100 = vadd.f32 %v8047, %v8099
  %v8101 = vpop.f32.mrb[0].mxu0
  %v8102 = vadd.f32 %v8049, %v8101
  %v8103 = vpop.f32.mrb[0].mxu0
  %v8104 = vadd.f32 %v8051, %v8103
  %8105 = vdwg.mxu0
  %8106 = vmatprep.subr.bf16.mxu0 %v5597
  %8107 = vmatpush1.bf16.msra.mxu0 %v5596
  %8108 = vmatprep.subr.bf16.mxu0 %v5599
  %8109 = vmatpush1.bf16.msra.mxu0 %v5598
  %8110 = vmatprep.subr.bf16.mxu0 %v5601
  %8111 = vmatpush1.bf16.msra.mxu0 %v5600
  %8112 = vmatprep.subr.bf16.mxu0 %v5603
  %8113 = vmatpush1.bf16.msra.mxu0 %v5602
  %8114 = vmatprep.subr.bf16.mxu0 %v5605
  %8115 = vmatpush1.bf16.msra.mxu0 %v5604
  %8116 = vmatprep.subr.bf16.mxu0 %v5607
  %8117 = vmatpush1.bf16.msra.mxu0 %v5606
  %8118 = vmatprep.subr.bf16.mxu0 %v5609
  %8119 = vmatpush1.bf16.msra.mxu0 %v5608
  %8120 = vmatprep.subr.bf16.mxu0 %v5611
  %8121 = vmatpush1.bf16.msra.mxu0 %v5610
  %8122 = vmatprep.subr.bf16.mxu0 %v5613
  %8123 = vmatpush1.bf16.msra.mxu0 %v5612
  %8124 = vmatprep.subr.bf16.mxu0 %v5615
  %8125 = vmatpush1.bf16.msra.mxu0 %v5614
  %8126 = vmatprep.subr.bf16.mxu0 %v5617
  %8127 = vmatpush1.bf16.msra.mxu0 %v5616
  %8128 = vmatprep.subr.bf16.mxu0 %v5619
  %8129 = vmatpush1.bf16.msra.mxu0 %v5618
  %8130 = vmatprep.subr.bf16.mxu0 %v5621
  %8131 = vmatpush1.bf16.msra.mxu0 %v5620
  %8132 = vmatprep.subr.bf16.mxu0 %v5623
  %8133 = vmatpush1.bf16.msra.mxu0 %v5622
  %8134 = vmatprep.subr.bf16.mxu0 %v5625
  %8135 = vmatpush1.bf16.msra.mxu0 %v5624
  %8136 = vmatprep.subr.bf16.mxu0 %v5627
  %8137 = vmatpush1.bf16.msra.mxu0 %v5626
  %8138 = vmatprep.mubr.bf16.mxu0 %v1609
  %8139 = vmatmul.mubr.bf16.gmra.mrb[0].mxu0 %v1608
  %v8140 = vpop.f32.mrb[0].mxu0
  %v8141 = vadd.f32 %v8088, %v8140
  %v8142 = vpop.f32.mrb[0].mxu0
  %v8143 = vadd.f32 %v8090, %v8142
  %v8144 = vpop.f32.mrb[0].mxu0
  %v8145 = vadd.f32 %v8092, %v8144
  %v8146 = vpop.f32.mrb[0].mxu0
  %v8147 = vadd.f32 %v8094, %v8146
  %8148 = vmatprep.mubr.bf16.mxu0 %v1673
  %8149 = vmatmul.mubr.bf16.gmra.mrb[0].mxu0 %v1672
  %v8150 = vpop.f32.mrb[0].mxu0
  %v8151 = vadd.f32 %v8098, %v8150
  %v8152 = vpop.f32.mrb[0].mxu0
  %v8153 = vadd.f32 %v8100, %v8152
  %v8154 = vpop.f32.mrb[0].mxu0
  %v8155 = vadd.f32 %v8102, %v8154
  %v8156 = vpop.f32.mrb[0].mxu0
  %v8157 = vadd.f32 %v8104, %v8156
  %8158 = vdwg.mxu0
  %8159 = vmatprep.subr.bf16.mxu0 %v5629
  %8160 = vmatpush1.bf16.msra.mxu0 %v5628
  %8161 = vmatprep.subr.bf16.mxu0 %v5631
  %8162 = vmatpush1.bf16.msra.mxu0 %v5630
  %8163 = vmatprep.subr.bf16.mxu0 %v5633
  %8164 = vmatpush1.bf16.msra.mxu0 %v5632
  %8165 = vmatprep.subr.bf16.mxu0 %v5635
  %8166 = vmatpush1.bf16.msra.mxu0 %v5634
  %8167 = vmatprep.subr.bf16.mxu0 %v5637
  %8168 = vmatpush1.bf16.msra.mxu0 %v5636
  %8169 = vmatprep.subr.bf16.mxu0 %v5639
  %8170 = vmatpush1.bf16.msra.mxu0 %v5638
  %8171 = vmatprep.subr.bf16.mxu0 %v5641
  %8172 = vmatpush1.bf16.msra.mxu0 %v5640
  %8173 = vmatprep.subr.bf16.mxu0 %v5643
  %8174 = vmatpush1.bf16.msra.mxu0 %v5642
  %8175 = vmatprep.subr.bf16.mxu0 %v5645
  %8176 = vmatpush1.bf16.msra.mxu0 %v5644
  %8177 = vmatprep.subr.bf16.mxu0 %v5647
  %8178 = vmatpush1.bf16.msra.mxu0 %v5646
  %8179 = vmatprep.subr.bf16.mxu0 %v5649
  %8180 = vmatpush1.bf16.msra.mxu0 %v5648
  %8181 = vmatprep.subr.bf16.mxu0 %v5651
  %8182 = vmatpush1.bf16.msra.mxu0 %v5650
  %8183 = vmatprep.subr.bf16.mxu0 %v5653
  %8184 = vmatpush1.bf16.msra.mxu0 %v5652
  %8185 = vmatprep.subr.bf16.mxu0 %v5655
  %8186 = vmatpush1.bf16.msra.mxu0 %v5654
  %8187 = vmatprep.subr.bf16.mxu0 %v5657
  %8188 = vmatpush1.bf16.msra.mxu0 %v5656
  %8189 = vmatprep.subr.bf16.mxu0 %v5659
  %8190 = vmatpush1.bf16.msra.mxu0 %v5658
  %8191 = vmatprep.mubr.bf16.mxu0 %v1611
  %8192 = vmatmul.mubr.bf16.gmra.mrb[0].mxu0 %v1610
  %v8193 = vpop.f32.mrb[0].mxu0
  %v8194 = vadd.f32 %v8141, %v8193
  %v8195 = vpop.f32.mrb[0].mxu0
  %v8196 = vadd.f32 %v8143, %v8195
  %v8197 = vpop.f32.mrb[0].mxu0
  %v8198 = vadd.f32 %v8145, %v8197
  %v8199 = vpop.f32.mrb[0].mxu0
  %v8200 = vadd.f32 %v8147, %v8199
  %8201 = vmatprep.mubr.bf16.mxu0 %v1675
  %8202 = vmatmul.mubr.bf16.gmra.mrb[0].mxu0 %v1674
  %v8203 = vpop.f32.mrb[0].mxu0
  %v8204 = vadd.f32 %v8151, %v8203
  %v8205 = vpop.f32.mrb[0].mxu0
  %v8206 = vadd.f32 %v8153, %v8205
  %v8207 = vpop.f32.mrb[0].mxu0
  %v8208 = vadd.f32 %v8155, %v8207
  %v8209 = vpop.f32.mrb[0].mxu0
  %v8210 = vadd.f32 %v8157, %v8209
  %8211 = vdwg.mxu0
  %8212 = vmatprep.subr.bf16.mxu0 %v5661
  %8213 = vmatpush1.bf16.msra.mxu0 %v5660
  %8214 = vmatprep.subr.bf16.mxu0 %v5663
  %8215 = vmatpush1.bf16.msra.mxu0 %v5662
  %8216 = vmatprep.subr.bf16.mxu0 %v5665
  %8217 = vmatpush1.bf16.msra.mxu0 %v5664
  %8218 = vmatprep.subr.bf16.mxu0 %v5667
  %8219 = vmatpush1.bf16.msra.mxu0 %v5666
  %8220 = vmatprep.subr.bf16.mxu0 %v5669
  %8221 = vmatpush1.bf16.msra.mxu0 %v5668
  %8222 = vmatprep.subr.bf16.mxu0 %v5671
  %8223 = vmatpush1.bf16.msra.mxu0 %v5670
  %8224 = vmatprep.subr.bf16.mxu0 %v5673
  %8225 = vmatpush1.bf16.msra.mxu0 %v5672
  %8226 = vmatprep.subr.bf16.mxu0 %v5675
  %8227 = vmatpush1.bf16.msra.mxu0 %v5674
  %8228 = vmatprep.subr.bf16.mxu0 %v5677
  %8229 = vmatpush1.bf16.msra.mxu0 %v5676
  %8230 = vmatprep.subr.bf16.mxu0 %v5679
  %8231 = vmatpush1.bf16.msra.mxu0 %v5678
  %8232 = vmatprep.subr.bf16.mxu0 %v5681
  %8233 = vmatpush1.bf16.msra.mxu0 %v5680
  %8234 = vmatprep.subr.bf16.mxu0 %v5683
  %8235 = vmatpush1.bf16.msra.mxu0 %v5682
  %8236 = vmatprep.subr.bf16.mxu0 %v5685
  %8237 = vmatpush1.bf16.msra.mxu0 %v5684
  %8238 = vmatprep.subr.bf16.mxu0 %v5687
  %8239 = vmatpush1.bf16.msra.mxu0 %v5686
  %8240 = vmatprep.subr.bf16.mxu0 %v5689
  %8241 = vmatpush1.bf16.msra.mxu0 %v5688
  %8242 = vmatprep.subr.bf16.mxu0 %v5691
  %8243 = vmatpush1.bf16.msra.mxu0 %v5690
  %8244 = vmatprep.mubr.bf16.mxu0 %v1613
  %8245 = vmatmul.mubr.bf16.gmra.mrb[0].mxu0 %v1612
  %v8246 = vpop.f32.mrb[0].mxu0
  %v8247 = vadd.f32 %v8194, %v8246
  %v8248 = vpop.f32.mrb[0].mxu0
  %v8249 = vadd.f32 %v8196, %v8248
  %v8250 = vpop.f32.mrb[0].mxu0
  %v8251 = vadd.f32 %v8198, %v8250
  %v8252 = vpop.f32.mrb[0].mxu0
  %v8253 = vadd.f32 %v8200, %v8252
  %8254 = vmatprep.mubr.bf16.mxu0 %v1677
  %8255 = vmatmul.mubr.bf16.gmra.mrb[0].mxu0 %v1676
  %v8256 = vpop.f32.mrb[0].mxu0
  %v8257 = vadd.f32 %v8204, %v8256
  %v8258 = vpop.f32.mrb[0].mxu0
  %v8259 = vadd.f32 %v8206, %v8258
  %v8260 = vpop.f32.mrb[0].mxu0
  %v8261 = vadd.f32 %v8208, %v8260
  %v8262 = vpop.f32.mrb[0].mxu0
  %v8263 = vadd.f32 %v8210, %v8262
  %8264 = vdwg.mxu0
  %8265 = vmatprep.subr.bf16.mxu0 %v5693
  %8266 = vmatpush1.bf16.msra.mxu0 %v5692
  %8267 = vmatprep.subr.bf16.mxu0 %v5695
  %8268 = vmatpush1.bf16.msra.mxu0 %v5694
  %8269 = vmatprep.subr.bf16.mxu0 %v5697
  %8270 = vmatpush1.bf16.msra.mxu0 %v5696
  %8271 = vmatprep.subr.bf16.mxu0 %v5699
  %8272 = vmatpush1.bf16.msra.mxu0 %v5698
  %8273 = vmatprep.subr.bf16.mxu0 %v5701
  %8274 = vmatpush1.bf16.msra.mxu0 %v5700
  %8275 = vmatprep.subr.bf16.mxu0 %v5703
  %8276 = vmatpush1.bf16.msra.mxu0 %v5702
  %8277 = vmatprep.subr.bf16.mxu0 %v5705
  %8278 = vmatpush1.bf16.msra.mxu0 %v5704
  %8279 = vmatprep.subr.bf16.mxu0 %v5707
  %8280 = vmatpush1.bf16.msra.mxu0 %v5706
  %8281 = vmatprep.subr.bf16.mxu0 %v5709
  %8282 = vmatpush1.bf16.msra.mxu0 %v5708
  %8283 = vmatprep.subr.bf16.mxu0 %v5711
  %8284 = vmatpush1.bf16.msra.mxu0 %v5710
  %8285 = vmatprep.subr.bf16.mxu0 %v5713
  %8286 = vmatpush1.bf16.msra.mxu0 %v5712
  %8287 = vmatprep.subr.bf16.mxu0 %v5715
  %8288 = vmatpush1.bf16.msra.mxu0 %v5714
  %8289 = vmatprep.subr.bf16.mxu0 %v5717
  %8290 = vmatpush1.bf16.msra.mxu0 %v5716
  %8291 = vmatprep.subr.bf16.mxu0 %v5719
  %8292 = vmatpush1.bf16.msra.mxu0 %v5718
  %8293 = vmatprep.subr.bf16.mxu0 %v5721
  %8294 = vmatpush1.bf16.msra.mxu0 %v5720
  %8295 = vmatprep.subr.bf16.mxu0 %v5723
  %8296 = vmatpush1.bf16.msra.mxu0 %v5722
  %8297 = vmatprep.mubr.bf16.mxu0 %v1615
  %8298 = vmatmul.mubr.bf16.gmra.mrb[0].mxu0 %v1614
  %v8299 = vpop.f32.mrb[0].mxu0
  %v8300 = vadd.f32 %v8247, %v8299
  %v8301 = vpop.f32.mrb[0].mxu0
  %v8302 = vadd.f32 %v8249, %v8301
  %v8303 = vpop.f32.mrb[0].mxu0
  %v8304 = vadd.f32 %v8251, %v8303
  %v8305 = vpop.f32.mrb[0].mxu0
  %v8306 = vadd.f32 %v8253, %v8305
  %8307 = vmatprep.mubr.bf16.mxu0 %v1679
  %8308 = vmatmul.mubr.bf16.gmra.mrb[0].mxu0 %v1678
  %v8309 = vpop.f32.mrb[0].mxu0
  %v8310 = vadd.f32 %v8257, %v8309
  %v8311 = vpop.f32.mrb[0].mxu0
  %v8312 = vadd.f32 %v8259, %v8311
  %v8313 = vpop.f32.mrb[0].mxu0
  %v8314 = vadd.f32 %v8261, %v8313
  %v8315 = vpop.f32.mrb[0].mxu0
  %v8316 = vadd.f32 %v8263, %v8315
  %8317 = vdwg.mxu0
  %8318 = vmatprep.subr.bf16.mxu0 %v5725
  %8319 = vmatpush1.bf16.msra.mxu0 %v5724
  %8320 = vmatprep.subr.bf16.mxu0 %v5727
  %8321 = vmatpush1.bf16.msra.mxu0 %v5726
  %8322 = vmatprep.subr.bf16.mxu0 %v5729
  %8323 = vmatpush1.bf16.msra.mxu0 %v5728
  %8324 = vmatprep.subr.bf16.mxu0 %v5731
  %8325 = vmatpush1.bf16.msra.mxu0 %v5730
  %8326 = vmatprep.subr.bf16.mxu0 %v5733
  %8327 = vmatpush1.bf16.msra.mxu0 %v5732
  %8328 = vmatprep.subr.bf16.mxu0 %v5735
  %8329 = vmatpush1.bf16.msra.mxu0 %v5734
  %8330 = vmatprep.subr.bf16.mxu0 %v5737
  %8331 = vmatpush1.bf16.msra.mxu0 %v5736
  %8332 = vmatprep.subr.bf16.mxu0 %v5739
  %8333 = vmatpush1.bf16.msra.mxu0 %v5738
  %8334 = vmatprep.subr.bf16.mxu0 %v5741
  %8335 = vmatpush1.bf16.msra.mxu0 %v5740
  %8336 = vmatprep.subr.bf16.mxu0 %v5743
  %8337 = vmatpush1.bf16.msra.mxu0 %v5742
  %8338 = vmatprep.subr.bf16.mxu0 %v5745
  %8339 = vmatpush1.bf16.msra.mxu0 %v5744
  %8340 = vmatprep.subr.bf16.mxu0 %v5747
  %8341 = vmatpush1.bf16.msra.mxu0 %v5746
  %8342 = vmatprep.subr.bf16.mxu0 %v5749
  %8343 = vmatpush1.bf16.msra.mxu0 %v5748
  %8344 = vmatprep.subr.bf16.mxu0 %v5751
  %8345 = vmatpush1.bf16.msra.mxu0 %v5750
  %8346 = vmatprep.subr.bf16.mxu0 %v5753
  %8347 = vmatpush1.bf16.msra.mxu0 %v5752
  %8348 = vmatprep.subr.bf16.mxu0 %v5755
  %8349 = vmatpush1.bf16.msra.mxu0 %v5754
  %8350 = vmatprep.mubr.bf16.mxu0 %v1617
  %8351 = vmatmul.mubr.bf16.gmra.mrb[0].mxu0 %v1616
  %v8352 = vpop.f32.mrb[0].mxu0
  %v8353 = vadd.f32 %v8300, %v8352
  %v8354 = vpop.f32.mrb[0].mxu0
  %v8355 = vadd.f32 %v8302, %v8354
  %v8356 = vpop.f32.mrb[0].mxu0
  %v8357 = vadd.f32 %v8304, %v8356
  %v8358 = vpop.f32.mrb[0].mxu0
  %v8359 = vadd.f32 %v8306, %v8358
  %8360 = vmatprep.mubr.bf16.mxu0 %v1681
  %8361 = vmatmul.mubr.bf16.gmra.mrb[0].mxu0 %v1680
  %v8362 = vpop.f32.mrb[0].mxu0
  %v8363 = vadd.f32 %v8310, %v8362
  %v8364 = vpop.f32.mrb[0].mxu0
  %v8365 = vadd.f32 %v8312, %v8364
  %v8366 = vpop.f32.mrb[0].mxu0
  %v8367 = vadd.f32 %v8314, %v8366
  %v8368 = vpop.f32.mrb[0].mxu0
  %v8369 = vadd.f32 %v8316, %v8368
  %8370 = vdwg.mxu0
  %8371 = vmatprep.subr.bf16.mxu0 %v5757
  %8372 = vmatpush1.bf16.msra.mxu0 %v5756
  %8373 = vmatprep.subr.bf16.mxu0 %v5759
  %8374 = vmatpush1.bf16.msra.mxu0 %v5758
  %8375 = vmatprep.subr.bf16.mxu0 %v5761
  %8376 = vmatpush1.bf16.msra.mxu0 %v5760
  %8377 = vmatprep.subr.bf16.mxu0 %v5763
  %8378 = vmatpush1.bf16.msra.mxu0 %v5762
  %8379 = vmatprep.subr.bf16.mxu0 %v5765
  %8380 = vmatpush1.bf16.msra.mxu0 %v5764
  %8381 = vmatprep.subr.bf16.mxu0 %v5767
  %8382 = vmatpush1.bf16.msra.mxu0 %v5766
  %8383 = vmatprep.subr.bf16.mxu0 %v5769
  %8384 = vmatpush1.bf16.msra.mxu0 %v5768
  %8385 = vmatprep.subr.bf16.mxu0 %v5771
  %8386 = vmatpush1.bf16.msra.mxu0 %v5770
  %8387 = vmatprep.subr.bf16.mxu0 %v5773
  %8388 = vmatpush1.bf16.msra.mxu0 %v5772
  %8389 = vmatprep.subr.bf16.mxu0 %v5775
  %8390 = vmatpush1.bf16.msra.mxu0 %v5774
  %8391 = vmatprep.subr.bf16.mxu0 %v5777
  %8392 = vmatpush1.bf16.msra.mxu0 %v5776
  %8393 = vmatprep.subr.bf16.mxu0 %v5779
  %8394 = vmatpush1.bf16.msra.mxu0 %v5778
  %8395 = vmatprep.subr.bf16.mxu0 %v5781
  %8396 = vmatpush1.bf16.msra.mxu0 %v5780
  %8397 = vmatprep.subr.bf16.mxu0 %v5783
  %8398 = vmatpush1.bf16.msra.mxu0 %v5782
  %8399 = vmatprep.subr.bf16.mxu0 %v5785
  %8400 = vmatpush1.bf16.msra.mxu0 %v5784
  %8401 = vmatprep.subr.bf16.mxu0 %v5787
  %8402 = vmatpush1.bf16.msra.mxu0 %v5786
  %8403 = vmatprep.mubr.bf16.mxu0 %v1619
  %8404 = vmatmul.mubr.bf16.gmra.mrb[0].mxu0 %v1618
  %v8405 = vpop.f32.mrb[0].mxu0
  %v8406 = vadd.f32 %v8353, %v8405
  %v8407 = vpop.f32.mrb[0].mxu0
  %v8408 = vadd.f32 %v8355, %v8407
  %v8409 = vpop.f32.mrb[0].mxu0
  %v8410 = vadd.f32 %v8357, %v8409
  %v8411 = vpop.f32.mrb[0].mxu0
  %v8412 = vadd.f32 %v8359, %v8411
  %8413 = vmatprep.mubr.bf16.mxu0 %v1683
  %8414 = vmatmul.mubr.bf16.gmra.mrb[0].mxu0 %v1682
  %v8415 = vpop.f32.mrb[0].mxu0
  %v8416 = vadd.f32 %v8363, %v8415
  %v8417 = vpop.f32.mrb[0].mxu0
  %v8418 = vadd.f32 %v8365, %v8417
  %v8419 = vpop.f32.mrb[0].mxu0
  %v8420 = vadd.f32 %v8367, %v8419
  %v8421 = vpop.f32.mrb[0].mxu0
  %v8422 = vadd.f32 %v8369, %v8421
  %8423 = vdwg.mxu0
  %8424 = vmatprep.subr.bf16.mxu0 %v5789
  %8425 = vmatpush1.bf16.msra.mxu0 %v5788
  %8426 = vmatprep.subr.bf16.mxu0 %v5791
  %8427 = vmatpush1.bf16.msra.mxu0 %v5790
  %8428 = vmatprep.subr.bf16.mxu0 %v5793
  %8429 = vmatpush1.bf16.msra.mxu0 %v5792
  %8430 = vmatprep.subr.bf16.mxu0 %v5795
  %8431 = vmatpush1.bf16.msra.mxu0 %v5794
  %8432 = vmatprep.subr.bf16.mxu0 %v5797
  %8433 = vmatpush1.bf16.msra.mxu0 %v5796
  %8434 = vmatprep.subr.bf16.mxu0 %v5799
  %8435 = vmatpush1.bf16.msra.mxu0 %v5798
  %8436 = vmatprep.subr.bf16.mxu0 %v5801
  %8437 = vmatpush1.bf16.msra.mxu0 %v5800
  %8438 = vmatprep.subr.bf16.mxu0 %v5803
  %8439 = vmatpush1.bf16.msra.mxu0 %v5802
  %8440 = vmatprep.subr.bf16.mxu0 %v5805
  %8441 = vmatpush1.bf16.msra.mxu0 %v5804
  %8442 = vmatprep.subr.bf16.mxu0 %v5807
  %8443 = vmatpush1.bf16.msra.mxu0 %v5806
  %8444 = vmatprep.subr.bf16.mxu0 %v5809
  %8445 = vmatpush1.bf16.msra.mxu0 %v5808
  %8446 = vmatprep.subr.bf16.mxu0 %v5811
  %8447 = vmatpush1.bf16.msra.mxu0 %v5810
  %8448 = vmatprep.subr.bf16.mxu0 %v5813
  %8449 = vmatpush1.bf16.msra.mxu0 %v5812
  %8450 = vmatprep.subr.bf16.mxu0 %v5815
  %8451 = vmatpush1.bf16.msra.mxu0 %v5814
  %8452 = vmatprep.subr.bf16.mxu0 %v5817
  %8453 = vmatpush1.bf16.msra.mxu0 %v5816
  %8454 = vmatprep.subr.bf16.mxu0 %v5819
  %8455 = vmatpush1.bf16.msra.mxu0 %v5818
  %8456 = vmatprep.mubr.bf16.mxu0 %v1621
  %8457 = vmatmul.mubr.bf16.gmra.mrb[0].mxu0 %v1620
  %v8458 = vpop.f32.mrb[0].mxu0
  %v8459 = vadd.f32 %v8406, %v8458
  %v8460 = vpop.f32.mrb[0].mxu0
  %v8461 = vadd.f32 %v8408, %v8460
  %v8462 = vpop.f32.mrb[0].mxu0
  %v8463 = vadd.f32 %v8410, %v8462
  %v8464 = vpop.f32.mrb[0].mxu0
  %v8465 = vadd.f32 %v8412, %v8464
  %8466 = vmatprep.mubr.bf16.mxu0 %v1685
  %8467 = vmatmul.mubr.bf16.gmra.mrb[0].mxu0 %v1684
  %v8468 = vpop.f32.mrb[0].mxu0
  %v8469 = vadd.f32 %v8416, %v8468
  %v8470 = vpop.f32.mrb[0].mxu0
  %v8471 = vadd.f32 %v8418, %v8470
  %v8472 = vpop.f32.mrb[0].mxu0
  %v8473 = vadd.f32 %v8420, %v8472
  %v8474 = vpop.f32.mrb[0].mxu0
  %v8475 = vadd.f32 %v8422, %v8474
  %8476 = vdwg.mxu0
  %8477 = vmatprep.subr.bf16.mxu0 %v5821
  %8478 = vmatpush1.bf16.msra.mxu0 %v5820
  %8479 = vmatprep.subr.bf16.mxu0 %v5823
  %8480 = vmatpush1.bf16.msra.mxu0 %v5822
  %8481 = vmatprep.subr.bf16.mxu0 %v5825
  %8482 = vmatpush1.bf16.msra.mxu0 %v5824
  %8483 = vmatprep.subr.bf16.mxu0 %v5827
  %8484 = vmatpush1.bf16.msra.mxu0 %v5826
  %8485 = vmatprep.subr.bf16.mxu0 %v5829
  %8486 = vmatpush1.bf16.msra.mxu0 %v5828
  %8487 = vmatprep.subr.bf16.mxu0 %v5831
  %8488 = vmatpush1.bf16.msra.mxu0 %v5830
  %8489 = vmatprep.subr.bf16.mxu0 %v5833
  %8490 = vmatpush1.bf16.msra.mxu0 %v5832
  %8491 = vmatprep.subr.bf16.mxu0 %v5835
  %8492 = vmatpush1.bf16.msra.mxu0 %v5834
  %8493 = vmatprep.subr.bf16.mxu0 %v5837
  %8494 = vmatpush1.bf16.msra.mxu0 %v5836
  %8495 = vmatprep.subr.bf16.mxu0 %v5839
  %8496 = vmatpush1.bf16.msra.mxu0 %v5838
  %8497 = vmatprep.subr.bf16.mxu0 %v5841
  %8498 = vmatpush1.bf16.msra.mxu0 %v5840
  %8499 = vmatprep.subr.bf16.mxu0 %v5843
  %8500 = vmatpush1.bf16.msra.mxu0 %v5842
  %8501 = vmatprep.subr.bf16.mxu0 %v5845
  %8502 = vmatpush1.bf16.msra.mxu0 %v5844
  %8503 = vmatprep.subr.bf16.mxu0 %v5847
  %8504 = vmatpush1.bf16.msra.mxu0 %v5846
  %8505 = vmatprep.subr.bf16.mxu0 %v5849
  %8506 = vmatpush1.bf16.msra.mxu0 %v5848
  %8507 = vmatprep.subr.bf16.mxu0 %v5851
  %8508 = vmatpush1.bf16.msra.mxu0 %v5850
  %8509 = vmatprep.mubr.bf16.mxu0 %v1623
  %8510 = vmatmul.mubr.bf16.gmra.mrb[0].mxu0 %v1622
  %v8511 = vpop.f32.mrb[0].mxu0
  %v8512 = vadd.f32 %v8459, %v8511
  %v8513 = vpop.f32.mrb[0].mxu0
  %v8514 = vadd.f32 %v8461, %v8513
  %v8515 = vpop.f32.mrb[0].mxu0
  %v8516 = vadd.f32 %v8463, %v8515
  %v8517 = vpop.f32.mrb[0].mxu0
  %v8518 = vadd.f32 %v8465, %v8517
  %8519 = vmatprep.mubr.bf16.mxu0 %v1687
  %8520 = vmatmul.mubr.bf16.gmra.mrb[0].mxu0 %v1686
  %v8521 = vpop.f32.mrb[0].mxu0
  %v8522 = vadd.f32 %v8469, %v8521
  %v8523 = vpop.f32.mrb[0].mxu0
  %v8524 = vadd.f32 %v8471, %v8523
  %v8525 = vpop.f32.mrb[0].mxu0
  %v8526 = vadd.f32 %v8473, %v8525
  %v8527 = vpop.f32.mrb[0].mxu0
  %v8528 = vadd.f32 %v8475, %v8527
  %8529 = vdwg.mxu0
  %8530 = vmatprep.subr.bf16.mxu0 %v5853
  %8531 = vmatpush1.bf16.msra.mxu0 %v5852
  %8532 = vmatprep.subr.bf16.mxu0 %v5855
  %8533 = vmatpush1.bf16.msra.mxu0 %v5854
  %8534 = vmatprep.subr.bf16.mxu0 %v5857
  %8535 = vmatpush1.bf16.msra.mxu0 %v5856
  %8536 = vmatprep.subr.bf16.mxu0 %v5859
  %8537 = vmatpush1.bf16.msra.mxu0 %v5858
  %8538 = vmatprep.subr.bf16.mxu0 %v5861
  %8539 = vmatpush1.bf16.msra.mxu0 %v5860
  %8540 = vmatprep.subr.bf16.mxu0 %v5863
  %8541 = vmatpush1.bf16.msra.mxu0 %v5862
  %8542 = vmatprep.subr.bf16.mxu0 %v5865
  %8543 = vmatpush1.bf16.msra.mxu0 %v5864
  %8544 = vmatprep.subr.bf16.mxu0 %v5867
  %8545 = vmatpush1.bf16.msra.mxu0 %v5866
  %8546 = vmatprep.subr.bf16.mxu0 %v5869
  %8547 = vmatpush1.bf16.msra.mxu0 %v5868
  %8548 = vmatprep.subr.bf16.mxu0 %v5871
  %8549 = vmatpush1.bf16.msra.mxu0 %v5870
  %8550 = vmatprep.subr.bf16.mxu0 %v5873
  %8551 = vmatpush1.bf16.msra.mxu0 %v5872
  %8552 = vmatprep.subr.bf16.mxu0 %v5875
  %8553 = vmatpush1.bf16.msra.mxu0 %v5874
  %8554 = vmatprep.subr.bf16.mxu0 %v5877
  %8555 = vmatpush1.bf16.msra.mxu0 %v5876
  %8556 = vmatprep.subr.bf16.mxu0 %v5879
  %8557 = vmatpush1.bf16.msra.mxu0 %v5878
  %8558 = vmatprep.subr.bf16.mxu0 %v5881
  %8559 = vmatpush1.bf16.msra.mxu0 %v5880
  %8560 = vmatprep.subr.bf16.mxu0 %v5883
  %8561 = vmatpush1.bf16.msra.mxu0 %v5882
  %8562 = vmatprep.mubr.bf16.mxu0 %v1625
  %8563 = vmatmul.mubr.bf16.gmra.mrb[0].mxu0 %v1624
  %v8564 = vpop.f32.mrb[0].mxu0
  %v8565 = vadd.f32 %v8512, %v8564
  %v8566 = vpop.f32.mrb[0].mxu0
  %v8567 = vadd.f32 %v8514, %v8566
  %v8568 = vpop.f32.mrb[0].mxu0
  %v8569 = vadd.f32 %v8516, %v8568
  %v8570 = vpop.f32.mrb[0].mxu0
  %v8571 = vadd.f32 %v8518, %v8570
  %8572 = vmatprep.mubr.bf16.mxu0 %v1689
  %8573 = vmatmul.mubr.bf16.gmra.mrb[0].mxu0 %v1688
  %v8574 = vpop.f32.mrb[0].mxu0
  %v8575 = vadd.f32 %v8522, %v8574
  %v8576 = vpop.f32.mrb[0].mxu0
  %v8577 = vadd.f32 %v8524, %v8576
  %v8578 = vpop.f32.mrb[0].mxu0
  %v8579 = vadd.f32 %v8526, %v8578
  %v8580 = vpop.f32.mrb[0].mxu0
  %v8581 = vadd.f32 %v8528, %v8580
  %8582 = vdwg.mxu0
  %8583 = vmatprep.subr.bf16.mxu0 %v5885
  %8584 = vmatpush1.bf16.msra.mxu0 %v5884
  %8585 = vmatprep.subr.bf16.mxu0 %v5887
  %8586 = vmatpush1.bf16.msra.mxu0 %v5886
  %8587 = vmatprep.subr.bf16.mxu0 %v5889
  %8588 = vmatpush1.bf16.msra.mxu0 %v5888
  %8589 = vmatprep.subr.bf16.mxu0 %v5891
  %8590 = vmatpush1.bf16.msra.mxu0 %v5890
  %8591 = vmatprep.subr.bf16.mxu0 %v5893
  %8592 = vmatpush1.bf16.msra.mxu0 %v5892
  %8593 = vmatprep.subr.bf16.mxu0 %v5895
  %8594 = vmatpush1.bf16.msra.mxu0 %v5894
  %8595 = vmatprep.subr.bf16.mxu0 %v5897
  %8596 = vmatpush1.bf16.msra.mxu0 %v5896
  %8597 = vmatprep.subr.bf16.mxu0 %v5899
  %8598 = vmatpush1.bf16.msra.mxu0 %v5898
  %8599 = vmatprep.subr.bf16.mxu0 %v5901
  %8600 = vmatpush1.bf16.msra.mxu0 %v5900
  %8601 = vmatprep.subr.bf16.mxu0 %v5903
  %8602 = vmatpush1.bf16.msra.mxu0 %v5902
  %8603 = vmatprep.subr.bf16.mxu0 %v5905
  %8604 = vmatpush1.bf16.msra.mxu0 %v5904
  %8605 = vmatprep.subr.bf16.mxu0 %v5907
  %8606 = vmatpush1.bf16.msra.mxu0 %v5906
  %8607 = vmatprep.subr.bf16.mxu0 %v5909
  %8608 = vmatpush1.bf16.msra.mxu0 %v5908
  %8609 = vmatprep.subr.bf16.mxu0 %v5911
  %8610 = vmatpush1.bf16.msra.mxu0 %v5910
  %8611 = vmatprep.subr.bf16.mxu0 %v5913
  %8612 = vmatpush1.bf16.msra.mxu0 %v5912
  %8613 = vmatprep.subr.bf16.mxu0 %v5915
  %8614 = vmatpush1.bf16.msra.mxu0 %v5914
  %8615 = vmatprep.mubr.bf16.mxu0 %v1627
  %8616 = vmatmul.mubr.bf16.gmra.mrb[0].mxu0 %v1626
  %v8617 = vpop.f32.mrb[0].mxu0
  %v8618 = vadd.f32 %v8565, %v8617
  %v8619 = vpop.f32.mrb[0].mxu0
  %v8620 = vadd.f32 %v8567, %v8619
  %v8621 = vpop.f32.mrb[0].mxu0
  %v8622 = vadd.f32 %v8569, %v8621
  %v8623 = vpop.f32.mrb[0].mxu0
  %v8624 = vadd.f32 %v8571, %v8623
  %8625 = vmatprep.mubr.bf16.mxu0 %v1691
  %8626 = vmatmul.mubr.bf16.gmra.mrb[0].mxu0 %v1690
  %v8627 = vpop.f32.mrb[0].mxu0
  %v8628 = vadd.f32 %v8575, %v8627
  %v8629 = vpop.f32.mrb[0].mxu0
  %v8630 = vadd.f32 %v8577, %v8629
  %v8631 = vpop.f32.mrb[0].mxu0
  %v8632 = vadd.f32 %v8579, %v8631
  %v8633 = vpop.f32.mrb[0].mxu0
  %v8634 = vadd.f32 %v8581, %v8633
  %8635 = vdwg.mxu0
  %vm8636 = vcmp.ge.f32.partialorder %v8618, 0.0
  %vm8637 = vcmp.ge.f32.partialorder %v8620, 0.0
  %vm8638 = vcmp.ge.f32.partialorder %v8622, 0.0
  %vm8639 = vcmp.ge.f32.partialorder %v8624, 0.0
  %vm8640 = vcmp.ge.f32.partialorder %v8628, 0.0
  %vm8641 = vcmp.ge.f32.partialorder %v8630, 0.0
  %vm8642 = vcmp.ge.f32.partialorder %v8632, 0.0
  %vm8643 = vcmp.ge.f32.partialorder %v8634, 0.0
  %v8644 = vmul.f32 %v8618, 0.2
  %v8645 = vmul.f32 %v8620, 0.2
  %v8646 = vmul.f32 %v8622, 0.2
  %v8647 = vmul.f32 %v8624, 0.2
  %v8648 = vmul.f32 %v8628, 0.2
  %v8649 = vmul.f32 %v8630, 0.2
  %v8650 = vmul.f32 %v8632, 0.2
  %v8651 = vmul.f32 %v8634, 0.2
  %v8652 = vsel %vm8636, %v8618, %v8644
  %v8653 = vsel %vm8637, %v8620, %v8645
  %v8654 = vsel %vm8638, %v8622, %v8646
  %v8655 = vsel %vm8639, %v8624, %v8647
  %v8656 = vsel %vm8640, %v8628, %v8648
  %v8657 = vsel %vm8641, %v8630, %v8649
  %v8658 = vsel %vm8642, %v8632, %v8650
  %v8659 = vsel %vm8643, %v8634, %v8651
  %8660 = vst [vmem:[%s3] sm:$0xff] %v8652
  %8661 = vst [vmem:[%s3 + $0x8] sm:$0xff] %v8653
  %8662 = vst [vmem:[%s3 + $0x10] sm:$0xff] %v8654
  %8663 = vst [vmem:[%s3 + $0x18] sm:$0xff] %v8655
  %8664 = vst [vmem:[%s3 + $0x20] sm:$0xff] %v8656
  %8665 = vst [vmem:[%s3 + $0x28] sm:$0xff] %v8657
  %8666 = vst [vmem:[%s3 + $0x30] sm:$0xff] %v8658
  %8667 = vst [vmem:[%s3 + $0x38] sm:$0xff] %v8659
  %v8668 = vlaneseq
  %v8669 = vshrl.u32 %v8668, 7
  %v8670 = vadd.s32 %v8669, 8
  %v8671 = vadd.s32 %v8669, 16
  %v8672 = vadd.s32 %v8669, 24
  %s8673 = smul.u32 0, 32
  %v8674 = vstv %s8673
  %v8675 = vadd.s32 %v8669, %v8674
  %v8676 = vadd.s32 %v8670, %v8674
  %v8677 = vadd.s32 %v8671, %v8674
  %v8678 = vadd.s32 %v8672, %v8674
  %vm8679 = vcmp.lt.s32.totalorder %v8675, 32
  %vm8680 = vcmp.lt.s32.totalorder %v8676, 32
  %vm8681 = vcmp.lt.s32.totalorder %v8677, 32
  %vm8682 = vcmp.lt.s32.totalorder %v8678, 32
  %v8683 = vsel %vm8679, 1, 0
  %v8684 = vsel %vm8680, 1, 0
  %v8685 = vsel %vm8681, 1, 0
  %v8686 = vsel %vm8682, 1, 0
  %v8687 = vcvt.s32.f32 %v8683
  %v8688 = vcvt.s32.f32 %v8684
  %v8689 = vcvt.s32.f32 %v8685
  %v8690 = vcvt.s32.f32 %v8686
  %v8691 = vmul.f32 %v8652, %v8687
  %v8692 = vmul.f32 %v8653, %v8687
  %v8693 = vmul.f32 %v8654, %v8688
  %v8694 = vmul.f32 %v8655, %v8688
  %v8695 = vmul.f32 %v8656, %v8689
  %v8696 = vmul.f32 %v8657, %v8689
  %v8697 = vmul.f32 %v8658, %v8690
  %v8698 = vmul.f32 %v8659, %v8690
  %v8699 = vadd.f32 %v8691, %v8693
  %v8700 = vadd.f32 %v8699, %v8695
  %v8701 = vadd.f32 %v8700, %v8697
  %v8702 = vrot.slane %v8701, 4
  %v8703 = vadd.f32 %v8701, %v8702
  %v8704 = vrot.slane %v8703, 2
  %v8705 = vadd.f32 %v8703, %v8704
  %v8706 = vrot.slane %v8705, 1
  %v8707 = vadd.f32 %v8705, %v8706
  %v8708 = vadd.f32 %v8692, %v8694
  %v8709 = vadd.f32 %v8708, %v8696
  %v8710 = vadd.f32 %v8709, %v8698
  %v8711 = vrot.slane %v8710, 4
  %v8712 = vadd.f32 %v8710, %v8711
  %v8713 = vrot.slane %v8712, 2
  %v8714 = vadd.f32 %v8712, %v8713
  %v8715 = vrot.slane %v8714, 1
  %v8716 = vadd.f32 %v8714, %v8715
  %v8717 = vmul.f32 %v8691, %v8691
  %v8718 = vmul.f32 %v8692, %v8692
  %v8719 = vmul.f32 %v8693, %v8693
  %v8720 = vmul.f32 %v8694, %v8694
  %v8721 = vmul.f32 %v8695, %v8695
  %v8722 = vmul.f32 %v8696, %v8696
  %v8723 = vmul.f32 %v8697, %v8697
  %v8724 = vmul.f32 %v8698, %v8698
  %v8725 = vadd.f32 %v8717, %v8719
  %v8726 = vadd.f32 %v8725, %v8721
  %v8727 = vadd.f32 %v8726, %v8723
  %v8728 = vrot.slane %v8727, 4
  %v8729 = vadd.f32 %v8727, %v8728
  %v8730 = vrot.slane %v8729, 2
  %v8731 = vadd.f32 %v8729, %v8730
  %v8732 = vrot.slane %v8731, 1
  %v8733 = vadd.f32 %v8731, %v8732
  %v8734 = vadd.f32 %v8718, %v8720
  %v8735 = vadd.f32 %v8734, %v8722
  %v8736 = vadd.f32 %v8735, %v8724
  %v8737 = vrot.slane %v8736, 4
  %v8738 = vadd.f32 %v8736, %v8737
  %v8739 = vrot.slane %v8738, 2
  %v8740 = vadd.f32 %v8738, %v8739
  %v8741 = vrot.slane %v8740, 1
  %v8742 = vadd.f32 %v8740, %v8741
  %vm8743 = vcmask 1040384
  %v8744 = vsel %vm8743, %v8707, %v8733
  %v8745 = vsel %vm8743, %v8716, %v8742
  %v8748 = vcombine.low %v8744, %v8745
  %v8750 = vunpack.c.l.s4 1983009808
  %v8751 = vunpack.c.0.s8 %v8750
  %v8752 = vlaneseq
  %v8753 = vshrl.u32 %v8752, 7
  %v8754 = vsub.s32 %v8751, %v8753
  %v8755 = vrot.slane %v8748, %v8754
  %8757 = vst [vmem:[%s4] sm:$0xf] %v8755
  // Predicated region
  $region14: #{da_feature_discriminator_v4.8} parent=0 // pred_check
    _
  $region15: #{da_feature_discriminator_v4.8} parent=0 // pred_check_branch
    %8759 = sbr.rel (0) target = $region17
  $region16: #{da_feature_discriminator_v4.8} parent=0 // pred_region
    _
  $region17: #{da_feature_discriminator_v4.8} parent=0 // pred_fallthru
    _
  // Predicated region
  $region18: #{da_feature_discriminator_v4.8} parent=0 // pred_check
    _
  $region19: #{da_feature_discriminator_v4.8} parent=0 // pred_check_branch
    %8761 = sbr.rel (0) target = $region21
  $region20: #{da_feature_discriminator_v4.8} parent=0 // pred_region
    _
  $region21: #{da_feature_discriminator_v4.8} parent=0 // pred_fallthru
    _
  // Predicated region
  $region22: #{da_feature_discriminator_v4.8} parent=0 // pred_check
    _
  $region23: #{da_feature_discriminator_v4.8} parent=0 // pred_check_branch
    %8763 = sbr.rel (0) target = $region25
  $region24: #{da_feature_discriminator_v4.8} parent=0 // pred_region
    _
  $region25: #{da_feature_discriminator_v4.8} parent=0 // pred_fallthru
    _
  // Predicated region
  $region26: #{da_feature_discriminator_v4.8} parent=0 // pred_check
    _
  $region27: #{da_feature_discriminator_v4.8} parent=0 // pred_check_branch
    %8765 = sbr.rel (0) target = $region29
  $region28: #{da_feature_discriminator_v4.8} parent=0 // pred_region
    _
  $region29: #{da_feature_discriminator_v4.8} parent=0 // pred_fallthru
    _

</llo_original>
